<compile_context>
chip_gen: v6e
topology: v6e:2x2x1
jax: 0.10.0
libtpu: 0.0.40
codegen_flags: <defaults>
</compile_context>

<pallas_src>
import functools
import math

import jax
import jax.numpy as jnp
from jax.experimental import pallas as pl
from jax.experimental.pallas import tpu as pltpu

# ----------------------------- configuration -------------------------------
B = 2            # batch
IMG_C = 3        # image channels
IMG_HW = 32      # image spatial size
STRIDE = 4       # synthetic backbone stride
OUT_CH = 16      # backbone.out_ch
D_MODEL = 32     # d_model (GroupNorm(32, 32) -> group size 1)
DIM_FF = 64      # transformer FFN hidden dim
N_QUERY = 8      # n_query
N_CLS = 2        # n_cls
N_DEC = 2        # decoder layers (simplified transformer)
FH = IMG_HW // STRIDE
FW = IMG_HW // STRIDE
HW = FH * FW
OUT_LANES = 8    # merged output slab: [logits(N_CLS) | boxes(4) | pad]
NEG_INF = -1e9

# --------------------- packed-weight name -> index tables -------------------
DD_NAMES = (["enc_q_w", "enc_k_w", "enc_v_w", "enc_o_w"]
            + [f"dec{l}_{n}_w" for l in range(N_DEC)
               for n in ("sq", "sk", "sv", "so", "cq", "ck", "cv", "co")]
            + ["box_w1", "box_w2"])                                   # (N, D, D)
FF1_NAMES = ["enc_ff1_w"] + [f"dec{l}_ff1_w" for l in range(N_DEC)]   # (N, D, FF)
FF2_NAMES = ["enc_ff2_w"] + [f"dec{l}_ff2_w" for l in range(N_DEC)]   # (N, FF, D)
BD_NAMES = (["proj_b", "gn_g", "gn_b",
             "enc_q_b", "enc_k_b", "enc_v_b", "enc_o_b",
             "enc_ln1_g", "enc_ln1_b", "enc_ff2_b", "enc_ln2_g", "enc_ln2_b"]
            + [f"dec{l}_{n}" for l in range(N_DEC)
               for n in ("pos_b", "sq_b", "sk_b", "sv_b", "so_b", "ln1_g", "ln1_b",
                         "cq_b", "ck_b", "cv_b", "co_b", "ln2_g", "ln2_b",
                         "ff2_b", "ln3_g", "ln3_b")]
            + ["box_b1", "box_b2"])                                   # (N, D) 2-D
BFF1_NAMES = ["enc_ff1_b"] + [f"dec{l}_ff1_b" for l in range(N_DEC)]  # (N, FF) 2-D

DD_IDX = {n: i for i, n in enumerate(DD_NAMES)}
FF1_IDX = {n: i for i, n in enumerate(FF1_NAMES)}
FF2_IDX = {n: i for i, n in enumerate(FF2_NAMES)}
BD_IDX = {n: i for i, n in enumerate(BD_NAMES)}
BFF1_IDX = {n: i for i, n in enumerate(BFF1_NAMES)}


# ------------------------------ small helpers ------------------------------
def inverse_sigmoid(x, eps=1e-3):
    x = jnp.clip(x, 0.0, 1.0)
    x1 = jnp.maximum(x, eps)
    x2 = jnp.maximum(1.0 - x, eps)
    return jnp.log(x1 / x2)


def sine_pos_embedding(mask_ds, d_model, temperature=10000.0):
    """DETR sine positional embedding from a (B, H, W) padding mask (1 = pad)."""
    not_mask = 1.0 - mask_ds
    y_embed = jnp.cumsum(not_mask, axis=1)
    x_embed = jnp.cumsum(not_mask, axis=2)
    eps = 1e-6
    scale = 2.0 * math.pi
    y_embed = y_embed / (y_embed[:, -1:, :] + eps) * scale
    x_embed = x_embed / (x_embed[:, :, -1:] + eps) * scale
    num_pos_feats = d_model // 2
    dim_t = jnp.arange(num_pos_feats, dtype=jnp.float32)
    dim_t = temperature ** (2.0 * jnp.floor(dim_t / 2.0) / num_pos_feats)
    pos_x = x_embed[..., None] / dim_t
    pos_y = y_embed[..., None] / dim_t
    pos_x = jnp.stack([jnp.sin(pos_x[..., 0::2]), jnp.cos(pos_x[..., 1::2])],
                      axis=4).reshape(*pos_x.shape[:3], -1)
    pos_y = jnp.stack([jnp.sin(pos_y[..., 0::2]), jnp.cos(pos_y[..., 1::2])],
                      axis=4).reshape(*pos_y.shape[:3], -1)
    pos = jnp.concatenate([pos_y, pos_x], axis=3)          # (B, H, W, d_model)
    return pos.reshape(pos.shape[0], -1, d_model)           # (B, HW, d_model)


# ------------------------------ the fused kernel -----------------------------
def _co_detr_kernel(nb,
                    tok_ref, pos_ref, enc_bias_ref, cross_bias_ref, self_bias_ref,
                    anchor_ref, bb_w_ref, bb_b_ref, proj_w_ref,
                    w_dd_ref, w_ff1_ref, w_ff2_ref, w_pos_ref,
                    b_d_ref, b_ff1_ref,
                    w_cls_ref, b_cls_ref, w_box3_ref, b_box3_ref,
                    out_ref):
    D = D_MODEL
    scale = 1.0 / math.sqrt(D)

    # --- packed-weight accessors (static indices / static slices only) ---
    def dd(name):
        return w_dd_ref[DD_IDX[name]]              # (D, D)

    def ff1w(name):
        return w_ff1_ref[FF1_IDX[name]]            # (D, FF)

    def ff2w(name):
        return w_ff2_ref[FF2_IDX[name]]            # (FF, D)

    def bd(name):
        i = BD_IDX[name]
        return b_d_ref[i:i + 1, :]                 # (1, D)

    def bff1(name):
        i = BFF1_IDX[name]
        return b_ff1_ref[i:i + 1, :]               # (1, FF)

    def mm(x, w, b):
        return jnp.dot(x, w, preferred_element_type=jnp.float32) + b

    def layer_norm(x, gname, bname):
        m = jnp.mean(x, axis=-1, keepdims=True)
        v = jnp.mean((x - m) ** 2, axis=-1, keepdims=True)
        return (x - m) * jax.lax.rsqrt(v + 1e-5) * bd(gname) + bd(bname)

    def softmax(s):
        s = s - jnp.max(s, axis=-1, keepdims=True)
        p = jnp.exp(s)
        return p * pl.reciprocal(jnp.sum(p, axis=-1, keepdims=True), approx=True)

    def attn(q, k, v, bias):
        # bias already encodes key padding + block-diagonal batch structure.
        s = jax.lax.dot_general(q, k, (((1,), (1,)), ((), ())),
                                preferred_element_type=jnp.float32) * scale + bias
        return jnp.dot(softmax(s), v, preferred_element_type=jnp.float32)

    def box_mlp(h):  # shared box_embed: 3-layer MLP (relu, relu, linear)
        z = jnp.maximum(mm(h, dd("box_w1"), bd("box_b1")), 0.0)
        z = jnp.maximum(mm(z, dd("box_w2"), bd("box_b2")), 0.0)
        return mm(z, w_box3_ref[...], b_box3_ref[...])

    def inv_sigmoid(x, eps=1e-3):
        x = jnp.clip(x, 0.0, 1.0)
        return jnp.log(jnp.maximum(x, eps) / jnp.maximum(1.0 - x, eps))

    # --- per-grid-step inputs (nb batches folded into the row axis) ---
    x = tok_ref[0]                 # (nb*HW, IMG_C)
    pos = pos_ref[0]               # (nb*HW, D)
    enc_bias = enc_bias_ref[0]     # (nb*HW, nb*HW)
    cross_bias = cross_bias_ref[0]  # (nb*Nq, nb*HW)
    self_bias = self_bias_ref[...]  # (nb*Nq, nb*Nq)

    # --- stem: backbone 1x1 conv + relu, then input_proj Conv1x1 + GroupNorm(32, D) ---
    feat = jnp.maximum(mm(x, bb_w_ref[...], bb_b_ref[...]), 0.0)     # (nb*HW, OUT_CH)
    y = mm(feat, proj_w_ref[...], bd("proj_b"))                      # (nb*HW, D)
    # GroupNorm(32, 32): group size 1 -> per-(sample, channel) normalization over HW.
    # Per-sample stats via static sublane-aligned row slices (HW = 64, multiple of 8).
    segs = []
    for b in range(nb):
        yb = y[b * HW:(b + 1) * HW, :]
        mu = jnp.mean(yb, axis=0, keepdims=True)
        var = jnp.mean((yb - mu) ** 2, axis=0, keepdims=True)
        segs.append((yb - mu) * jax.lax.rsqrt(var + 1e-5))
    yn = segs[0] if nb == 1 else jnp.concatenate(segs, axis=0)
    src = yn * bd("gn_g") + bd("gn_b")

    # --- encoder layer (separate Q/K matmuls: no lane slicing) ---
    sp = src + pos
    q = mm(sp, dd("enc_q_w"), bd("enc_q_b"))
    k = mm(sp, dd("enc_k_w"), bd("enc_k_b"))
    v = mm(src, dd("enc_v_w"), bd("enc_v_b"))
    a = mm(attn(q, k, v, enc_bias), dd("enc_o_w"), bd("enc_o_b"))
    src = layer_norm(src + a, "enc_ln1_g", "enc_ln1_b")
    h = jnp.maximum(mm(src, ff1w("enc_ff1_w"), bff1("enc_ff1_b")), 0.0)
    h = mm(h, ff2w("enc_ff2_w"), bd("enc_ff2_b"))
    memory = layer_norm(src + h, "enc_ln2_g", "enc_ln2_b")
    mem_pos = memory + pos         # hoisted: shared by all decoder layers

    # --- cross-attention K/V: depend only on memory, hoisted off the serial tgt chain ---
    ck_all = [mm(mem_pos, dd(f"dec{l}_ck_w"), bd(f"dec{l}_ck_b")) for l in range(N_DEC)]
    cv_all = [mm(memory, dd(f"dec{l}_cv_w"), bd(f"dec{l}_cv_b")) for l in range(N_DEC)]

    # --- decoder (N_DEC layers, iterative box refinement) ---
    tgt = jnp.zeros((nb * N_QUERY, D), jnp.float32)
    ref_logit = anchor_ref[...]                                      # (nb*Nq, 4)

    for l in range(N_DEC):
        pref = f"dec{l}_"
        qpos = mm(ref_logit, w_pos_ref[l], bd(pref + "pos_b"))       # (nb*Nq, D)

        # self-attention (block-diagonal bias keeps batches separate)
        tq = tgt + qpos
        sq = mm(tq, dd(pref + "sq_w"), bd(pref + "sq_b"))
        sk = mm(tq, dd(pref + "sk_w"), bd(pref + "sk_b"))
        sv = mm(tgt, dd(pref + "sv_w"), bd(pref + "sv_b"))
        a = mm(attn(sq, sk, sv, self_bias), dd(pref + "so_w"), bd(pref + "so_b"))
        tgt = layer_norm(tgt + a, pref + "ln1_g", pref + "ln1_b")

        # cross-attention with encoder memory (K/V precomputed above)
        cq = mm(tgt + qpos, dd(pref + "cq_w"), bd(pref + "cq_b"))
        a = mm(attn(cq, ck_all[l], cv_all[l], cross_bias),
               dd(pref + "co_w"), bd(pref + "co_b"))
        tgt = layer_norm(tgt + a, pref + "ln2_g", pref + "ln2_b")

        # FFN
        h = jnp.maximum(mm(tgt, ff1w(pref + "ff1_w"), bff1(pref + "ff1_b")), 0.0)
        h = mm(h, ff2w(pref + "ff2_w"), bd(pref + "ff2_b"))
        tgt = layer_norm(tgt + h, pref + "ln3_g", pref + "ln3_b")

        # iterative update with the shared box_embed MLP (iter_update=True).
        # The last layer's update is never consumed downstream, so skip it.
        if l < N_DEC - 1:
            ref_logit = ref_logit + box_mlp(tgt)

    # --- heads (eval path): cls logits + boxes = sigmoid(inv_sigmoid(anchor) + offset) ---
    anchor_last = jax.nn.sigmoid(ref_logit)        # anchors[-1] of the transformer
    off = box_mlp(tgt)
    boxes = jax.nn.sigmoid(inv_sigmoid(anchor_last) + off)           # (nb*Nq, 4)
    logits = mm(tgt, w_cls_ref[...], b_cls_ref[...])                 # (nb*Nq, N_CLS)

    # single lane-padded output slab, written once
    parts = [logits, boxes]
    extra = OUT_LANES - N_CLS - 4
    if extra > 0:
        parts.append(jnp.zeros((nb * N_QUERY, extra), jnp.float32))
    out_ref[0] = jnp.concatenate(parts, axis=-1)


# ------------------------------- forward wrapper -----------------------------
def _batches_per_call():
    """Layout choice: fold batch on single-TC chips; batch-parallel grid on v7x."""
    try:
        kind = jax.devices()[0].device_kind.lower()
    except Exception:
        kind = ""
    if "v7" in kind and B % 2 == 0:
        return 1          # v7x: 2 TCs/chip -> keep batch on a "parallel" grid axis
    return B              # v5e/v6e: 1 TC -> fold batch into the row/sublane axis


def co_detr_forward(packed, img, mask):
    """Eval-mode (self.training == False) forward pass of Co_DETR, fused in one kernel."""
    nb = _batches_per_call()
    g = B // nb

    # plain-JAX glue: backbone spatial subsample -> tokens, mask downsample, sine pos embed
    x = img[:, :, ::STRIDE, ::STRIDE]                                 # NCHW (B, 3, FH, FW)
    tokens = jnp.transpose(x, (0, 2, 3, 1)).reshape(g, nb * HW, IMG_C)
    mask_ds = mask[:, ::STRIDE, ::STRIDE]                             # nearest, (B, FH, FW)
    pos = sine_pos_embedding(mask_ds, D_MODEL).reshape(g, nb * HW, D_MODEL)

    # additive attention biases (block-diagonal batch structure + key padding),
    # precomputed once so attn() in the kernel is a plain add.
    key_pad = mask_ds.reshape(B * HW)                                 # 1.0 = padded key
    tok_bid = jnp.repeat(jnp.arange(B), HW)
    qry_bid = jnp.repeat(jnp.arange(B), N_QUERY)
    enc_full = jnp.where((tok_bid[:, None] == tok_bid[None, :]) & (key_pad[None, :] < 0.5),
                         0.0, NEG_INF).astype(jnp.float32)            # (B*HW, B*HW)
    cross_full = jnp.where((qry_bid[:, None] == tok_bid[None, :]) & (key_pad[None, :] < 0.5),
                           0.0, NEG_INF).astype(jnp.float32)          # (B*Nq, B*HW)
    self_full = jnp.where(qry_bid[:, None] == qry_bid[None, :],
                          0.0, NEG_INF).astype(jnp.float32)           # (B*Nq, B*Nq)

    enc_bias = jnp.stack([enc_full[i * nb * HW:(i + 1) * nb * HW,
                                   i * nb * HW:(i + 1) * nb * HW] for i in range(g)])
    cross_bias = jnp.stack([cross_full[i * nb * N_QUERY:(i + 1) * nb * N_QUERY,
                                       i * nb * HW:(i + 1) * nb * HW] for i in range(g)])
    self_bias = self_full[:nb * N_QUERY, :nb * N_QUERY]               # same for all steps
    anchor = jnp.tile(packed["anchor"], (nb, 1))                      # (nb*Nq, 4)

    def batch_spec(shape):
        nd = len(shape)

        def imap(i):
            return (i,) + (0,) * (nd - 1)
        return pl.BlockSpec((1,) + tuple(shape[1:]), imap)

    def const_spec(shape):
        nd = len(shape)

        def imap(i):
            return (0,) * nd
        return pl.BlockSpec(tuple(shape), imap)

    in_arrays = [tokens, pos, enc_bias, cross_bias, self_bias, anchor,
                 packed["bb_w"], packed["bb_b"], packed["proj_w"],
                 packed["w_dd"], packed["w_ff1"], packed["w_ff2"], packed["w_pos"],
                 packed["b_d"], packed["b_ff1"],
                 packed["w_cls"], packed["b_cls"], packed["w_box3"], packed["b_box3"]]
    in_specs = ([batch_spec(a.shape) for a in in_arrays[:4]]
                + [const_spec(a.shape) for a in in_arrays[4:]])

    # TODO(synk): training branch (make_cdn_query / CDN noised queries, two-stage heads,
    #             aux heads, split_outputs) not implemented -- eval path only.
    out = pl.pallas_call(
        functools.partial(_co_detr_kernel, nb),
        grid=(g,),
        in_specs=in_specs,
        out_specs=pl.BlockSpec((1, nb * N_QUERY, OUT_LANES), lambda i: (i, 0, 0)),
        out_shape=jax.ShapeDtypeStruct((g, nb * N_QUERY, OUT_LANES), jnp.float32),
        compiler_params=pltpu.CompilerParams(
            dimension_semantics=("parallel",)),   # maps the (possibly size-1) grid across TCs
    )(*in_arrays)

    out = out.reshape(B, N_QUERY, OUT_LANES)
    return {"pred_logits": out[..., :N_CLS],
            "pred_boxes": out[..., N_CLS:N_CLS + 4]}


# ----------------------------- parameter creation ----------------------------
def make_params(key):
    keys = jax.random.split(key, 64)
    kit = iter(list(keys))

    def lin(din, dout, std=0.02):
        w = jax.random.normal(next(kit), (din, dout), jnp.float32) * std
        b = jnp.zeros((dout,), jnp.float32)
        return w, b

    p = {}
    # synthetic backbone (1x1 conv 3 -> OUT_CH)
    p["bb_w"], p["bb_b"] = lin(IMG_C, OUT_CH)
    # input_proj: Conv2d(OUT_CH, D_MODEL, 1) + GroupNorm(32, D_MODEL)
    p["proj_w"], p["proj_b"] = lin(OUT_CH, D_MODEL)
    p["gn_g"] = jnp.ones((D_MODEL,), jnp.float32)
    p["gn_b"] = jnp.zeros((D_MODEL,), jnp.float32)
    # encoder layer
    for name in ["enc_q", "enc_k", "enc_v", "enc_o"]:
        p[name + "_w"], p[name + "_b"] = lin(D_MODEL, D_MODEL)
    p["enc_ff1_w"], p["enc_ff1_b"] = lin(D_MODEL, DIM_FF)
    p["enc_ff2_w"], p["enc_ff2_b"] = lin(DIM_FF, D_MODEL)
    for ln in ["enc_ln1", "enc_ln2"]:
        p[ln + "_g"] = jnp.ones((D_MODEL,), jnp.float32)
        p[ln + "_b"] = jnp.zeros((D_MODEL,), jnp.float32)
    # decoder layers
    for l in range(N_DEC):
        pref = f"dec{l}_"
        p[pref + "pos_w"], p[pref + "pos_b"] = lin(4, D_MODEL)
        for name in ["sq", "sk", "sv", "so", "cq", "ck", "cv", "co"]:
            p[pref + name + "_w"], p[pref + name + "_b"] = lin(D_MODEL, D_MODEL)
        p[pref + "ff1_w"], p[pref + "ff1_b"] = lin(D_MODEL, DIM_FF)
        p[pref + "ff2_w"], p[pref + "ff2_b"] = lin(DIM_FF, D_MODEL)
        for ln in ["ln1", "ln2", "ln3"]:
            p[pref + ln + "_g"] = jnp.ones((D_MODEL,), jnp.float32)
            p[pref + ln + "_b"] = jnp.zeros((D_MODEL,), jnp.float32)
    # classification head: bias = -log((1 - 0.01) / 0.01)
    p["cls_w"], _ = lin(D_MODEL, N_CLS)
    bias_value = -math.log((1.0 - 0.01) / 0.01)
    p["cls_b"] = jnp.full((N_CLS,), bias_value, jnp.float32)
    # box_embed MLP (last layer weight/bias = 0 per nn.init.constant_)
    p["box_w1"], p["box_b1"] = lin(D_MODEL, D_MODEL)
    p["box_w2"], p["box_b2"] = lin(D_MODEL, D_MODEL)
    p["box_w3"] = jnp.zeros((D_MODEL, 4), jnp.float32)
    p["box_b3"] = jnp.zeros((4,), jnp.float32)
    # anchor_query: uniform xy [0,1), wh [0,0.5), stored in inverse-sigmoid space
    xy = jax.random.uniform(next(kit), (N_QUERY, 2), jnp.float32, 0.0, 1.0)
    wh = jax.random.uniform(next(kit), (N_QUERY, 2), jnp.float32, 0.0, 0.5)
    p["anchor_query"] = inverse_sigmoid(jnp.concatenate([xy, wh], axis=1))
    # label_enc Embedding(n_cls + 1, d_model - 1): only used by the CDN training path.
    p["label_enc"] = jax.random.normal(next(kit), (N_CLS + 1, D_MODEL - 1), jnp.float32) * 0.02
    return p


def pack_params(p):
    """Pack the per-name parameters into a few stacked VMEM-resident arrays."""
    packed = {
        "bb_w": p["bb_w"],                                        # (IMG_C, OUT_CH)
        "bb_b": p["bb_b"].reshape(1, OUT_CH),                     # (1, OUT_CH)
        "proj_w": p["proj_w"],                                    # (OUT_CH, D)
        "w_dd": jnp.stack([p[n] for n in DD_NAMES]),              # (22, D, D)
        "w_ff1": jnp.stack([p[n] for n in FF1_NAMES]),            # (3, D, FF)
        "w_ff2": jnp.stack([p[n] for n in FF2_NAMES]),            # (3, FF, D)
        "w_pos": jnp.stack([p[f"dec{l}_pos_w"] for l in range(N_DEC)]),   # (N_DEC, 4, D)
        "b_d": jnp.stack([p[n].reshape(D_MODEL) for n in BD_NAMES]),      # (46, D) 2-D
        "b_ff1": jnp.stack([p[n].reshape(DIM_FF) for n in BFF1_NAMES]),   # (3, FF) 2-D
        "w_cls": p["cls_w"],                                      # (D, N_CLS)
        "b_cls": p["cls_b"].reshape(1, N_CLS),                    # (1, N_CLS)
        "w_box3": p["box_w3"],                                    # (D, 4)
        "b_box3": p["box_b3"].reshape(1, 4),                      # (1, 4)
        "anchor": p["anchor_query"],                              # (N_QUERY, 4)
    }
    return packed


# ------------------------------------ main -----------------------------------
if __name__ == "__main__":
    key = jax.random.PRNGKey(0)
    k_param, k_img = jax.random.split(key)

    params = make_params(k_param)
    packed = pack_params(params)

    img = jax.random.normal(k_img, (B, IMG_C, IMG_HW, IMG_HW), jnp.float32)  # NCHW
    mask = jnp.zeros((B, IMG_HW, IMG_HW), jnp.float32)
    # pad the right quarter of the second image (1.0 = padded), like DETR masks
    mask = mask.at[1, :, 24:].set(1.0)

    fwd = jax.jit(co_detr_forward)
    outputs = fwd(packed, img, mask)
    jax.block_until_ready(outputs)

    assert outputs["pred_logits"].shape == (B, N_QUERY, N_CLS)
    assert outputs["pred_boxes"].shape == (B, N_QUERY, 4)
    assert bool(jnp.all(jnp.isfinite(outputs["pred_logits"])))
    assert bool(jnp.all(jnp.isfinite(outputs["pred_boxes"])))
    print("KERNEL_OK")
</pallas_src>

<mosaic_0001>
module attributes {stable_mosaic.version = 11 : i64} {
  func.func @_co_detr_kernel(%arg0: i32, %arg1: memref<1x128x3xf32, #tpu.memory_space<vmem>>, %arg2: memref<1x128x32xf32, #tpu.memory_space<vmem>>, %arg3: memref<1x128x128xf32, #tpu.memory_space<vmem>>, %arg4: memref<1x16x128xf32, #tpu.memory_space<vmem>>, %arg5: memref<16x16xf32, #tpu.memory_space<vmem>>, %arg6: memref<16x4xf32, #tpu.memory_space<vmem>>, %arg7: memref<3x16xf32, #tpu.memory_space<vmem>>, %arg8: memref<1x16xf32, #tpu.memory_space<vmem>>, %arg9: memref<16x32xf32, #tpu.memory_space<vmem>>, %arg10: memref<22x32x32xf32, #tpu.memory_space<vmem>>, %arg11: memref<3x32x64xf32, #tpu.memory_space<vmem>>, %arg12: memref<3x64x32xf32, #tpu.memory_space<vmem>>, %arg13: memref<2x4x32xf32, #tpu.memory_space<vmem>>, %arg14: memref<46x32xf32, #tpu.memory_space<vmem>>, %arg15: memref<3x64xf32, #tpu.memory_space<vmem>>, %arg16: memref<32x2xf32, #tpu.memory_space<vmem>>, %arg17: memref<1x2xf32, #tpu.memory_space<vmem>>, %arg18: memref<32x4xf32, #tpu.memory_space<vmem>>, %arg19: memref<1x4xf32, #tpu.memory_space<vmem>>, %arg20: memref<1x16x8xf32, #tpu.memory_space<vmem>>) attributes {dimension_semantics = [#tpu.dimension_semantics<parallel>], iteration_bounds = array<i64: 1>, scalar_prefetch = 0 : i64, scratch_operands = 0 : i64, tpu.core_type = #tpu.core_type<tc>, window_params = [{transform_indices = @transform_0, window_bounds = array<i64: 1, 128, 3>}, {transform_indices = @transform_1, window_bounds = array<i64: 1, 128, 32>}, {transform_indices = @transform_2, window_bounds = array<i64: 1, 128, 128>}, {transform_indices = @transform_3, window_bounds = array<i64: 1, 16, 128>}, {pipeline_mode = #tpu.pipeline_mode<synchronous>, transform_indices = @transform_4, window_bounds = array<i64: 16, 16>}, {pipeline_mode = #tpu.pipeline_mode<synchronous>, transform_indices = @transform_5, window_bounds = array<i64: 16, 4>}, {pipeline_mode = #tpu.pipeline_mode<synchronous>, transform_indices = @transform_6, window_bounds = array<i64: 3, 16>}, {pipeline_mode = #tpu.pipeline_mode<synchronous>, transform_indices = @transform_7, window_bounds = array<i64: 1, 16>}, {pipeline_mode = #tpu.pipeline_mode<synchronous>, transform_indices = @transform_8, window_bounds = array<i64: 16, 32>}, {pipeline_mode = #tpu.pipeline_mode<synchronous>, transform_indices = @transform_9, window_bounds = array<i64: 22, 32, 32>}, {pipeline_mode = #tpu.pipeline_mode<synchronous>, transform_indices = @transform_10, window_bounds = array<i64: 3, 32, 64>}, {pipeline_mode = #tpu.pipeline_mode<synchronous>, transform_indices = @transform_11, window_bounds = array<i64: 3, 64, 32>}, {pipeline_mode = #tpu.pipeline_mode<synchronous>, transform_indices = @transform_12, window_bounds = array<i64: 2, 4, 32>}, {pipeline_mode = #tpu.pipeline_mode<synchronous>, transform_indices = @transform_13, window_bounds = array<i64: 46, 32>}, {pipeline_mode = #tpu.pipeline_mode<synchronous>, transform_indices = @transform_14, window_bounds = array<i64: 3, 64>}, {pipeline_mode = #tpu.pipeline_mode<synchronous>, transform_indices = @transform_15, window_bounds = array<i64: 32, 2>}, {pipeline_mode = #tpu.pipeline_mode<synchronous>, transform_indices = @transform_16, window_bounds = array<i64: 1, 2>}, {pipeline_mode = #tpu.pipeline_mode<synchronous>, transform_indices = @transform_17, window_bounds = array<i64: 32, 4>}, {pipeline_mode = #tpu.pipeline_mode<synchronous>, transform_indices = @transform_18, window_bounds = array<i64: 1, 4>}, {transform_indices = @transform_19, window_bounds = array<i64: 1, 16, 8>}]} {
    %c0 = arith.constant 0 : index
    %c0_0 = arith.constant 0 : index
    %c0_1 = arith.constant 0 : index
    %0 = vector.load %arg1[%c0, %c0_0, %c0_1] : memref<1x128x3xf32, #tpu.memory_space<vmem>>, vector<1x128x3xf32>
    %1 = vector.shape_cast %0 : vector<1x128x3xf32> to vector<128x3xf32>
    %c0_2 = arith.constant 0 : index
    %c0_3 = arith.constant 0 : index
    %c0_4 = arith.constant 0 : index
    %2 = vector.load %arg2[%c0_2, %c0_3, %c0_4] : memref<1x128x32xf32, #tpu.memory_space<vmem>>, vector<1x128x32xf32>
    %3 = vector.shape_cast %2 : vector<1x128x32xf32> to vector<128x32xf32>
    %c0_5 = arith.constant 0 : index
    %c0_6 = arith.constant 0 : index
    %c0_7 = arith.constant 0 : index
    %4 = vector.load %arg3[%c0_5, %c0_6, %c0_7] : memref<1x128x128xf32, #tpu.memory_space<vmem>>, vector<1x128x128xf32>
    %5 = vector.shape_cast %4 : vector<1x128x128xf32> to vector<128x128xf32>
    %c0_8 = arith.constant 0 : index
    %c0_9 = arith.constant 0 : index
    %c0_10 = arith.constant 0 : index
    %6 = vector.load %arg4[%c0_8, %c0_9, %c0_10] : memref<1x16x128xf32, #tpu.memory_space<vmem>>, vector<1x16x128xf32>
    %7 = vector.shape_cast %6 : vector<1x16x128xf32> to vector<16x128xf32>
    %c0_11 = arith.constant 0 : index
    %c0_12 = arith.constant 0 : index
    %8 = vector.load %arg5[%c0_11, %c0_12] : memref<16x16xf32, #tpu.memory_space<vmem>>, vector<16x16xf32>
    %c0_13 = arith.constant 0 : index
    %c0_14 = arith.constant 0 : index
    %9 = vector.load %arg7[%c0_13, %c0_14] : memref<3x16xf32, #tpu.memory_space<vmem>>, vector<3x16xf32>
    %c0_15 = arith.constant 0 : index
    %c0_16 = arith.constant 0 : index
    %10 = vector.load %arg8[%c0_15, %c0_16] : memref<1x16xf32, #tpu.memory_space<vmem>>, vector<1x16xf32>
    %cst = arith.constant dense<0.000000e+00> : vector<128x16xf32>
    %11 = tpu.matmul %1, %9, %cst {dimension_numbers = #tpu.dot_dimension_numbers<[1], [0], [0], [1], [0, 0, 1, 1], [], []>} : vector<128x3xf32>, vector<3x16xf32>, vector<128x16xf32> -> vector<128x16xf32>
    %12 = vector.broadcast %10 : vector<1x16xf32> to vector<128x16xf32>
    %13 = arith.addf %11, %12 : vector<128x16xf32>
    %cst_17 = arith.constant 0.000000e+00 : f32
    %14 = vector.broadcast %cst_17 : f32 to vector<128x16xf32>
    %15 = arith.maximumf %13, %14 : vector<128x16xf32>
    %c0_18 = arith.constant 0 : index
    %c0_19 = arith.constant 0 : index
    %16 = vector.load %arg9[%c0_18, %c0_19] : memref<16x32xf32, #tpu.memory_space<vmem>>, vector<16x32xf32>
    %c0_20 = arith.constant 0 : index
    %c0_21 = arith.constant 0 : index
    %17 = vector.load %arg14[%c0_20, %c0_21] : memref<46x32xf32, #tpu.memory_space<vmem>>, vector<1x32xf32>
    %cst_22 = arith.constant dense<0.000000e+00> : vector<128x32xf32>
    %18 = tpu.matmul %15, %16, %cst_22 {dimension_numbers = #tpu.dot_dimension_numbers<[1], [0], [0], [1], [0, 0, 1, 1], [], []>} : vector<128x16xf32>, vector<16x32xf32>, vector<128x32xf32> -> vector<128x32xf32>
    %19 = vector.broadcast %17 : vector<1x32xf32> to vector<128x32xf32>
    %20 = arith.addf %18, %19 : vector<128x32xf32>
    %21 = vector.extract_strided_slice %20 {offsets = [0, 0], sizes = [64, 32], strides = [1, 1]} : vector<128x32xf32> to vector<64x32xf32>
    %cst_23 = arith.constant dense<0.000000e+00> : vector<32xf32>
    %22 = vector.multi_reduction <add>, %21, %cst_23 [0] : vector<64x32xf32> to vector<32xf32>
    %23 = vector.shape_cast %22 : vector<32xf32> to vector<1x32xf32>
    %cst_24 = arith.constant 6.400000e+01 : f32
    %24 = vector.broadcast %cst_24 : f32 to vector<1x32xf32>
    %25 = arith.divf %23, %24 : vector<1x32xf32>
    %26 = vector.broadcast %25 : vector<1x32xf32> to vector<64x32xf32>
    %27 = arith.subf %21, %26 : vector<64x32xf32>
    %28 = arith.mulf %27, %27 : vector<64x32xf32>
    %cst_25 = arith.constant dense<0.000000e+00> : vector<32xf32>
    %29 = vector.multi_reduction <add>, %28, %cst_25 [0] : vector<64x32xf32> to vector<32xf32>
    %30 = vector.shape_cast %29 : vector<32xf32> to vector<1x32xf32>
    %cst_26 = arith.constant 6.400000e+01 : f32
    %31 = vector.broadcast %cst_26 : f32 to vector<1x32xf32>
    %32 = arith.divf %30, %31 : vector<1x32xf32>
    %33 = vector.broadcast %25 : vector<1x32xf32> to vector<64x32xf32>
    %34 = arith.subf %21, %33 : vector<64x32xf32>
    %cst_27 = arith.constant 9.99999974E-6 : f32
    %35 = vector.broadcast %cst_27 : f32 to vector<1x32xf32>
    %36 = arith.addf %32, %35 : vector<1x32xf32>
    %37 = math.rsqrt %36 : vector<1x32xf32>
    %38 = vector.broadcast %37 : vector<1x32xf32> to vector<64x32xf32>
    %39 = arith.mulf %34, %38 : vector<64x32xf32>
    %40 = vector.extract_strided_slice %20 {offsets = [64, 0], sizes = [64, 32], strides = [1, 1]} : vector<128x32xf32> to vector<64x32xf32>
    %cst_28 = arith.constant dense<0.000000e+00> : vector<32xf32>
    %41 = vector.multi_reduction <add>, %40, %cst_28 [0] : vector<64x32xf32> to vector<32xf32>
    %42 = vector.shape_cast %41 : vector<32xf32> to vector<1x32xf32>
    %cst_29 = arith.constant 6.400000e+01 : f32
    %43 = vector.broadcast %cst_29 : f32 to vector<1x32xf32>
    %44 = arith.divf %42, %43 : vector<1x32xf32>
    %45 = vector.broadcast %44 : vector<1x32xf32> to vector<64x32xf32>
    %46 = arith.subf %40, %45 : vector<64x32xf32>
    %47 = arith.mulf %46, %46 : vector<64x32xf32>
    %cst_30 = arith.constant dense<0.000000e+00> : vector<32xf32>
    %48 = vector.multi_reduction <add>, %47, %cst_30 [0] : vector<64x32xf32> to vector<32xf32>
    %49 = vector.shape_cast %48 : vector<32xf32> to vector<1x32xf32>
    %cst_31 = arith.constant 6.400000e+01 : f32
    %50 = vector.broadcast %cst_31 : f32 to vector<1x32xf32>
    %51 = arith.divf %49, %50 : vector<1x32xf32>
    %52 = vector.broadcast %44 : vector<1x32xf32> to vector<64x32xf32>
    %53 = arith.subf %40, %52 : vector<64x32xf32>
    %cst_32 = arith.constant 9.99999974E-6 : f32
    %54 = vector.broadcast %cst_32 : f32 to vector<1x32xf32>
    %55 = arith.addf %51, %54 : vector<1x32xf32>
    %56 = math.rsqrt %55 : vector<1x32xf32>
    %57 = vector.broadcast %56 : vector<1x32xf32> to vector<64x32xf32>
    %58 = arith.mulf %53, %57 : vector<64x32xf32>
    %59 = tpu.concatenate %39, %58 in 0 : vector<64x32xf32>, vector<64x32xf32> -> vector<128x32xf32>
    %c1 = arith.constant 1 : index
    %c0_33 = arith.constant 0 : index
    %60 = vector.load %arg14[%c1, %c0_33] : memref<46x32xf32, #tpu.memory_space<vmem>>, vector<1x32xf32>
    %61 = vector.broadcast %60 : vector<1x32xf32> to vector<128x32xf32>
    %62 = arith.mulf %59, %61 : vector<128x32xf32>
    %c2 = arith.constant 2 : index
    %c0_34 = arith.constant 0 : index
    %63 = vector.load %arg14[%c2, %c0_34] : memref<46x32xf32, #tpu.memory_space<vmem>>, vector<1x32xf32>
    %64 = vector.broadcast %63 : vector<1x32xf32> to vector<128x32xf32>
    %65 = arith.addf %62, %64 : vector<128x32xf32>
    %66 = arith.addf %65, %3 : vector<128x32xf32>
    %c0_35 = arith.constant 0 : index
    %c0_36 = arith.constant 0 : index
    %c0_37 = arith.constant 0 : index
    %67 = vector.load %arg10[%c0_35, %c0_36, %c0_37] : memref<22x32x32xf32, #tpu.memory_space<vmem>>, vector<1x32x32xf32>
    %68 = vector.shape_cast %67 : vector<1x32x32xf32> to vector<32x32xf32>
    %c3 = arith.constant 3 : index
    %c0_38 = arith.constant 0 : index
    %69 = vector.load %arg14[%c3, %c0_38] : memref<46x32xf32, #tpu.memory_space<vmem>>, vector<1x32xf32>
    %cst_39 = arith.constant dense<0.000000e+00> : vector<128x32xf32>
    %70 = tpu.matmul %66, %68, %cst_39 {dimension_numbers = #tpu.dot_dimension_numbers<[1], [0], [0], [1], [0, 0, 1, 1], [], []>} : vector<128x32xf32>, vector<32x32xf32>, vector<128x32xf32> -> vector<128x32xf32>
    %71 = vector.broadcast %69 : vector<1x32xf32> to vector<128x32xf32>
    %72 = arith.addf %70, %71 : vector<128x32xf32>
    %c1_40 = arith.constant 1 : index
    %c0_41 = arith.constant 0 : index
    %c0_42 = arith.constant 0 : index
    %73 = vector.load %arg10[%c1_40, %c0_41, %c0_42] : memref<22x32x32xf32, #tpu.memory_space<vmem>>, vector<1x32x32xf32>
    %74 = vector.shape_cast %73 : vector<1x32x32xf32> to vector<32x32xf32>
    %c4 = arith.constant 4 : index
    %c0_43 = arith.constant 0 : index
    %75 = vector.load %arg14[%c4, %c0_43] : memref<46x32xf32, #tpu.memory_space<vmem>>, vector<1x32xf32>
    %cst_44 = arith.constant dense<0.000000e+00> : vector<128x32xf32>
    %76 = tpu.matmul %66, %74, %cst_44 {dimension_numbers = #tpu.dot_dimension_numbers<[1], [0], [0], [1], [0, 0, 1, 1], [], []>} : vector<128x32xf32>, vector<32x32xf32>, vector<128x32xf32> -> vector<128x32xf32>
    %77 = vector.broadcast %75 : vector<1x32xf32> to vector<128x32xf32>
    %78 = arith.addf %76, %77 : vector<128x32xf32>
    %c2_45 = arith.constant 2 : index
    %c0_46 = arith.constant 0 : index
    %c0_47 = arith.constant 0 : index
    %79 = vector.load %arg10[%c2_45, %c0_46, %c0_47] : memref<22x32x32xf32, #tpu.memory_space<vmem>>, vector<1x32x32xf32>
    %80 = vector.shape_cast %79 : vector<1x32x32xf32> to vector<32x32xf32>
    %c5 = arith.constant 5 : index
    %c0_48 = arith.constant 0 : index
    %81 = vector.load %arg14[%c5, %c0_48] : memref<46x32xf32, #tpu.memory_space<vmem>>, vector<1x32xf32>
    %cst_49 = arith.constant dense<0.000000e+00> : vector<128x32xf32>
    %82 = tpu.matmul %65, %80, %cst_49 {dimension_numbers = #tpu.dot_dimension_numbers<[1], [0], [0], [1], [0, 0, 1, 1], [], []>} : vector<128x32xf32>, vector<32x32xf32>, vector<128x32xf32> -> vector<128x32xf32>
    %83 = vector.broadcast %81 : vector<1x32xf32> to vector<128x32xf32>
    %84 = arith.addf %82, %83 : vector<128x32xf32>
    %cst_50 = arith.constant dense<0.000000e+00> : vector<128x128xf32>
    %85 = tpu.matmul %72, %78, %cst_50 {dimension_numbers = #tpu.dot_dimension_numbers<[1], [1], [0], [0], [0, 0, 1, 0], [], []>} : vector<128x32xf32>, vector<128x32xf32>, vector<128x128xf32> -> vector<128x128xf32>
    %cst_51 = arith.constant 0.176776692 : f32
    %86 = vector.broadcast %cst_51 : f32 to vector<128x128xf32>
    %87 = arith.mulf %85, %86 : vector<128x128xf32>
    %88 = arith.addf %87, %5 : vector<128x128xf32>
    %cst_52 = arith.constant dense<0xFF800000> : vector<128xf32>
    %89 = vector.multi_reduction <maximumf>, %88, %cst_52 [1] : vector<128x128xf32> to vector<128xf32>
    %90 = vector.shape_cast %89 : vector<128xf32> to vector<128x1xf32>
    %91 = vector.broadcast %90 : vector<128x1xf32> to vector<128x128xf32>
    %92 = arith.subf %88, %91 : vector<128x128xf32>
    %93 = math.exp %92 : vector<128x128xf32>
    %cst_53 = arith.constant dense<0.000000e+00> : vector<128xf32>
    %94 = vector.multi_reduction <add>, %93, %cst_53 [1] : vector<128x128xf32> to vector<128xf32>
    %95 = vector.shape_cast %94 : vector<128xf32> to vector<128x1xf32>
    %96 = tpu.reciprocal %95 {approx = true} : vector<128x1xf32> -> vector<128x1xf32>
    %97 = vector.broadcast %96 : vector<128x1xf32> to vector<128x128xf32>
    %98 = arith.mulf %93, %97 : vector<128x128xf32>
    %cst_54 = arith.constant dense<0.000000e+00> : vector<128x32xf32>
    %99 = tpu.matmul %98, %84, %cst_54 {dimension_numbers = #tpu.dot_dimension_numbers<[1], [0], [0], [1], [0, 0, 1, 1], [], []>} : vector<128x128xf32>, vector<128x32xf32>, vector<128x32xf32> -> vector<128x32xf32>
    %c3_55 = arith.constant 3 : index
    %c0_56 = arith.constant 0 : index
    %c0_57 = arith.constant 0 : index
    %100 = vector.load %arg10[%c3_55, %c0_56, %c0_57] : memref<22x32x32xf32, #tpu.memory_space<vmem>>, vector<1x32x32xf32>
    %101 = vector.shape_cast %100 : vector<1x32x32xf32> to vector<32x32xf32>
    %c6 = arith.constant 6 : index
    %c0_58 = arith.constant 0 : index
    %102 = vector.load %arg14[%c6, %c0_58] : memref<46x32xf32, #tpu.memory_space<vmem>>, vector<1x32xf32>
    %cst_59 = arith.constant dense<0.000000e+00> : vector<128x32xf32>
    %103 = tpu.matmul %99, %101, %cst_59 {dimension_numbers = #tpu.dot_dimension_numbers<[1], [0], [0], [1], [0, 0, 1, 1], [], []>} : vector<128x32xf32>, vector<32x32xf32>, vector<128x32xf32> -> vector<128x32xf32>
    %104 = vector.broadcast %102 : vector<1x32xf32> to vector<128x32xf32>
    %105 = arith.addf %103, %104 : vector<128x32xf32>
    %106 = arith.addf %65, %105 : vector<128x32xf32>
    %cst_60 = arith.constant dense<0.000000e+00> : vector<128xf32>
    %107 = vector.multi_reduction <add>, %106, %cst_60 [1] : vector<128x32xf32> to vector<128xf32>
    %108 = vector.shape_cast %107 : vector<128xf32> to vector<128x1xf32>
    %cst_61 = arith.constant 3.200000e+01 : f32
    %109 = vector.broadcast %cst_61 : f32 to vector<128x1xf32>
    %110 = arith.divf %108, %109 : vector<128x1xf32>
    %111 = vector.broadcast %110 : vector<128x1xf32> to vector<128x32xf32>
    %112 = arith.subf %106, %111 : vector<128x32xf32>
    %113 = arith.mulf %112, %112 : vector<128x32xf32>
    %cst_62 = arith.constant dense<0.000000e+00> : vector<128xf32>
    %114 = vector.multi_reduction <add>, %113, %cst_62 [1] : vector<128x32xf32> to vector<128xf32>
    %115 = vector.shape_cast %114 : vector<128xf32> to vector<128x1xf32>
    %cst_63 = arith.constant 3.200000e+01 : f32
    %116 = vector.broadcast %cst_63 : f32 to vector<128x1xf32>
    %117 = arith.divf %115, %116 : vector<128x1xf32>
    %118 = vector.broadcast %110 : vector<128x1xf32> to vector<128x32xf32>
    %119 = arith.subf %106, %118 : vector<128x32xf32>
    %cst_64 = arith.constant 9.99999974E-6 : f32
    %120 = vector.broadcast %cst_64 : f32 to vector<128x1xf32>
    %121 = arith.addf %117, %120 : vector<128x1xf32>
    %122 = math.rsqrt %121 : vector<128x1xf32>
    %123 = vector.broadcast %122 : vector<128x1xf32> to vector<128x32xf32>
    %124 = arith.mulf %119, %123 : vector<128x32xf32>
    %c7 = arith.constant 7 : index
    %c0_65 = arith.constant 0 : index
    %125 = vector.load %arg14[%c7, %c0_65] : memref<46x32xf32, #tpu.memory_space<vmem>>, vector<1x32xf32>
    %126 = vector.broadcast %125 : vector<1x32xf32> to vector<128x32xf32>
    %127 = arith.mulf %124, %126 : vector<128x32xf32>
    %c8 = arith.constant 8 : index
    %c0_66 = arith.constant 0 : index
    %128 = vector.load %arg14[%c8, %c0_66] : memref<46x32xf32, #tpu.memory_space<vmem>>, vector<1x32xf32>
    %129 = vector.broadcast %128 : vector<1x32xf32> to vector<128x32xf32>
    %130 = arith.addf %127, %129 : vector<128x32xf32>
    %c0_67 = arith.constant 0 : index
    %c0_68 = arith.constant 0 : index
    %c0_69 = arith.constant 0 : index
    %131 = vector.load %arg11[%c0_67, %c0_68, %c0_69] : memref<3x32x64xf32, #tpu.memory_space<vmem>>, vector<1x32x64xf32>
    %132 = vector.shape_cast %131 : vector<1x32x64xf32> to vector<32x64xf32>
    %c0_70 = arith.constant 0 : index
    %c0_71 = arith.constant 0 : index
    %133 = vector.load %arg15[%c0_70, %c0_71] : memref<3x64xf32, #tpu.memory_space<vmem>>, vector<1x64xf32>
    %cst_72 = arith.constant dense<0.000000e+00> : vector<128x64xf32>
    %134 = tpu.matmul %130, %132, %cst_72 {dimension_numbers = #tpu.dot_dimension_numbers<[1], [0], [0], [1], [0, 0, 1, 1], [], []>} : vector<128x32xf32>, vector<32x64xf32>, vector<128x64xf32> -> vector<128x64xf32>
    %135 = vector.broadcast %133 : vector<1x64xf32> to vector<128x64xf32>
    %136 = arith.addf %134, %135 : vector<128x64xf32>
    %cst_73 = arith.constant 0.000000e+00 : f32
    %137 = vector.broadcast %cst_73 : f32 to vector<128x64xf32>
    %138 = arith.maximumf %136, %137 : vector<128x64xf32>
    %c0_74 = arith.constant 0 : index
    %c0_75 = arith.constant 0 : index
    %c0_76 = arith.constant 0 : index
    %139 = vector.load %arg12[%c0_74, %c0_75, %c0_76] : memref<3x64x32xf32, #tpu.memory_space<vmem>>, vector<1x64x32xf32>
    %140 = vector.shape_cast %139 : vector<1x64x32xf32> to vector<64x32xf32>
    %c9 = arith.constant 9 : index
    %c0_77 = arith.constant 0 : index
    %141 = vector.load %arg14[%c9, %c0_77] : memref<46x32xf32, #tpu.memory_space<vmem>>, vector<1x32xf32>
    %cst_78 = arith.constant dense<0.000000e+00> : vector<128x32xf32>
    %142 = tpu.matmul %138, %140, %cst_78 {dimension_numbers = #tpu.dot_dimension_numbers<[1], [0], [0], [1], [0, 0, 1, 1], [], []>} : vector<128x64xf32>, vector<64x32xf32>, vector<128x32xf32> -> vector<128x32xf32>
    %143 = vector.broadcast %141 : vector<1x32xf32> to vector<128x32xf32>
    %144 = arith.addf %142, %143 : vector<128x32xf32>
    %145 = arith.addf %130, %144 : vector<128x32xf32>
    %cst_79 = arith.constant dense<0.000000e+00> : vector<128xf32>
    %146 = vector.multi_reduction <add>, %145, %cst_79 [1] : vector<128x32xf32> to vector<128xf32>
    %147 = vector.shape_cast %146 : vector<128xf32> to vector<128x1xf32>
    %cst_80 = arith.constant 3.200000e+01 : f32
    %148 = vector.broadcast %cst_80 : f32 to vector<128x1xf32>
    %149 = arith.divf %147, %148 : vector<128x1xf32>
    %150 = vector.broadcast %149 : vector<128x1xf32> to vector<128x32xf32>
    %151 = arith.subf %145, %150 : vector<128x32xf32>
    %152 = arith.mulf %151, %151 : vector<128x32xf32>
    %cst_81 = arith.constant dense<0.000000e+00> : vector<128xf32>
    %153 = vector.multi_reduction <add>, %152, %cst_81 [1] : vector<128x32xf32> to vector<128xf32>
    %154 = vector.shape_cast %153 : vector<128xf32> to vector<128x1xf32>
    %cst_82 = arith.constant 3.200000e+01 : f32
    %155 = vector.broadcast %cst_82 : f32 to vector<128x1xf32>
    %156 = arith.divf %154, %155 : vector<128x1xf32>
    %157 = vector.broadcast %149 : vector<128x1xf32> to vector<128x32xf32>
    %158 = arith.subf %145, %157 : vector<128x32xf32>
    %cst_83 = arith.constant 9.99999974E-6 : f32
    %159 = vector.broadcast %cst_83 : f32 to vector<128x1xf32>
    %160 = arith.addf %156, %159 : vector<128x1xf32>
    %161 = math.rsqrt %160 : vector<128x1xf32>
    %162 = vector.broadcast %161 : vector<128x1xf32> to vector<128x32xf32>
    %163 = arith.mulf %158, %162 : vector<128x32xf32>
    %c10 = arith.constant 10 : index
    %c0_84 = arith.constant 0 : index
    %164 = vector.load %arg14[%c10, %c0_84] : memref<46x32xf32, #tpu.memory_space<vmem>>, vector<1x32xf32>
    %165 = vector.broadcast %164 : vector<1x32xf32> to vector<128x32xf32>
    %166 = arith.mulf %163, %165 : vector<128x32xf32>
    %c11 = arith.constant 11 : index
    %c0_85 = arith.constant 0 : index
    %167 = vector.load %arg14[%c11, %c0_85] : memref<46x32xf32, #tpu.memory_space<vmem>>, vector<1x32xf32>
    %168 = vector.broadcast %167 : vector<1x32xf32> to vector<128x32xf32>
    %169 = arith.addf %166, %168 : vector<128x32xf32>
    %170 = arith.addf %169, %3 : vector<128x32xf32>
    %c9_86 = arith.constant 9 : index
    %c0_87 = arith.constant 0 : index
    %c0_88 = arith.constant 0 : index
    %171 = vector.load %arg10[%c9_86, %c0_87, %c0_88] : memref<22x32x32xf32, #tpu.memory_space<vmem>>, vector<1x32x32xf32>
    %172 = vector.shape_cast %171 : vector<1x32x32xf32> to vector<32x32xf32>
    %c20 = arith.constant 20 : index
    %c0_89 = arith.constant 0 : index
    %173 = vector.load %arg14[%c20, %c0_89] : memref<46x32xf32, #tpu.memory_space<vmem>>, vector<1x32xf32>
    %cst_90 = arith.constant dense<0.000000e+00> : vector<128x32xf32>
    %174 = tpu.matmul %170, %172, %cst_90 {dimension_numbers = #tpu.dot_dimension_numbers<[1], [0], [0], [1], [0, 0, 1, 1], [], []>} : vector<128x32xf32>, vector<32x32xf32>, vector<128x32xf32> -> vector<128x32xf32>
    %175 = vector.broadcast %173 : vector<1x32xf32> to vector<128x32xf32>
    %176 = arith.addf %174, %175 : vector<128x32xf32>
    %c17 = arith.constant 17 : index
    %c0_91 = arith.constant 0 : index
    %c0_92 = arith.constant 0 : index
    %177 = vector.load %arg10[%c17, %c0_91, %c0_92] : memref<22x32x32xf32, #tpu.memory_space<vmem>>, vector<1x32x32xf32>
    %178 = vector.shape_cast %177 : vector<1x32x32xf32> to vector<32x32xf32>
    %c36 = arith.constant 36 : index
    %c0_93 = arith.constant 0 : index
    %179 = vector.load %arg14[%c36, %c0_93] : memref<46x32xf32, #tpu.memory_space<vmem>>, vector<1x32xf32>
    %cst_94 = arith.constant dense<0.000000e+00> : vector<128x32xf32>
    %180 = tpu.matmul %170, %178, %cst_94 {dimension_numbers = #tpu.dot_dimension_numbers<[1], [0], [0], [1], [0, 0, 1, 1], [], []>} : vector<128x32xf32>, vector<32x32xf32>, vector<128x32xf32> -> vector<128x32xf32>
    %181 = vector.broadcast %179 : vector<1x32xf32> to vector<128x32xf32>
    %182 = arith.addf %180, %181 : vector<128x32xf32>
    %c10_95 = arith.constant 10 : index
    %c0_96 = arith.constant 0 : index
    %c0_97 = arith.constant 0 : index
    %183 = vector.load %arg10[%c10_95, %c0_96, %c0_97] : memref<22x32x32xf32, #tpu.memory_space<vmem>>, vector<1x32x32xf32>
    %184 = vector.shape_cast %183 : vector<1x32x32xf32> to vector<32x32xf32>
    %c21 = arith.constant 21 : index
    %c0_98 = arith.constant 0 : index
    %185 = vector.load %arg14[%c21, %c0_98] : memref<46x32xf32, #tpu.memory_space<vmem>>, vector<1x32xf32>
    %cst_99 = arith.constant dense<0.000000e+00> : vector<128x32xf32>
    %186 = tpu.matmul %169, %184, %cst_99 {dimension_numbers = #tpu.dot_dimension_numbers<[1], [0], [0], [1], [0, 0, 1, 1], [], []>} : vector<128x32xf32>, vector<32x32xf32>, vector<128x32xf32> -> vector<128x32xf32>
    %187 = vector.broadcast %185 : vector<1x32xf32> to vector<128x32xf32>
    %188 = arith.addf %186, %187 : vector<128x32xf32>
    %c18 = arith.constant 18 : index
    %c0_100 = arith.constant 0 : index
    %c0_101 = arith.constant 0 : index
    %189 = vector.load %arg10[%c18, %c0_100, %c0_101] : memref<22x32x32xf32, #tpu.memory_space<vmem>>, vector<1x32x32xf32>
    %190 = vector.shape_cast %189 : vector<1x32x32xf32> to vector<32x32xf32>
    %c37 = arith.constant 37 : index
    %c0_102 = arith.constant 0 : index
    %191 = vector.load %arg14[%c37, %c0_102] : memref<46x32xf32, #tpu.memory_space<vmem>>, vector<1x32xf32>
    %cst_103 = arith.constant dense<0.000000e+00> : vector<128x32xf32>
    %192 = tpu.matmul %169, %190, %cst_103 {dimension_numbers = #tpu.dot_dimension_numbers<[1], [0], [0], [1], [0, 0, 1, 1], [], []>} : vector<128x32xf32>, vector<32x32xf32>, vector<128x32xf32> -> vector<128x32xf32>
    %193 = vector.broadcast %191 : vector<1x32xf32> to vector<128x32xf32>
    %194 = arith.addf %192, %193 : vector<128x32xf32>
    %cst_104 = arith.constant 0.000000e+00 : f32
    %195 = vector.broadcast %cst_104 : f32 to vector<16x32xf32>
    %c0_105 = arith.constant 0 : index
    %c0_106 = arith.constant 0 : index
    %196 = vector.load %arg6[%c0_105, %c0_106] : memref<16x4xf32, #tpu.memory_space<vmem>>, vector<16x4xf32>
    %c0_107 = arith.constant 0 : index
    %c0_108 = arith.constant 0 : index
    %c0_109 = arith.constant 0 : index
    %197 = vector.load %arg13[%c0_107, %c0_108, %c0_109] : memref<2x4x32xf32, #tpu.memory_space<vmem>>, vector<1x4x32xf32>
    %198 = vector.shape_cast %197 : vector<1x4x32xf32> to vector<4x32xf32>
    %c12 = arith.constant 12 : index
    %c0_110 = arith.constant 0 : index
    %199 = vector.load %arg14[%c12, %c0_110] : memref<46x32xf32, #tpu.memory_space<vmem>>, vector<1x32xf32>
    %cst_111 = arith.constant dense<0.000000e+00> : vector<16x32xf32>
    %200 = tpu.matmul %196, %198, %cst_111 {dimension_numbers = #tpu.dot_dimension_numbers<[1], [0], [0], [1], [0, 0, 1, 1], [], []>} : vector<16x4xf32>, vector<4x32xf32>, vector<16x32xf32> -> vector<16x32xf32>
    %201 = vector.broadcast %199 : vector<1x32xf32> to vector<16x32xf32>
    %202 = arith.addf %200, %201 : vector<16x32xf32>
    %203 = arith.addf %195, %202 : vector<16x32xf32>
    %c4_112 = arith.constant 4 : index
    %c0_113 = arith.constant 0 : index
    %c0_114 = arith.constant 0 : index
    %204 = vector.load %arg10[%c4_112, %c0_113, %c0_114] : memref<22x32x32xf32, #tpu.memory_space<vmem>>, vector<1x32x32xf32>
    %205 = vector.shape_cast %204 : vector<1x32x32xf32> to vector<32x32xf32>
    %c13 = arith.constant 13 : index
    %c0_115 = arith.constant 0 : index
    %206 = vector.load %arg14[%c13, %c0_115] : memref<46x32xf32, #tpu.memory_space<vmem>>, vector<1x32xf32>
    %cst_116 = arith.constant dense<0.000000e+00> : vector<16x32xf32>
    %207 = tpu.matmul %203, %205, %cst_116 {dimension_numbers = #tpu.dot_dimension_numbers<[1], [0], [0], [1], [0, 0, 1, 1], [], []>} : vector<16x32xf32>, vector<32x32xf32>, vector<16x32xf32> -> vector<16x32xf32>
    %208 = vector.broadcast %206 : vector<1x32xf32> to vector<16x32xf32>
    %209 = arith.addf %207, %208 : vector<16x32xf32>
    %c5_117 = arith.constant 5 : index
    %c0_118 = arith.constant 0 : index
    %c0_119 = arith.constant 0 : index
    %210 = vector.load %arg10[%c5_117, %c0_118, %c0_119] : memref<22x32x32xf32, #tpu.memory_space<vmem>>, vector<1x32x32xf32>
    %211 = vector.shape_cast %210 : vector<1x32x32xf32> to vector<32x32xf32>
    %c14 = arith.constant 14 : index
    %c0_120 = arith.constant 0 : index
    %212 = vector.load %arg14[%c14, %c0_120] : memref<46x32xf32, #tpu.memory_space<vmem>>, vector<1x32xf32>
    %cst_121 = arith.constant dense<0.000000e+00> : vector<16x32xf32>
    %213 = tpu.matmul %203, %211, %cst_121 {dimension_numbers = #tpu.dot_dimension_numbers<[1], [0], [0], [1], [0, 0, 1, 1], [], []>} : vector<16x32xf32>, vector<32x32xf32>, vector<16x32xf32> -> vector<16x32xf32>
    %214 = vector.broadcast %212 : vector<1x32xf32> to vector<16x32xf32>
    %215 = arith.addf %213, %214 : vector<16x32xf32>
    %c6_122 = arith.constant 6 : index
    %c0_123 = arith.constant 0 : index
    %c0_124 = arith.constant 0 : index
    %216 = vector.load %arg10[%c6_122, %c0_123, %c0_124] : memref<22x32x32xf32, #tpu.memory_space<vmem>>, vector<1x32x32xf32>
    %217 = vector.shape_cast %216 : vector<1x32x32xf32> to vector<32x32xf32>
    %c15 = arith.constant 15 : index
    %c0_125 = arith.constant 0 : index
    %218 = vector.load %arg14[%c15, %c0_125] : memref<46x32xf32, #tpu.memory_space<vmem>>, vector<1x32xf32>
    %cst_126 = arith.constant dense<0.000000e+00> : vector<16x32xf32>
    %219 = tpu.matmul %195, %217, %cst_126 {dimension_numbers = #tpu.dot_dimension_numbers<[1], [0], [0], [1], [0, 0, 1, 1], [], []>} : vector<16x32xf32>, vector<32x32xf32>, vector<16x32xf32> -> vector<16x32xf32>
    %220 = vector.broadcast %218 : vector<1x32xf32> to vector<16x32xf32>
    %221 = arith.addf %219, %220 : vector<16x32xf32>
    %cst_127 = arith.constant dense<0.000000e+00> : vector<16x16xf32>
    %222 = tpu.matmul %209, %215, %cst_127 {dimension_numbers = #tpu.dot_dimension_numbers<[1], [1], [0], [0], [0, 0, 1, 0], [], []>} : vector<16x32xf32>, vector<16x32xf32>, vector<16x16xf32> -> vector<16x16xf32>
    %cst_128 = arith.constant 0.176776692 : f32
    %223 = vector.broadcast %cst_128 : f32 to vector<16x16xf32>
    %224 = arith.mulf %222, %223 : vector<16x16xf32>
    %225 = arith.addf %224, %8 : vector<16x16xf32>
    %cst_129 = arith.constant dense<0xFF800000> : vector<16xf32>
    %226 = vector.multi_reduction <maximumf>, %225, %cst_129 [1] : vector<16x16xf32> to vector<16xf32>
    %227 = vector.shape_cast %226 : vector<16xf32> to vector<16x1xf32>
    %228 = vector.broadcast %227 : vector<16x1xf32> to vector<16x16xf32>
    %229 = arith.subf %225, %228 : vector<16x16xf32>
    %230 = math.exp %229 : vector<16x16xf32>
    %cst_130 = arith.constant dense<0.000000e+00> : vector<16xf32>
    %231 = vector.multi_reduction <add>, %230, %cst_130 [1] : vector<16x16xf32> to vector<16xf32>
    %232 = vector.shape_cast %231 : vector<16xf32> to vector<16x1xf32>
    %233 = tpu.reciprocal %232 {approx = true} : vector<16x1xf32> -> vector<16x1xf32>
    %234 = vector.broadcast %233 : vector<16x1xf32> to vector<16x16xf32>
    %235 = arith.mulf %230, %234 : vector<16x16xf32>
    %cst_131 = arith.constant dense<0.000000e+00> : vector<16x32xf32>
    %236 = tpu.matmul %235, %221, %cst_131 {dimension_numbers = #tpu.dot_dimension_numbers<[1], [0], [0], [1], [0, 0, 1, 1], [], []>} : vector<16x16xf32>, vector<16x32xf32>, vector<16x32xf32> -> vector<16x32xf32>
    %c7_132 = arith.constant 7 : index
    %c0_133 = arith.constant 0 : index
    %c0_134 = arith.constant 0 : index
    %237 = vector.load %arg10[%c7_132, %c0_133, %c0_134] : memref<22x32x32xf32, #tpu.memory_space<vmem>>, vector<1x32x32xf32>
    %238 = vector.shape_cast %237 : vector<1x32x32xf32> to vector<32x32xf32>
    %c16 = arith.constant 16 : index
    %c0_135 = arith.constant 0 : index
    %239 = vector.load %arg14[%c16, %c0_135] : memref<46x32xf32, #tpu.memory_space<vmem>>, vector<1x32xf32>
    %cst_136 = arith.constant dense<0.000000e+00> : vector<16x32xf32>
    %240 = tpu.matmul %236, %238, %cst_136 {dimension_numbers = #tpu.dot_dimension_numbers<[1], [0], [0], [1], [0, 0, 1, 1], [], []>} : vector<16x32xf32>, vector<32x32xf32>, vector<16x32xf32> -> vector<16x32xf32>
    %241 = vector.broadcast %239 : vector<1x32xf32> to vector<16x32xf32>
    %242 = arith.addf %240, %241 : vector<16x32xf32>
    %243 = arith.addf %195, %242 : vector<16x32xf32>
    %cst_137 = arith.constant dense<0.000000e+00> : vector<16xf32>
    %244 = vector.multi_reduction <add>, %243, %cst_137 [1] : vector<16x32xf32> to vector<16xf32>
    %245 = vector.shape_cast %244 : vector<16xf32> to vector<16x1xf32>
    %cst_138 = arith.constant 3.200000e+01 : f32
    %246 = vector.broadcast %cst_138 : f32 to vector<16x1xf32>
    %247 = arith.divf %245, %246 : vector<16x1xf32>
    %248 = vector.broadcast %247 : vector<16x1xf32> to vector<16x32xf32>
    %249 = arith.subf %243, %248 : vector<16x32xf32>
    %250 = arith.mulf %249, %249 : vector<16x32xf32>
    %cst_139 = arith.constant dense<0.000000e+00> : vector<16xf32>
    %251 = vector.multi_reduction <add>, %250, %cst_139 [1] : vector<16x32xf32> to vector<16xf32>
    %252 = vector.shape_cast %251 : vector<16xf32> to vector<16x1xf32>
    %cst_140 = arith.constant 3.200000e+01 : f32
    %253 = vector.broadcast %cst_140 : f32 to vector<16x1xf32>
    %254 = arith.divf %252, %253 : vector<16x1xf32>
    %255 = vector.broadcast %247 : vector<16x1xf32> to vector<16x32xf32>
    %256 = arith.subf %243, %255 : vector<16x32xf32>
    %cst_141 = arith.constant 9.99999974E-6 : f32
    %257 = vector.broadcast %cst_141 : f32 to vector<16x1xf32>
    %258 = arith.addf %254, %257 : vector<16x1xf32>
    %259 = math.rsqrt %258 : vector<16x1xf32>
    %260 = vector.broadcast %259 : vector<16x1xf32> to vector<16x32xf32>
    %261 = arith.mulf %256, %260 : vector<16x32xf32>
    %c17_142 = arith.constant 17 : index
    %c0_143 = arith.constant 0 : index
    %262 = vector.load %arg14[%c17_142, %c0_143] : memref<46x32xf32, #tpu.memory_space<vmem>>, vector<1x32xf32>
    %263 = vector.broadcast %262 : vector<1x32xf32> to vector<16x32xf32>
    %264 = arith.mulf %261, %263 : vector<16x32xf32>
    %c18_144 = arith.constant 18 : index
    %c0_145 = arith.constant 0 : index
    %265 = vector.load %arg14[%c18_144, %c0_145] : memref<46x32xf32, #tpu.memory_space<vmem>>, vector<1x32xf32>
    %266 = vector.broadcast %265 : vector<1x32xf32> to vector<16x32xf32>
    %267 = arith.addf %264, %266 : vector<16x32xf32>
    %268 = arith.addf %267, %202 : vector<16x32xf32>
    %c8_146 = arith.constant 8 : index
    %c0_147 = arith.constant 0 : index
    %c0_148 = arith.constant 0 : index
    %269 = vector.load %arg10[%c8_146, %c0_147, %c0_148] : memref<22x32x32xf32, #tpu.memory_space<vmem>>, vector<1x32x32xf32>
    %270 = vector.shape_cast %269 : vector<1x32x32xf32> to vector<32x32xf32>
    %c19 = arith.constant 19 : index
    %c0_149 = arith.constant 0 : index
    %271 = vector.load %arg14[%c19, %c0_149] : memref<46x32xf32, #tpu.memory_space<vmem>>, vector<1x32xf32>
    %cst_150 = arith.constant dense<0.000000e+00> : vector<16x32xf32>
    %272 = tpu.matmul %268, %270, %cst_150 {dimension_numbers = #tpu.dot_dimension_numbers<[1], [0], [0], [1], [0, 0, 1, 1], [], []>} : vector<16x32xf32>, vector<32x32xf32>, vector<16x32xf32> -> vector<16x32xf32>
    %273 = vector.broadcast %271 : vector<1x32xf32> to vector<16x32xf32>
    %274 = arith.addf %272, %273 : vector<16x32xf32>
    %cst_151 = arith.constant dense<0.000000e+00> : vector<16x128xf32>
    %275 = tpu.matmul %274, %176, %cst_151 {dimension_numbers = #tpu.dot_dimension_numbers<[1], [1], [0], [0], [0, 0, 1, 0], [], []>} : vector<16x32xf32>, vector<128x32xf32>, vector<16x128xf32> -> vector<16x128xf32>
    %cst_152 = arith.constant 0.176776692 : f32
    %276 = vector.broadcast %cst_152 : f32 to vector<16x128xf32>
    %277 = arith.mulf %275, %276 : vector<16x128xf32>
    %278 = arith.addf %277, %7 : vector<16x128xf32>
    %cst_153 = arith.constant dense<0xFF800000> : vector<16xf32>
    %279 = vector.multi_reduction <maximumf>, %278, %cst_153 [1] : vector<16x128xf32> to vector<16xf32>
    %280 = vector.shape_cast %279 : vector<16xf32> to vector<16x1xf32>
    %281 = vector.broadcast %280 : vector<16x1xf32> to vector<16x128xf32>
    %282 = arith.subf %278, %281 : vector<16x128xf32>
    %283 = math.exp %282 : vector<16x128xf32>
    %cst_154 = arith.constant dense<0.000000e+00> : vector<16xf32>
    %284 = vector.multi_reduction <add>, %283, %cst_154 [1] : vector<16x128xf32> to vector<16xf32>
    %285 = vector.shape_cast %284 : vector<16xf32> to vector<16x1xf32>
    %286 = tpu.reciprocal %285 {approx = true} : vector<16x1xf32> -> vector<16x1xf32>
    %287 = vector.broadcast %286 : vector<16x1xf32> to vector<16x128xf32>
    %288 = arith.mulf %283, %287 : vector<16x128xf32>
    %cst_155 = arith.constant dense<0.000000e+00> : vector<16x32xf32>
    %289 = tpu.matmul %288, %188, %cst_155 {dimension_numbers = #tpu.dot_dimension_numbers<[1], [0], [0], [1], [0, 0, 1, 1], [], []>} : vector<16x128xf32>, vector<128x32xf32>, vector<16x32xf32> -> vector<16x32xf32>
    %c11_156 = arith.constant 11 : index
    %c0_157 = arith.constant 0 : index
    %c0_158 = arith.constant 0 : index
    %290 = vector.load %arg10[%c11_156, %c0_157, %c0_158] : memref<22x32x32xf32, #tpu.memory_space<vmem>>, vector<1x32x32xf32>
    %291 = vector.shape_cast %290 : vector<1x32x32xf32> to vector<32x32xf32>
    %c22 = arith.constant 22 : index
    %c0_159 = arith.constant 0 : index
    %292 = vector.load %arg14[%c22, %c0_159] : memref<46x32xf32, #tpu.memory_space<vmem>>, vector<1x32xf32>
    %cst_160 = arith.constant dense<0.000000e+00> : vector<16x32xf32>
    %293 = tpu.matmul %289, %291, %cst_160 {dimension_numbers = #tpu.dot_dimension_numbers<[1], [0], [0], [1], [0, 0, 1, 1], [], []>} : vector<16x32xf32>, vector<32x32xf32>, vector<16x32xf32> -> vector<16x32xf32>
    %294 = vector.broadcast %292 : vector<1x32xf32> to vector<16x32xf32>
    %295 = arith.addf %293, %294 : vector<16x32xf32>
    %296 = arith.addf %267, %295 : vector<16x32xf32>
    %cst_161 = arith.constant dense<0.000000e+00> : vector<16xf32>
    %297 = vector.multi_reduction <add>, %296, %cst_161 [1] : vector<16x32xf32> to vector<16xf32>
    %298 = vector.shape_cast %297 : vector<16xf32> to vector<16x1xf32>
    %cst_162 = arith.constant 3.200000e+01 : f32
    %299 = vector.broadcast %cst_162 : f32 to vector<16x1xf32>
    %300 = arith.divf %298, %299 : vector<16x1xf32>
    %301 = vector.broadcast %300 : vector<16x1xf32> to vector<16x32xf32>
    %302 = arith.subf %296, %301 : vector<16x32xf32>
    %303 = arith.mulf %302, %302 : vector<16x32xf32>
    %cst_163 = arith.constant dense<0.000000e+00> : vector<16xf32>
    %304 = vector.multi_reduction <add>, %303, %cst_163 [1] : vector<16x32xf32> to vector<16xf32>
    %305 = vector.shape_cast %304 : vector<16xf32> to vector<16x1xf32>
    %cst_164 = arith.constant 3.200000e+01 : f32
    %306 = vector.broadcast %cst_164 : f32 to vector<16x1xf32>
    %307 = arith.divf %305, %306 : vector<16x1xf32>
    %308 = vector.broadcast %300 : vector<16x1xf32> to vector<16x32xf32>
    %309 = arith.subf %296, %308 : vector<16x32xf32>
    %cst_165 = arith.constant 9.99999974E-6 : f32
    %310 = vector.broadcast %cst_165 : f32 to vector<16x1xf32>
    %311 = arith.addf %307, %310 : vector<16x1xf32>
    %312 = math.rsqrt %311 : vector<16x1xf32>
    %313 = vector.broadcast %312 : vector<16x1xf32> to vector<16x32xf32>
    %314 = arith.mulf %309, %313 : vector<16x32xf32>
    %c23 = arith.constant 23 : index
    %c0_166 = arith.constant 0 : index
    %315 = vector.load %arg14[%c23, %c0_166] : memref<46x32xf32, #tpu.memory_space<vmem>>, vector<1x32xf32>
    %316 = vector.broadcast %315 : vector<1x32xf32> to vector<16x32xf32>
    %317 = arith.mulf %314, %316 : vector<16x32xf32>
    %c24 = arith.constant 24 : index
    %c0_167 = arith.constant 0 : index
    %318 = vector.load %arg14[%c24, %c0_167] : memref<46x32xf32, #tpu.memory_space<vmem>>, vector<1x32xf32>
    %319 = vector.broadcast %318 : vector<1x32xf32> to vector<16x32xf32>
    %320 = arith.addf %317, %319 : vector<16x32xf32>
    %c1_168 = arith.constant 1 : index
    %c0_169 = arith.constant 0 : index
    %c0_170 = arith.constant 0 : index
    %321 = vector.load %arg11[%c1_168, %c0_169, %c0_170] : memref<3x32x64xf32, #tpu.memory_space<vmem>>, vector<1x32x64xf32>
    %322 = vector.shape_cast %321 : vector<1x32x64xf32> to vector<32x64xf32>
    %c1_171 = arith.constant 1 : index
    %c0_172 = arith.constant 0 : index
    %323 = vector.load %arg15[%c1_171, %c0_172] : memref<3x64xf32, #tpu.memory_space<vmem>>, vector<1x64xf32>
    %cst_173 = arith.constant dense<0.000000e+00> : vector<16x64xf32>
    %324 = tpu.matmul %320, %322, %cst_173 {dimension_numbers = #tpu.dot_dimension_numbers<[1], [0], [0], [1], [0, 0, 1, 1], [], []>} : vector<16x32xf32>, vector<32x64xf32>, vector<16x64xf32> -> vector<16x64xf32>
    %325 = vector.broadcast %323 : vector<1x64xf32> to vector<16x64xf32>
    %326 = arith.addf %324, %325 : vector<16x64xf32>
    %cst_174 = arith.constant 0.000000e+00 : f32
    %327 = vector.broadcast %cst_174 : f32 to vector<16x64xf32>
    %328 = arith.maximumf %326, %327 : vector<16x64xf32>
    %c1_175 = arith.constant 1 : index
    %c0_176 = arith.constant 0 : index
    %c0_177 = arith.constant 0 : index
    %329 = vector.load %arg12[%c1_175, %c0_176, %c0_177] : memref<3x64x32xf32, #tpu.memory_space<vmem>>, vector<1x64x32xf32>
    %330 = vector.shape_cast %329 : vector<1x64x32xf32> to vector<64x32xf32>
    %c25 = arith.constant 25 : index
    %c0_178 = arith.constant 0 : index
    %331 = vector.load %arg14[%c25, %c0_178] : memref<46x32xf32, #tpu.memory_space<vmem>>, vector<1x32xf32>
    %cst_179 = arith.constant dense<0.000000e+00> : vector<16x32xf32>
    %332 = tpu.matmul %328, %330, %cst_179 {dimension_numbers = #tpu.dot_dimension_numbers<[1], [0], [0], [1], [0, 0, 1, 1], [], []>} : vector<16x64xf32>, vector<64x32xf32>, vector<16x32xf32> -> vector<16x32xf32>
    %333 = vector.broadcast %331 : vector<1x32xf32> to vector<16x32xf32>
    %334 = arith.addf %332, %333 : vector<16x32xf32>
    %335 = arith.addf %320, %334 : vector<16x32xf32>
    %cst_180 = arith.constant dense<0.000000e+00> : vector<16xf32>
    %336 = vector.multi_reduction <add>, %335, %cst_180 [1] : vector<16x32xf32> to vector<16xf32>
    %337 = vector.shape_cast %336 : vector<16xf32> to vector<16x1xf32>
    %cst_181 = arith.constant 3.200000e+01 : f32
    %338 = vector.broadcast %cst_181 : f32 to vector<16x1xf32>
    %339 = arith.divf %337, %338 : vector<16x1xf32>
    %340 = vector.broadcast %339 : vector<16x1xf32> to vector<16x32xf32>
    %341 = arith.subf %335, %340 : vector<16x32xf32>
    %342 = arith.mulf %341, %341 : vector<16x32xf32>
    %cst_182 = arith.constant dense<0.000000e+00> : vector<16xf32>
    %343 = vector.multi_reduction <add>, %342, %cst_182 [1] : vector<16x32xf32> to vector<16xf32>
    %344 = vector.shape_cast %343 : vector<16xf32> to vector<16x1xf32>
    %cst_183 = arith.constant 3.200000e+01 : f32
    %345 = vector.broadcast %cst_183 : f32 to vector<16x1xf32>
    %346 = arith.divf %344, %345 : vector<16x1xf32>
    %347 = vector.broadcast %339 : vector<16x1xf32> to vector<16x32xf32>
    %348 = arith.subf %335, %347 : vector<16x32xf32>
    %cst_184 = arith.constant 9.99999974E-6 : f32
    %349 = vector.broadcast %cst_184 : f32 to vector<16x1xf32>
    %350 = arith.addf %346, %349 : vector<16x1xf32>
    %351 = math.rsqrt %350 : vector<16x1xf32>
    %352 = vector.broadcast %351 : vector<16x1xf32> to vector<16x32xf32>
    %353 = arith.mulf %348, %352 : vector<16x32xf32>
    %c26 = arith.constant 26 : index
    %c0_185 = arith.constant 0 : index
    %354 = vector.load %arg14[%c26, %c0_185] : memref<46x32xf32, #tpu.memory_space<vmem>>, vector<1x32xf32>
    %355 = vector.broadcast %354 : vector<1x32xf32> to vector<16x32xf32>
    %356 = arith.mulf %353, %355 : vector<16x32xf32>
    %c27 = arith.constant 27 : index
    %c0_186 = arith.constant 0 : index
    %357 = vector.load %arg14[%c27, %c0_186] : memref<46x32xf32, #tpu.memory_space<vmem>>, vector<1x32xf32>
    %358 = vector.broadcast %357 : vector<1x32xf32> to vector<16x32xf32>
    %359 = arith.addf %356, %358 : vector<16x32xf32>
    %c20_187 = arith.constant 20 : index
    %c0_188 = arith.constant 0 : index
    %c0_189 = arith.constant 0 : index
    %360 = vector.load %arg10[%c20_187, %c0_188, %c0_189] : memref<22x32x32xf32, #tpu.memory_space<vmem>>, vector<1x32x32xf32>
    %361 = vector.shape_cast %360 : vector<1x32x32xf32> to vector<32x32xf32>
    %c44 = arith.constant 44 : index
    %c0_190 = arith.constant 0 : index
    %362 = vector.load %arg14[%c44, %c0_190] : memref<46x32xf32, #tpu.memory_space<vmem>>, vector<1x32xf32>
    %cst_191 = arith.constant dense<0.000000e+00> : vector<16x32xf32>
    %363 = tpu.matmul %359, %361, %cst_191 {dimension_numbers = #tpu.dot_dimension_numbers<[1], [0], [0], [1], [0, 0, 1, 1], [], []>} : vector<16x32xf32>, vector<32x32xf32>, vector<16x32xf32> -> vector<16x32xf32>
    %364 = vector.broadcast %362 : vector<1x32xf32> to vector<16x32xf32>
    %365 = arith.addf %363, %364 : vector<16x32xf32>
    %cst_192 = arith.constant 0.000000e+00 : f32
    %366 = vector.broadcast %cst_192 : f32 to vector<16x32xf32>
    %367 = arith.maximumf %365, %366 : vector<16x32xf32>
    %c21_193 = arith.constant 21 : index
    %c0_194 = arith.constant 0 : index
    %c0_195 = arith.constant 0 : index
    %368 = vector.load %arg10[%c21_193, %c0_194, %c0_195] : memref<22x32x32xf32, #tpu.memory_space<vmem>>, vector<1x32x32xf32>
    %369 = vector.shape_cast %368 : vector<1x32x32xf32> to vector<32x32xf32>
    %c45 = arith.constant 45 : index
    %c0_196 = arith.constant 0 : index
    %370 = vector.load %arg14[%c45, %c0_196] : memref<46x32xf32, #tpu.memory_space<vmem>>, vector<1x32xf32>
    %cst_197 = arith.constant dense<0.000000e+00> : vector<16x32xf32>
    %371 = tpu.matmul %367, %369, %cst_197 {dimension_numbers = #tpu.dot_dimension_numbers<[1], [0], [0], [1], [0, 0, 1, 1], [], []>} : vector<16x32xf32>, vector<32x32xf32>, vector<16x32xf32> -> vector<16x32xf32>
    %372 = vector.broadcast %370 : vector<1x32xf32> to vector<16x32xf32>
    %373 = arith.addf %371, %372 : vector<16x32xf32>
    %cst_198 = arith.constant 0.000000e+00 : f32
    %374 = vector.broadcast %cst_198 : f32 to vector<16x32xf32>
    %375 = arith.maximumf %373, %374 : vector<16x32xf32>
    %c0_199 = arith.constant 0 : index
    %c0_200 = arith.constant 0 : index
    %376 = vector.load %arg18[%c0_199, %c0_200] : memref<32x4xf32, #tpu.memory_space<vmem>>, vector<32x4xf32>
    %c0_201 = arith.constant 0 : index
    %c0_202 = arith.constant 0 : index
    %377 = vector.load %arg19[%c0_201, %c0_202] : memref<1x4xf32, #tpu.memory_space<vmem>>, vector<1x4xf32>
    %cst_203 = arith.constant dense<0.000000e+00> : vector<16x4xf32>
    %378 = tpu.matmul %375, %376, %cst_203 {dimension_numbers = #tpu.dot_dimension_numbers<[1], [0], [0], [1], [0, 0, 1, 1], [], []>} : vector<16x32xf32>, vector<32x4xf32>, vector<16x4xf32> -> vector<16x4xf32>
    %379 = vector.broadcast %377 : vector<1x4xf32> to vector<16x4xf32>
    %380 = arith.addf %378, %379 : vector<16x4xf32>
    %381 = arith.addf %196, %380 : vector<16x4xf32>
    %c1_204 = arith.constant 1 : index
    %c0_205 = arith.constant 0 : index
    %c0_206 = arith.constant 0 : index
    %382 = vector.load %arg13[%c1_204, %c0_205, %c0_206] : memref<2x4x32xf32, #tpu.memory_space<vmem>>, vector<1x4x32xf32>
    %383 = vector.shape_cast %382 : vector<1x4x32xf32> to vector<4x32xf32>
    %c28 = arith.constant 28 : index
    %c0_207 = arith.constant 0 : index
    %384 = vector.load %arg14[%c28, %c0_207] : memref<46x32xf32, #tpu.memory_space<vmem>>, vector<1x32xf32>
    %cst_208 = arith.constant dense<0.000000e+00> : vector<16x32xf32>
    %385 = tpu.matmul %381, %383, %cst_208 {dimension_numbers = #tpu.dot_dimension_numbers<[1], [0], [0], [1], [0, 0, 1, 1], [], []>} : vector<16x4xf32>, vector<4x32xf32>, vector<16x32xf32> -> vector<16x32xf32>
    %386 = vector.broadcast %384 : vector<1x32xf32> to vector<16x32xf32>
    %387 = arith.addf %385, %386 : vector<16x32xf32>
    %388 = arith.addf %359, %387 : vector<16x32xf32>
    %c12_209 = arith.constant 12 : index
    %c0_210 = arith.constant 0 : index
    %c0_211 = arith.constant 0 : index
    %389 = vector.load %arg10[%c12_209, %c0_210, %c0_211] : memref<22x32x32xf32, #tpu.memory_space<vmem>>, vector<1x32x32xf32>
    %390 = vector.shape_cast %389 : vector<1x32x32xf32> to vector<32x32xf32>
    %c29 = arith.constant 29 : index
    %c0_212 = arith.constant 0 : index
    %391 = vector.load %arg14[%c29, %c0_212] : memref<46x32xf32, #tpu.memory_space<vmem>>, vector<1x32xf32>
    %cst_213 = arith.constant dense<0.000000e+00> : vector<16x32xf32>
    %392 = tpu.matmul %388, %390, %cst_213 {dimension_numbers = #tpu.dot_dimension_numbers<[1], [0], [0], [1], [0, 0, 1, 1], [], []>} : vector<16x32xf32>, vector<32x32xf32>, vector<16x32xf32> -> vector<16x32xf32>
    %393 = vector.broadcast %391 : vector<1x32xf32> to vector<16x32xf32>
    %394 = arith.addf %392, %393 : vector<16x32xf32>
    %c13_214 = arith.constant 13 : index
    %c0_215 = arith.constant 0 : index
    %c0_216 = arith.constant 0 : index
    %395 = vector.load %arg10[%c13_214, %c0_215, %c0_216] : memref<22x32x32xf32, #tpu.memory_space<vmem>>, vector<1x32x32xf32>
    %396 = vector.shape_cast %395 : vector<1x32x32xf32> to vector<32x32xf32>
    %c30 = arith.constant 30 : index
    %c0_217 = arith.constant 0 : index
    %397 = vector.load %arg14[%c30, %c0_217] : memref<46x32xf32, #tpu.memory_space<vmem>>, vector<1x32xf32>
    %cst_218 = arith.constant dense<0.000000e+00> : vector<16x32xf32>
    %398 = tpu.matmul %388, %396, %cst_218 {dimension_numbers = #tpu.dot_dimension_numbers<[1], [0], [0], [1], [0, 0, 1, 1], [], []>} : vector<16x32xf32>, vector<32x32xf32>, vector<16x32xf32> -> vector<16x32xf32>
    %399 = vector.broadcast %397 : vector<1x32xf32> to vector<16x32xf32>
    %400 = arith.addf %398, %399 : vector<16x32xf32>
    %c14_219 = arith.constant 14 : index
    %c0_220 = arith.constant 0 : index
    %c0_221 = arith.constant 0 : index
    %401 = vector.load %arg10[%c14_219, %c0_220, %c0_221] : memref<22x32x32xf32, #tpu.memory_space<vmem>>, vector<1x32x32xf32>
    %402 = vector.shape_cast %401 : vector<1x32x32xf32> to vector<32x32xf32>
    %c31 = arith.constant 31 : index
    %c0_222 = arith.constant 0 : index
    %403 = vector.load %arg14[%c31, %c0_222] : memref<46x32xf32, #tpu.memory_space<vmem>>, vector<1x32xf32>
    %cst_223 = arith.constant dense<0.000000e+00> : vector<16x32xf32>
    %404 = tpu.matmul %359, %402, %cst_223 {dimension_numbers = #tpu.dot_dimension_numbers<[1], [0], [0], [1], [0, 0, 1, 1], [], []>} : vector<16x32xf32>, vector<32x32xf32>, vector<16x32xf32> -> vector<16x32xf32>
    %405 = vector.broadcast %403 : vector<1x32xf32> to vector<16x32xf32>
    %406 = arith.addf %404, %405 : vector<16x32xf32>
    %cst_224 = arith.constant dense<0.000000e+00> : vector<16x16xf32>
    %407 = tpu.matmul %394, %400, %cst_224 {dimension_numbers = #tpu.dot_dimension_numbers<[1], [1], [0], [0], [0, 0, 1, 0], [], []>} : vector<16x32xf32>, vector<16x32xf32>, vector<16x16xf32> -> vector<16x16xf32>
    %cst_225 = arith.constant 0.176776692 : f32
    %408 = vector.broadcast %cst_225 : f32 to vector<16x16xf32>
    %409 = arith.mulf %407, %408 : vector<16x16xf32>
    %410 = arith.addf %409, %8 : vector<16x16xf32>
    %cst_226 = arith.constant dense<0xFF800000> : vector<16xf32>
    %411 = vector.multi_reduction <maximumf>, %410, %cst_226 [1] : vector<16x16xf32> to vector<16xf32>
    %412 = vector.shape_cast %411 : vector<16xf32> to vector<16x1xf32>
    %413 = vector.broadcast %412 : vector<16x1xf32> to vector<16x16xf32>
    %414 = arith.subf %410, %413 : vector<16x16xf32>
    %415 = math.exp %414 : vector<16x16xf32>
    %cst_227 = arith.constant dense<0.000000e+00> : vector<16xf32>
    %416 = vector.multi_reduction <add>, %415, %cst_227 [1] : vector<16x16xf32> to vector<16xf32>
    %417 = vector.shape_cast %416 : vector<16xf32> to vector<16x1xf32>
    %418 = tpu.reciprocal %417 {approx = true} : vector<16x1xf32> -> vector<16x1xf32>
    %419 = vector.broadcast %418 : vector<16x1xf32> to vector<16x16xf32>
    %420 = arith.mulf %415, %419 : vector<16x16xf32>
    %cst_228 = arith.constant dense<0.000000e+00> : vector<16x32xf32>
    %421 = tpu.matmul %420, %406, %cst_228 {dimension_numbers = #tpu.dot_dimension_numbers<[1], [0], [0], [1], [0, 0, 1, 1], [], []>} : vector<16x16xf32>, vector<16x32xf32>, vector<16x32xf32> -> vector<16x32xf32>
    %c15_229 = arith.constant 15 : index
    %c0_230 = arith.constant 0 : index
    %c0_231 = arith.constant 0 : index
    %422 = vector.load %arg10[%c15_229, %c0_230, %c0_231] : memref<22x32x32xf32, #tpu.memory_space<vmem>>, vector<1x32x32xf32>
    %423 = vector.shape_cast %422 : vector<1x32x32xf32> to vector<32x32xf32>
    %c32 = arith.constant 32 : index
    %c0_232 = arith.constant 0 : index
    %424 = vector.load %arg14[%c32, %c0_232] : memref<46x32xf32, #tpu.memory_space<vmem>>, vector<1x32xf32>
    %cst_233 = arith.constant dense<0.000000e+00> : vector<16x32xf32>
    %425 = tpu.matmul %421, %423, %cst_233 {dimension_numbers = #tpu.dot_dimension_numbers<[1], [0], [0], [1], [0, 0, 1, 1], [], []>} : vector<16x32xf32>, vector<32x32xf32>, vector<16x32xf32> -> vector<16x32xf32>
    %426 = vector.broadcast %424 : vector<1x32xf32> to vector<16x32xf32>
    %427 = arith.addf %425, %426 : vector<16x32xf32>
    %428 = arith.addf %359, %427 : vector<16x32xf32>
    %cst_234 = arith.constant dense<0.000000e+00> : vector<16xf32>
    %429 = vector.multi_reduction <add>, %428, %cst_234 [1] : vector<16x32xf32> to vector<16xf32>
    %430 = vector.shape_cast %429 : vector<16xf32> to vector<16x1xf32>
    %cst_235 = arith.constant 3.200000e+01 : f32
    %431 = vector.broadcast %cst_235 : f32 to vector<16x1xf32>
    %432 = arith.divf %430, %431 : vector<16x1xf32>
    %433 = vector.broadcast %432 : vector<16x1xf32> to vector<16x32xf32>
    %434 = arith.subf %428, %433 : vector<16x32xf32>
    %435 = arith.mulf %434, %434 : vector<16x32xf32>
    %cst_236 = arith.constant dense<0.000000e+00> : vector<16xf32>
    %436 = vector.multi_reduction <add>, %435, %cst_236 [1] : vector<16x32xf32> to vector<16xf32>
    %437 = vector.shape_cast %436 : vector<16xf32> to vector<16x1xf32>
    %cst_237 = arith.constant 3.200000e+01 : f32
    %438 = vector.broadcast %cst_237 : f32 to vector<16x1xf32>
    %439 = arith.divf %437, %438 : vector<16x1xf32>
    %440 = vector.broadcast %432 : vector<16x1xf32> to vector<16x32xf32>
    %441 = arith.subf %428, %440 : vector<16x32xf32>
    %cst_238 = arith.constant 9.99999974E-6 : f32
    %442 = vector.broadcast %cst_238 : f32 to vector<16x1xf32>
    %443 = arith.addf %439, %442 : vector<16x1xf32>
    %444 = math.rsqrt %443 : vector<16x1xf32>
    %445 = vector.broadcast %444 : vector<16x1xf32> to vector<16x32xf32>
    %446 = arith.mulf %441, %445 : vector<16x32xf32>
    %c33 = arith.constant 33 : index
    %c0_239 = arith.constant 0 : index
    %447 = vector.load %arg14[%c33, %c0_239] : memref<46x32xf32, #tpu.memory_space<vmem>>, vector<1x32xf32>
    %448 = vector.broadcast %447 : vector<1x32xf32> to vector<16x32xf32>
    %449 = arith.mulf %446, %448 : vector<16x32xf32>
    %c34 = arith.constant 34 : index
    %c0_240 = arith.constant 0 : index
    %450 = vector.load %arg14[%c34, %c0_240] : memref<46x32xf32, #tpu.memory_space<vmem>>, vector<1x32xf32>
    %451 = vector.broadcast %450 : vector<1x32xf32> to vector<16x32xf32>
    %452 = arith.addf %449, %451 : vector<16x32xf32>
    %453 = arith.addf %452, %387 : vector<16x32xf32>
    %c16_241 = arith.constant 16 : index
    %c0_242 = arith.constant 0 : index
    %c0_243 = arith.constant 0 : index
    %454 = vector.load %arg10[%c16_241, %c0_242, %c0_243] : memref<22x32x32xf32, #tpu.memory_space<vmem>>, vector<1x32x32xf32>
    %455 = vector.shape_cast %454 : vector<1x32x32xf32> to vector<32x32xf32>
    %c35 = arith.constant 35 : index
    %c0_244 = arith.constant 0 : index
    %456 = vector.load %arg14[%c35, %c0_244] : memref<46x32xf32, #tpu.memory_space<vmem>>, vector<1x32xf32>
    %cst_245 = arith.constant dense<0.000000e+00> : vector<16x32xf32>
    %457 = tpu.matmul %453, %455, %cst_245 {dimension_numbers = #tpu.dot_dimension_numbers<[1], [0], [0], [1], [0, 0, 1, 1], [], []>} : vector<16x32xf32>, vector<32x32xf32>, vector<16x32xf32> -> vector<16x32xf32>
    %458 = vector.broadcast %456 : vector<1x32xf32> to vector<16x32xf32>
    %459 = arith.addf %457, %458 : vector<16x32xf32>
    %cst_246 = arith.constant dense<0.000000e+00> : vector<16x128xf32>
    %460 = tpu.matmul %459, %182, %cst_246 {dimension_numbers = #tpu.dot_dimension_numbers<[1], [1], [0], [0], [0, 0, 1, 0], [], []>} : vector<16x32xf32>, vector<128x32xf32>, vector<16x128xf32> -> vector<16x128xf32>
    %cst_247 = arith.constant 0.176776692 : f32
    %461 = vector.broadcast %cst_247 : f32 to vector<16x128xf32>
    %462 = arith.mulf %460, %461 : vector<16x128xf32>
    %463 = arith.addf %462, %7 : vector<16x128xf32>
    %cst_248 = arith.constant dense<0xFF800000> : vector<16xf32>
    %464 = vector.multi_reduction <maximumf>, %463, %cst_248 [1] : vector<16x128xf32> to vector<16xf32>
    %465 = vector.shape_cast %464 : vector<16xf32> to vector<16x1xf32>
    %466 = vector.broadcast %465 : vector<16x1xf32> to vector<16x128xf32>
    %467 = arith.subf %463, %466 : vector<16x128xf32>
    %468 = math.exp %467 : vector<16x128xf32>
    %cst_249 = arith.constant dense<0.000000e+00> : vector<16xf32>
    %469 = vector.multi_reduction <add>, %468, %cst_249 [1] : vector<16x128xf32> to vector<16xf32>
    %470 = vector.shape_cast %469 : vector<16xf32> to vector<16x1xf32>
    %471 = tpu.reciprocal %470 {approx = true} : vector<16x1xf32> -> vector<16x1xf32>
    %472 = vector.broadcast %471 : vector<16x1xf32> to vector<16x128xf32>
    %473 = arith.mulf %468, %472 : vector<16x128xf32>
    %cst_250 = arith.constant dense<0.000000e+00> : vector<16x32xf32>
    %474 = tpu.matmul %473, %194, %cst_250 {dimension_numbers = #tpu.dot_dimension_numbers<[1], [0], [0], [1], [0, 0, 1, 1], [], []>} : vector<16x128xf32>, vector<128x32xf32>, vector<16x32xf32> -> vector<16x32xf32>
    %c19_251 = arith.constant 19 : index
    %c0_252 = arith.constant 0 : index
    %c0_253 = arith.constant 0 : index
    %475 = vector.load %arg10[%c19_251, %c0_252, %c0_253] : memref<22x32x32xf32, #tpu.memory_space<vmem>>, vector<1x32x32xf32>
    %476 = vector.shape_cast %475 : vector<1x32x32xf32> to vector<32x32xf32>
    %c38 = arith.constant 38 : index
    %c0_254 = arith.constant 0 : index
    %477 = vector.load %arg14[%c38, %c0_254] : memref<46x32xf32, #tpu.memory_space<vmem>>, vector<1x32xf32>
    %cst_255 = arith.constant dense<0.000000e+00> : vector<16x32xf32>
    %478 = tpu.matmul %474, %476, %cst_255 {dimension_numbers = #tpu.dot_dimension_numbers<[1], [0], [0], [1], [0, 0, 1, 1], [], []>} : vector<16x32xf32>, vector<32x32xf32>, vector<16x32xf32> -> vector<16x32xf32>
    %479 = vector.broadcast %477 : vector<1x32xf32> to vector<16x32xf32>
    %480 = arith.addf %478, %479 : vector<16x32xf32>
    %481 = arith.addf %452, %480 : vector<16x32xf32>
    %cst_256 = arith.constant dense<0.000000e+00> : vector<16xf32>
    %482 = vector.multi_reduction <add>, %481, %cst_256 [1] : vector<16x32xf32> to vector<16xf32>
    %483 = vector.shape_cast %482 : vector<16xf32> to vector<16x1xf32>
    %cst_257 = arith.constant 3.200000e+01 : f32
    %484 = vector.broadcast %cst_257 : f32 to vector<16x1xf32>
    %485 = arith.divf %483, %484 : vector<16x1xf32>
    %486 = vector.broadcast %485 : vector<16x1xf32> to vector<16x32xf32>
    %487 = arith.subf %481, %486 : vector<16x32xf32>
    %488 = arith.mulf %487, %487 : vector<16x32xf32>
    %cst_258 = arith.constant dense<0.000000e+00> : vector<16xf32>
    %489 = vector.multi_reduction <add>, %488, %cst_258 [1] : vector<16x32xf32> to vector<16xf32>
    %490 = vector.shape_cast %489 : vector<16xf32> to vector<16x1xf32>
    %cst_259 = arith.constant 3.200000e+01 : f32
    %491 = vector.broadcast %cst_259 : f32 to vector<16x1xf32>
    %492 = arith.divf %490, %491 : vector<16x1xf32>
    %493 = vector.broadcast %485 : vector<16x1xf32> to vector<16x32xf32>
    %494 = arith.subf %481, %493 : vector<16x32xf32>
    %cst_260 = arith.constant 9.99999974E-6 : f32
    %495 = vector.broadcast %cst_260 : f32 to vector<16x1xf32>
    %496 = arith.addf %492, %495 : vector<16x1xf32>
    %497 = math.rsqrt %496 : vector<16x1xf32>
    %498 = vector.broadcast %497 : vector<16x1xf32> to vector<16x32xf32>
    %499 = arith.mulf %494, %498 : vector<16x32xf32>
    %c39 = arith.constant 39 : index
    %c0_261 = arith.constant 0 : index
    %500 = vector.load %arg14[%c39, %c0_261] : memref<46x32xf32, #tpu.memory_space<vmem>>, vector<1x32xf32>
    %501 = vector.broadcast %500 : vector<1x32xf32> to vector<16x32xf32>
    %502 = arith.mulf %499, %501 : vector<16x32xf32>
    %c40 = arith.constant 40 : index
    %c0_262 = arith.constant 0 : index
    %503 = vector.load %arg14[%c40, %c0_262] : memref<46x32xf32, #tpu.memory_space<vmem>>, vector<1x32xf32>
    %504 = vector.broadcast %503 : vector<1x32xf32> to vector<16x32xf32>
    %505 = arith.addf %502, %504 : vector<16x32xf32>
    %c2_263 = arith.constant 2 : index
    %c0_264 = arith.constant 0 : index
    %c0_265 = arith.constant 0 : index
    %506 = vector.load %arg11[%c2_263, %c0_264, %c0_265] : memref<3x32x64xf32, #tpu.memory_space<vmem>>, vector<1x32x64xf32>
    %507 = vector.shape_cast %506 : vector<1x32x64xf32> to vector<32x64xf32>
    %c2_266 = arith.constant 2 : index
    %c0_267 = arith.constant 0 : index
    %508 = vector.load %arg15[%c2_266, %c0_267] : memref<3x64xf32, #tpu.memory_space<vmem>>, vector<1x64xf32>
    %cst_268 = arith.constant dense<0.000000e+00> : vector<16x64xf32>
    %509 = tpu.matmul %505, %507, %cst_268 {dimension_numbers = #tpu.dot_dimension_numbers<[1], [0], [0], [1], [0, 0, 1, 1], [], []>} : vector<16x32xf32>, vector<32x64xf32>, vector<16x64xf32> -> vector<16x64xf32>
    %510 = vector.broadcast %508 : vector<1x64xf32> to vector<16x64xf32>
    %511 = arith.addf %509, %510 : vector<16x64xf32>
    %cst_269 = arith.constant 0.000000e+00 : f32
    %512 = vector.broadcast %cst_269 : f32 to vector<16x64xf32>
    %513 = arith.maximumf %511, %512 : vector<16x64xf32>
    %c2_270 = arith.constant 2 : index
    %c0_271 = arith.constant 0 : index
    %c0_272 = arith.constant 0 : index
    %514 = vector.load %arg12[%c2_270, %c0_271, %c0_272] : memref<3x64x32xf32, #tpu.memory_space<vmem>>, vector<1x64x32xf32>
    %515 = vector.shape_cast %514 : vector<1x64x32xf32> to vector<64x32xf32>
    %c41 = arith.constant 41 : index
    %c0_273 = arith.constant 0 : index
    %516 = vector.load %arg14[%c41, %c0_273] : memref<46x32xf32, #tpu.memory_space<vmem>>, vector<1x32xf32>
    %cst_274 = arith.constant dense<0.000000e+00> : vector<16x32xf32>
    %517 = tpu.matmul %513, %515, %cst_274 {dimension_numbers = #tpu.dot_dimension_numbers<[1], [0], [0], [1], [0, 0, 1, 1], [], []>} : vector<16x64xf32>, vector<64x32xf32>, vector<16x32xf32> -> vector<16x32xf32>
    %518 = vector.broadcast %516 : vector<1x32xf32> to vector<16x32xf32>
    %519 = arith.addf %517, %518 : vector<16x32xf32>
    %520 = arith.addf %505, %519 : vector<16x32xf32>
    %cst_275 = arith.constant dense<0.000000e+00> : vector<16xf32>
    %521 = vector.multi_reduction <add>, %520, %cst_275 [1] : vector<16x32xf32> to vector<16xf32>
    %522 = vector.shape_cast %521 : vector<16xf32> to vector<16x1xf32>
    %cst_276 = arith.constant 3.200000e+01 : f32
    %523 = vector.broadcast %cst_276 : f32 to vector<16x1xf32>
    %524 = arith.divf %522, %523 : vector<16x1xf32>
    %525 = vector.broadcast %524 : vector<16x1xf32> to vector<16x32xf32>
    %526 = arith.subf %520, %525 : vector<16x32xf32>
    %527 = arith.mulf %526, %526 : vector<16x32xf32>
    %cst_277 = arith.constant dense<0.000000e+00> : vector<16xf32>
    %528 = vector.multi_reduction <add>, %527, %cst_277 [1] : vector<16x32xf32> to vector<16xf32>
    %529 = vector.shape_cast %528 : vector<16xf32> to vector<16x1xf32>
    %cst_278 = arith.constant 3.200000e+01 : f32
    %530 = vector.broadcast %cst_278 : f32 to vector<16x1xf32>
    %531 = arith.divf %529, %530 : vector<16x1xf32>
    %532 = vector.broadcast %524 : vector<16x1xf32> to vector<16x32xf32>
    %533 = arith.subf %520, %532 : vector<16x32xf32>
    %cst_279 = arith.constant 9.99999974E-6 : f32
    %534 = vector.broadcast %cst_279 : f32 to vector<16x1xf32>
    %535 = arith.addf %531, %534 : vector<16x1xf32>
    %536 = math.rsqrt %535 : vector<16x1xf32>
    %537 = vector.broadcast %536 : vector<16x1xf32> to vector<16x32xf32>
    %538 = arith.mulf %533, %537 : vector<16x32xf32>
    %c42 = arith.constant 42 : index
    %c0_280 = arith.constant 0 : index
    %539 = vector.load %arg14[%c42, %c0_280] : memref<46x32xf32, #tpu.memory_space<vmem>>, vector<1x32xf32>
    %540 = vector.broadcast %539 : vector<1x32xf32> to vector<16x32xf32>
    %541 = arith.mulf %538, %540 : vector<16x32xf32>
    %c43 = arith.constant 43 : index
    %c0_281 = arith.constant 0 : index
    %542 = vector.load %arg14[%c43, %c0_281] : memref<46x32xf32, #tpu.memory_space<vmem>>, vector<1x32xf32>
    %543 = vector.broadcast %542 : vector<1x32xf32> to vector<16x32xf32>
    %544 = arith.addf %541, %543 : vector<16x32xf32>
    %545 = arith.negf %381 : vector<16x4xf32>
    %546 = math.exp %545 : vector<16x4xf32>
    %cst_282 = arith.constant 1.000000e+00 : f32
    %547 = vector.broadcast %cst_282 : f32 to vector<16x4xf32>
    %548 = arith.addf %547, %546 : vector<16x4xf32>
    %549 = arith.divf %547, %548 : vector<16x4xf32>
    %c20_283 = arith.constant 20 : index
    %c0_284 = arith.constant 0 : index
    %c0_285 = arith.constant 0 : index
    %550 = vector.load %arg10[%c20_283, %c0_284, %c0_285] : memref<22x32x32xf32, #tpu.memory_space<vmem>>, vector<1x32x32xf32>
    %551 = vector.shape_cast %550 : vector<1x32x32xf32> to vector<32x32xf32>
    %c44_286 = arith.constant 44 : index
    %c0_287 = arith.constant 0 : index
    %552 = vector.load %arg14[%c44_286, %c0_287] : memref<46x32xf32, #tpu.memory_space<vmem>>, vector<1x32xf32>
    %cst_288 = arith.constant dense<0.000000e+00> : vector<16x32xf32>
    %553 = tpu.matmul %544, %551, %cst_288 {dimension_numbers = #tpu.dot_dimension_numbers<[1], [0], [0], [1], [0, 0, 1, 1], [], []>} : vector<16x32xf32>, vector<32x32xf32>, vector<16x32xf32> -> vector<16x32xf32>
    %554 = vector.broadcast %552 : vector<1x32xf32> to vector<16x32xf32>
    %555 = arith.addf %553, %554 : vector<16x32xf32>
    %cst_289 = arith.constant 0.000000e+00 : f32
    %556 = vector.broadcast %cst_289 : f32 to vector<16x32xf32>
    %557 = arith.maximumf %555, %556 : vector<16x32xf32>
    %c21_290 = arith.constant 21 : index
    %c0_291 = arith.constant 0 : index
    %c0_292 = arith.constant 0 : index
    %558 = vector.load %arg10[%c21_290, %c0_291, %c0_292] : memref<22x32x32xf32, #tpu.memory_space<vmem>>, vector<1x32x32xf32>
    %559 = vector.shape_cast %558 : vector<1x32x32xf32> to vector<32x32xf32>
    %c45_293 = arith.constant 45 : index
    %c0_294 = arith.constant 0 : index
    %560 = vector.load %arg14[%c45_293, %c0_294] : memref<46x32xf32, #tpu.memory_space<vmem>>, vector<1x32xf32>
    %cst_295 = arith.constant dense<0.000000e+00> : vector<16x32xf32>
    %561 = tpu.matmul %557, %559, %cst_295 {dimension_numbers = #tpu.dot_dimension_numbers<[1], [0], [0], [1], [0, 0, 1, 1], [], []>} : vector<16x32xf32>, vector<32x32xf32>, vector<16x32xf32> -> vector<16x32xf32>
    %562 = vector.broadcast %560 : vector<1x32xf32> to vector<16x32xf32>
    %563 = arith.addf %561, %562 : vector<16x32xf32>
    %cst_296 = arith.constant 0.000000e+00 : f32
    %564 = vector.broadcast %cst_296 : f32 to vector<16x32xf32>
    %565 = arith.maximumf %563, %564 : vector<16x32xf32>
    %c0_297 = arith.constant 0 : index
    %c0_298 = arith.constant 0 : index
    %566 = vector.load %arg18[%c0_297, %c0_298] : memref<32x4xf32, #tpu.memory_space<vmem>>, vector<32x4xf32>
    %c0_299 = arith.constant 0 : index
    %c0_300 = arith.constant 0 : index
    %567 = vector.load %arg19[%c0_299, %c0_300] : memref<1x4xf32, #tpu.memory_space<vmem>>, vector<1x4xf32>
    %cst_301 = arith.constant dense<0.000000e+00> : vector<16x4xf32>
    %568 = tpu.matmul %565, %566, %cst_301 {dimension_numbers = #tpu.dot_dimension_numbers<[1], [0], [0], [1], [0, 0, 1, 1], [], []>} : vector<16x32xf32>, vector<32x4xf32>, vector<16x4xf32> -> vector<16x4xf32>
    %569 = vector.broadcast %567 : vector<1x4xf32> to vector<16x4xf32>
    %570 = arith.addf %568, %569 : vector<16x4xf32>
    %cst_302 = arith.constant 0.000000e+00 : f32
    %cst_303 = arith.constant 1.000000e+00 : f32
    %571 = vector.broadcast %cst_302 : f32 to vector<16x4xf32>
    %572 = arith.maximumf %571, %549 : vector<16x4xf32>
    %573 = vector.broadcast %cst_303 : f32 to vector<16x4xf32>
    %574 = arith.minimumf %573, %572 : vector<16x4xf32>
    %cst_304 = arith.constant 1.000000e-03 : f32
    %575 = vector.broadcast %cst_304 : f32 to vector<16x4xf32>
    %576 = arith.maximumf %574, %575 : vector<16x4xf32>
    %cst_305 = arith.constant 1.000000e+00 : f32
    %577 = vector.broadcast %cst_305 : f32 to vector<16x4xf32>
    %578 = arith.subf %577, %574 : vector<16x4xf32>
    %cst_306 = arith.constant 1.000000e-03 : f32
    %579 = vector.broadcast %cst_306 : f32 to vector<16x4xf32>
    %580 = arith.maximumf %578, %579 : vector<16x4xf32>
    %581 = arith.divf %576, %580 : vector<16x4xf32>
    %582 = math.log %581 : vector<16x4xf32>
    %583 = arith.addf %582, %570 : vector<16x4xf32>
    %584 = arith.negf %583 : vector<16x4xf32>
    %585 = math.exp %584 : vector<16x4xf32>
    %cst_307 = arith.constant 1.000000e+00 : f32
    %586 = vector.broadcast %cst_307 : f32 to vector<16x4xf32>
    %587 = arith.addf %586, %585 : vector<16x4xf32>
    %588 = arith.divf %586, %587 : vector<16x4xf32>
    %c0_308 = arith.constant 0 : index
    %c0_309 = arith.constant 0 : index
    %589 = vector.load %arg16[%c0_308, %c0_309] : memref<32x2xf32, #tpu.memory_space<vmem>>, vector<32x2xf32>
    %c0_310 = arith.constant 0 : index
    %c0_311 = arith.constant 0 : index
    %590 = vector.load %arg17[%c0_310, %c0_311] : memref<1x2xf32, #tpu.memory_space<vmem>>, vector<1x2xf32>
    %cst_312 = arith.constant dense<0.000000e+00> : vector<16x2xf32>
    %591 = tpu.matmul %544, %589, %cst_312 {dimension_numbers = #tpu.dot_dimension_numbers<[1], [0], [0], [1], [0, 0, 1, 1], [], []>} : vector<16x32xf32>, vector<32x2xf32>, vector<16x2xf32> -> vector<16x2xf32>
    %592 = vector.broadcast %590 : vector<1x2xf32> to vector<16x2xf32>
    %593 = arith.addf %591, %592 : vector<16x2xf32>
    %cst_313 = arith.constant 0.000000e+00 : f32
    %594 = vector.broadcast %cst_313 : f32 to vector<16x2xf32>
    %595 = tpu.concatenate %593, %588, %594 in 1 : vector<16x2xf32>, vector<16x4xf32>, vector<16x2xf32> -> vector<16x8xf32>
    %c0_314 = arith.constant 0 : index
    %c0_315 = arith.constant 0 : index
    %c0_316 = arith.constant 0 : index
    %596 = vector.load %arg20[%c0_314, %c0_315, %c0_316] : memref<1x16x8xf32, #tpu.memory_space<vmem>>, vector<1x16x8xf32>
    %597 = vector.shape_cast %596 : vector<1x16x8xf32> to vector<16x8xf32>
    %598 = vector.shape_cast %595 : vector<16x8xf32> to vector<1x16x8xf32>
    tpu.vector_store %arg20[%c0_314, %c0_315, %c0_316], %598 {strides = array<i32>} : memref<1x16x8xf32, #tpu.memory_space<vmem>>, vector<1x16x8xf32>,
    return
  }
  func.func @transform_0(%arg0: i32) -> (i32, i32, i32) {
    %c0_i32 = arith.constant 0 : i32
    %c0_i32_0 = arith.constant 0 : i32
    %c0_i32_1 = arith.constant 0 : i32
    return %arg0, %c0_i32, %c0_i32_0 : i32, i32, i32
  }
  func.func @transform_1(%arg0: i32) -> (i32, i32, i32) {
    %c0_i32 = arith.constant 0 : i32
    %c0_i32_0 = arith.constant 0 : i32
    %c0_i32_1 = arith.constant 0 : i32
    return %arg0, %c0_i32, %c0_i32_0 : i32, i32, i32
  }
  func.func @transform_2(%arg0: i32) -> (i32, i32, i32) {
    %c0_i32 = arith.constant 0 : i32
    %c0_i32_0 = arith.constant 0 : i32
    %c0_i32_1 = arith.constant 0 : i32
    return %arg0, %c0_i32, %c0_i32_0 : i32, i32, i32
  }
  func.func @transform_3(%arg0: i32) -> (i32, i32, i32) {
    %c0_i32 = arith.constant 0 : i32
    %c0_i32_0 = arith.constant 0 : i32
    %c0_i32_1 = arith.constant 0 : i32
    return %arg0, %c0_i32, %c0_i32_0 : i32, i32, i32
  }
  func.func @transform_4(%arg0: i32) -> (i32, i32) {
    %c0_i32 = arith.constant 0 : i32
    %c0_i32_0 = arith.constant 0 : i32
    %c0_i32_1 = arith.constant 0 : i32
    return %c0_i32, %c0_i32_0 : i32, i32
  }
  func.func @transform_5(%arg0: i32) -> (i32, i32) {
    %c0_i32 = arith.constant 0 : i32
    %c0_i32_0 = arith.constant 0 : i32
    %c0_i32_1 = arith.constant 0 : i32
    return %c0_i32, %c0_i32_0 : i32, i32
  }
  func.func @transform_6(%arg0: i32) -> (i32, i32) {
    %c0_i32 = arith.constant 0 : i32
    %c0_i32_0 = arith.constant 0 : i32
    %c0_i32_1 = arith.constant 0 : i32
    return %c0_i32, %c0_i32_0 : i32, i32
  }
  func.func @transform_7(%arg0: i32) -> (i32, i32) {
    %c0_i32 = arith.constant 0 : i32
    %c0_i32_0 = arith.constant 0 : i32
    %c0_i32_1 = arith.constant 0 : i32
    return %c0_i32, %c0_i32_0 : i32, i32
  }
  func.func @transform_8(%arg0: i32) -> (i32, i32) {
    %c0_i32 = arith.constant 0 : i32
    %c0_i32_0 = arith.constant 0 : i32
    %c0_i32_1 = arith.constant 0 : i32
    return %c0_i32, %c0_i32_0 : i32, i32
  }
  func.func @transform_9(%arg0: i32) -> (i32, i32, i32) {
    %c0_i32 = arith.constant 0 : i32
    %c0_i32_0 = arith.constant 0 : i32
    %c0_i32_1 = arith.constant 0 : i32
    %c0_i32_2 = arith.constant 0 : i32
    return %c0_i32, %c0_i32_0, %c0_i32_1 : i32, i32, i32
  }
  func.func @transform_10(%arg0: i32) -> (i32, i32, i32) {
    %c0_i32 = arith.constant 0 : i32
    %c0_i32_0 = arith.constant 0 : i32
    %c0_i32_1 = arith.constant 0 : i32
    %c0_i32_2 = arith.constant 0 : i32
    return %c0_i32, %c0_i32_0, %c0_i32_1 : i32, i32, i32
  }
  func.func @transform_11(%arg0: i32) -> (i32, i32, i32) {
    %c0_i32 = arith.constant 0 : i32
    %c0_i32_0 = arith.constant 0 : i32
    %c0_i32_1 = arith.constant 0 : i32
    %c0_i32_2 = arith.constant 0 : i32
    return %c0_i32, %c0_i32_0, %c0_i32_1 : i32, i32, i32
  }
  func.func @transform_12(%arg0: i32) -> (i32, i32, i32) {
    %c0_i32 = arith.constant 0 : i32
    %c0_i32_0 = arith.constant 0 : i32
    %c0_i32_1 = arith.constant 0 : i32
    %c0_i32_2 = arith.constant 0 : i32
    return %c0_i32, %c0_i32_0, %c0_i32_1 : i32, i32, i32
  }
  func.func @transform_13(%arg0: i32) -> (i32, i32) {
    %c0_i32 = arith.constant 0 : i32
    %c0_i32_0 = arith.constant 0 : i32
    %c0_i32_1 = arith.constant 0 : i32
    return %c0_i32, %c0_i32_0 : i32, i32
  }
  func.func @transform_14(%arg0: i32) -> (i32, i32) {
    %c0_i32 = arith.constant 0 : i32
    %c0_i32_0 = arith.constant 0 : i32
    %c0_i32_1 = arith.constant 0 : i32
    return %c0_i32, %c0_i32_0 : i32, i32
  }
  func.func @transform_15(%arg0: i32) -> (i32, i32) {
    %c0_i32 = arith.constant 0 : i32
    %c0_i32_0 = arith.constant 0 : i32
    %c0_i32_1 = arith.constant 0 : i32
    return %c0_i32, %c0_i32_0 : i32, i32
  }
  func.func @transform_16(%arg0: i32) -> (i32, i32) {
    %c0_i32 = arith.constant 0 : i32
    %c0_i32_0 = arith.constant 0 : i32
    %c0_i32_1 = arith.constant 0 : i32
    return %c0_i32, %c0_i32_0 : i32, i32
  }
  func.func @transform_17(%arg0: i32) -> (i32, i32) {
    %c0_i32 = arith.constant 0 : i32
    %c0_i32_0 = arith.constant 0 : i32
    %c0_i32_1 = arith.constant 0 : i32
    return %c0_i32, %c0_i32_0 : i32, i32
  }
  func.func @transform_18(%arg0: i32) -> (i32, i32) {
    %c0_i32 = arith.constant 0 : i32
    %c0_i32_0 = arith.constant 0 : i32
    %c0_i32_1 = arith.constant 0 : i32
    return %c0_i32, %c0_i32_0 : i32, i32
  }
  func.func @transform_19(%arg0: i32) -> (i32, i32, i32) {
    %c0_i32 = arith.constant 0 : i32
    %c0_i32_0 = arith.constant 0 : i32
    %c0_i32_1 = arith.constant 0 : i32
    return %arg0, %c0_i32, %c0_i32_0 : i32, i32, i32
  }
}

</mosaic_0001>

<llo_original>
// kernel: co_detr_forward.1
$region0: #{co_detr_forward.1}
  #allocation0 [shape = 'u32[]', space=smem, size = 0x4, offset = 0x4, fixed_abs, tag = 'smem constant byte address 0x4 - core index']
  #allocation1 [shape = 'u32[144,128]{1,0:T(1,128)}', space=vmem, size = 0x12000, scoped, tag = 'internal scratch']
  %s0 = inlined_call_operand.vmem [shape: f32[1,128,3], index: 0, kind: input, shape index: {}]
  %s1 = inlined_call_operand.vmem [shape: f32[1,128,32], index: 1, kind: input, shape index: {}]
  %s2 = inlined_call_operand.vmem [shape: f32[1,128,128], index: 2, kind: input, shape index: {}]
  %s3 = inlined_call_operand.vmem [shape: f32[1,16,128], index: 3, kind: input, shape index: {}]
  %s4 = inlined_call_operand.vmem [shape: f32[16,16], index: 4, kind: input, shape index: {}]
  %s5 = inlined_call_operand.vmem [shape: f32[16,4], index: 5, kind: input, shape index: {}]
  %s6 = inlined_call_operand.vmem [shape: f32[3,16], index: 6, kind: input, shape index: {}]
  %s7 = inlined_call_operand.vmem [shape: f32[1,16], index: 7, kind: input, shape index: {}]
  %s8 = inlined_call_operand.vmem [shape: f32[16,32], index: 8, kind: input, shape index: {}]
  %s9 = inlined_call_operand.vmem [shape: f32[22,32,32], index: 9, kind: input, shape index: {}]
  %s10 = inlined_call_operand.vmem [shape: f32[3,32,64], index: 10, kind: input, shape index: {}]
  %s11 = inlined_call_operand.vmem [shape: f32[3,64,32], index: 11, kind: input, shape index: {}]
  %s12 = inlined_call_operand.vmem [shape: f32[2,4,32], index: 12, kind: input, shape index: {}]
  %s13 = inlined_call_operand.vmem [shape: f32[46,32], index: 13, kind: input, shape index: {}]
  %s14 = inlined_call_operand.vmem [shape: f32[3,64], index: 14, kind: input, shape index: {}]
  %s15 = inlined_call_operand.vmem [shape: f32[32,2], index: 15, kind: input, shape index: {}]
  %s16 = inlined_call_operand.vmem [shape: f32[1,2], index: 16, kind: input, shape index: {}]
  %s17 = inlined_call_operand.vmem [shape: f32[32,4], index: 17, kind: input, shape index: {}]
  %s18 = inlined_call_operand.vmem [shape: f32[1,4], index: 18, kind: input, shape index: {}]
  %s19 = inlined_call_operand.vmem [shape: f32[1,16,8], index: 19, kind: output, shape index: {}]
  %s20 = sld [smem:[#allocation0]]
  $region86: #{co_detr_forward.1} parent=0
    _
  %s22 = ssub.s32 1, %s20
  %s23 = scalar_select 0, %s22, %s20
  // Predicated region
  $region2: #{co_detr_forward.1} parent=0 // pred_check
    _
  $region3: #{co_detr_forward.1} parent=0 // pred_check_branch
    %25 = sbr.rel (0) target = $region5
  $region4: #{co_detr_forward.1} parent=0 // pred_region
    _
  $region5: #{co_detr_forward.1} parent=0 // pred_fallthru
    _
  // Predicated region
  $region6: #{co_detr_forward.1} parent=0 // pred_check
    _
  $region7: #{co_detr_forward.1} parent=0 // pred_check_branch
    %27 = sbr.rel (0) target = $region9
  $region8: #{co_detr_forward.1} parent=0 // pred_region
    _
  $region9: #{co_detr_forward.1} parent=0 // pred_fallthru
    _
  // Predicated region
  $region10: #{co_detr_forward.1} parent=0 // pred_check
    _
  $region11: #{co_detr_forward.1} parent=0 // pred_check_branch
    %29 = sbr.rel (0) target = $region13
  $region12: #{co_detr_forward.1} parent=0 // pred_region
    _
  $region13: #{co_detr_forward.1} parent=0 // pred_fallthru
    _
  // Predicated region
  $region14: #{co_detr_forward.1} parent=0 // pred_check
    _
  $region15: #{co_detr_forward.1} parent=0 // pred_check_branch
    %31 = sbr.rel (0) target = $region17
  $region16: #{co_detr_forward.1} parent=0 // pred_region
    _
  $region17: #{co_detr_forward.1} parent=0 // pred_fallthru
    _
  // Predicated region
  $region18: #{co_detr_forward.1} parent=0 // pred_check
    _
  $region19: #{co_detr_forward.1} parent=0 // pred_check_branch
    %33 = sbr.rel (0) target = $region21
  $region20: #{co_detr_forward.1} parent=0 // pred_region
    _
  $region21: #{co_detr_forward.1} parent=0 // pred_fallthru
    _
  // Predicated region
  $region22: #{co_detr_forward.1} parent=0 // pred_check
    _
  $region23: #{co_detr_forward.1} parent=0 // pred_check_branch
    %35 = sbr.rel (0) target = $region25
  $region24: #{co_detr_forward.1} parent=0 // pred_region
    _
  $region25: #{co_detr_forward.1} parent=0 // pred_fallthru
    _
  // Predicated region
  $region26: #{co_detr_forward.1} parent=0 // pred_check
    _
  $region27: #{co_detr_forward.1} parent=0 // pred_check_branch
    %37 = sbr.rel (0) target = $region29
  $region28: #{co_detr_forward.1} parent=0 // pred_region
    _
  $region29: #{co_detr_forward.1} parent=0 // pred_fallthru
    _
  // Predicated region
  $region30: #{co_detr_forward.1} parent=0 // pred_check
    _
  $region31: #{co_detr_forward.1} parent=0 // pred_check_branch
    %39 = sbr.rel (0) target = $region33
  $region32: #{co_detr_forward.1} parent=0 // pred_region
    _
  $region33: #{co_detr_forward.1} parent=0 // pred_fallthru
    _
  // Predicated region
  $region34: #{co_detr_forward.1} parent=0 // pred_check
    _
  $region35: #{co_detr_forward.1} parent=0 // pred_check_branch
    %41 = sbr.rel (0) target = $region37
  $region36: #{co_detr_forward.1} parent=0 // pred_region
    _
  $region37: #{co_detr_forward.1} parent=0 // pred_fallthru
    _
  // Predicated region
  $region38: #{co_detr_forward.1} parent=0 // pred_check
    _
  $region39: #{co_detr_forward.1} parent=0 // pred_check_branch
    %43 = sbr.rel (0) target = $region41
  $region40: #{co_detr_forward.1} parent=0 // pred_region
    _
  $region41: #{co_detr_forward.1} parent=0 // pred_fallthru
    _
  // Predicated region
  $region42: #{co_detr_forward.1} parent=0 // pred_check
    _
  $region43: #{co_detr_forward.1} parent=0 // pred_check_branch
    %45 = sbr.rel (0) target = $region45
  $region44: #{co_detr_forward.1} parent=0 // pred_region
    _
  $region45: #{co_detr_forward.1} parent=0 // pred_fallthru
    _
  // Predicated region
  $region46: #{co_detr_forward.1} parent=0 // pred_check
    _
  $region47: #{co_detr_forward.1} parent=0 // pred_check_branch
    %47 = sbr.rel (0) target = $region49
  $region48: #{co_detr_forward.1} parent=0 // pred_region
    _
  $region49: #{co_detr_forward.1} parent=0 // pred_fallthru
    _
  // Predicated region
  $region50: #{co_detr_forward.1} parent=0 // pred_check
    _
  $region51: #{co_detr_forward.1} parent=0 // pred_check_branch
    %49 = sbr.rel (0) target = $region53
  $region52: #{co_detr_forward.1} parent=0 // pred_region
    _
  $region53: #{co_detr_forward.1} parent=0 // pred_fallthru
    _
  // Predicated region
  $region54: #{co_detr_forward.1} parent=0 // pred_check
    _
  $region55: #{co_detr_forward.1} parent=0 // pred_check_branch
    %51 = sbr.rel (0) target = $region57
  $region56: #{co_detr_forward.1} parent=0 // pred_region
    _
  $region57: #{co_detr_forward.1} parent=0 // pred_fallthru
    _
  // Predicated region
  $region58: #{co_detr_forward.1} parent=0 // pred_check
    _
  $region59: #{co_detr_forward.1} parent=0 // pred_check_branch
    %53 = sbr.rel (0) target = $region61
  $region60: #{co_detr_forward.1} parent=0 // pred_region
    _
  $region61: #{co_detr_forward.1} parent=0 // pred_fallthru
    _
  // Predicated region
  $region62: #{co_detr_forward.1} parent=0 // pred_check
    _
  $region63: #{co_detr_forward.1} parent=0 // pred_check_branch
    %55 = sbr.rel (0) target = $region65
  $region64: #{co_detr_forward.1} parent=0 // pred_region
    _
  $region65: #{co_detr_forward.1} parent=0 // pred_fallthru
    _
  // Predicated region
  $region66: #{co_detr_forward.1} parent=0 // pred_check
    _
  $region67: #{co_detr_forward.1} parent=0 // pred_check_branch
    %57 = sbr.rel (0) target = $region69
  $region68: #{co_detr_forward.1} parent=0 // pred_region
    _
  $region69: #{co_detr_forward.1} parent=0 // pred_fallthru
    _
  // Predicated region
  $region70: #{co_detr_forward.1} parent=0 // pred_check
    _
  $region71: #{co_detr_forward.1} parent=0 // pred_check_branch
    %59 = sbr.rel (0) target = $region73
  $region72: #{co_detr_forward.1} parent=0 // pred_region
    _
  $region73: #{co_detr_forward.1} parent=0 // pred_fallthru
    _
  // Predicated region
  $region74: #{co_detr_forward.1} parent=0 // pred_check
    _
  $region75: #{co_detr_forward.1} parent=0 // pred_check_branch
    %61 = sbr.rel (0) target = $region77
  $region76: #{co_detr_forward.1} parent=0 // pred_region
    _
  $region77: #{co_detr_forward.1} parent=0 // pred_fallthru
    _
  %v62 = vld [vmem:[%s0] sm:$0xff]
  %v63 = vld [vmem:[%s0 + $0x8] sm:$0xff]
  %v64 = vld [vmem:[%s0 + $0x10] sm:$0xff]
  %v65 = vld [vmem:[%s0 + $0x18] sm:$0xff]
  %v66 = vld [vmem:[%s0 + $0x20] sm:$0xff]
  %v67 = vld [vmem:[%s0 + $0x28] sm:$0xff]
  %v68 = vld [vmem:[%s0 + $0x30] sm:$0xff]
  %v69 = vld [vmem:[%s0 + $0x38] sm:$0xff]
  %v70 = vld [vmem:[%s0 + $0x40] sm:$0xff]
  %v71 = vld [vmem:[%s0 + $0x48] sm:$0xff]
  %v72 = vld [vmem:[%s0 + $0x50] sm:$0xff]
  %v73 = vld [vmem:[%s0 + $0x58] sm:$0xff]
  %v74 = vld [vmem:[%s0 + $0x60] sm:$0xff]
  %v75 = vld [vmem:[%s0 + $0x68] sm:$0xff]
  %v76 = vld [vmem:[%s0 + $0x70] sm:$0xff]
  %v77 = vld [vmem:[%s0 + $0x78] sm:$0xff]
  %v78 = vld [vmem:[%s1] sm:$0xff]
  %v79 = vld [vmem:[%s1 + $0x8] sm:$0xff]
  %v80 = vld [vmem:[%s1 + $0x10] sm:$0xff]
  %v81 = vld [vmem:[%s1 + $0x18] sm:$0xff]
  %v82 = vld [vmem:[%s1 + $0x20] sm:$0xff]
  %v83 = vld [vmem:[%s1 + $0x28] sm:$0xff]
  %v84 = vld [vmem:[%s1 + $0x30] sm:$0xff]
  %v85 = vld [vmem:[%s1 + $0x38] sm:$0xff]
  %v86 = vld [vmem:[%s1 + $0x40] sm:$0xff]
  %v87 = vld [vmem:[%s1 + $0x48] sm:$0xff]
  %v88 = vld [vmem:[%s1 + $0x50] sm:$0xff]
  %v89 = vld [vmem:[%s1 + $0x58] sm:$0xff]
  %v90 = vld [vmem:[%s1 + $0x60] sm:$0xff]
  %v91 = vld [vmem:[%s1 + $0x68] sm:$0xff]
  %v92 = vld [vmem:[%s1 + $0x70] sm:$0xff]
  %v93 = vld [vmem:[%s1 + $0x78] sm:$0xff]
  %v94 = vld [vmem:[%s2] sm:$0xff]
  %v95 = vld [vmem:[%s2 + $0x8] sm:$0xff]
  %v96 = vld [vmem:[%s2 + $0x10] sm:$0xff]
  %v97 = vld [vmem:[%s2 + $0x18] sm:$0xff]
  %v98 = vld [vmem:[%s2 + $0x20] sm:$0xff]
  %v99 = vld [vmem:[%s2 + $0x28] sm:$0xff]
  %v100 = vld [vmem:[%s2 + $0x30] sm:$0xff]
  %v101 = vld [vmem:[%s2 + $0x38] sm:$0xff]
  %v102 = vld [vmem:[%s2 + $0x40] sm:$0xff]
  %v103 = vld [vmem:[%s2 + $0x48] sm:$0xff]
  %v104 = vld [vmem:[%s2 + $0x50] sm:$0xff]
  %v105 = vld [vmem:[%s2 + $0x58] sm:$0xff]
  %v106 = vld [vmem:[%s2 + $0x60] sm:$0xff]
  %v107 = vld [vmem:[%s2 + $0x68] sm:$0xff]
  %v108 = vld [vmem:[%s2 + $0x70] sm:$0xff]
  %v109 = vld [vmem:[%s2 + $0x78] sm:$0xff]
  %v110 = vld [vmem:[%s3] sm:$0xff]
  %v111 = vld [vmem:[%s3 + $0x8] sm:$0xff]
  %v112 = vld [vmem:[%s4] sm:$0xff]
  %v113 = vld [vmem:[%s4 + $0x8] sm:$0xff]
  %v114 = vld [vmem:[%s6] sm:$0x7]
  %v115 = vld [vmem:[%s7] sm:$0x1]
  %v117 = vlaneseq
  %v118 = vshrl.u32 %v117, 7
  %v119 = vsub.s32 0, %v118
  %v120 = vrot.slane %v115, %v119
  %vm122 = vcmask 23552
  %v124 = vsel %vm122, %v62, 0
  %v127 = vsel %vm122, %v63, 0
  %v130 = vsel %vm122, %v64, 0
  %v133 = vsel %vm122, %v65, 0
  %v136 = vsel %vm122, %v66, 0
  %v139 = vsel %vm122, %v67, 0
  %v142 = vsel %vm122, %v68, 0
  %v145 = vsel %vm122, %v69, 0
  %v148 = vsel %vm122, %v70, 0
  %v151 = vsel %vm122, %v71, 0
  %v154 = vsel %vm122, %v72, 0
  %v157 = vsel %vm122, %v73, 0
  %v160 = vsel %vm122, %v74, 0
  %v163 = vsel %vm122, %v75, 0
  %v166 = vsel %vm122, %v76, 0
  %v169 = vsel %vm122, %v77, 0
  %vm171 = vcmask 1042432
  %v173 = vsel %vm171, %v114, 0
  %175 = vmatprep.subr.mxu0 0.0
  %176 = vmatpush1.msra.mxu0 0.0
  %177 = vmatprep.subr.mxu0 0.0
  %178 = vmatpush1.msra.mxu0 0.0
  %179 = vmatprep.subr.mxu0 0.0
  %180 = vmatpush1.msra.mxu0 0.0
  %181 = vmatprep.subr.mxu0 0.0
  %182 = vmatpush1.msra.mxu0 0.0
  %183 = vmatprep.subr.mxu0 0.0
  %184 = vmatpush1.msra.mxu0 0.0
  %185 = vmatprep.subr.mxu0 0.0
  %186 = vmatpush1.msra.mxu0 0.0
  %187 = vmatprep.subr.mxu0 0.0
  %188 = vmatpush1.msra.mxu0 0.0
  %189 = vmatprep.subr.mxu0 0.0
  %190 = vmatpush1.msra.mxu0 0.0
  %191 = vmatprep.subr.mxu0 0.0
  %192 = vmatpush1.msra.mxu0 0.0
  %193 = vmatprep.subr.mxu0 0.0
  %194 = vmatpush1.msra.mxu0 0.0
  %195 = vmatprep.subr.mxu0 0.0
  %196 = vmatpush1.msra.mxu0 0.0
  %197 = vmatprep.subr.mxu0 0.0
  %198 = vmatpush1.msra.mxu0 0.0
  %199 = vmatprep.subr.mxu0 0.0
  %200 = vmatpush1.msra.mxu0 0.0
  %201 = vmatprep.subr.mxu0 0.0
  %202 = vmatpush1.msra.mxu0 0.0
  %203 = vmatprep.subr.mxu0 0.0
  %204 = vmatpush1.msra.mxu0 0.0
  %205 = vmatprep.subr.mxu0 0.0
  %206 = vmatpush1.msra.mxu0 %v173
  %207 = vmatprep.subr.mxu0 0.0
  %208 = vmatpush2.msra.mxu0 0.0
  %209 = vmatprep.subr.mxu0 0.0
  %210 = vmatpush2.msra.mxu0 0.0
  %211 = vmatprep.subr.mxu0 0.0
  %212 = vmatpush2.msra.mxu0 0.0
  %213 = vmatprep.subr.mxu0 0.0
  %214 = vmatpush2.msra.mxu0 0.0
  %215 = vmatprep.subr.mxu0 0.0
  %216 = vmatpush2.msra.mxu0 0.0
  %217 = vmatprep.subr.mxu0 0.0
  %218 = vmatpush2.msra.mxu0 0.0
  %219 = vmatprep.subr.mxu0 0.0
  %220 = vmatpush2.msra.mxu0 0.0
  %221 = vmatprep.subr.mxu0 0.0
  %222 = vmatpush2.msra.mxu0 0.0
  %223 = vmatprep.subr.mxu0 0.0
  %224 = vmatpush2.msra.mxu0 0.0
  %225 = vmatprep.subr.mxu0 0.0
  %226 = vmatpush2.msra.mxu0 0.0
  %227 = vmatprep.subr.mxu0 0.0
  %228 = vmatpush2.msra.mxu0 0.0
  %229 = vmatprep.subr.mxu0 0.0
  %230 = vmatpush2.msra.mxu0 0.0
  %231 = vmatprep.subr.mxu0 0.0
  %232 = vmatpush2.msra.mxu0 0.0
  %233 = vmatprep.subr.mxu0 0.0
  %234 = vmatpush2.msra.mxu0 0.0
  %235 = vmatprep.subr.mxu0 0.0
  %236 = vmatpush2.msra.mxu0 0.0
  %237 = vmatprep.subr.mxu0 0.0
  %238 = vmatpush2.msra.mxu0 0.0
  %239 = vmatprep.mubr.f32.mxu0 0.0
  %240 = vmatmul.mubr.f32.gmra.mxu0 %v124
  %v241 = vpop.f32.mrf.mxu0
  %v242 = vadd.f32 %v120, %v241
  %v243 = vpop.f32.mrf.mxu0
  %244 = vmatprep.mubr.f32.mxu0 0.0
  %245 = vmatmul.mubr.f32.gmra.mxu0 %v127
  %v246 = vpop.f32.mrf.mxu0
  %v247 = vadd.f32 %v120, %v246
  %v248 = vpop.f32.mrf.mxu0
  %249 = vmatprep.mubr.f32.mxu0 0.0
  %250 = vmatmul.mubr.f32.gmra.mxu0 %v130
  %v251 = vpop.f32.mrf.mxu0
  %v252 = vadd.f32 %v120, %v251
  %v253 = vpop.f32.mrf.mxu0
  %254 = vmatprep.mubr.f32.mxu0 0.0
  %255 = vmatmul.mubr.f32.gmra.mxu0 %v133
  %v256 = vpop.f32.mrf.mxu0
  %v257 = vadd.f32 %v120, %v256
  %v258 = vpop.f32.mrf.mxu0
  %259 = vmatprep.mubr.f32.mxu0 0.0
  %260 = vmatmul.mubr.f32.gmra.mxu0 %v136
  %v261 = vpop.f32.mrf.mxu0
  %v262 = vadd.f32 %v120, %v261
  %v263 = vpop.f32.mrf.mxu0
  %264 = vmatprep.mubr.f32.mxu0 0.0
  %265 = vmatmul.mubr.f32.gmra.mxu0 %v139
  %v266 = vpop.f32.mrf.mxu0
  %v267 = vadd.f32 %v120, %v266
  %v268 = vpop.f32.mrf.mxu0
  %269 = vmatprep.mubr.f32.mxu0 0.0
  %270 = vmatmul.mubr.f32.gmra.mxu0 %v142
  %v271 = vpop.f32.mrf.mxu0
  %v272 = vadd.f32 %v120, %v271
  %v273 = vpop.f32.mrf.mxu0
  %274 = vmatprep.mubr.f32.mxu0 0.0
  %275 = vmatmul.mubr.f32.gmra.mxu0 %v145
  %v276 = vpop.f32.mrf.mxu0
  %v277 = vadd.f32 %v120, %v276
  %v278 = vpop.f32.mrf.mxu0
  %279 = vmatprep.mubr.f32.mxu0 0.0
  %280 = vmatmul.mubr.f32.gmra.mxu0 %v148
  %v281 = vpop.f32.mrf.mxu0
  %v282 = vadd.f32 %v120, %v281
  %v283 = vpop.f32.mrf.mxu0
  %284 = vmatprep.mubr.f32.mxu0 0.0
  %285 = vmatmul.mubr.f32.gmra.mxu0 %v151
  %v286 = vpop.f32.mrf.mxu0
  %v287 = vadd.f32 %v120, %v286
  %v288 = vpop.f32.mrf.mxu0
  %289 = vmatprep.mubr.f32.mxu0 0.0
  %290 = vmatmul.mubr.f32.gmra.mxu0 %v154
  %v291 = vpop.f32.mrf.mxu0
  %v292 = vadd.f32 %v120, %v291
  %v293 = vpop.f32.mrf.mxu0
  %294 = vmatprep.mubr.f32.mxu0 0.0
  %295 = vmatmul.mubr.f32.gmra.mxu0 %v157
  %v296 = vpop.f32.mrf.mxu0
  %v297 = vadd.f32 %v120, %v296
  %v298 = vpop.f32.mrf.mxu0
  %299 = vmatprep.mubr.f32.mxu0 0.0
  %300 = vmatmul.mubr.f32.gmra.mxu0 %v160
  %v301 = vpop.f32.mrf.mxu0
  %v302 = vadd.f32 %v120, %v301
  %v303 = vpop.f32.mrf.mxu0
  %304 = vmatprep.mubr.f32.mxu0 0.0
  %305 = vmatmul.mubr.f32.gmra.mxu0 %v163
  %v306 = vpop.f32.mrf.mxu0
  %v307 = vadd.f32 %v120, %v306
  %v308 = vpop.f32.mrf.mxu0
  %309 = vmatprep.mubr.f32.mxu0 0.0
  %310 = vmatmul.mubr.f32.gmra.mxu0 %v166
  %v311 = vpop.f32.mrf.mxu0
  %v312 = vadd.f32 %v120, %v311
  %v313 = vpop.f32.mrf.mxu0
  %314 = vmatprep.mubr.f32.mxu0 0.0
  %315 = vmatmul.mubr.f32.gmra.mxu0 %v169
  %v316 = vpop.f32.mrf.mxu0
  %v317 = vadd.f32 %v120, %v316
  %v318 = vpop.f32.mrf.mxu0
  %319 = vdwg.mxu0
  %v320 = vmax.f32 %v242, 0.0
  %v321 = vmax.f32 %v247, 0.0
  %v322 = vmax.f32 %v252, 0.0
  %v323 = vmax.f32 %v257, 0.0
  %v324 = vmax.f32 %v262, 0.0
  %v325 = vmax.f32 %v267, 0.0
  %v326 = vmax.f32 %v272, 0.0
  %v327 = vmax.f32 %v277, 0.0
  %v328 = vmax.f32 %v282, 0.0
  %v329 = vmax.f32 %v287, 0.0
  %v330 = vmax.f32 %v292, 0.0
  %v331 = vmax.f32 %v297, 0.0
  %v332 = vmax.f32 %v302, 0.0
  %v333 = vmax.f32 %v307, 0.0
  %v334 = vmax.f32 %v312, 0.0
  %v335 = vmax.f32 %v317, 0.0
  %v336 = vld [vmem:[%s8] sm:$0xff]
  %v337 = vld [vmem:[%s8 + $0x8] sm:$0xff]
  %v338 = vld [vmem:[%s13] sm:$0x1]
  %v339 = vlaneseq
  %v340 = vshrl.u32 %v339, 7
  %v341 = vsub.s32 0, %v340
  %v342 = vrot.slane %v338, %v341
  %vm343 = vcmask 130048
  %v345 = vsel %vm343, %v320, 0
  %v348 = vsel %vm343, %v321, 0
  %v351 = vsel %vm343, %v322, 0
  %v354 = vsel %vm343, %v323, 0
  %v357 = vsel %vm343, %v324, 0
  %v360 = vsel %vm343, %v325, 0
  %v363 = vsel %vm343, %v326, 0
  %v366 = vsel %vm343, %v327, 0
  %v369 = vsel %vm343, %v328, 0
  %v372 = vsel %vm343, %v329, 0
  %v375 = vsel %vm343, %v330, 0
  %v378 = vsel %vm343, %v331, 0
  %v381 = vsel %vm343, %v332, 0
  %v384 = vsel %vm343, %v333, 0
  %v387 = vsel %vm343, %v334, 0
  %v390 = vsel %vm343, %v335, 0
  %392 = vmatprep.subr.mxu0 0.0
  %393 = vmatpush1.msra.mxu0 0.0
  %394 = vmatprep.subr.mxu0 0.0
  %395 = vmatpush1.msra.mxu0 0.0
  %396 = vmatprep.subr.mxu0 0.0
  %397 = vmatpush1.msra.mxu0 0.0
  %398 = vmatprep.subr.mxu0 0.0
  %399 = vmatpush1.msra.mxu0 0.0
  %400 = vmatprep.subr.mxu0 0.0
  %401 = vmatpush1.msra.mxu0 0.0
  %402 = vmatprep.subr.mxu0 0.0
  %403 = vmatpush1.msra.mxu0 0.0
  %404 = vmatprep.subr.mxu0 0.0
  %405 = vmatpush1.msra.mxu0 0.0
  %406 = vmatprep.subr.mxu0 0.0
  %407 = vmatpush1.msra.mxu0 0.0
  %408 = vmatprep.subr.mxu0 0.0
  %409 = vmatpush1.msra.mxu0 0.0
  %410 = vmatprep.subr.mxu0 0.0
  %411 = vmatpush1.msra.mxu0 0.0
  %412 = vmatprep.subr.mxu0 0.0
  %413 = vmatpush1.msra.mxu0 0.0
  %414 = vmatprep.subr.mxu0 0.0
  %415 = vmatpush1.msra.mxu0 0.0
  %416 = vmatprep.subr.mxu0 0.0
  %417 = vmatpush1.msra.mxu0 0.0
  %418 = vmatprep.subr.mxu0 0.0
  %419 = vmatpush1.msra.mxu0 0.0
  %420 = vmatprep.subr.mxu0 0.0
  %421 = vmatpush1.msra.mxu0 %v337
  %422 = vmatprep.subr.mxu0 0.0
  %423 = vmatpush1.msra.mxu0 %v336
  %424 = vmatprep.subr.mxu0 0.0
  %425 = vmatpush2.msra.mxu0 0.0
  %426 = vmatprep.subr.mxu0 0.0
  %427 = vmatpush2.msra.mxu0 0.0
  %428 = vmatprep.subr.mxu0 0.0
  %429 = vmatpush2.msra.mxu0 0.0
  %430 = vmatprep.subr.mxu0 0.0
  %431 = vmatpush2.msra.mxu0 0.0
  %432 = vmatprep.subr.mxu0 0.0
  %433 = vmatpush2.msra.mxu0 0.0
  %434 = vmatprep.subr.mxu0 0.0
  %435 = vmatpush2.msra.mxu0 0.0
  %436 = vmatprep.subr.mxu0 0.0
  %437 = vmatpush2.msra.mxu0 0.0
  %438 = vmatprep.subr.mxu0 0.0
  %439 = vmatpush2.msra.mxu0 0.0
  %440 = vmatprep.subr.mxu0 0.0
  %441 = vmatpush2.msra.mxu0 0.0
  %442 = vmatprep.subr.mxu0 0.0
  %443 = vmatpush2.msra.mxu0 0.0
  %444 = vmatprep.subr.mxu0 0.0
  %445 = vmatpush2.msra.mxu0 0.0
  %446 = vmatprep.subr.mxu0 0.0
  %447 = vmatpush2.msra.mxu0 0.0
  %448 = vmatprep.subr.mxu0 0.0
  %449 = vmatpush2.msra.mxu0 0.0
  %450 = vmatprep.subr.mxu0 0.0
  %451 = vmatpush2.msra.mxu0 0.0
  %452 = vmatprep.subr.mxu0 0.0
  %453 = vmatpush2.msra.mxu0 0.0
  %454 = vmatprep.subr.mxu0 0.0
  %455 = vmatpush2.msra.mxu0 0.0
  %456 = vmatprep.mubr.f32.mxu0 0.0
  %457 = vmatmul.mubr.f32.gmra.mxu0 %v345
  %v458 = vpop.f32.mrf.mxu0
  %v459 = vadd.f32 %v342, %v458
  %v460 = vpop.f32.mrf.mxu0
  %461 = vmatprep.mubr.f32.mxu0 0.0
  %462 = vmatmul.mubr.f32.gmra.mxu0 %v348
  %v463 = vpop.f32.mrf.mxu0
  %v464 = vadd.f32 %v342, %v463
  %v465 = vpop.f32.mrf.mxu0
  %466 = vmatprep.mubr.f32.mxu0 0.0
  %467 = vmatmul.mubr.f32.gmra.mxu0 %v351
  %v468 = vpop.f32.mrf.mxu0
  %v469 = vadd.f32 %v342, %v468
  %v470 = vpop.f32.mrf.mxu0
  %471 = vmatprep.mubr.f32.mxu0 0.0
  %472 = vmatmul.mubr.f32.gmra.mxu0 %v354
  %v473 = vpop.f32.mrf.mxu0
  %v474 = vadd.f32 %v342, %v473
  %v475 = vpop.f32.mrf.mxu0
  %476 = vmatprep.mubr.f32.mxu0 0.0
  %477 = vmatmul.mubr.f32.gmra.mxu0 %v357
  %v478 = vpop.f32.mrf.mxu0
  %v479 = vadd.f32 %v342, %v478
  %v480 = vpop.f32.mrf.mxu0
  %481 = vmatprep.mubr.f32.mxu0 0.0
  %482 = vmatmul.mubr.f32.gmra.mxu0 %v360
  %v483 = vpop.f32.mrf.mxu0
  %v484 = vadd.f32 %v342, %v483
  %v485 = vpop.f32.mrf.mxu0
  %486 = vmatprep.mubr.f32.mxu0 0.0
  %487 = vmatmul.mubr.f32.gmra.mxu0 %v363
  %v488 = vpop.f32.mrf.mxu0
  %v489 = vadd.f32 %v342, %v488
  %v490 = vpop.f32.mrf.mxu0
  %491 = vmatprep.mubr.f32.mxu0 0.0
  %492 = vmatmul.mubr.f32.gmra.mxu0 %v366
  %v493 = vpop.f32.mrf.mxu0
  %v494 = vadd.f32 %v342, %v493
  %v495 = vpop.f32.mrf.mxu0
  %496 = vmatprep.mubr.f32.mxu0 0.0
  %497 = vmatmul.mubr.f32.gmra.mxu0 %v369
  %v498 = vpop.f32.mrf.mxu0
  %v499 = vadd.f32 %v342, %v498
  %v500 = vpop.f32.mrf.mxu0
  %501 = vmatprep.mubr.f32.mxu0 0.0
  %502 = vmatmul.mubr.f32.gmra.mxu0 %v372
  %v503 = vpop.f32.mrf.mxu0
  %v504 = vadd.f32 %v342, %v503
  %v505 = vpop.f32.mrf.mxu0
  %506 = vmatprep.mubr.f32.mxu0 0.0
  %507 = vmatmul.mubr.f32.gmra.mxu0 %v375
  %v508 = vpop.f32.mrf.mxu0
  %v509 = vadd.f32 %v342, %v508
  %v510 = vpop.f32.mrf.mxu0
  %511 = vmatprep.mubr.f32.mxu0 0.0
  %512 = vmatmul.mubr.f32.gmra.mxu0 %v378
  %v513 = vpop.f32.mrf.mxu0
  %v514 = vadd.f32 %v342, %v513
  %v515 = vpop.f32.mrf.mxu0
  %516 = vmatprep.mubr.f32.mxu0 0.0
  %517 = vmatmul.mubr.f32.gmra.mxu0 %v381
  %v518 = vpop.f32.mrf.mxu0
  %v519 = vadd.f32 %v342, %v518
  %v520 = vpop.f32.mrf.mxu0
  %521 = vmatprep.mubr.f32.mxu0 0.0
  %522 = vmatmul.mubr.f32.gmra.mxu0 %v384
  %v523 = vpop.f32.mrf.mxu0
  %v524 = vadd.f32 %v342, %v523
  %v525 = vpop.f32.mrf.mxu0
  %526 = vmatprep.mubr.f32.mxu0 0.0
  %527 = vmatmul.mubr.f32.gmra.mxu0 %v387
  %v528 = vpop.f32.mrf.mxu0
  %v529 = vadd.f32 %v342, %v528
  %v530 = vpop.f32.mrf.mxu0
  %531 = vmatprep.mubr.f32.mxu0 0.0
  %532 = vmatmul.mubr.f32.gmra.mxu0 %v390
  %v533 = vpop.f32.mrf.mxu0
  %v534 = vadd.f32 %v342, %v533
  %v535 = vpop.f32.mrf.mxu0
  %536 = vdwg.mxu0
  %vm537 = vcmask 261120
  %v538 = vsel %vm537, %v459, 0.0
  %v539 = vsel %vm537, %v464, 0.0
  %v540 = vadd.f32 %v538, %v539
  %v541 = vsel %vm537, %v469, 0.0
  %v542 = vadd.f32 %v540, %v541
  %v543 = vsel %vm537, %v474, 0.0
  %v544 = vadd.f32 %v542, %v543
  %v545 = vsel %vm537, %v479, 0.0
  %v546 = vadd.f32 %v544, %v545
  %v547 = vsel %vm537, %v484, 0.0
  %v548 = vadd.f32 %v546, %v547
  %v549 = vsel %vm537, %v489, 0.0
  %v550 = vadd.f32 %v548, %v549
  %v551 = vsel %vm537, %v494, 0.0
  %v552 = vadd.f32 %v550, %v551
  %v553 = vrot.slane %v552, 4
  %v554 = vadd.f32 %v552, %v553
  %v555 = vrot.slane %v554, 2
  %v556 = vadd.f32 %v554, %v555
  %v557 = vrot.slane %v556, 1
  %v558 = vadd.f32 %v556, %v557
  %v559 = vrcp.pop 64.0
  %v560 = vmul.f32 %v558, %v559
  %v561 = vsub.f32 %v459, %v560
  %v562 = vsub.f32 %v464, %v560
  %v563 = vsub.f32 %v469, %v560
  %v564 = vsub.f32 %v474, %v560
  %v565 = vsub.f32 %v479, %v560
  %v566 = vsub.f32 %v484, %v560
  %v567 = vsub.f32 %v489, %v560
  %v568 = vsub.f32 %v494, %v560
  %v569 = vmul.f32 %v561, %v561
  %v570 = vmul.f32 %v562, %v562
  %v571 = vmul.f32 %v563, %v563
  %v572 = vmul.f32 %v564, %v564
  %v573 = vmul.f32 %v565, %v565
  %v574 = vmul.f32 %v566, %v566
  %v575 = vmul.f32 %v567, %v567
  %v576 = vmul.f32 %v568, %v568
  %v577 = vsel %vm537, %v569, 0.0
  %v578 = vsel %vm537, %v570, 0.0
  %v579 = vadd.f32 %v577, %v578
  %v580 = vsel %vm537, %v571, 0.0
  %v581 = vadd.f32 %v579, %v580
  %v582 = vsel %vm537, %v572, 0.0
  %v583 = vadd.f32 %v581, %v582
  %v584 = vsel %vm537, %v573, 0.0
  %v585 = vadd.f32 %v583, %v584
  %v586 = vsel %vm537, %v574, 0.0
  %v587 = vadd.f32 %v585, %v586
  %v588 = vsel %vm537, %v575, 0.0
  %v589 = vadd.f32 %v587, %v588
  %v590 = vsel %vm537, %v576, 0.0
  %v591 = vadd.f32 %v589, %v590
  %v592 = vrot.slane %v591, 4
  %v593 = vadd.f32 %v591, %v592
  %v594 = vrot.slane %v593, 2
  %v595 = vadd.f32 %v593, %v594
  %v596 = vrot.slane %v595, 1
  %v597 = vadd.f32 %v595, %v596
  %v598 = vmul.f32 %v597, %v559
  %v599 = vadd.f32 %v598, 1e-05
  %v600 = vrsqrt.pop %v599
  %v601 = vmul.f32 %v561, %v600
  %v602 = vmul.f32 %v562, %v600
  %v603 = vmul.f32 %v563, %v600
  %v604 = vmul.f32 %v564, %v600
  %v605 = vmul.f32 %v565, %v600
  %v606 = vmul.f32 %v566, %v600
  %v607 = vmul.f32 %v567, %v600
  %v608 = vmul.f32 %v568, %v600
  %v609 = vsel %vm537, %v499, 0.0
  %v610 = vsel %vm537, %v504, 0.0
  %v611 = vadd.f32 %v609, %v610
  %v612 = vsel %vm537, %v509, 0.0
  %v613 = vadd.f32 %v611, %v612
  %v614 = vsel %vm537, %v514, 0.0
  %v615 = vadd.f32 %v613, %v614
  %v616 = vsel %vm537, %v519, 0.0
  %v617 = vadd.f32 %v615, %v616
  %v618 = vsel %vm537, %v524, 0.0
  %v619 = vadd.f32 %v617, %v618
  %v620 = vsel %vm537, %v529, 0.0
  %v621 = vadd.f32 %v619, %v620
  %v622 = vsel %vm537, %v534, 0.0
  %v623 = vadd.f32 %v621, %v622
  %v624 = vrot.slane %v623, 4
  %v625 = vadd.f32 %v623, %v624
  %v626 = vrot.slane %v625, 2
  %v627 = vadd.f32 %v625, %v626
  %v628 = vrot.slane %v627, 1
  %v629 = vadd.f32 %v627, %v628
  %v630 = vmul.f32 %v629, %v559
  %v631 = vsub.f32 %v499, %v630
  %v632 = vsub.f32 %v504, %v630
  %v633 = vsub.f32 %v509, %v630
  %v634 = vsub.f32 %v514, %v630
  %v635 = vsub.f32 %v519, %v630
  %v636 = vsub.f32 %v524, %v630
  %v637 = vsub.f32 %v529, %v630
  %v638 = vsub.f32 %v534, %v630
  %v639 = vmul.f32 %v631, %v631
  %v640 = vmul.f32 %v632, %v632
  %v641 = vmul.f32 %v633, %v633
  %v642 = vmul.f32 %v634, %v634
  %v643 = vmul.f32 %v635, %v635
  %v644 = vmul.f32 %v636, %v636
  %v645 = vmul.f32 %v637, %v637
  %v646 = vmul.f32 %v638, %v638
  %v647 = vsel %vm537, %v639, 0.0
  %v648 = vsel %vm537, %v640, 0.0
  %v649 = vadd.f32 %v647, %v648
  %v650 = vsel %vm537, %v641, 0.0
  %v651 = vadd.f32 %v649, %v650
  %v652 = vsel %vm537, %v642, 0.0
  %v653 = vadd.f32 %v651, %v652
  %v654 = vsel %vm537, %v643, 0.0
  %v655 = vadd.f32 %v653, %v654
  %v656 = vsel %vm537, %v644, 0.0
  %v657 = vadd.f32 %v655, %v656
  %v658 = vsel %vm537, %v645, 0.0
  %v659 = vadd.f32 %v657, %v658
  %v660 = vsel %vm537, %v646, 0.0
  %v661 = vadd.f32 %v659, %v660
  %v662 = vrot.slane %v661, 4
  %v663 = vadd.f32 %v661, %v662
  %v664 = vrot.slane %v663, 2
  %v665 = vadd.f32 %v663, %v664
  %v666 = vrot.slane %v665, 1
  %v667 = vadd.f32 %v665, %v666
  %v668 = vmul.f32 %v667, %v559
  %v669 = vadd.f32 %v668, 1e-05
  %v670 = vrsqrt.pop %v669
  %v671 = vmul.f32 %v631, %v670
  %v672 = vmul.f32 %v632, %v670
  %v673 = vmul.f32 %v633, %v670
  %v674 = vmul.f32 %v634, %v670
  %v675 = vmul.f32 %v635, %v670
  %v676 = vmul.f32 %v636, %v670
  %v677 = vmul.f32 %v637, %v670
  %v678 = vmul.f32 %v638, %v670
  %v679 = vld [vmem:[%s13 + $0x1] sm:$0x1]
  %v680 = vlaneseq
  %v681 = vshrl.u32 %v680, 7
  %v682 = vsub.s32 0, %v681
  %v683 = vrot.slane %v679, %v682
  %v684 = vmul.f32 %v601, %v683
  %v685 = vmul.f32 %v602, %v683
  %v686 = vmul.f32 %v603, %v683
  %v687 = vmul.f32 %v604, %v683
  %v688 = vmul.f32 %v605, %v683
  %v689 = vmul.f32 %v606, %v683
  %v690 = vmul.f32 %v607, %v683
  %v691 = vmul.f32 %v608, %v683
  %v692 = vmul.f32 %v671, %v683
  %v693 = vmul.f32 %v672, %v683
  %v694 = vmul.f32 %v673, %v683
  %v695 = vmul.f32 %v674, %v683
  %v696 = vmul.f32 %v675, %v683
  %v697 = vmul.f32 %v676, %v683
  %v698 = vmul.f32 %v677, %v683
  %v699 = vmul.f32 %v678, %v683
  %v700 = vld [vmem:[%s13 + $0x2] sm:$0x1]
  %v701 = vlaneseq
  %v702 = vshrl.u32 %v701, 7
  %v703 = vsub.s32 0, %v702
  %v704 = vrot.slane %v700, %v703
  %v705 = vadd.f32 %v684, %v704
  %v706 = vadd.f32 %v685, %v704
  %v707 = vadd.f32 %v686, %v704
  %v708 = vadd.f32 %v687, %v704
  %v709 = vadd.f32 %v688, %v704
  %v710 = vadd.f32 %v689, %v704
  %v711 = vadd.f32 %v690, %v704
  %v712 = vadd.f32 %v691, %v704
  %v713 = vadd.f32 %v692, %v704
  %v714 = vadd.f32 %v693, %v704
  %v715 = vadd.f32 %v694, %v704
  %v716 = vadd.f32 %v695, %v704
  %v717 = vadd.f32 %v696, %v704
  %v718 = vadd.f32 %v697, %v704
  %v719 = vadd.f32 %v698, %v704
  %v720 = vadd.f32 %v699, %v704
  %v721 = vadd.f32 %v705, %v78
  %v722 = vadd.f32 %v706, %v79
  %v723 = vadd.f32 %v707, %v80
  %v724 = vadd.f32 %v708, %v81
  %v725 = vadd.f32 %v709, %v82
  %v726 = vadd.f32 %v710, %v83
  %v727 = vadd.f32 %v711, %v84
  %v728 = vadd.f32 %v712, %v85
  %v729 = vadd.f32 %v713, %v86
  %v730 = vadd.f32 %v714, %v87
  %v731 = vadd.f32 %v715, %v88
  %v732 = vadd.f32 %v716, %v89
  %v733 = vadd.f32 %v717, %v90
  %v734 = vadd.f32 %v718, %v91
  %v735 = vadd.f32 %v719, %v92
  %v736 = vadd.f32 %v720, %v93
  %v737 = vld [vmem:[%s9] sm:$0xff]
  %v738 = vld [vmem:[%s9 + $0x8] sm:$0xff]
  %v739 = vld [vmem:[%s9 + $0x10] sm:$0xff]
  %v740 = vld [vmem:[%s9 + $0x18] sm:$0xff]
  %v741 = vld [vmem:[%s13 + $0x3] sm:$0x1]
  %v742 = vlaneseq
  %v743 = vshrl.u32 %v742, 7
  %v744 = vsub.s32 0, %v743
  %v745 = vrot.slane %v741, %v744
  %v747 = vsel %vm537, %v721, 0
  %v750 = vsel %vm537, %v722, 0
  %v753 = vsel %vm537, %v723, 0
  %v756 = vsel %vm537, %v724, 0
  %v759 = vsel %vm537, %v725, 0
  %v762 = vsel %vm537, %v726, 0
  %v765 = vsel %vm537, %v727, 0
  %v768 = vsel %vm537, %v728, 0
  %v771 = vsel %vm537, %v729, 0
  %v774 = vsel %vm537, %v730, 0
  %v777 = vsel %vm537, %v731, 0
  %v780 = vsel %vm537, %v732, 0
  %v783 = vsel %vm537, %v733, 0
  %v786 = vsel %vm537, %v734, 0
  %v789 = vsel %vm537, %v735, 0
  %v792 = vsel %vm537, %v736, 0
  %794 = vmatprep.subr.mxu0 0.0
  %795 = vmatpush1.msra.mxu0 0.0
  %796 = vmatprep.subr.mxu0 0.0
  %797 = vmatpush1.msra.mxu0 0.0
  %798 = vmatprep.subr.mxu0 0.0
  %799 = vmatpush1.msra.mxu0 0.0
  %800 = vmatprep.subr.mxu0 0.0
  %801 = vmatpush1.msra.mxu0 0.0
  %802 = vmatprep.subr.mxu0 0.0
  %803 = vmatpush1.msra.mxu0 0.0
  %804 = vmatprep.subr.mxu0 0.0
  %805 = vmatpush1.msra.mxu0 0.0
  %806 = vmatprep.subr.mxu0 0.0
  %807 = vmatpush1.msra.mxu0 0.0
  %808 = vmatprep.subr.mxu0 0.0
  %809 = vmatpush1.msra.mxu0 0.0
  %810 = vmatprep.subr.mxu0 0.0
  %811 = vmatpush1.msra.mxu0 0.0
  %812 = vmatprep.subr.mxu0 0.0
  %813 = vmatpush1.msra.mxu0 0.0
  %814 = vmatprep.subr.mxu0 0.0
  %815 = vmatpush1.msra.mxu0 0.0
  %816 = vmatprep.subr.mxu0 0.0
  %817 = vmatpush1.msra.mxu0 0.0
  %818 = vmatprep.subr.mxu0 0.0
  %819 = vmatpush1.msra.mxu0 %v740
  %820 = vmatprep.subr.mxu0 0.0
  %821 = vmatpush1.msra.mxu0 %v739
  %822 = vmatprep.subr.mxu0 0.0
  %823 = vmatpush1.msra.mxu0 %v738
  %824 = vmatprep.subr.mxu0 0.0
  %825 = vmatpush1.msra.mxu0 %v737
  %826 = vmatprep.subr.mxu0 0.0
  %827 = vmatpush2.msra.mxu0 0.0
  %828 = vmatprep.subr.mxu0 0.0
  %829 = vmatpush2.msra.mxu0 0.0
  %830 = vmatprep.subr.mxu0 0.0
  %831 = vmatpush2.msra.mxu0 0.0
  %832 = vmatprep.subr.mxu0 0.0
  %833 = vmatpush2.msra.mxu0 0.0
  %834 = vmatprep.subr.mxu0 0.0
  %835 = vmatpush2.msra.mxu0 0.0
  %836 = vmatprep.subr.mxu0 0.0
  %837 = vmatpush2.msra.mxu0 0.0
  %838 = vmatprep.subr.mxu0 0.0
  %839 = vmatpush2.msra.mxu0 0.0
  %840 = vmatprep.subr.mxu0 0.0
  %841 = vmatpush2.msra.mxu0 0.0
  %842 = vmatprep.subr.mxu0 0.0
  %843 = vmatpush2.msra.mxu0 0.0
  %844 = vmatprep.subr.mxu0 0.0
  %845 = vmatpush2.msra.mxu0 0.0
  %846 = vmatprep.subr.mxu0 0.0
  %847 = vmatpush2.msra.mxu0 0.0
  %848 = vmatprep.subr.mxu0 0.0
  %849 = vmatpush2.msra.mxu0 0.0
  %850 = vmatprep.subr.mxu0 0.0
  %851 = vmatpush2.msra.mxu0 0.0
  %852 = vmatprep.subr.mxu0 0.0
  %853 = vmatpush2.msra.mxu0 0.0
  %854 = vmatprep.subr.mxu0 0.0
  %855 = vmatpush2.msra.mxu0 0.0
  %856 = vmatprep.subr.mxu0 0.0
  %857 = vmatpush2.msra.mxu0 0.0
  %858 = vmatprep.mubr.f32.mxu0 0.0
  %859 = vmatmul.mubr.f32.gmra.mxu0 %v747
  %v860 = vpop.f32.mrf.mxu0
  %v861 = vadd.f32 %v745, %v860
  %v862 = vpop.f32.mrf.mxu0
  %863 = vmatprep.mubr.f32.mxu0 0.0
  %864 = vmatmul.mubr.f32.gmra.mxu0 %v750
  %v865 = vpop.f32.mrf.mxu0
  %v866 = vadd.f32 %v745, %v865
  %v867 = vpop.f32.mrf.mxu0
  %868 = vmatprep.mubr.f32.mxu0 0.0
  %869 = vmatmul.mubr.f32.gmra.mxu0 %v753
  %v870 = vpop.f32.mrf.mxu0
  %v871 = vadd.f32 %v745, %v870
  %v872 = vpop.f32.mrf.mxu0
  %873 = vmatprep.mubr.f32.mxu0 0.0
  %874 = vmatmul.mubr.f32.gmra.mxu0 %v756
  %v875 = vpop.f32.mrf.mxu0
  %v876 = vadd.f32 %v745, %v875
  %v877 = vpop.f32.mrf.mxu0
  %878 = vmatprep.mubr.f32.mxu0 0.0
  %879 = vmatmul.mubr.f32.gmra.mxu0 %v759
  %v880 = vpop.f32.mrf.mxu0
  %v881 = vadd.f32 %v745, %v880
  %v882 = vpop.f32.mrf.mxu0
  %883 = vmatprep.mubr.f32.mxu0 0.0
  %884 = vmatmul.mubr.f32.gmra.mxu0 %v762
  %v885 = vpop.f32.mrf.mxu0
  %v886 = vadd.f32 %v745, %v885
  %v887 = vpop.f32.mrf.mxu0
  %888 = vmatprep.mubr.f32.mxu0 0.0
  %889 = vmatmul.mubr.f32.gmra.mxu0 %v765
  %v890 = vpop.f32.mrf.mxu0
  %v891 = vadd.f32 %v745, %v890
  %v892 = vpop.f32.mrf.mxu0
  %893 = vmatprep.mubr.f32.mxu0 0.0
  %894 = vmatmul.mubr.f32.gmra.mxu0 %v768
  %v895 = vpop.f32.mrf.mxu0
  %v896 = vadd.f32 %v745, %v895
  %v897 = vpop.f32.mrf.mxu0
  %898 = vmatprep.mubr.f32.mxu0 0.0
  %899 = vmatmul.mubr.f32.gmra.mxu0 %v771
  %v900 = vpop.f32.mrf.mxu0
  %v901 = vadd.f32 %v745, %v900
  %v902 = vpop.f32.mrf.mxu0
  %903 = vmatprep.mubr.f32.mxu0 0.0
  %904 = vmatmul.mubr.f32.gmra.mxu0 %v774
  %v905 = vpop.f32.mrf.mxu0
  %v906 = vadd.f32 %v745, %v905
  %v907 = vpop.f32.mrf.mxu0
  %908 = vmatprep.mubr.f32.mxu0 0.0
  %909 = vmatmul.mubr.f32.gmra.mxu0 %v777
  %v910 = vpop.f32.mrf.mxu0
  %v911 = vadd.f32 %v745, %v910
  %v912 = vpop.f32.mrf.mxu0
  %913 = vmatprep.mubr.f32.mxu0 0.0
  %914 = vmatmul.mubr.f32.gmra.mxu0 %v780
  %v915 = vpop.f32.mrf.mxu0
  %v916 = vadd.f32 %v745, %v915
  %v917 = vpop.f32.mrf.mxu0
  %918 = vmatprep.mubr.f32.mxu0 0.0
  %919 = vmatmul.mubr.f32.gmra.mxu0 %v783
  %v920 = vpop.f32.mrf.mxu0
  %v921 = vadd.f32 %v745, %v920
  %v922 = vpop.f32.mrf.mxu0
  %923 = vmatprep.mubr.f32.mxu0 0.0
  %924 = vmatmul.mubr.f32.gmra.mxu0 %v786
  %v925 = vpop.f32.mrf.mxu0
  %v926 = vadd.f32 %v745, %v925
  %v927 = vpop.f32.mrf.mxu0
  %928 = vmatprep.mubr.f32.mxu0 0.0
  %929 = vmatmul.mubr.f32.gmra.mxu0 %v789
  %v930 = vpop.f32.mrf.mxu0
  %v931 = vadd.f32 %v745, %v930
  %v932 = vpop.f32.mrf.mxu0
  %933 = vmatprep.mubr.f32.mxu0 0.0
  %934 = vmatmul.mubr.f32.gmra.mxu0 %v792
  %v935 = vpop.f32.mrf.mxu0
  %v936 = vadd.f32 %v745, %v935
  %v937 = vpop.f32.mrf.mxu0
  %938 = vdwg.mxu0
  %s939 = scalar_lea.vmem %s9, 32
  %v940 = vld [vmem:[%s939] sm:$0xff]
  %v941 = vld [vmem:[%s939 + $0x8] sm:$0xff]
  %v942 = vld [vmem:[%s939 + $0x10] sm:$0xff]
  %v943 = vld [vmem:[%s939 + $0x18] sm:$0xff]
  %v944 = vld [vmem:[%s13 + $0x4] sm:$0x1]
  %v945 = vlaneseq
  %v946 = vshrl.u32 %v945, 7
  %v947 = vsub.s32 0, %v946
  %v948 = vrot.slane %v944, %v947
  %949 = vmatprep.subr.mxu0 0.0
  %950 = vmatpush1.msra.mxu0 0.0
  %951 = vmatprep.subr.mxu0 0.0
  %952 = vmatpush1.msra.mxu0 0.0
  %953 = vmatprep.subr.mxu0 0.0
  %954 = vmatpush1.msra.mxu0 0.0
  %955 = vmatprep.subr.mxu0 0.0
  %956 = vmatpush1.msra.mxu0 0.0
  %957 = vmatprep.subr.mxu0 0.0
  %958 = vmatpush1.msra.mxu0 0.0
  %959 = vmatprep.subr.mxu0 0.0
  %960 = vmatpush1.msra.mxu0 0.0
  %961 = vmatprep.subr.mxu0 0.0
  %962 = vmatpush1.msra.mxu0 0.0
  %963 = vmatprep.subr.mxu0 0.0
  %964 = vmatpush1.msra.mxu0 0.0
  %965 = vmatprep.subr.mxu0 0.0
  %966 = vmatpush1.msra.mxu0 0.0
  %967 = vmatprep.subr.mxu0 0.0
  %968 = vmatpush1.msra.mxu0 0.0
  %969 = vmatprep.subr.mxu0 0.0
  %970 = vmatpush1.msra.mxu0 0.0
  %971 = vmatprep.subr.mxu0 0.0
  %972 = vmatpush1.msra.mxu0 0.0
  %973 = vmatprep.subr.mxu0 0.0
  %974 = vmatpush1.msra.mxu0 %v943
  %975 = vmatprep.subr.mxu0 0.0
  %976 = vmatpush1.msra.mxu0 %v942
  %977 = vmatprep.subr.mxu0 0.0
  %978 = vmatpush1.msra.mxu0 %v941
  %979 = vmatprep.subr.mxu0 0.0
  %980 = vmatpush1.msra.mxu0 %v940
  %981 = vmatprep.subr.mxu0 0.0
  %982 = vmatpush2.msra.mxu0 0.0
  %983 = vmatprep.subr.mxu0 0.0
  %984 = vmatpush2.msra.mxu0 0.0
  %985 = vmatprep.subr.mxu0 0.0
  %986 = vmatpush2.msra.mxu0 0.0
  %987 = vmatprep.subr.mxu0 0.0
  %988 = vmatpush2.msra.mxu0 0.0
  %989 = vmatprep.subr.mxu0 0.0
  %990 = vmatpush2.msra.mxu0 0.0
  %991 = vmatprep.subr.mxu0 0.0
  %992 = vmatpush2.msra.mxu0 0.0
  %993 = vmatprep.subr.mxu0 0.0
  %994 = vmatpush2.msra.mxu0 0.0
  %995 = vmatprep.subr.mxu0 0.0
  %996 = vmatpush2.msra.mxu0 0.0
  %997 = vmatprep.subr.mxu0 0.0
  %998 = vmatpush2.msra.mxu0 0.0
  %999 = vmatprep.subr.mxu0 0.0
  %1000 = vmatpush2.msra.mxu0 0.0
  %1001 = vmatprep.subr.mxu0 0.0
  %1002 = vmatpush2.msra.mxu0 0.0
  %1003 = vmatprep.subr.mxu0 0.0
  %1004 = vmatpush2.msra.mxu0 0.0
  %1005 = vmatprep.subr.mxu0 0.0
  %1006 = vmatpush2.msra.mxu0 0.0
  %1007 = vmatprep.subr.mxu0 0.0
  %1008 = vmatpush2.msra.mxu0 0.0
  %1009 = vmatprep.subr.mxu0 0.0
  %1010 = vmatpush2.msra.mxu0 0.0
  %1011 = vmatprep.subr.mxu0 0.0
  %1012 = vmatpush2.msra.mxu0 0.0
  %1013 = vmatprep.mubr.f32.mxu0 0.0
  %1014 = vmatmul.mubr.f32.gmra.mxu0 %v747
  %v1015 = vpop.f32.mrf.mxu0
  %v1016 = vadd.f32 %v948, %v1015
  %v1017 = vpop.f32.mrf.mxu0
  %1018 = vmatprep.mubr.f32.mxu0 0.0
  %1019 = vmatmul.mubr.f32.gmra.mxu0 %v750
  %v1020 = vpop.f32.mrf.mxu0
  %v1021 = vadd.f32 %v948, %v1020
  %v1022 = vpop.f32.mrf.mxu0
  %1023 = vmatprep.mubr.f32.mxu0 0.0
  %1024 = vmatmul.mubr.f32.gmra.mxu0 %v753
  %v1025 = vpop.f32.mrf.mxu0
  %v1026 = vadd.f32 %v948, %v1025
  %v1027 = vpop.f32.mrf.mxu0
  %1028 = vmatprep.mubr.f32.mxu0 0.0
  %1029 = vmatmul.mubr.f32.gmra.mxu0 %v756
  %v1030 = vpop.f32.mrf.mxu0
  %v1031 = vadd.f32 %v948, %v1030
  %v1032 = vpop.f32.mrf.mxu0
  %1033 = vmatprep.mubr.f32.mxu0 0.0
  %1034 = vmatmul.mubr.f32.gmra.mxu0 %v759
  %v1035 = vpop.f32.mrf.mxu0
  %v1036 = vadd.f32 %v948, %v1035
  %v1037 = vpop.f32.mrf.mxu0
  %1038 = vmatprep.mubr.f32.mxu0 0.0
  %1039 = vmatmul.mubr.f32.gmra.mxu0 %v762
  %v1040 = vpop.f32.mrf.mxu0
  %v1041 = vadd.f32 %v948, %v1040
  %v1042 = vpop.f32.mrf.mxu0
  %1043 = vmatprep.mubr.f32.mxu0 0.0
  %1044 = vmatmul.mubr.f32.gmra.mxu0 %v765
  %v1045 = vpop.f32.mrf.mxu0
  %v1046 = vadd.f32 %v948, %v1045
  %v1047 = vpop.f32.mrf.mxu0
  %1048 = vmatprep.mubr.f32.mxu0 0.0
  %1049 = vmatmul.mubr.f32.gmra.mxu0 %v768
  %v1050 = vpop.f32.mrf.mxu0
  %v1051 = vadd.f32 %v948, %v1050
  %v1052 = vpop.f32.mrf.mxu0
  %1053 = vmatprep.mubr.f32.mxu0 0.0
  %1054 = vmatmul.mubr.f32.gmra.mxu0 %v771
  %v1055 = vpop.f32.mrf.mxu0
  %v1056 = vadd.f32 %v948, %v1055
  %v1057 = vpop.f32.mrf.mxu0
  %1058 = vmatprep.mubr.f32.mxu0 0.0
  %1059 = vmatmul.mubr.f32.gmra.mxu0 %v774
  %v1060 = vpop.f32.mrf.mxu0
  %v1061 = vadd.f32 %v948, %v1060
  %v1062 = vpop.f32.mrf.mxu0
  %1063 = vmatprep.mubr.f32.mxu0 0.0
  %1064 = vmatmul.mubr.f32.gmra.mxu0 %v777
  %v1065 = vpop.f32.mrf.mxu0
  %v1066 = vadd.f32 %v948, %v1065
  %v1067 = vpop.f32.mrf.mxu0
  %1068 = vmatprep.mubr.f32.mxu0 0.0
  %1069 = vmatmul.mubr.f32.gmra.mxu0 %v780
  %v1070 = vpop.f32.mrf.mxu0
  %v1071 = vadd.f32 %v948, %v1070
  %v1072 = vpop.f32.mrf.mxu0
  %1073 = vmatprep.mubr.f32.mxu0 0.0
  %1074 = vmatmul.mubr.f32.gmra.mxu0 %v783
  %v1075 = vpop.f32.mrf.mxu0
  %v1076 = vadd.f32 %v948, %v1075
  %v1077 = vpop.f32.mrf.mxu0
  %1078 = vmatprep.mubr.f32.mxu0 0.0
  %1079 = vmatmul.mubr.f32.gmra.mxu0 %v786
  %v1080 = vpop.f32.mrf.mxu0
  %v1081 = vadd.f32 %v948, %v1080
  %v1082 = vpop.f32.mrf.mxu0
  %1083 = vmatprep.mubr.f32.mxu0 0.0
  %1084 = vmatmul.mubr.f32.gmra.mxu0 %v789
  %v1085 = vpop.f32.mrf.mxu0
  %v1086 = vadd.f32 %v948, %v1085
  %v1087 = vpop.f32.mrf.mxu0
  %1088 = vmatprep.mubr.f32.mxu0 0.0
  %1089 = vmatmul.mubr.f32.gmra.mxu0 %v792
  %v1090 = vpop.f32.mrf.mxu0
  %v1091 = vadd.f32 %v948, %v1090
  %v1092 = vpop.f32.mrf.mxu0
  %1093 = vdwg.mxu0
  %s1094 = scalar_lea.vmem %s9, 64
  %v1095 = vld [vmem:[%s1094] sm:$0xff]
  %v1096 = vld [vmem:[%s1094 + $0x8] sm:$0xff]
  %v1097 = vld [vmem:[%s1094 + $0x10] sm:$0xff]
  %v1098 = vld [vmem:[%s1094 + $0x18] sm:$0xff]
  %v1099 = vld [vmem:[%s13 + $0x5] sm:$0x1]
  %v1100 = vlaneseq
  %v1101 = vshrl.u32 %v1100, 7
  %v1102 = vsub.s32 0, %v1101
  %v1103 = vrot.slane %v1099, %v1102
  %v1105 = vsel %vm537, %v705, 0
  %v1108 = vsel %vm537, %v706, 0
  %v1111 = vsel %vm537, %v707, 0
  %v1114 = vsel %vm537, %v708, 0
  %v1117 = vsel %vm537, %v709, 0
  %v1120 = vsel %vm537, %v710, 0
  %v1123 = vsel %vm537, %v711, 0
  %v1126 = vsel %vm537, %v712, 0
  %v1129 = vsel %vm537, %v713, 0
  %v1132 = vsel %vm537, %v714, 0
  %v1135 = vsel %vm537, %v715, 0
  %v1138 = vsel %vm537, %v716, 0
  %v1141 = vsel %vm537, %v717, 0
  %v1144 = vsel %vm537, %v718, 0
  %v1147 = vsel %vm537, %v719, 0
  %v1150 = vsel %vm537, %v720, 0
  %1152 = vmatprep.subr.mxu0 0.0
  %1153 = vmatpush1.msra.mxu0 0.0
  %1154 = vmatprep.subr.mxu0 0.0
  %1155 = vmatpush1.msra.mxu0 0.0
  %1156 = vmatprep.subr.mxu0 0.0
  %1157 = vmatpush1.msra.mxu0 0.0
  %1158 = vmatprep.subr.mxu0 0.0
  %1159 = vmatpush1.msra.mxu0 0.0
  %1160 = vmatprep.subr.mxu0 0.0
  %1161 = vmatpush1.msra.mxu0 0.0
  %1162 = vmatprep.subr.mxu0 0.0
  %1163 = vmatpush1.msra.mxu0 0.0
  %1164 = vmatprep.subr.mxu0 0.0
  %1165 = vmatpush1.msra.mxu0 0.0
  %1166 = vmatprep.subr.mxu0 0.0
  %1167 = vmatpush1.msra.mxu0 0.0
  %1168 = vmatprep.subr.mxu0 0.0
  %1169 = vmatpush1.msra.mxu0 0.0
  %1170 = vmatprep.subr.mxu0 0.0
  %1171 = vmatpush1.msra.mxu0 0.0
  %1172 = vmatprep.subr.mxu0 0.0
  %1173 = vmatpush1.msra.mxu0 0.0
  %1174 = vmatprep.subr.mxu0 0.0
  %1175 = vmatpush1.msra.mxu0 0.0
  %1176 = vmatprep.subr.mxu0 0.0
  %1177 = vmatpush1.msra.mxu0 %v1098
  %1178 = vmatprep.subr.mxu0 0.0
  %1179 = vmatpush1.msra.mxu0 %v1097
  %1180 = vmatprep.subr.mxu0 0.0
  %1181 = vmatpush1.msra.mxu0 %v1096
  %1182 = vmatprep.subr.mxu0 0.0
  %1183 = vmatpush1.msra.mxu0 %v1095
  %1184 = vmatprep.subr.mxu0 0.0
  %1185 = vmatpush2.msra.mxu0 0.0
  %1186 = vmatprep.subr.mxu0 0.0
  %1187 = vmatpush2.msra.mxu0 0.0
  %1188 = vmatprep.subr.mxu0 0.0
  %1189 = vmatpush2.msra.mxu0 0.0
  %1190 = vmatprep.subr.mxu0 0.0
  %1191 = vmatpush2.msra.mxu0 0.0
  %1192 = vmatprep.subr.mxu0 0.0
  %1193 = vmatpush2.msra.mxu0 0.0
  %1194 = vmatprep.subr.mxu0 0.0
  %1195 = vmatpush2.msra.mxu0 0.0
  %1196 = vmatprep.subr.mxu0 0.0
  %1197 = vmatpush2.msra.mxu0 0.0
  %1198 = vmatprep.subr.mxu0 0.0
  %1199 = vmatpush2.msra.mxu0 0.0
  %1200 = vmatprep.subr.mxu0 0.0
  %1201 = vmatpush2.msra.mxu0 0.0
  %1202 = vmatprep.subr.mxu0 0.0
  %1203 = vmatpush2.msra.mxu0 0.0
  %1204 = vmatprep.subr.mxu0 0.0
  %1205 = vmatpush2.msra.mxu0 0.0
  %1206 = vmatprep.subr.mxu0 0.0
  %1207 = vmatpush2.msra.mxu0 0.0
  %1208 = vmatprep.subr.mxu0 0.0
  %1209 = vmatpush2.msra.mxu0 0.0
  %1210 = vmatprep.subr.mxu0 0.0
  %1211 = vmatpush2.msra.mxu0 0.0
  %1212 = vmatprep.subr.mxu0 0.0
  %1213 = vmatpush2.msra.mxu0 0.0
  %1214 = vmatprep.subr.mxu0 0.0
  %1215 = vmatpush2.msra.mxu0 0.0
  %1216 = vmatprep.mubr.f32.mxu0 0.0
  %1217 = vmatmul.mubr.f32.gmra.mxu0 %v1105
  %v1218 = vpop.f32.mrf.mxu0
  %v1219 = vadd.f32 %v1103, %v1218
  %v1220 = vpop.f32.mrf.mxu0
  %1221 = vmatprep.mubr.f32.mxu0 0.0
  %1222 = vmatmul.mubr.f32.gmra.mxu0 %v1108
  %v1223 = vpop.f32.mrf.mxu0
  %v1224 = vadd.f32 %v1103, %v1223
  %v1225 = vpop.f32.mrf.mxu0
  %1226 = vmatprep.mubr.f32.mxu0 0.0
  %1227 = vmatmul.mubr.f32.gmra.mxu0 %v1111
  %v1228 = vpop.f32.mrf.mxu0
  %v1229 = vadd.f32 %v1103, %v1228
  %v1230 = vpop.f32.mrf.mxu0
  %1231 = vmatprep.mubr.f32.mxu0 0.0
  %1232 = vmatmul.mubr.f32.gmra.mxu0 %v1114
  %v1233 = vpop.f32.mrf.mxu0
  %v1234 = vadd.f32 %v1103, %v1233
  %v1235 = vpop.f32.mrf.mxu0
  %1236 = vmatprep.mubr.f32.mxu0 0.0
  %1237 = vmatmul.mubr.f32.gmra.mxu0 %v1117
  %v1238 = vpop.f32.mrf.mxu0
  %v1239 = vadd.f32 %v1103, %v1238
  %v1240 = vpop.f32.mrf.mxu0
  %1241 = vmatprep.mubr.f32.mxu0 0.0
  %1242 = vmatmul.mubr.f32.gmra.mxu0 %v1120
  %v1243 = vpop.f32.mrf.mxu0
  %v1244 = vadd.f32 %v1103, %v1243
  %v1245 = vpop.f32.mrf.mxu0
  %1246 = vmatprep.mubr.f32.mxu0 0.0
  %1247 = vmatmul.mubr.f32.gmra.mxu0 %v1123
  %v1248 = vpop.f32.mrf.mxu0
  %v1249 = vadd.f32 %v1103, %v1248
  %v1250 = vpop.f32.mrf.mxu0
  %1251 = vmatprep.mubr.f32.mxu0 0.0
  %1252 = vmatmul.mubr.f32.gmra.mxu0 %v1126
  %v1253 = vpop.f32.mrf.mxu0
  %v1254 = vadd.f32 %v1103, %v1253
  %v1255 = vpop.f32.mrf.mxu0
  %1256 = vmatprep.mubr.f32.mxu0 0.0
  %1257 = vmatmul.mubr.f32.gmra.mxu0 %v1129
  %v1258 = vpop.f32.mrf.mxu0
  %v1259 = vadd.f32 %v1103, %v1258
  %v1260 = vpop.f32.mrf.mxu0
  %1261 = vmatprep.mubr.f32.mxu0 0.0
  %1262 = vmatmul.mubr.f32.gmra.mxu0 %v1132
  %v1263 = vpop.f32.mrf.mxu0
  %v1264 = vadd.f32 %v1103, %v1263
  %v1265 = vpop.f32.mrf.mxu0
  %1266 = vmatprep.mubr.f32.mxu0 0.0
  %1267 = vmatmul.mubr.f32.gmra.mxu0 %v1135
  %v1268 = vpop.f32.mrf.mxu0
  %v1269 = vadd.f32 %v1103, %v1268
  %v1270 = vpop.f32.mrf.mxu0
  %1271 = vmatprep.mubr.f32.mxu0 0.0
  %1272 = vmatmul.mubr.f32.gmra.mxu0 %v1138
  %v1273 = vpop.f32.mrf.mxu0
  %v1274 = vadd.f32 %v1103, %v1273
  %v1275 = vpop.f32.mrf.mxu0
  %1276 = vmatprep.mubr.f32.mxu0 0.0
  %1277 = vmatmul.mubr.f32.gmra.mxu0 %v1141
  %v1278 = vpop.f32.mrf.mxu0
  %v1279 = vadd.f32 %v1103, %v1278
  %v1280 = vpop.f32.mrf.mxu0
  %1281 = vmatprep.mubr.f32.mxu0 0.0
  %1282 = vmatmul.mubr.f32.gmra.mxu0 %v1144
  %v1283 = vpop.f32.mrf.mxu0
  %v1284 = vadd.f32 %v1103, %v1283
  %v1285 = vpop.f32.mrf.mxu0
  %1286 = vmatprep.mubr.f32.mxu0 0.0
  %1287 = vmatmul.mubr.f32.gmra.mxu0 %v1147
  %v1288 = vpop.f32.mrf.mxu0
  %v1289 = vadd.f32 %v1103, %v1288
  %v1290 = vpop.f32.mrf.mxu0
  %1291 = vmatprep.mubr.f32.mxu0 0.0
  %1292 = vmatmul.mubr.f32.gmra.mxu0 %v1150
  %v1293 = vpop.f32.mrf.mxu0
  %v1294 = vadd.f32 %v1103, %v1293
  %v1295 = vpop.f32.mrf.mxu0
  %1296 = vdwg.mxu0
  %v1298 = vsel %vm537, %v861, 0
  %v1301 = vsel %vm537, %v866, 0
  %v1304 = vsel %vm537, %v871, 0
  %v1307 = vsel %vm537, %v876, 0
  %v1310 = vsel %vm537, %v881, 0
  %v1313 = vsel %vm537, %v886, 0
  %v1316 = vsel %vm537, %v891, 0
  %v1319 = vsel %vm537, %v896, 0
  %v1322 = vsel %vm537, %v901, 0
  %v1325 = vsel %vm537, %v906, 0
  %v1328 = vsel %vm537, %v911, 0
  %v1331 = vsel %vm537, %v916, 0
  %v1334 = vsel %vm537, %v921, 0
  %v1337 = vsel %vm537, %v926, 0
  %v1340 = vsel %vm537, %v931, 0
  %v1343 = vsel %vm537, %v936, 0
  %v1346 = vsel %vm537, %v1016, 0
  %v1349 = vsel %vm537, %v1021, 0
  %v1352 = vsel %vm537, %v1026, 0
  %v1355 = vsel %vm537, %v1031, 0
  %v1358 = vsel %vm537, %v1036, 0
  %v1361 = vsel %vm537, %v1041, 0
  %v1364 = vsel %vm537, %v1046, 0
  %v1367 = vsel %vm537, %v1051, 0
  %v1370 = vsel %vm537, %v1056, 0
  %v1373 = vsel %vm537, %v1061, 0
  %v1376 = vsel %vm537, %v1066, 0
  %v1379 = vsel %vm537, %v1071, 0
  %v1382 = vsel %vm537, %v1076, 0
  %v1385 = vsel %vm537, %v1081, 0
  %v1388 = vsel %vm537, %v1086, 0
  %v1391 = vsel %vm537, %v1091, 0
  %1393 = vmatprep.subr.mxu0 0.0
  %1394 = vmatpush1.xpose.msra.mxu0 %v1391
  %1395 = vmatprep.subr.mxu0 0.0
  %1396 = vmatpush1.xpose.msra.mxu0 %v1388
  %1397 = vmatprep.subr.mxu0 0.0
  %1398 = vmatpush1.xpose.msra.mxu0 %v1385
  %1399 = vmatprep.subr.mxu0 0.0
  %1400 = vmatpush1.xpose.msra.mxu0 %v1382
  %1401 = vmatprep.subr.mxu0 0.0
  %1402 = vmatpush1.xpose.msra.mxu0 %v1379
  %1403 = vmatprep.subr.mxu0 0.0
  %1404 = vmatpush1.xpose.msra.mxu0 %v1376
  %1405 = vmatprep.subr.mxu0 0.0
  %1406 = vmatpush1.xpose.msra.mxu0 %v1373
  %1407 = vmatprep.subr.mxu0 0.0
  %1408 = vmatpush1.xpose.msra.mxu0 %v1370
  %1409 = vmatprep.subr.mxu0 0.0
  %1410 = vmatpush1.xpose.msra.mxu0 %v1367
  %1411 = vmatprep.subr.mxu0 0.0
  %1412 = vmatpush1.xpose.msra.mxu0 %v1364
  %1413 = vmatprep.subr.mxu0 0.0
  %1414 = vmatpush1.xpose.msra.mxu0 %v1361
  %1415 = vmatprep.subr.mxu0 0.0
  %1416 = vmatpush1.xpose.msra.mxu0 %v1358
  %1417 = vmatprep.subr.mxu0 0.0
  %1418 = vmatpush1.xpose.msra.mxu0 %v1355
  %1419 = vmatprep.subr.mxu0 0.0
  %1420 = vmatpush1.xpose.msra.mxu0 %v1352
  %1421 = vmatprep.subr.mxu0 0.0
  %1422 = vmatpush1.xpose.msra.mxu0 %v1349
  %1423 = vmatprep.subr.mxu0 0.0
  %1424 = vmatpush1.xpose.msra.mxu0 %v1346
  %1425 = vmatprep.subr.mxu0 0.0
  %1426 = vmatpush2.xpose.msra.mxu0 0.0
  %1427 = vmatprep.subr.mxu0 0.0
  %1428 = vmatpush2.xpose.msra.mxu0 0.0
  %1429 = vmatprep.subr.mxu0 0.0
  %1430 = vmatpush2.xpose.msra.mxu0 0.0
  %1431 = vmatprep.subr.mxu0 0.0
  %1432 = vmatpush2.xpose.msra.mxu0 0.0
  %1433 = vmatprep.subr.mxu0 0.0
  %1434 = vmatpush2.xpose.msra.mxu0 0.0
  %1435 = vmatprep.subr.mxu0 0.0
  %1436 = vmatpush2.xpose.msra.mxu0 0.0
  %1437 = vmatprep.subr.mxu0 0.0
  %1438 = vmatpush2.xpose.msra.mxu0 0.0
  %1439 = vmatprep.subr.mxu0 0.0
  %1440 = vmatpush2.xpose.msra.mxu0 0.0
  %1441 = vmatprep.subr.mxu0 0.0
  %1442 = vmatpush2.xpose.msra.mxu0 0.0
  %1443 = vmatprep.subr.mxu0 0.0
  %1444 = vmatpush2.xpose.msra.mxu0 0.0
  %1445 = vmatprep.subr.mxu0 0.0
  %1446 = vmatpush2.xpose.msra.mxu0 0.0
  %1447 = vmatprep.subr.mxu0 0.0
  %1448 = vmatpush2.xpose.msra.mxu0 0.0
  %1449 = vmatprep.subr.mxu0 0.0
  %1450 = vmatpush2.xpose.msra.mxu0 0.0
  %1451 = vmatprep.subr.mxu0 0.0
  %1452 = vmatpush2.xpose.msra.mxu0 0.0
  %1453 = vmatprep.subr.mxu0 0.0
  %1454 = vmatpush2.xpose.msra.mxu0 0.0
  %1455 = vmatprep.subr.mxu0 0.0
  %1456 = vmatpush2.xpose.msra.mxu0 0.0
  %1457 = vmatprep.mubr.f32.mxu0 0.0
  %1458 = vmatmul.mubr.f32.gmra.mxu0 %v1298
  %v1459 = vpop.f32.mrf.mxu0
  %v1460 = vadd.f32 0.0, %v1459
  %v1461 = vpop.f32.mrf.mxu0
  %1462 = vmatprep.mubr.f32.mxu0 0.0
  %1463 = vmatmul.mubr.f32.gmra.mxu0 %v1301
  %v1464 = vpop.f32.mrf.mxu0
  %v1465 = vadd.f32 0.0, %v1464
  %v1466 = vpop.f32.mrf.mxu0
  %1467 = vmatprep.mubr.f32.mxu0 0.0
  %1468 = vmatmul.mubr.f32.gmra.mxu0 %v1304
  %v1469 = vpop.f32.mrf.mxu0
  %v1470 = vadd.f32 0.0, %v1469
  %v1471 = vpop.f32.mrf.mxu0
  %1472 = vmatprep.mubr.f32.mxu0 0.0
  %1473 = vmatmul.mubr.f32.gmra.mxu0 %v1307
  %v1474 = vpop.f32.mrf.mxu0
  %v1475 = vadd.f32 0.0, %v1474
  %v1476 = vpop.f32.mrf.mxu0
  %1477 = vmatprep.mubr.f32.mxu0 0.0
  %1478 = vmatmul.mubr.f32.gmra.mxu0 %v1310
  %v1479 = vpop.f32.mrf.mxu0
  %v1480 = vadd.f32 0.0, %v1479
  %v1481 = vpop.f32.mrf.mxu0
  %1482 = vmatprep.mubr.f32.mxu0 0.0
  %1483 = vmatmul.mubr.f32.gmra.mxu0 %v1313
  %v1484 = vpop.f32.mrf.mxu0
  %v1485 = vadd.f32 0.0, %v1484
  %v1486 = vpop.f32.mrf.mxu0
  %1487 = vmatprep.mubr.f32.mxu0 0.0
  %1488 = vmatmul.mubr.f32.gmra.mxu0 %v1316
  %v1489 = vpop.f32.mrf.mxu0
  %v1490 = vadd.f32 0.0, %v1489
  %v1491 = vpop.f32.mrf.mxu0
  %1492 = vmatprep.mubr.f32.mxu0 0.0
  %1493 = vmatmul.mubr.f32.gmra.mxu0 %v1319
  %v1494 = vpop.f32.mrf.mxu0
  %v1495 = vadd.f32 0.0, %v1494
  %v1496 = vpop.f32.mrf.mxu0
  %1497 = vmatprep.mubr.f32.mxu0 0.0
  %1498 = vmatmul.mubr.f32.gmra.mxu0 %v1322
  %v1499 = vpop.f32.mrf.mxu0
  %v1500 = vadd.f32 0.0, %v1499
  %v1501 = vpop.f32.mrf.mxu0
  %1502 = vmatprep.mubr.f32.mxu0 0.0
  %1503 = vmatmul.mubr.f32.gmra.mxu0 %v1325
  %v1504 = vpop.f32.mrf.mxu0
  %v1505 = vadd.f32 0.0, %v1504
  %v1506 = vpop.f32.mrf.mxu0
  %1507 = vmatprep.mubr.f32.mxu0 0.0
  %1508 = vmatmul.mubr.f32.gmra.mxu0 %v1328
  %v1509 = vpop.f32.mrf.mxu0
  %v1510 = vadd.f32 0.0, %v1509
  %v1511 = vpop.f32.mrf.mxu0
  %1512 = vmatprep.mubr.f32.mxu0 0.0
  %1513 = vmatmul.mubr.f32.gmra.mxu0 %v1331
  %v1514 = vpop.f32.mrf.mxu0
  %v1515 = vadd.f32 0.0, %v1514
  %v1516 = vpop.f32.mrf.mxu0
  %1517 = vmatprep.mubr.f32.mxu0 0.0
  %1518 = vmatmul.mubr.f32.gmra.mxu0 %v1334
  %v1519 = vpop.f32.mrf.mxu0
  %v1520 = vadd.f32 0.0, %v1519
  %v1521 = vpop.f32.mrf.mxu0
  %1522 = vmatprep.mubr.f32.mxu0 0.0
  %1523 = vmatmul.mubr.f32.gmra.mxu0 %v1337
  %v1524 = vpop.f32.mrf.mxu0
  %v1525 = vadd.f32 0.0, %v1524
  %v1526 = vpop.f32.mrf.mxu0
  %1527 = vmatprep.mubr.f32.mxu0 0.0
  %1528 = vmatmul.mubr.f32.gmra.mxu0 %v1340
  %v1529 = vpop.f32.mrf.mxu0
  %v1530 = vadd.f32 0.0, %v1529
  %v1531 = vpop.f32.mrf.mxu0
  %1532 = vmatprep.mubr.f32.mxu0 0.0
  %1533 = vmatmul.mubr.f32.gmra.mxu0 %v1343
  %v1534 = vpop.f32.mrf.mxu0
  %v1535 = vadd.f32 0.0, %v1534
  %v1536 = vpop.f32.mrf.mxu0
  %1537 = vdwg.mxu0
  %v1538 = vmul.f32 %v1460, 0.17677669
  %v1539 = vmul.f32 %v1465, 0.17677669
  %v1540 = vmul.f32 %v1470, 0.17677669
  %v1541 = vmul.f32 %v1475, 0.17677669
  %v1542 = vmul.f32 %v1480, 0.17677669
  %v1543 = vmul.f32 %v1485, 0.17677669
  %v1544 = vmul.f32 %v1490, 0.17677669
  %v1545 = vmul.f32 %v1495, 0.17677669
  %v1546 = vmul.f32 %v1500, 0.17677669
  %v1547 = vmul.f32 %v1505, 0.17677669
  %v1548 = vmul.f32 %v1510, 0.17677669
  %v1549 = vmul.f32 %v1515, 0.17677669
  %v1550 = vmul.f32 %v1520, 0.17677669
  %v1551 = vmul.f32 %v1525, 0.17677669
  %v1552 = vmul.f32 %v1530, 0.17677669
  %v1553 = vmul.f32 %v1535, 0.17677669
  %v1554 = vadd.f32 %v1538, %v94
  %v1555 = vadd.f32 %v1539, %v95
  %v1556 = vadd.f32 %v1540, %v96
  %v1557 = vadd.f32 %v1541, %v97
  %v1558 = vadd.f32 %v1542, %v98
  %v1559 = vadd.f32 %v1543, %v99
  %v1560 = vadd.f32 %v1544, %v100
  %v1561 = vadd.f32 %v1545, %v101
  %v1562 = vadd.f32 %v1546, %v102
  %v1563 = vadd.f32 %v1547, %v103
  %v1564 = vadd.f32 %v1548, %v104
  %v1565 = vadd.f32 %v1549, %v105
  %v1566 = vadd.f32 %v1550, %v106
  %v1567 = vadd.f32 %v1551, %v107
  %v1568 = vadd.f32 %v1552, %v108
  %v1569 = vadd.f32 %v1553, %v109
  %1570 = vmax.xlane.f32.xlu0 %v1554
  %v1571 = vpop.xlane.xlu0 %1570
  %1572 = vmax.xlane.f32.xlu0 %v1555
  %v1573 = vpop.xlane.xlu0 %1572
  %1574 = vmax.xlane.f32.xlu0 %v1556
  %v1575 = vpop.xlane.xlu0 %1574
  %1576 = vmax.xlane.f32.xlu0 %v1557
  %v1577 = vpop.xlane.xlu0 %1576
  %1578 = vmax.xlane.f32.xlu0 %v1558
  %v1579 = vpop.xlane.xlu0 %1578
  %1580 = vmax.xlane.f32.xlu0 %v1559
  %v1581 = vpop.xlane.xlu0 %1580
  %1582 = vmax.xlane.f32.xlu0 %v1560
  %v1583 = vpop.xlane.xlu0 %1582
  %1584 = vmax.xlane.f32.xlu0 %v1561
  %v1585 = vpop.xlane.xlu0 %1584
  %1586 = vmax.xlane.f32.xlu0 %v1562
  %v1587 = vpop.xlane.xlu0 %1586
  %1588 = vmax.xlane.f32.xlu0 %v1563
  %v1589 = vpop.xlane.xlu0 %1588
  %1590 = vmax.xlane.f32.xlu0 %v1564
  %v1591 = vpop.xlane.xlu0 %1590
  %1592 = vmax.xlane.f32.xlu0 %v1565
  %v1593 = vpop.xlane.xlu0 %1592
  %1594 = vmax.xlane.f32.xlu0 %v1566
  %v1595 = vpop.xlane.xlu0 %1594
  %1596 = vmax.xlane.f32.xlu0 %v1567
  %v1597 = vpop.xlane.xlu0 %1596
  %1598 = vmax.xlane.f32.xlu0 %v1568
  %v1599 = vpop.xlane.xlu0 %1598
  %1600 = vmax.xlane.f32.xlu0 %v1569
  %v1601 = vpop.xlane.xlu0 %1600
  %v1602 = vsub.f32 %v1554, %v1571
  %v1603 = vsub.f32 %v1555, %v1573
  %v1604 = vsub.f32 %v1556, %v1575
  %v1605 = vsub.f32 %v1557, %v1577
  %v1606 = vsub.f32 %v1558, %v1579
  %v1607 = vsub.f32 %v1559, %v1581
  %v1608 = vsub.f32 %v1560, %v1583
  %v1609 = vsub.f32 %v1561, %v1585
  %v1610 = vsub.f32 %v1562, %v1587
  %v1611 = vsub.f32 %v1563, %v1589
  %v1612 = vsub.f32 %v1564, %v1591
  %v1613 = vsub.f32 %v1565, %v1593
  %v1614 = vsub.f32 %v1566, %v1595
  %v1615 = vsub.f32 %v1567, %v1597
  %v1616 = vsub.f32 %v1568, %v1599
  %v1617 = vsub.f32 %v1569, %v1601
  %v1618 = vmul.f32 %v1602, 1.442695
  %v1619 = vpow.pop %v1618
  %v1620 = vmul.f32 %v1603, 1.442695
  %v1621 = vpow.pop %v1620
  %v1622 = vmul.f32 %v1604, 1.442695
  %v1623 = vpow.pop %v1622
  %v1624 = vmul.f32 %v1605, 1.442695
  %v1625 = vpow.pop %v1624
  %v1626 = vmul.f32 %v1606, 1.442695
  %v1627 = vpow.pop %v1626
  %v1628 = vmul.f32 %v1607, 1.442695
  %v1629 = vpow.pop %v1628
  %v1630 = vmul.f32 %v1608, 1.442695
  %v1631 = vpow.pop %v1630
  %v1632 = vmul.f32 %v1609, 1.442695
  %v1633 = vpow.pop %v1632
  %v1634 = vmul.f32 %v1610, 1.442695
  %v1635 = vpow.pop %v1634
  %v1636 = vmul.f32 %v1611, 1.442695
  %v1637 = vpow.pop %v1636
  %v1638 = vmul.f32 %v1612, 1.442695
  %v1639 = vpow.pop %v1638
  %v1640 = vmul.f32 %v1613, 1.442695
  %v1641 = vpow.pop %v1640
  %v1642 = vmul.f32 %v1614, 1.442695
  %v1643 = vpow.pop %v1642
  %v1644 = vmul.f32 %v1615, 1.442695
  %v1645 = vpow.pop %v1644
  %v1646 = vmul.f32 %v1616, 1.442695
  %v1647 = vpow.pop %v1646
  %v1648 = vmul.f32 %v1617, 1.442695
  %v1649 = vpow.pop %v1648
  %1650 = vadd.xlane.f32.xlu0 %v1619
  %v1651 = vpop.xlane.xlu0 %1650
  %1652 = vadd.xlane.f32.xlu0 %v1621
  %v1653 = vpop.xlane.xlu0 %1652
  %1654 = vadd.xlane.f32.xlu0 %v1623
  %v1655 = vpop.xlane.xlu0 %1654
  %1656 = vadd.xlane.f32.xlu0 %v1625
  %v1657 = vpop.xlane.xlu0 %1656
  %1658 = vadd.xlane.f32.xlu0 %v1627
  %v1659 = vpop.xlane.xlu0 %1658
  %1660 = vadd.xlane.f32.xlu0 %v1629
  %v1661 = vpop.xlane.xlu0 %1660
  %1662 = vadd.xlane.f32.xlu0 %v1631
  %v1663 = vpop.xlane.xlu0 %1662
  %1664 = vadd.xlane.f32.xlu0 %v1633
  %v1665 = vpop.xlane.xlu0 %1664
  %1666 = vadd.xlane.f32.xlu0 %v1635
  %v1667 = vpop.xlane.xlu0 %1666
  %1668 = vadd.xlane.f32.xlu0 %v1637
  %v1669 = vpop.xlane.xlu0 %1668
  %1670 = vadd.xlane.f32.xlu0 %v1639
  %v1671 = vpop.xlane.xlu0 %1670
  %1672 = vadd.xlane.f32.xlu0 %v1641
  %v1673 = vpop.xlane.xlu0 %1672
  %1674 = vadd.xlane.f32.xlu0 %v1643
  %v1675 = vpop.xlane.xlu0 %1674
  %1676 = vadd.xlane.f32.xlu0 %v1645
  %v1677 = vpop.xlane.xlu0 %1676
  %1678 = vadd.xlane.f32.xlu0 %v1647
  %v1679 = vpop.xlane.xlu0 %1678
  %1680 = vadd.xlane.f32.xlu0 %v1649
  %v1681 = vpop.xlane.xlu0 %1680
  %v1682 = vrcp.pop %v1651
  %v1683 = vrcp.pop %v1653
  %v1684 = vrcp.pop %v1655
  %v1685 = vrcp.pop %v1657
  %v1686 = vrcp.pop %v1659
  %v1687 = vrcp.pop %v1661
  %v1688 = vrcp.pop %v1663
  %v1689 = vrcp.pop %v1665
  %v1690 = vrcp.pop %v1667
  %v1691 = vrcp.pop %v1669
  %v1692 = vrcp.pop %v1671
  %v1693 = vrcp.pop %v1673
  %v1694 = vrcp.pop %v1675
  %v1695 = vrcp.pop %v1677
  %v1696 = vrcp.pop %v1679
  %v1697 = vrcp.pop %v1681
  %v1698 = vmul.f32 %v1619, %v1682
  %v1699 = vmul.f32 %v1621, %v1683
  %v1700 = vmul.f32 %v1623, %v1684
  %v1701 = vmul.f32 %v1625, %v1685
  %v1702 = vmul.f32 %v1627, %v1686
  %v1703 = vmul.f32 %v1629, %v1687
  %v1704 = vmul.f32 %v1631, %v1688
  %v1705 = vmul.f32 %v1633, %v1689
  %v1706 = vmul.f32 %v1635, %v1690
  %v1707 = vmul.f32 %v1637, %v1691
  %v1708 = vmul.f32 %v1639, %v1692
  %v1709 = vmul.f32 %v1641, %v1693
  %v1710 = vmul.f32 %v1643, %v1694
  %v1711 = vmul.f32 %v1645, %v1695
  %v1712 = vmul.f32 %v1647, %v1696
  %v1713 = vmul.f32 %v1649, %v1697
  %1714 = vmatprep.subr.mxu0 0.0
  %1715 = vmatpush1.msra.mxu0 %v1294
  %1716 = vmatprep.subr.mxu0 0.0
  %1717 = vmatpush1.msra.mxu0 %v1289
  %1718 = vmatprep.subr.mxu0 0.0
  %1719 = vmatpush1.msra.mxu0 %v1284
  %1720 = vmatprep.subr.mxu0 0.0
  %1721 = vmatpush1.msra.mxu0 %v1279
  %1722 = vmatprep.subr.mxu0 0.0
  %1723 = vmatpush1.msra.mxu0 %v1274
  %1724 = vmatprep.subr.mxu0 0.0
  %1725 = vmatpush1.msra.mxu0 %v1269
  %1726 = vmatprep.subr.mxu0 0.0
  %1727 = vmatpush1.msra.mxu0 %v1264
  %1728 = vmatprep.subr.mxu0 0.0
  %1729 = vmatpush1.msra.mxu0 %v1259
  %1730 = vmatprep.subr.mxu0 0.0
  %1731 = vmatpush1.msra.mxu0 %v1254
  %1732 = vmatprep.subr.mxu0 0.0
  %1733 = vmatpush1.msra.mxu0 %v1249
  %1734 = vmatprep.subr.mxu0 0.0
  %1735 = vmatpush1.msra.mxu0 %v1244
  %1736 = vmatprep.subr.mxu0 0.0
  %1737 = vmatpush1.msra.mxu0 %v1239
  %1738 = vmatprep.subr.mxu0 0.0
  %1739 = vmatpush1.msra.mxu0 %v1234
  %1740 = vmatprep.subr.mxu0 0.0
  %1741 = vmatpush1.msra.mxu0 %v1229
  %1742 = vmatprep.subr.mxu0 0.0
  %1743 = vmatpush1.msra.mxu0 %v1224
  %1744 = vmatprep.subr.mxu0 0.0
  %1745 = vmatpush1.msra.mxu0 %v1219
  %1746 = vmatprep.subr.mxu0 0.0
  %1747 = vmatpush2.msra.mxu0 0.0
  %1748 = vmatprep.subr.mxu0 0.0
  %1749 = vmatpush2.msra.mxu0 0.0
  %1750 = vmatprep.subr.mxu0 0.0
  %1751 = vmatpush2.msra.mxu0 0.0
  %1752 = vmatprep.subr.mxu0 0.0
  %1753 = vmatpush2.msra.mxu0 0.0
  %1754 = vmatprep.subr.mxu0 0.0
  %1755 = vmatpush2.msra.mxu0 0.0
  %1756 = vmatprep.subr.mxu0 0.0
  %1757 = vmatpush2.msra.mxu0 0.0
  %1758 = vmatprep.subr.mxu0 0.0
  %1759 = vmatpush2.msra.mxu0 0.0
  %1760 = vmatprep.subr.mxu0 0.0
  %1761 = vmatpush2.msra.mxu0 0.0
  %1762 = vmatprep.subr.mxu0 0.0
  %1763 = vmatpush2.msra.mxu0 0.0
  %1764 = vmatprep.subr.mxu0 0.0
  %1765 = vmatpush2.msra.mxu0 0.0
  %1766 = vmatprep.subr.mxu0 0.0
  %1767 = vmatpush2.msra.mxu0 0.0
  %1768 = vmatprep.subr.mxu0 0.0
  %1769 = vmatpush2.msra.mxu0 0.0
  %1770 = vmatprep.subr.mxu0 0.0
  %1771 = vmatpush2.msra.mxu0 0.0
  %1772 = vmatprep.subr.mxu0 0.0
  %1773 = vmatpush2.msra.mxu0 0.0
  %1774 = vmatprep.subr.mxu0 0.0
  %1775 = vmatpush2.msra.mxu0 0.0
  %1776 = vmatprep.subr.mxu0 0.0
  %1777 = vmatpush2.msra.mxu0 0.0
  %1778 = vmatprep.mubr.f32.mxu0 0.0
  %1779 = vmatmul.mubr.f32.gmra.mxu0 %v1698
  %v1780 = vpop.f32.mrf.mxu0
  %v1781 = vadd.f32 0.0, %v1780
  %v1782 = vpop.f32.mrf.mxu0
  %1783 = vmatprep.mubr.f32.mxu0 0.0
  %1784 = vmatmul.mubr.f32.gmra.mxu0 %v1699
  %v1785 = vpop.f32.mrf.mxu0
  %v1786 = vadd.f32 0.0, %v1785
  %v1787 = vpop.f32.mrf.mxu0
  %1788 = vmatprep.mubr.f32.mxu0 0.0
  %1789 = vmatmul.mubr.f32.gmra.mxu0 %v1700
  %v1790 = vpop.f32.mrf.mxu0
  %v1791 = vadd.f32 0.0, %v1790
  %v1792 = vpop.f32.mrf.mxu0
  %1793 = vmatprep.mubr.f32.mxu0 0.0
  %1794 = vmatmul.mubr.f32.gmra.mxu0 %v1701
  %v1795 = vpop.f32.mrf.mxu0
  %v1796 = vadd.f32 0.0, %v1795
  %v1797 = vpop.f32.mrf.mxu0
  %1798 = vmatprep.mubr.f32.mxu0 0.0
  %1799 = vmatmul.mubr.f32.gmra.mxu0 %v1702
  %v1800 = vpop.f32.mrf.mxu0
  %v1801 = vadd.f32 0.0, %v1800
  %v1802 = vpop.f32.mrf.mxu0
  %1803 = vmatprep.mubr.f32.mxu0 0.0
  %1804 = vmatmul.mubr.f32.gmra.mxu0 %v1703
  %v1805 = vpop.f32.mrf.mxu0
  %v1806 = vadd.f32 0.0, %v1805
  %v1807 = vpop.f32.mrf.mxu0
  %1808 = vmatprep.mubr.f32.mxu0 0.0
  %1809 = vmatmul.mubr.f32.gmra.mxu0 %v1704
  %v1810 = vpop.f32.mrf.mxu0
  %v1811 = vadd.f32 0.0, %v1810
  %v1812 = vpop.f32.mrf.mxu0
  %1813 = vmatprep.mubr.f32.mxu0 0.0
  %1814 = vmatmul.mubr.f32.gmra.mxu0 %v1705
  %v1815 = vpop.f32.mrf.mxu0
  %v1816 = vadd.f32 0.0, %v1815
  %v1817 = vpop.f32.mrf.mxu0
  %1818 = vmatprep.mubr.f32.mxu0 0.0
  %1819 = vmatmul.mubr.f32.gmra.mxu0 %v1706
  %v1820 = vpop.f32.mrf.mxu0
  %v1821 = vadd.f32 0.0, %v1820
  %v1822 = vpop.f32.mrf.mxu0
  %1823 = vmatprep.mubr.f32.mxu0 0.0
  %1824 = vmatmul.mubr.f32.gmra.mxu0 %v1707
  %v1825 = vpop.f32.mrf.mxu0
  %v1826 = vadd.f32 0.0, %v1825
  %v1827 = vpop.f32.mrf.mxu0
  %1828 = vmatprep.mubr.f32.mxu0 0.0
  %1829 = vmatmul.mubr.f32.gmra.mxu0 %v1708
  %v1830 = vpop.f32.mrf.mxu0
  %v1831 = vadd.f32 0.0, %v1830
  %v1832 = vpop.f32.mrf.mxu0
  %1833 = vmatprep.mubr.f32.mxu0 0.0
  %1834 = vmatmul.mubr.f32.gmra.mxu0 %v1709
  %v1835 = vpop.f32.mrf.mxu0
  %v1836 = vadd.f32 0.0, %v1835
  %v1837 = vpop.f32.mrf.mxu0
  %1838 = vmatprep.mubr.f32.mxu0 0.0
  %1839 = vmatmul.mubr.f32.gmra.mxu0 %v1710
  %v1840 = vpop.f32.mrf.mxu0
  %v1841 = vadd.f32 0.0, %v1840
  %v1842 = vpop.f32.mrf.mxu0
  %1843 = vmatprep.mubr.f32.mxu0 0.0
  %1844 = vmatmul.mubr.f32.gmra.mxu0 %v1711
  %v1845 = vpop.f32.mrf.mxu0
  %v1846 = vadd.f32 0.0, %v1845
  %v1847 = vpop.f32.mrf.mxu0
  %1848 = vmatprep.mubr.f32.mxu0 0.0
  %1849 = vmatmul.mubr.f32.gmra.mxu0 %v1712
  %v1850 = vpop.f32.mrf.mxu0
  %v1851 = vadd.f32 0.0, %v1850
  %v1852 = vpop.f32.mrf.mxu0
  %1853 = vmatprep.mubr.f32.mxu0 0.0
  %1854 = vmatmul.mubr.f32.gmra.mxu0 %v1713
  %v1855 = vpop.f32.mrf.mxu0
  %v1856 = vadd.f32 0.0, %v1855
  %v1857 = vpop.f32.mrf.mxu0
  %1858 = vdwg.mxu0
  %s1859 = scalar_lea.vmem %s9, 96
  %v1860 = vld [vmem:[%s1859] sm:$0xff]
  %v1861 = vld [vmem:[%s1859 + $0x8] sm:$0xff]
  %v1862 = vld [vmem:[%s1859 + $0x10] sm:$0xff]
  %v1863 = vld [vmem:[%s1859 + $0x18] sm:$0xff]
  %v1864 = vld [vmem:[%s13 + $0x6] sm:$0x1]
  %v1865 = vlaneseq
  %v1866 = vshrl.u32 %v1865, 7
  %v1867 = vsub.s32 0, %v1866
  %v1868 = vrot.slane %v1864, %v1867
  %v1870 = vsel %vm537, %v1781, 0
  %v1873 = vsel %vm537, %v1786, 0
  %v1876 = vsel %vm537, %v1791, 0
  %v1879 = vsel %vm537, %v1796, 0
  %v1882 = vsel %vm537, %v1801, 0
  %v1885 = vsel %vm537, %v1806, 0
  %v1888 = vsel %vm537, %v1811, 0
  %v1891 = vsel %vm537, %v1816, 0
  %v1894 = vsel %vm537, %v1821, 0
  %v1897 = vsel %vm537, %v1826, 0
  %v1900 = vsel %vm537, %v1831, 0
  %v1903 = vsel %vm537, %v1836, 0
  %v1906 = vsel %vm537, %v1841, 0
  %v1909 = vsel %vm537, %v1846, 0
  %v1912 = vsel %vm537, %v1851, 0
  %v1915 = vsel %vm537, %v1856, 0
  %1917 = vmatprep.subr.mxu0 0.0
  %1918 = vmatpush1.msra.mxu0 0.0
  %1919 = vmatprep.subr.mxu0 0.0
  %1920 = vmatpush1.msra.mxu0 0.0
  %1921 = vmatprep.subr.mxu0 0.0
  %1922 = vmatpush1.msra.mxu0 0.0
  %1923 = vmatprep.subr.mxu0 0.0
  %1924 = vmatpush1.msra.mxu0 0.0
  %1925 = vmatprep.subr.mxu0 0.0
  %1926 = vmatpush1.msra.mxu0 0.0
  %1927 = vmatprep.subr.mxu0 0.0
  %1928 = vmatpush1.msra.mxu0 0.0
  %1929 = vmatprep.subr.mxu0 0.0
  %1930 = vmatpush1.msra.mxu0 0.0
  %1931 = vmatprep.subr.mxu0 0.0
  %1932 = vmatpush1.msra.mxu0 0.0
  %1933 = vmatprep.subr.mxu0 0.0
  %1934 = vmatpush1.msra.mxu0 0.0
  %1935 = vmatprep.subr.mxu0 0.0
  %1936 = vmatpush1.msra.mxu0 0.0
  %1937 = vmatprep.subr.mxu0 0.0
  %1938 = vmatpush1.msra.mxu0 0.0
  %1939 = vmatprep.subr.mxu0 0.0
  %1940 = vmatpush1.msra.mxu0 0.0
  %1941 = vmatprep.subr.mxu0 0.0
  %1942 = vmatpush1.msra.mxu0 %v1863
  %1943 = vmatprep.subr.mxu0 0.0
  %1944 = vmatpush1.msra.mxu0 %v1862
  %1945 = vmatprep.subr.mxu0 0.0
  %1946 = vmatpush1.msra.mxu0 %v1861
  %1947 = vmatprep.subr.mxu0 0.0
  %1948 = vmatpush1.msra.mxu0 %v1860
  %1949 = vmatprep.subr.mxu0 0.0
  %1950 = vmatpush2.msra.mxu0 0.0
  %1951 = vmatprep.subr.mxu0 0.0
  %1952 = vmatpush2.msra.mxu0 0.0
  %1953 = vmatprep.subr.mxu0 0.0
  %1954 = vmatpush2.msra.mxu0 0.0
  %1955 = vmatprep.subr.mxu0 0.0
  %1956 = vmatpush2.msra.mxu0 0.0
  %1957 = vmatprep.subr.mxu0 0.0
  %1958 = vmatpush2.msra.mxu0 0.0
  %1959 = vmatprep.subr.mxu0 0.0
  %1960 = vmatpush2.msra.mxu0 0.0
  %1961 = vmatprep.subr.mxu0 0.0
  %1962 = vmatpush2.msra.mxu0 0.0
  %1963 = vmatprep.subr.mxu0 0.0
  %1964 = vmatpush2.msra.mxu0 0.0
  %1965 = vmatprep.subr.mxu0 0.0
  %1966 = vmatpush2.msra.mxu0 0.0
  %1967 = vmatprep.subr.mxu0 0.0
  %1968 = vmatpush2.msra.mxu0 0.0
  %1969 = vmatprep.subr.mxu0 0.0
  %1970 = vmatpush2.msra.mxu0 0.0
  %1971 = vmatprep.subr.mxu0 0.0
  %1972 = vmatpush2.msra.mxu0 0.0
  %1973 = vmatprep.subr.mxu0 0.0
  %1974 = vmatpush2.msra.mxu0 0.0
  %1975 = vmatprep.subr.mxu0 0.0
  %1976 = vmatpush2.msra.mxu0 0.0
  %1977 = vmatprep.subr.mxu0 0.0
  %1978 = vmatpush2.msra.mxu0 0.0
  %1979 = vmatprep.subr.mxu0 0.0
  %1980 = vmatpush2.msra.mxu0 0.0
  %1981 = vmatprep.mubr.f32.mxu0 0.0
  %1982 = vmatmul.mubr.f32.gmra.mxu0 %v1870
  %v1983 = vpop.f32.mrf.mxu0
  %v1984 = vadd.f32 %v1868, %v1983
  %v1985 = vpop.f32.mrf.mxu0
  %1986 = vmatprep.mubr.f32.mxu0 0.0
  %1987 = vmatmul.mubr.f32.gmra.mxu0 %v1873
  %v1988 = vpop.f32.mrf.mxu0
  %v1989 = vadd.f32 %v1868, %v1988
  %v1990 = vpop.f32.mrf.mxu0
  %1991 = vmatprep.mubr.f32.mxu0 0.0
  %1992 = vmatmul.mubr.f32.gmra.mxu0 %v1876
  %v1993 = vpop.f32.mrf.mxu0
  %v1994 = vadd.f32 %v1868, %v1993
  %v1995 = vpop.f32.mrf.mxu0
  %1996 = vmatprep.mubr.f32.mxu0 0.0
  %1997 = vmatmul.mubr.f32.gmra.mxu0 %v1879
  %v1998 = vpop.f32.mrf.mxu0
  %v1999 = vadd.f32 %v1868, %v1998
  %v2000 = vpop.f32.mrf.mxu0
  %2001 = vmatprep.mubr.f32.mxu0 0.0
  %2002 = vmatmul.mubr.f32.gmra.mxu0 %v1882
  %v2003 = vpop.f32.mrf.mxu0
  %v2004 = vadd.f32 %v1868, %v2003
  %v2005 = vpop.f32.mrf.mxu0
  %2006 = vmatprep.mubr.f32.mxu0 0.0
  %2007 = vmatmul.mubr.f32.gmra.mxu0 %v1885
  %v2008 = vpop.f32.mrf.mxu0
  %v2009 = vadd.f32 %v1868, %v2008
  %v2010 = vpop.f32.mrf.mxu0
  %2011 = vmatprep.mubr.f32.mxu0 0.0
  %2012 = vmatmul.mubr.f32.gmra.mxu0 %v1888
  %v2013 = vpop.f32.mrf.mxu0
  %v2014 = vadd.f32 %v1868, %v2013
  %v2015 = vpop.f32.mrf.mxu0
  %2016 = vmatprep.mubr.f32.mxu0 0.0
  %2017 = vmatmul.mubr.f32.gmra.mxu0 %v1891
  %v2018 = vpop.f32.mrf.mxu0
  %v2019 = vadd.f32 %v1868, %v2018
  %v2020 = vpop.f32.mrf.mxu0
  %2021 = vmatprep.mubr.f32.mxu0 0.0
  %2022 = vmatmul.mubr.f32.gmra.mxu0 %v1894
  %v2023 = vpop.f32.mrf.mxu0
  %v2024 = vadd.f32 %v1868, %v2023
  %v2025 = vpop.f32.mrf.mxu0
  %2026 = vmatprep.mubr.f32.mxu0 0.0
  %2027 = vmatmul.mubr.f32.gmra.mxu0 %v1897
  %v2028 = vpop.f32.mrf.mxu0
  %v2029 = vadd.f32 %v1868, %v2028
  %v2030 = vpop.f32.mrf.mxu0
  %2031 = vmatprep.mubr.f32.mxu0 0.0
  %2032 = vmatmul.mubr.f32.gmra.mxu0 %v1900
  %v2033 = vpop.f32.mrf.mxu0
  %v2034 = vadd.f32 %v1868, %v2033
  %v2035 = vpop.f32.mrf.mxu0
  %2036 = vmatprep.mubr.f32.mxu0 0.0
  %2037 = vmatmul.mubr.f32.gmra.mxu0 %v1903
  %v2038 = vpop.f32.mrf.mxu0
  %v2039 = vadd.f32 %v1868, %v2038
  %v2040 = vpop.f32.mrf.mxu0
  %2041 = vmatprep.mubr.f32.mxu0 0.0
  %2042 = vmatmul.mubr.f32.gmra.mxu0 %v1906
  %v2043 = vpop.f32.mrf.mxu0
  %v2044 = vadd.f32 %v1868, %v2043
  %v2045 = vpop.f32.mrf.mxu0
  %2046 = vmatprep.mubr.f32.mxu0 0.0
  %2047 = vmatmul.mubr.f32.gmra.mxu0 %v1909
  %v2048 = vpop.f32.mrf.mxu0
  %v2049 = vadd.f32 %v1868, %v2048
  %v2050 = vpop.f32.mrf.mxu0
  %2051 = vmatprep.mubr.f32.mxu0 0.0
  %2052 = vmatmul.mubr.f32.gmra.mxu0 %v1912
  %v2053 = vpop.f32.mrf.mxu0
  %v2054 = vadd.f32 %v1868, %v2053
  %v2055 = vpop.f32.mrf.mxu0
  %2056 = vmatprep.mubr.f32.mxu0 0.0
  %2057 = vmatmul.mubr.f32.gmra.mxu0 %v1915
  %v2058 = vpop.f32.mrf.mxu0
  %v2059 = vadd.f32 %v1868, %v2058
  %v2060 = vpop.f32.mrf.mxu0
  %2061 = vdwg.mxu0
  %v2062 = vadd.f32 %v705, %v1984
  %v2063 = vadd.f32 %v706, %v1989
  %v2064 = vadd.f32 %v707, %v1994
  %v2065 = vadd.f32 %v708, %v1999
  %v2066 = vadd.f32 %v709, %v2004
  %v2067 = vadd.f32 %v710, %v2009
  %v2068 = vadd.f32 %v711, %v2014
  %v2069 = vadd.f32 %v712, %v2019
  %v2070 = vadd.f32 %v713, %v2024
  %v2071 = vadd.f32 %v714, %v2029
  %v2072 = vadd.f32 %v715, %v2034
  %v2073 = vadd.f32 %v716, %v2039
  %v2074 = vadd.f32 %v717, %v2044
  %v2075 = vadd.f32 %v718, %v2049
  %v2076 = vadd.f32 %v719, %v2054
  %v2077 = vadd.f32 %v720, %v2059
  %v2078 = vsel %vm537, %v2062, 0.0
  %2079 = vadd.xlane.f32.xlu0 %v2078
  %v2080 = vpop.xlane.xlu0 %2079
  %v2081 = vsel %vm537, %v2063, 0.0
  %2082 = vadd.xlane.f32.xlu0 %v2081
  %v2083 = vpop.xlane.xlu0 %2082
  %v2084 = vsel %vm537, %v2064, 0.0
  %2085 = vadd.xlane.f32.xlu0 %v2084
  %v2086 = vpop.xlane.xlu0 %2085
  %v2087 = vsel %vm537, %v2065, 0.0
  %2088 = vadd.xlane.f32.xlu0 %v2087
  %v2089 = vpop.xlane.xlu0 %2088
  %v2090 = vsel %vm537, %v2066, 0.0
  %2091 = vadd.xlane.f32.xlu0 %v2090
  %v2092 = vpop.xlane.xlu0 %2091
  %v2093 = vsel %vm537, %v2067, 0.0
  %2094 = vadd.xlane.f32.xlu0 %v2093
  %v2095 = vpop.xlane.xlu0 %2094
  %v2096 = vsel %vm537, %v2068, 0.0
  %2097 = vadd.xlane.f32.xlu0 %v2096
  %v2098 = vpop.xlane.xlu0 %2097
  %v2099 = vsel %vm537, %v2069, 0.0
  %2100 = vadd.xlane.f32.xlu0 %v2099
  %v2101 = vpop.xlane.xlu0 %2100
  %v2102 = vsel %vm537, %v2070, 0.0
  %2103 = vadd.xlane.f32.xlu0 %v2102
  %v2104 = vpop.xlane.xlu0 %2103
  %v2105 = vsel %vm537, %v2071, 0.0
  %2106 = vadd.xlane.f32.xlu0 %v2105
  %v2107 = vpop.xlane.xlu0 %2106
  %v2108 = vsel %vm537, %v2072, 0.0
  %2109 = vadd.xlane.f32.xlu0 %v2108
  %v2110 = vpop.xlane.xlu0 %2109
  %v2111 = vsel %vm537, %v2073, 0.0
  %2112 = vadd.xlane.f32.xlu0 %v2111
  %v2113 = vpop.xlane.xlu0 %2112
  %v2114 = vsel %vm537, %v2074, 0.0
  %2115 = vadd.xlane.f32.xlu0 %v2114
  %v2116 = vpop.xlane.xlu0 %2115
  %v2117 = vsel %vm537, %v2075, 0.0
  %2118 = vadd.xlane.f32.xlu0 %v2117
  %v2119 = vpop.xlane.xlu0 %2118
  %v2120 = vsel %vm537, %v2076, 0.0
  %2121 = vadd.xlane.f32.xlu0 %v2120
  %v2122 = vpop.xlane.xlu0 %2121
  %v2123 = vsel %vm537, %v2077, 0.0
  %2124 = vadd.xlane.f32.xlu0 %v2123
  %v2125 = vpop.xlane.xlu0 %2124
  %v2126 = vrcp.pop 32.0
  %v2127 = vmul.f32 %v2080, %v2126
  %v2128 = vmul.f32 %v2083, %v2126
  %v2129 = vmul.f32 %v2086, %v2126
  %v2130 = vmul.f32 %v2089, %v2126
  %v2131 = vmul.f32 %v2092, %v2126
  %v2132 = vmul.f32 %v2095, %v2126
  %v2133 = vmul.f32 %v2098, %v2126
  %v2134 = vmul.f32 %v2101, %v2126
  %v2135 = vmul.f32 %v2104, %v2126
  %v2136 = vmul.f32 %v2107, %v2126
  %v2137 = vmul.f32 %v2110, %v2126
  %v2138 = vmul.f32 %v2113, %v2126
  %v2139 = vmul.f32 %v2116, %v2126
  %v2140 = vmul.f32 %v2119, %v2126
  %v2141 = vmul.f32 %v2122, %v2126
  %v2142 = vmul.f32 %v2125, %v2126
  %v2143 = vsub.f32 %v2062, %v2127
  %v2144 = vsub.f32 %v2063, %v2128
  %v2145 = vsub.f32 %v2064, %v2129
  %v2146 = vsub.f32 %v2065, %v2130
  %v2147 = vsub.f32 %v2066, %v2131
  %v2148 = vsub.f32 %v2067, %v2132
  %v2149 = vsub.f32 %v2068, %v2133
  %v2150 = vsub.f32 %v2069, %v2134
  %v2151 = vsub.f32 %v2070, %v2135
  %v2152 = vsub.f32 %v2071, %v2136
  %v2153 = vsub.f32 %v2072, %v2137
  %v2154 = vsub.f32 %v2073, %v2138
  %v2155 = vsub.f32 %v2074, %v2139
  %v2156 = vsub.f32 %v2075, %v2140
  %v2157 = vsub.f32 %v2076, %v2141
  %v2158 = vsub.f32 %v2077, %v2142
  %v2159 = vmul.f32 %v2143, %v2143
  %v2160 = vmul.f32 %v2144, %v2144
  %v2161 = vmul.f32 %v2145, %v2145
  %v2162 = vmul.f32 %v2146, %v2146
  %v2163 = vmul.f32 %v2147, %v2147
  %v2164 = vmul.f32 %v2148, %v2148
  %v2165 = vmul.f32 %v2149, %v2149
  %v2166 = vmul.f32 %v2150, %v2150
  %v2167 = vmul.f32 %v2151, %v2151
  %v2168 = vmul.f32 %v2152, %v2152
  %v2169 = vmul.f32 %v2153, %v2153
  %v2170 = vmul.f32 %v2154, %v2154
  %v2171 = vmul.f32 %v2155, %v2155
  %v2172 = vmul.f32 %v2156, %v2156
  %v2173 = vmul.f32 %v2157, %v2157
  %v2174 = vmul.f32 %v2158, %v2158
  %v2175 = vsel %vm537, %v2159, 0.0
  %2176 = vadd.xlane.f32.xlu0 %v2175
  %v2177 = vpop.xlane.xlu0 %2176
  %v2178 = vsel %vm537, %v2160, 0.0
  %2179 = vadd.xlane.f32.xlu0 %v2178
  %v2180 = vpop.xlane.xlu0 %2179
  %v2181 = vsel %vm537, %v2161, 0.0
  %2182 = vadd.xlane.f32.xlu0 %v2181
  %v2183 = vpop.xlane.xlu0 %2182
  %v2184 = vsel %vm537, %v2162, 0.0
  %2185 = vadd.xlane.f32.xlu0 %v2184
  %v2186 = vpop.xlane.xlu0 %2185
  %v2187 = vsel %vm537, %v2163, 0.0
  %2188 = vadd.xlane.f32.xlu0 %v2187
  %v2189 = vpop.xlane.xlu0 %2188
  %v2190 = vsel %vm537, %v2164, 0.0
  %2191 = vadd.xlane.f32.xlu0 %v2190
  %v2192 = vpop.xlane.xlu0 %2191
  %v2193 = vsel %vm537, %v2165, 0.0
  %2194 = vadd.xlane.f32.xlu0 %v2193
  %v2195 = vpop.xlane.xlu0 %2194
  %v2196 = vsel %vm537, %v2166, 0.0
  %2197 = vadd.xlane.f32.xlu0 %v2196
  %v2198 = vpop.xlane.xlu0 %2197
  %v2199 = vsel %vm537, %v2167, 0.0
  %2200 = vadd.xlane.f32.xlu0 %v2199
  %v2201 = vpop.xlane.xlu0 %2200
  %v2202 = vsel %vm537, %v2168, 0.0
  %2203 = vadd.xlane.f32.xlu0 %v2202
  %v2204 = vpop.xlane.xlu0 %2203
  %v2205 = vsel %vm537, %v2169, 0.0
  %2206 = vadd.xlane.f32.xlu0 %v2205
  %v2207 = vpop.xlane.xlu0 %2206
  %v2208 = vsel %vm537, %v2170, 0.0
  %2209 = vadd.xlane.f32.xlu0 %v2208
  %v2210 = vpop.xlane.xlu0 %2209
  %v2211 = vsel %vm537, %v2171, 0.0
  %2212 = vadd.xlane.f32.xlu0 %v2211
  %v2213 = vpop.xlane.xlu0 %2212
  %v2214 = vsel %vm537, %v2172, 0.0
  %2215 = vadd.xlane.f32.xlu0 %v2214
  %v2216 = vpop.xlane.xlu0 %2215
  %v2217 = vsel %vm537, %v2173, 0.0
  %2218 = vadd.xlane.f32.xlu0 %v2217
  %v2219 = vpop.xlane.xlu0 %2218
  %v2220 = vsel %vm537, %v2174, 0.0
  %2221 = vadd.xlane.f32.xlu0 %v2220
  %v2222 = vpop.xlane.xlu0 %2221
  %v2223 = vmul.f32 %v2177, %v2126
  %v2224 = vmul.f32 %v2180, %v2126
  %v2225 = vmul.f32 %v2183, %v2126
  %v2226 = vmul.f32 %v2186, %v2126
  %v2227 = vmul.f32 %v2189, %v2126
  %v2228 = vmul.f32 %v2192, %v2126
  %v2229 = vmul.f32 %v2195, %v2126
  %v2230 = vmul.f32 %v2198, %v2126
  %v2231 = vmul.f32 %v2201, %v2126
  %v2232 = vmul.f32 %v2204, %v2126
  %v2233 = vmul.f32 %v2207, %v2126
  %v2234 = vmul.f32 %v2210, %v2126
  %v2235 = vmul.f32 %v2213, %v2126
  %v2236 = vmul.f32 %v2216, %v2126
  %v2237 = vmul.f32 %v2219, %v2126
  %v2238 = vmul.f32 %v2222, %v2126
  %v2239 = vadd.f32 %v2223, 1e-05
  %v2240 = vadd.f32 %v2224, 1e-05
  %v2241 = vadd.f32 %v2225, 1e-05
  %v2242 = vadd.f32 %v2226, 1e-05
  %v2243 = vadd.f32 %v2227, 1e-05
  %v2244 = vadd.f32 %v2228, 1e-05
  %v2245 = vadd.f32 %v2229, 1e-05
  %v2246 = vadd.f32 %v2230, 1e-05
  %v2247 = vadd.f32 %v2231, 1e-05
  %v2248 = vadd.f32 %v2232, 1e-05
  %v2249 = vadd.f32 %v2233, 1e-05
  %v2250 = vadd.f32 %v2234, 1e-05
  %v2251 = vadd.f32 %v2235, 1e-05
  %v2252 = vadd.f32 %v2236, 1e-05
  %v2253 = vadd.f32 %v2237, 1e-05
  %v2254 = vadd.f32 %v2238, 1e-05
  %v2255 = vrsqrt.pop %v2239
  %v2256 = vrsqrt.pop %v2240
  %v2257 = vrsqrt.pop %v2241
  %v2258 = vrsqrt.pop %v2242
  %v2259 = vrsqrt.pop %v2243
  %v2260 = vrsqrt.pop %v2244
  %v2261 = vrsqrt.pop %v2245
  %v2262 = vrsqrt.pop %v2246
  %v2263 = vrsqrt.pop %v2247
  %v2264 = vrsqrt.pop %v2248
  %v2265 = vrsqrt.pop %v2249
  %v2266 = vrsqrt.pop %v2250
  %v2267 = vrsqrt.pop %v2251
  %v2268 = vrsqrt.pop %v2252
  %v2269 = vrsqrt.pop %v2253
  %v2270 = vrsqrt.pop %v2254
  %v2271 = vmul.f32 %v2143, %v2255
  %v2272 = vmul.f32 %v2144, %v2256
  %v2273 = vmul.f32 %v2145, %v2257
  %v2274 = vmul.f32 %v2146, %v2258
  %v2275 = vmul.f32 %v2147, %v2259
  %v2276 = vmul.f32 %v2148, %v2260
  %v2277 = vmul.f32 %v2149, %v2261
  %v2278 = vmul.f32 %v2150, %v2262
  %v2279 = vmul.f32 %v2151, %v2263
  %v2280 = vmul.f32 %v2152, %v2264
  %v2281 = vmul.f32 %v2153, %v2265
  %v2282 = vmul.f32 %v2154, %v2266
  %v2283 = vmul.f32 %v2155, %v2267
  %v2284 = vmul.f32 %v2156, %v2268
  %v2285 = vmul.f32 %v2157, %v2269
  %v2286 = vmul.f32 %v2158, %v2270
  %v2287 = vld [vmem:[%s13 + $0x7] sm:$0x1]
  %v2288 = vlaneseq
  %v2289 = vshrl.u32 %v2288, 7
  %v2290 = vsub.s32 0, %v2289
  %v2291 = vrot.slane %v2287, %v2290
  %v2292 = vmul.f32 %v2271, %v2291
  %v2293 = vmul.f32 %v2272, %v2291
  %v2294 = vmul.f32 %v2273, %v2291
  %v2295 = vmul.f32 %v2274, %v2291
  %v2296 = vmul.f32 %v2275, %v2291
  %v2297 = vmul.f32 %v2276, %v2291
  %v2298 = vmul.f32 %v2277, %v2291
  %v2299 = vmul.f32 %v2278, %v2291
  %v2300 = vmul.f32 %v2279, %v2291
  %v2301 = vmul.f32 %v2280, %v2291
  %v2302 = vmul.f32 %v2281, %v2291
  %v2303 = vmul.f32 %v2282, %v2291
  %v2304 = vmul.f32 %v2283, %v2291
  %v2305 = vmul.f32 %v2284, %v2291
  %v2306 = vmul.f32 %v2285, %v2291
  %v2307 = vmul.f32 %v2286, %v2291
  %v2308 = vld [vmem:[%s13 + $0x8] sm:$0x1]
  %v2309 = vlaneseq
  %v2310 = vshrl.u32 %v2309, 7
  %v2311 = vsub.s32 0, %v2310
  %v2312 = vrot.slane %v2308, %v2311
  %v2313 = vadd.f32 %v2292, %v2312
  %v2314 = vadd.f32 %v2293, %v2312
  %v2315 = vadd.f32 %v2294, %v2312
  %v2316 = vadd.f32 %v2295, %v2312
  %v2317 = vadd.f32 %v2296, %v2312
  %v2318 = vadd.f32 %v2297, %v2312
  %v2319 = vadd.f32 %v2298, %v2312
  %v2320 = vadd.f32 %v2299, %v2312
  %v2321 = vadd.f32 %v2300, %v2312
  %v2322 = vadd.f32 %v2301, %v2312
  %v2323 = vadd.f32 %v2302, %v2312
  %v2324 = vadd.f32 %v2303, %v2312
  %v2325 = vadd.f32 %v2304, %v2312
  %v2326 = vadd.f32 %v2305, %v2312
  %v2327 = vadd.f32 %v2306, %v2312
  %v2328 = vadd.f32 %v2307, %v2312
  %v2329 = vld [vmem:[%s10] sm:$0xff]
  %v2330 = vld [vmem:[%s10 + $0x8] sm:$0xff]
  %v2331 = vld [vmem:[%s10 + $0x10] sm:$0xff]
  %v2332 = vld [vmem:[%s10 + $0x18] sm:$0xff]
  %v2333 = vld [vmem:[%s14] sm:$0x1]
  %v2334 = vlaneseq
  %v2335 = vshrl.u32 %v2334, 7
  %v2336 = vsub.s32 0, %v2335
  %v2337 = vrot.slane %v2333, %v2336
  %v2339 = vsel %vm537, %v2313, 0
  %v2342 = vsel %vm537, %v2314, 0
  %v2345 = vsel %vm537, %v2315, 0
  %v2348 = vsel %vm537, %v2316, 0
  %v2351 = vsel %vm537, %v2317, 0
  %v2354 = vsel %vm537, %v2318, 0
  %v2357 = vsel %vm537, %v2319, 0
  %v2360 = vsel %vm537, %v2320, 0
  %v2363 = vsel %vm537, %v2321, 0
  %v2366 = vsel %vm537, %v2322, 0
  %v2369 = vsel %vm537, %v2323, 0
  %v2372 = vsel %vm537, %v2324, 0
  %v2375 = vsel %vm537, %v2325, 0
  %v2378 = vsel %vm537, %v2326, 0
  %v2381 = vsel %vm537, %v2327, 0
  %v2384 = vsel %vm537, %v2328, 0
  %2386 = vmatprep.subr.mxu0 0.0
  %2387 = vmatpush1.msra.mxu0 0.0
  %2388 = vmatprep.subr.mxu0 0.0
  %2389 = vmatpush1.msra.mxu0 0.0
  %2390 = vmatprep.subr.mxu0 0.0
  %2391 = vmatpush1.msra.mxu0 0.0
  %2392 = vmatprep.subr.mxu0 0.0
  %2393 = vmatpush1.msra.mxu0 0.0
  %2394 = vmatprep.subr.mxu0 0.0
  %2395 = vmatpush1.msra.mxu0 0.0
  %2396 = vmatprep.subr.mxu0 0.0
  %2397 = vmatpush1.msra.mxu0 0.0
  %2398 = vmatprep.subr.mxu0 0.0
  %2399 = vmatpush1.msra.mxu0 0.0
  %2400 = vmatprep.subr.mxu0 0.0
  %2401 = vmatpush1.msra.mxu0 0.0
  %2402 = vmatprep.subr.mxu0 0.0
  %2403 = vmatpush1.msra.mxu0 0.0
  %2404 = vmatprep.subr.mxu0 0.0
  %2405 = vmatpush1.msra.mxu0 0.0
  %2406 = vmatprep.subr.mxu0 0.0
  %2407 = vmatpush1.msra.mxu0 0.0
  %2408 = vmatprep.subr.mxu0 0.0
  %2409 = vmatpush1.msra.mxu0 0.0
  %2410 = vmatprep.subr.mxu0 0.0
  %2411 = vmatpush1.msra.mxu0 %v2332
  %2412 = vmatprep.subr.mxu0 0.0
  %2413 = vmatpush1.msra.mxu0 %v2331
  %2414 = vmatprep.subr.mxu0 0.0
  %2415 = vmatpush1.msra.mxu0 %v2330
  %2416 = vmatprep.subr.mxu0 0.0
  %2417 = vmatpush1.msra.mxu0 %v2329
  %2418 = vmatprep.subr.mxu0 0.0
  %2419 = vmatpush2.msra.mxu0 0.0
  %2420 = vmatprep.subr.mxu0 0.0
  %2421 = vmatpush2.msra.mxu0 0.0
  %2422 = vmatprep.subr.mxu0 0.0
  %2423 = vmatpush2.msra.mxu0 0.0
  %2424 = vmatprep.subr.mxu0 0.0
  %2425 = vmatpush2.msra.mxu0 0.0
  %2426 = vmatprep.subr.mxu0 0.0
  %2427 = vmatpush2.msra.mxu0 0.0
  %2428 = vmatprep.subr.mxu0 0.0
  %2429 = vmatpush2.msra.mxu0 0.0
  %2430 = vmatprep.subr.mxu0 0.0
  %2431 = vmatpush2.msra.mxu0 0.0
  %2432 = vmatprep.subr.mxu0 0.0
  %2433 = vmatpush2.msra.mxu0 0.0
  %2434 = vmatprep.subr.mxu0 0.0
  %2435 = vmatpush2.msra.mxu0 0.0
  %2436 = vmatprep.subr.mxu0 0.0
  %2437 = vmatpush2.msra.mxu0 0.0
  %2438 = vmatprep.subr.mxu0 0.0
  %2439 = vmatpush2.msra.mxu0 0.0
  %2440 = vmatprep.subr.mxu0 0.0
  %2441 = vmatpush2.msra.mxu0 0.0
  %2442 = vmatprep.subr.mxu0 0.0
  %2443 = vmatpush2.msra.mxu0 0.0
  %2444 = vmatprep.subr.mxu0 0.0
  %2445 = vmatpush2.msra.mxu0 0.0
  %2446 = vmatprep.subr.mxu0 0.0
  %2447 = vmatpush2.msra.mxu0 0.0
  %2448 = vmatprep.subr.mxu0 0.0
  %2449 = vmatpush2.msra.mxu0 0.0
  %2450 = vmatprep.mubr.f32.mxu0 0.0
  %2451 = vmatmul.mubr.f32.gmra.mxu0 %v2339
  %v2452 = vpop.f32.mrf.mxu0
  %v2453 = vadd.f32 %v2337, %v2452
  %v2454 = vpop.f32.mrf.mxu0
  %2455 = vmatprep.mubr.f32.mxu0 0.0
  %2456 = vmatmul.mubr.f32.gmra.mxu0 %v2342
  %v2457 = vpop.f32.mrf.mxu0
  %v2458 = vadd.f32 %v2337, %v2457
  %v2459 = vpop.f32.mrf.mxu0
  %2460 = vmatprep.mubr.f32.mxu0 0.0
  %2461 = vmatmul.mubr.f32.gmra.mxu0 %v2345
  %v2462 = vpop.f32.mrf.mxu0
  %v2463 = vadd.f32 %v2337, %v2462
  %v2464 = vpop.f32.mrf.mxu0
  %2465 = vmatprep.mubr.f32.mxu0 0.0
  %2466 = vmatmul.mubr.f32.gmra.mxu0 %v2348
  %v2467 = vpop.f32.mrf.mxu0
  %v2468 = vadd.f32 %v2337, %v2467
  %v2469 = vpop.f32.mrf.mxu0
  %2470 = vmatprep.mubr.f32.mxu0 0.0
  %2471 = vmatmul.mubr.f32.gmra.mxu0 %v2351
  %v2472 = vpop.f32.mrf.mxu0
  %v2473 = vadd.f32 %v2337, %v2472
  %v2474 = vpop.f32.mrf.mxu0
  %2475 = vmatprep.mubr.f32.mxu0 0.0
  %2476 = vmatmul.mubr.f32.gmra.mxu0 %v2354
  %v2477 = vpop.f32.mrf.mxu0
  %v2478 = vadd.f32 %v2337, %v2477
  %v2479 = vpop.f32.mrf.mxu0
  %2480 = vmatprep.mubr.f32.mxu0 0.0
  %2481 = vmatmul.mubr.f32.gmra.mxu0 %v2357
  %v2482 = vpop.f32.mrf.mxu0
  %v2483 = vadd.f32 %v2337, %v2482
  %v2484 = vpop.f32.mrf.mxu0
  %2485 = vmatprep.mubr.f32.mxu0 0.0
  %2486 = vmatmul.mubr.f32.gmra.mxu0 %v2360
  %v2487 = vpop.f32.mrf.mxu0
  %v2488 = vadd.f32 %v2337, %v2487
  %v2489 = vpop.f32.mrf.mxu0
  %2490 = vmatprep.mubr.f32.mxu0 0.0
  %2491 = vmatmul.mubr.f32.gmra.mxu0 %v2363
  %v2492 = vpop.f32.mrf.mxu0
  %v2493 = vadd.f32 %v2337, %v2492
  %v2494 = vpop.f32.mrf.mxu0
  %2495 = vmatprep.mubr.f32.mxu0 0.0
  %2496 = vmatmul.mubr.f32.gmra.mxu0 %v2366
  %v2497 = vpop.f32.mrf.mxu0
  %v2498 = vadd.f32 %v2337, %v2497
  %v2499 = vpop.f32.mrf.mxu0
  %2500 = vmatprep.mubr.f32.mxu0 0.0
  %2501 = vmatmul.mubr.f32.gmra.mxu0 %v2369
  %v2502 = vpop.f32.mrf.mxu0
  %v2503 = vadd.f32 %v2337, %v2502
  %v2504 = vpop.f32.mrf.mxu0
  %2505 = vmatprep.mubr.f32.mxu0 0.0
  %2506 = vmatmul.mubr.f32.gmra.mxu0 %v2372
  %v2507 = vpop.f32.mrf.mxu0
  %v2508 = vadd.f32 %v2337, %v2507
  %v2509 = vpop.f32.mrf.mxu0
  %2510 = vmatprep.mubr.f32.mxu0 0.0
  %2511 = vmatmul.mubr.f32.gmra.mxu0 %v2375
  %v2512 = vpop.f32.mrf.mxu0
  %v2513 = vadd.f32 %v2337, %v2512
  %v2514 = vpop.f32.mrf.mxu0
  %2515 = vmatprep.mubr.f32.mxu0 0.0
  %2516 = vmatmul.mubr.f32.gmra.mxu0 %v2378
  %v2517 = vpop.f32.mrf.mxu0
  %v2518 = vadd.f32 %v2337, %v2517
  %v2519 = vpop.f32.mrf.mxu0
  %2520 = vmatprep.mubr.f32.mxu0 0.0
  %2521 = vmatmul.mubr.f32.gmra.mxu0 %v2381
  %v2522 = vpop.f32.mrf.mxu0
  %v2523 = vadd.f32 %v2337, %v2522
  %v2524 = vpop.f32.mrf.mxu0
  %2525 = vmatprep.mubr.f32.mxu0 0.0
  %2526 = vmatmul.mubr.f32.gmra.mxu0 %v2384
  %v2527 = vpop.f32.mrf.mxu0
  %v2528 = vadd.f32 %v2337, %v2527
  %v2529 = vpop.f32.mrf.mxu0
  %2530 = vdwg.mxu0
  %v2531 = vmax.f32 %v2453, 0.0
  %v2532 = vmax.f32 %v2458, 0.0
  %v2533 = vmax.f32 %v2463, 0.0
  %v2534 = vmax.f32 %v2468, 0.0
  %v2535 = vmax.f32 %v2473, 0.0
  %v2536 = vmax.f32 %v2478, 0.0
  %v2537 = vmax.f32 %v2483, 0.0
  %v2538 = vmax.f32 %v2488, 0.0
  %v2539 = vmax.f32 %v2493, 0.0
  %v2540 = vmax.f32 %v2498, 0.0
  %v2541 = vmax.f32 %v2503, 0.0
  %v2542 = vmax.f32 %v2508, 0.0
  %v2543 = vmax.f32 %v2513, 0.0
  %v2544 = vmax.f32 %v2518, 0.0
  %v2545 = vmax.f32 %v2523, 0.0
  %v2546 = vmax.f32 %v2528, 0.0
  %v2547 = vld [vmem:[%s11] sm:$0xff]
  %v2548 = vld [vmem:[%s11 + $0x8] sm:$0xff]
  %v2549 = vld [vmem:[%s11 + $0x10] sm:$0xff]
  %v2550 = vld [vmem:[%s11 + $0x18] sm:$0xff]
  %v2551 = vld [vmem:[%s11 + $0x20] sm:$0xff]
  %v2552 = vld [vmem:[%s11 + $0x28] sm:$0xff]
  %v2553 = vld [vmem:[%s11 + $0x30] sm:$0xff]
  %v2554 = vld [vmem:[%s11 + $0x38] sm:$0xff]
  %v2555 = vld [vmem:[%s13 + $0x9] sm:$0x1]
  %v2556 = vlaneseq
  %v2557 = vshrl.u32 %v2556, 7
  %v2558 = vsub.s32 0, %v2557
  %v2559 = vrot.slane %v2555, %v2558
  %vm2560 = vcmask 523264
  %v2562 = vsel %vm2560, %v2531, 0
  %v2565 = vsel %vm2560, %v2532, 0
  %v2568 = vsel %vm2560, %v2533, 0
  %v2571 = vsel %vm2560, %v2534, 0
  %v2574 = vsel %vm2560, %v2535, 0
  %v2577 = vsel %vm2560, %v2536, 0
  %v2580 = vsel %vm2560, %v2537, 0
  %v2583 = vsel %vm2560, %v2538, 0
  %v2586 = vsel %vm2560, %v2539, 0
  %v2589 = vsel %vm2560, %v2540, 0
  %v2592 = vsel %vm2560, %v2541, 0
  %v2595 = vsel %vm2560, %v2542, 0
  %v2598 = vsel %vm2560, %v2543, 0
  %v2601 = vsel %vm2560, %v2544, 0
  %v2604 = vsel %vm2560, %v2545, 0
  %v2607 = vsel %vm2560, %v2546, 0
  %2609 = vmatprep.subr.mxu0 0.0
  %2610 = vmatpush1.msra.mxu0 0.0
  %2611 = vmatprep.subr.mxu0 0.0
  %2612 = vmatpush1.msra.mxu0 0.0
  %2613 = vmatprep.subr.mxu0 0.0
  %2614 = vmatpush1.msra.mxu0 0.0
  %2615 = vmatprep.subr.mxu0 0.0
  %2616 = vmatpush1.msra.mxu0 0.0
  %2617 = vmatprep.subr.mxu0 0.0
  %2618 = vmatpush1.msra.mxu0 0.0
  %2619 = vmatprep.subr.mxu0 0.0
  %2620 = vmatpush1.msra.mxu0 0.0
  %2621 = vmatprep.subr.mxu0 0.0
  %2622 = vmatpush1.msra.mxu0 0.0
  %2623 = vmatprep.subr.mxu0 0.0
  %2624 = vmatpush1.msra.mxu0 0.0
  %2625 = vmatprep.subr.mxu0 0.0
  %2626 = vmatpush1.msra.mxu0 %v2554
  %2627 = vmatprep.subr.mxu0 0.0
  %2628 = vmatpush1.msra.mxu0 %v2553
  %2629 = vmatprep.subr.mxu0 0.0
  %2630 = vmatpush1.msra.mxu0 %v2552
  %2631 = vmatprep.subr.mxu0 0.0
  %2632 = vmatpush1.msra.mxu0 %v2551
  %2633 = vmatprep.subr.mxu0 0.0
  %2634 = vmatpush1.msra.mxu0 %v2550
  %2635 = vmatprep.subr.mxu0 0.0
  %2636 = vmatpush1.msra.mxu0 %v2549
  %2637 = vmatprep.subr.mxu0 0.0
  %2638 = vmatpush1.msra.mxu0 %v2548
  %2639 = vmatprep.subr.mxu0 0.0
  %2640 = vmatpush1.msra.mxu0 %v2547
  %2641 = vmatprep.subr.mxu0 0.0
  %2642 = vmatpush2.msra.mxu0 0.0
  %2643 = vmatprep.subr.mxu0 0.0
  %2644 = vmatpush2.msra.mxu0 0.0
  %2645 = vmatprep.subr.mxu0 0.0
  %2646 = vmatpush2.msra.mxu0 0.0
  %2647 = vmatprep.subr.mxu0 0.0
  %2648 = vmatpush2.msra.mxu0 0.0
  %2649 = vmatprep.subr.mxu0 0.0
  %2650 = vmatpush2.msra.mxu0 0.0
  %2651 = vmatprep.subr.mxu0 0.0
  %2652 = vmatpush2.msra.mxu0 0.0
  %2653 = vmatprep.subr.mxu0 0.0
  %2654 = vmatpush2.msra.mxu0 0.0
  %2655 = vmatprep.subr.mxu0 0.0
  %2656 = vmatpush2.msra.mxu0 0.0
  %2657 = vmatprep.subr.mxu0 0.0
  %2658 = vmatpush2.msra.mxu0 0.0
  %2659 = vmatprep.subr.mxu0 0.0
  %2660 = vmatpush2.msra.mxu0 0.0
  %2661 = vmatprep.subr.mxu0 0.0
  %2662 = vmatpush2.msra.mxu0 0.0
  %2663 = vmatprep.subr.mxu0 0.0
  %2664 = vmatpush2.msra.mxu0 0.0
  %2665 = vmatprep.subr.mxu0 0.0
  %2666 = vmatpush2.msra.mxu0 0.0
  %2667 = vmatprep.subr.mxu0 0.0
  %2668 = vmatpush2.msra.mxu0 0.0
  %2669 = vmatprep.subr.mxu0 0.0
  %2670 = vmatpush2.msra.mxu0 0.0
  %2671 = vmatprep.subr.mxu0 0.0
  %2672 = vmatpush2.msra.mxu0 0.0
  %2673 = vmatprep.mubr.f32.mxu0 0.0
  %2674 = vmatmul.mubr.f32.gmra.mxu0 %v2562
  %v2675 = vpop.f32.mrf.mxu0
  %v2676 = vadd.f32 %v2559, %v2675
  %v2677 = vpop.f32.mrf.mxu0
  %2678 = vmatprep.mubr.f32.mxu0 0.0
  %2679 = vmatmul.mubr.f32.gmra.mxu0 %v2565
  %v2680 = vpop.f32.mrf.mxu0
  %v2681 = vadd.f32 %v2559, %v2680
  %v2682 = vpop.f32.mrf.mxu0
  %2683 = vmatprep.mubr.f32.mxu0 0.0
  %2684 = vmatmul.mubr.f32.gmra.mxu0 %v2568
  %v2685 = vpop.f32.mrf.mxu0
  %v2686 = vadd.f32 %v2559, %v2685
  %v2687 = vpop.f32.mrf.mxu0
  %2688 = vmatprep.mubr.f32.mxu0 0.0
  %2689 = vmatmul.mubr.f32.gmra.mxu0 %v2571
  %v2690 = vpop.f32.mrf.mxu0
  %v2691 = vadd.f32 %v2559, %v2690
  %v2692 = vpop.f32.mrf.mxu0
  %2693 = vmatprep.mubr.f32.mxu0 0.0
  %2694 = vmatmul.mubr.f32.gmra.mxu0 %v2574
  %v2695 = vpop.f32.mrf.mxu0
  %v2696 = vadd.f32 %v2559, %v2695
  %v2697 = vpop.f32.mrf.mxu0
  %2698 = vmatprep.mubr.f32.mxu0 0.0
  %2699 = vmatmul.mubr.f32.gmra.mxu0 %v2577
  %v2700 = vpop.f32.mrf.mxu0
  %v2701 = vadd.f32 %v2559, %v2700
  %v2702 = vpop.f32.mrf.mxu0
  %2703 = vmatprep.mubr.f32.mxu0 0.0
  %2704 = vmatmul.mubr.f32.gmra.mxu0 %v2580
  %v2705 = vpop.f32.mrf.mxu0
  %v2706 = vadd.f32 %v2559, %v2705
  %v2707 = vpop.f32.mrf.mxu0
  %2708 = vmatprep.mubr.f32.mxu0 0.0
  %2709 = vmatmul.mubr.f32.gmra.mxu0 %v2583
  %v2710 = vpop.f32.mrf.mxu0
  %v2711 = vadd.f32 %v2559, %v2710
  %v2712 = vpop.f32.mrf.mxu0
  %2713 = vmatprep.mubr.f32.mxu0 0.0
  %2714 = vmatmul.mubr.f32.gmra.mxu0 %v2586
  %v2715 = vpop.f32.mrf.mxu0
  %v2716 = vadd.f32 %v2559, %v2715
  %v2717 = vpop.f32.mrf.mxu0
  %2718 = vmatprep.mubr.f32.mxu0 0.0
  %2719 = vmatmul.mubr.f32.gmra.mxu0 %v2589
  %v2720 = vpop.f32.mrf.mxu0
  %v2721 = vadd.f32 %v2559, %v2720
  %v2722 = vpop.f32.mrf.mxu0
  %2723 = vmatprep.mubr.f32.mxu0 0.0
  %2724 = vmatmul.mubr.f32.gmra.mxu0 %v2592
  %v2725 = vpop.f32.mrf.mxu0
  %v2726 = vadd.f32 %v2559, %v2725
  %v2727 = vpop.f32.mrf.mxu0
  %2728 = vmatprep.mubr.f32.mxu0 0.0
  %2729 = vmatmul.mubr.f32.gmra.mxu0 %v2595
  %v2730 = vpop.f32.mrf.mxu0
  %v2731 = vadd.f32 %v2559, %v2730
  %v2732 = vpop.f32.mrf.mxu0
  %2733 = vmatprep.mubr.f32.mxu0 0.0
  %2734 = vmatmul.mubr.f32.gmra.mxu0 %v2598
  %v2735 = vpop.f32.mrf.mxu0
  %v2736 = vadd.f32 %v2559, %v2735
  %v2737 = vpop.f32.mrf.mxu0
  %2738 = vmatprep.mubr.f32.mxu0 0.0
  %2739 = vmatmul.mubr.f32.gmra.mxu0 %v2601
  %v2740 = vpop.f32.mrf.mxu0
  %v2741 = vadd.f32 %v2559, %v2740
  %v2742 = vpop.f32.mrf.mxu0
  %2743 = vmatprep.mubr.f32.mxu0 0.0
  %2744 = vmatmul.mubr.f32.gmra.mxu0 %v2604
  %v2745 = vpop.f32.mrf.mxu0
  %v2746 = vadd.f32 %v2559, %v2745
  %v2747 = vpop.f32.mrf.mxu0
  %2748 = vmatprep.mubr.f32.mxu0 0.0
  %2749 = vmatmul.mubr.f32.gmra.mxu0 %v2607
  %v2750 = vpop.f32.mrf.mxu0
  %v2751 = vadd.f32 %v2559, %v2750
  %v2752 = vpop.f32.mrf.mxu0
  %2753 = vdwg.mxu0
  %v2754 = vadd.f32 %v2313, %v2676
  %v2755 = vadd.f32 %v2314, %v2681
  %v2756 = vadd.f32 %v2315, %v2686
  %v2757 = vadd.f32 %v2316, %v2691
  %v2758 = vadd.f32 %v2317, %v2696
  %v2759 = vadd.f32 %v2318, %v2701
  %v2760 = vadd.f32 %v2319, %v2706
  %v2761 = vadd.f32 %v2320, %v2711
  %v2762 = vadd.f32 %v2321, %v2716
  %v2763 = vadd.f32 %v2322, %v2721
  %v2764 = vadd.f32 %v2323, %v2726
  %v2765 = vadd.f32 %v2324, %v2731
  %v2766 = vadd.f32 %v2325, %v2736
  %v2767 = vadd.f32 %v2326, %v2741
  %v2768 = vadd.f32 %v2327, %v2746
  %v2769 = vadd.f32 %v2328, %v2751
  %v2770 = vsel %vm537, %v2754, 0.0
  %2771 = vadd.xlane.f32.xlu0 %v2770
  %v2772 = vpop.xlane.xlu0 %2771
  %v2773 = vsel %vm537, %v2755, 0.0
  %2774 = vadd.xlane.f32.xlu0 %v2773
  %v2775 = vpop.xlane.xlu0 %2774
  %v2776 = vsel %vm537, %v2756, 0.0
  %2777 = vadd.xlane.f32.xlu0 %v2776
  %v2778 = vpop.xlane.xlu0 %2777
  %v2779 = vsel %vm537, %v2757, 0.0
  %2780 = vadd.xlane.f32.xlu0 %v2779
  %v2781 = vpop.xlane.xlu0 %2780
  %v2782 = vsel %vm537, %v2758, 0.0
  %2783 = vadd.xlane.f32.xlu0 %v2782
  %v2784 = vpop.xlane.xlu0 %2783
  %v2785 = vsel %vm537, %v2759, 0.0
  %2786 = vadd.xlane.f32.xlu0 %v2785
  %v2787 = vpop.xlane.xlu0 %2786
  %v2788 = vsel %vm537, %v2760, 0.0
  %2789 = vadd.xlane.f32.xlu0 %v2788
  %v2790 = vpop.xlane.xlu0 %2789
  %v2791 = vsel %vm537, %v2761, 0.0
  %2792 = vadd.xlane.f32.xlu0 %v2791
  %v2793 = vpop.xlane.xlu0 %2792
  %v2794 = vsel %vm537, %v2762, 0.0
  %2795 = vadd.xlane.f32.xlu0 %v2794
  %v2796 = vpop.xlane.xlu0 %2795
  %v2797 = vsel %vm537, %v2763, 0.0
  %2798 = vadd.xlane.f32.xlu0 %v2797
  %v2799 = vpop.xlane.xlu0 %2798
  %v2800 = vsel %vm537, %v2764, 0.0
  %2801 = vadd.xlane.f32.xlu0 %v2800
  %v2802 = vpop.xlane.xlu0 %2801
  %v2803 = vsel %vm537, %v2765, 0.0
  %2804 = vadd.xlane.f32.xlu0 %v2803
  %v2805 = vpop.xlane.xlu0 %2804
  %v2806 = vsel %vm537, %v2766, 0.0
  %2807 = vadd.xlane.f32.xlu0 %v2806
  %v2808 = vpop.xlane.xlu0 %2807
  %v2809 = vsel %vm537, %v2767, 0.0
  %2810 = vadd.xlane.f32.xlu0 %v2809
  %v2811 = vpop.xlane.xlu0 %2810
  %v2812 = vsel %vm537, %v2768, 0.0
  %2813 = vadd.xlane.f32.xlu0 %v2812
  %v2814 = vpop.xlane.xlu0 %2813
  %v2815 = vsel %vm537, %v2769, 0.0
  %2816 = vadd.xlane.f32.xlu0 %v2815
  %v2817 = vpop.xlane.xlu0 %2816
  %v2818 = vmul.f32 %v2772, %v2126
  %v2819 = vmul.f32 %v2775, %v2126
  %v2820 = vmul.f32 %v2778, %v2126
  %v2821 = vmul.f32 %v2781, %v2126
  %v2822 = vmul.f32 %v2784, %v2126
  %v2823 = vmul.f32 %v2787, %v2126
  %v2824 = vmul.f32 %v2790, %v2126
  %v2825 = vmul.f32 %v2793, %v2126
  %v2826 = vmul.f32 %v2796, %v2126
  %v2827 = vmul.f32 %v2799, %v2126
  %v2828 = vmul.f32 %v2802, %v2126
  %v2829 = vmul.f32 %v2805, %v2126
  %v2830 = vmul.f32 %v2808, %v2126
  %v2831 = vmul.f32 %v2811, %v2126
  %v2832 = vmul.f32 %v2814, %v2126
  %v2833 = vmul.f32 %v2817, %v2126
  %v2834 = vsub.f32 %v2754, %v2818
  %v2835 = vsub.f32 %v2755, %v2819
  %v2836 = vsub.f32 %v2756, %v2820
  %v2837 = vsub.f32 %v2757, %v2821
  %v2838 = vsub.f32 %v2758, %v2822
  %v2839 = vsub.f32 %v2759, %v2823
  %v2840 = vsub.f32 %v2760, %v2824
  %v2841 = vsub.f32 %v2761, %v2825
  %v2842 = vsub.f32 %v2762, %v2826
  %v2843 = vsub.f32 %v2763, %v2827
  %v2844 = vsub.f32 %v2764, %v2828
  %v2845 = vsub.f32 %v2765, %v2829
  %v2846 = vsub.f32 %v2766, %v2830
  %v2847 = vsub.f32 %v2767, %v2831
  %v2848 = vsub.f32 %v2768, %v2832
  %v2849 = vsub.f32 %v2769, %v2833
  %v2850 = vmul.f32 %v2834, %v2834
  %v2851 = vmul.f32 %v2835, %v2835
  %v2852 = vmul.f32 %v2836, %v2836
  %v2853 = vmul.f32 %v2837, %v2837
  %v2854 = vmul.f32 %v2838, %v2838
  %v2855 = vmul.f32 %v2839, %v2839
  %v2856 = vmul.f32 %v2840, %v2840
  %v2857 = vmul.f32 %v2841, %v2841
  %v2858 = vmul.f32 %v2842, %v2842
  %v2859 = vmul.f32 %v2843, %v2843
  %v2860 = vmul.f32 %v2844, %v2844
  %v2861 = vmul.f32 %v2845, %v2845
  %v2862 = vmul.f32 %v2846, %v2846
  %v2863 = vmul.f32 %v2847, %v2847
  %v2864 = vmul.f32 %v2848, %v2848
  %v2865 = vmul.f32 %v2849, %v2849
  %v2866 = vsel %vm537, %v2850, 0.0
  %2867 = vadd.xlane.f32.xlu0 %v2866
  %v2868 = vpop.xlane.xlu0 %2867
  %v2869 = vsel %vm537, %v2851, 0.0
  %2870 = vadd.xlane.f32.xlu0 %v2869
  %v2871 = vpop.xlane.xlu0 %2870
  %v2872 = vsel %vm537, %v2852, 0.0
  %2873 = vadd.xlane.f32.xlu0 %v2872
  %v2874 = vpop.xlane.xlu0 %2873
  %v2875 = vsel %vm537, %v2853, 0.0
  %2876 = vadd.xlane.f32.xlu0 %v2875
  %v2877 = vpop.xlane.xlu0 %2876
  %v2878 = vsel %vm537, %v2854, 0.0
  %2879 = vadd.xlane.f32.xlu0 %v2878
  %v2880 = vpop.xlane.xlu0 %2879
  %v2881 = vsel %vm537, %v2855, 0.0
  %2882 = vadd.xlane.f32.xlu0 %v2881
  %v2883 = vpop.xlane.xlu0 %2882
  %v2884 = vsel %vm537, %v2856, 0.0
  %2885 = vadd.xlane.f32.xlu0 %v2884
  %v2886 = vpop.xlane.xlu0 %2885
  %v2887 = vsel %vm537, %v2857, 0.0
  %2888 = vadd.xlane.f32.xlu0 %v2887
  %v2889 = vpop.xlane.xlu0 %2888
  %v2890 = vsel %vm537, %v2858, 0.0
  %2891 = vadd.xlane.f32.xlu0 %v2890
  %v2892 = vpop.xlane.xlu0 %2891
  %v2893 = vsel %vm537, %v2859, 0.0
  %2894 = vadd.xlane.f32.xlu0 %v2893
  %v2895 = vpop.xlane.xlu0 %2894
  %v2896 = vsel %vm537, %v2860, 0.0
  %2897 = vadd.xlane.f32.xlu0 %v2896
  %v2898 = vpop.xlane.xlu0 %2897
  %v2899 = vsel %vm537, %v2861, 0.0
  %2900 = vadd.xlane.f32.xlu0 %v2899
  %v2901 = vpop.xlane.xlu0 %2900
  %v2902 = vsel %vm537, %v2862, 0.0
  %2903 = vadd.xlane.f32.xlu0 %v2902
  %v2904 = vpop.xlane.xlu0 %2903
  %v2905 = vsel %vm537, %v2863, 0.0
  %2906 = vadd.xlane.f32.xlu0 %v2905
  %v2907 = vpop.xlane.xlu0 %2906
  %v2908 = vsel %vm537, %v2864, 0.0
  %2909 = vadd.xlane.f32.xlu0 %v2908
  %v2910 = vpop.xlane.xlu0 %2909
  %v2911 = vsel %vm537, %v2865, 0.0
  %2912 = vadd.xlane.f32.xlu0 %v2911
  %v2913 = vpop.xlane.xlu0 %2912
  %v2914 = vmul.f32 %v2868, %v2126
  %v2915 = vmul.f32 %v2871, %v2126
  %v2916 = vmul.f32 %v2874, %v2126
  %v2917 = vmul.f32 %v2877, %v2126
  %v2918 = vmul.f32 %v2880, %v2126
  %v2919 = vmul.f32 %v2883, %v2126
  %v2920 = vmul.f32 %v2886, %v2126
  %v2921 = vmul.f32 %v2889, %v2126
  %v2922 = vmul.f32 %v2892, %v2126
  %v2923 = vmul.f32 %v2895, %v2126
  %v2924 = vmul.f32 %v2898, %v2126
  %v2925 = vmul.f32 %v2901, %v2126
  %v2926 = vmul.f32 %v2904, %v2126
  %v2927 = vmul.f32 %v2907, %v2126
  %v2928 = vmul.f32 %v2910, %v2126
  %v2929 = vmul.f32 %v2913, %v2126
  %v2930 = vadd.f32 %v2914, 1e-05
  %v2931 = vadd.f32 %v2915, 1e-05
  %v2932 = vadd.f32 %v2916, 1e-05
  %v2933 = vadd.f32 %v2917, 1e-05
  %v2934 = vadd.f32 %v2918, 1e-05
  %v2935 = vadd.f32 %v2919, 1e-05
  %v2936 = vadd.f32 %v2920, 1e-05
  %v2937 = vadd.f32 %v2921, 1e-05
  %v2938 = vadd.f32 %v2922, 1e-05
  %v2939 = vadd.f32 %v2923, 1e-05
  %v2940 = vadd.f32 %v2924, 1e-05
  %v2941 = vadd.f32 %v2925, 1e-05
  %v2942 = vadd.f32 %v2926, 1e-05
  %v2943 = vadd.f32 %v2927, 1e-05
  %v2944 = vadd.f32 %v2928, 1e-05
  %v2945 = vadd.f32 %v2929, 1e-05
  %v2946 = vrsqrt.pop %v2930
  %v2947 = vrsqrt.pop %v2931
  %v2948 = vrsqrt.pop %v2932
  %v2949 = vrsqrt.pop %v2933
  %v2950 = vrsqrt.pop %v2934
  %v2951 = vrsqrt.pop %v2935
  %v2952 = vrsqrt.pop %v2936
  %v2953 = vrsqrt.pop %v2937
  %v2954 = vrsqrt.pop %v2938
  %v2955 = vrsqrt.pop %v2939
  %v2956 = vrsqrt.pop %v2940
  %v2957 = vrsqrt.pop %v2941
  %v2958 = vrsqrt.pop %v2942
  %v2959 = vrsqrt.pop %v2943
  %v2960 = vrsqrt.pop %v2944
  %v2961 = vrsqrt.pop %v2945
  %v2962 = vmul.f32 %v2834, %v2946
  %v2963 = vmul.f32 %v2835, %v2947
  %v2964 = vmul.f32 %v2836, %v2948
  %v2965 = vmul.f32 %v2837, %v2949
  %v2966 = vmul.f32 %v2838, %v2950
  %v2967 = vmul.f32 %v2839, %v2951
  %v2968 = vmul.f32 %v2840, %v2952
  %v2969 = vmul.f32 %v2841, %v2953
  %v2970 = vmul.f32 %v2842, %v2954
  %v2971 = vmul.f32 %v2843, %v2955
  %v2972 = vmul.f32 %v2844, %v2956
  %v2973 = vmul.f32 %v2845, %v2957
  %v2974 = vmul.f32 %v2846, %v2958
  %v2975 = vmul.f32 %v2847, %v2959
  %v2976 = vmul.f32 %v2848, %v2960
  %v2977 = vmul.f32 %v2849, %v2961
  %v2978 = vld [vmem:[%s13 + $0xa] sm:$0x1]
  %v2979 = vlaneseq
  %v2980 = vshrl.u32 %v2979, 7
  %v2981 = vsub.s32 0, %v2980
  %v2982 = vrot.slane %v2978, %v2981
  %v2983 = vmul.f32 %v2962, %v2982
  %v2984 = vmul.f32 %v2963, %v2982
  %v2985 = vmul.f32 %v2964, %v2982
  %v2986 = vmul.f32 %v2965, %v2982
  %v2987 = vmul.f32 %v2966, %v2982
  %v2988 = vmul.f32 %v2967, %v2982
  %v2989 = vmul.f32 %v2968, %v2982
  %v2990 = vmul.f32 %v2969, %v2982
  %v2991 = vmul.f32 %v2970, %v2982
  %v2992 = vmul.f32 %v2971, %v2982
  %v2993 = vmul.f32 %v2972, %v2982
  %v2994 = vmul.f32 %v2973, %v2982
  %v2995 = vmul.f32 %v2974, %v2982
  %v2996 = vmul.f32 %v2975, %v2982
  %v2997 = vmul.f32 %v2976, %v2982
  %v2998 = vmul.f32 %v2977, %v2982
  %v2999 = vld [vmem:[%s13 + $0xb] sm:$0x1]
  %v3000 = vlaneseq
  %v3001 = vshrl.u32 %v3000, 7
  %v3002 = vsub.s32 0, %v3001
  %v3003 = vrot.slane %v2999, %v3002
  %v3004 = vadd.f32 %v2983, %v3003
  %v3005 = vadd.f32 %v2984, %v3003
  %v3006 = vadd.f32 %v2985, %v3003
  %v3007 = vadd.f32 %v2986, %v3003
  %v3008 = vadd.f32 %v2987, %v3003
  %v3009 = vadd.f32 %v2988, %v3003
  %v3010 = vadd.f32 %v2989, %v3003
  %v3011 = vadd.f32 %v2990, %v3003
  %v3012 = vadd.f32 %v2991, %v3003
  %v3013 = vadd.f32 %v2992, %v3003
  %v3014 = vadd.f32 %v2993, %v3003
  %v3015 = vadd.f32 %v2994, %v3003
  %v3016 = vadd.f32 %v2995, %v3003
  %v3017 = vadd.f32 %v2996, %v3003
  %v3018 = vadd.f32 %v2997, %v3003
  %v3019 = vadd.f32 %v2998, %v3003
  %v3020 = vadd.f32 %v3004, %v78
  %v3021 = vadd.f32 %v3005, %v79
  %v3022 = vadd.f32 %v3006, %v80
  %v3023 = vadd.f32 %v3007, %v81
  %v3024 = vadd.f32 %v3008, %v82
  %v3025 = vadd.f32 %v3009, %v83
  %v3026 = vadd.f32 %v3010, %v84
  %v3027 = vadd.f32 %v3011, %v85
  %v3028 = vadd.f32 %v3012, %v86
  %v3029 = vadd.f32 %v3013, %v87
  %v3030 = vadd.f32 %v3014, %v88
  %v3031 = vadd.f32 %v3015, %v89
  %v3032 = vadd.f32 %v3016, %v90
  %v3033 = vadd.f32 %v3017, %v91
  %v3034 = vadd.f32 %v3018, %v92
  %v3035 = vadd.f32 %v3019, %v93
  %s3036 = scalar_lea.vmem %s9, 288
  %v3037 = vld [vmem:[%s3036] sm:$0xff]
  %v3038 = vld [vmem:[%s3036 + $0x8] sm:$0xff]
  %v3039 = vld [vmem:[%s3036 + $0x10] sm:$0xff]
  %v3040 = vld [vmem:[%s3036 + $0x18] sm:$0xff]
  %v3041 = vld [vmem:[%s13 + $0x14] sm:$0x1]
  %v3042 = vlaneseq
  %v3043 = vshrl.u32 %v3042, 7
  %v3044 = vsub.s32 0, %v3043
  %v3045 = vrot.slane %v3041, %v3044
  %v3047 = vsel %vm537, %v3020, 0
  %v3050 = vsel %vm537, %v3021, 0
  %v3053 = vsel %vm537, %v3022, 0
  %v3056 = vsel %vm537, %v3023, 0
  %v3059 = vsel %vm537, %v3024, 0
  %v3062 = vsel %vm537, %v3025, 0
  %v3065 = vsel %vm537, %v3026, 0
  %v3068 = vsel %vm537, %v3027, 0
  %v3071 = vsel %vm537, %v3028, 0
  %v3074 = vsel %vm537, %v3029, 0
  %v3077 = vsel %vm537, %v3030, 0
  %v3080 = vsel %vm537, %v3031, 0
  %v3083 = vsel %vm537, %v3032, 0
  %v3086 = vsel %vm537, %v3033, 0
  %v3089 = vsel %vm537, %v3034, 0
  %v3092 = vsel %vm537, %v3035, 0
  %3094 = vmatprep.subr.mxu0 0.0
  %3095 = vmatpush1.msra.mxu0 0.0
  %3096 = vmatprep.subr.mxu0 0.0
  %3097 = vmatpush1.msra.mxu0 0.0
  %3098 = vmatprep.subr.mxu0 0.0
  %3099 = vmatpush1.msra.mxu0 0.0
  %3100 = vmatprep.subr.mxu0 0.0
  %3101 = vmatpush1.msra.mxu0 0.0
  %3102 = vmatprep.subr.mxu0 0.0
  %3103 = vmatpush1.msra.mxu0 0.0
  %3104 = vmatprep.subr.mxu0 0.0
  %3105 = vmatpush1.msra.mxu0 0.0
  %3106 = vmatprep.subr.mxu0 0.0
  %3107 = vmatpush1.msra.mxu0 0.0
  %3108 = vmatprep.subr.mxu0 0.0
  %3109 = vmatpush1.msra.mxu0 0.0
  %3110 = vmatprep.subr.mxu0 0.0
  %3111 = vmatpush1.msra.mxu0 0.0
  %3112 = vmatprep.subr.mxu0 0.0
  %3113 = vmatpush1.msra.mxu0 0.0
  %3114 = vmatprep.subr.mxu0 0.0
  %3115 = vmatpush1.msra.mxu0 0.0
  %3116 = vmatprep.subr.mxu0 0.0
  %3117 = vmatpush1.msra.mxu0 0.0
  %3118 = vmatprep.subr.mxu0 0.0
  %3119 = vmatpush1.msra.mxu0 %v3040
  %3120 = vmatprep.subr.mxu0 0.0
  %3121 = vmatpush1.msra.mxu0 %v3039
  %3122 = vmatprep.subr.mxu0 0.0
  %3123 = vmatpush1.msra.mxu0 %v3038
  %3124 = vmatprep.subr.mxu0 0.0
  %3125 = vmatpush1.msra.mxu0 %v3037
  %3126 = vmatprep.subr.mxu0 0.0
  %3127 = vmatpush2.msra.mxu0 0.0
  %3128 = vmatprep.subr.mxu0 0.0
  %3129 = vmatpush2.msra.mxu0 0.0
  %3130 = vmatprep.subr.mxu0 0.0
  %3131 = vmatpush2.msra.mxu0 0.0
  %3132 = vmatprep.subr.mxu0 0.0
  %3133 = vmatpush2.msra.mxu0 0.0
  %3134 = vmatprep.subr.mxu0 0.0
  %3135 = vmatpush2.msra.mxu0 0.0
  %3136 = vmatprep.subr.mxu0 0.0
  %3137 = vmatpush2.msra.mxu0 0.0
  %3138 = vmatprep.subr.mxu0 0.0
  %3139 = vmatpush2.msra.mxu0 0.0
  %3140 = vmatprep.subr.mxu0 0.0
  %3141 = vmatpush2.msra.mxu0 0.0
  %3142 = vmatprep.subr.mxu0 0.0
  %3143 = vmatpush2.msra.mxu0 0.0
  %3144 = vmatprep.subr.mxu0 0.0
  %3145 = vmatpush2.msra.mxu0 0.0
  %3146 = vmatprep.subr.mxu0 0.0
  %3147 = vmatpush2.msra.mxu0 0.0
  %3148 = vmatprep.subr.mxu0 0.0
  %3149 = vmatpush2.msra.mxu0 0.0
  %3150 = vmatprep.subr.mxu0 0.0
  %3151 = vmatpush2.msra.mxu0 0.0
  %3152 = vmatprep.subr.mxu0 0.0
  %3153 = vmatpush2.msra.mxu0 0.0
  %3154 = vmatprep.subr.mxu0 0.0
  %3155 = vmatpush2.msra.mxu0 0.0
  %3156 = vmatprep.subr.mxu0 0.0
  %3157 = vmatpush2.msra.mxu0 0.0
  %3158 = vmatprep.mubr.f32.mxu0 0.0
  %3159 = vmatmul.mubr.f32.gmra.mxu0 %v3047
  %v3160 = vpop.f32.mrf.mxu0
  %v3161 = vadd.f32 %v3045, %v3160
  %v3162 = vpop.f32.mrf.mxu0
  %3163 = vmatprep.mubr.f32.mxu0 0.0
  %3164 = vmatmul.mubr.f32.gmra.mxu0 %v3050
  %v3165 = vpop.f32.mrf.mxu0
  %v3166 = vadd.f32 %v3045, %v3165
  %v3167 = vpop.f32.mrf.mxu0
  %3168 = vmatprep.mubr.f32.mxu0 0.0
  %3169 = vmatmul.mubr.f32.gmra.mxu0 %v3053
  %v3170 = vpop.f32.mrf.mxu0
  %v3171 = vadd.f32 %v3045, %v3170
  %v3172 = vpop.f32.mrf.mxu0
  %3173 = vmatprep.mubr.f32.mxu0 0.0
  %3174 = vmatmul.mubr.f32.gmra.mxu0 %v3056
  %v3175 = vpop.f32.mrf.mxu0
  %v3176 = vadd.f32 %v3045, %v3175
  %v3177 = vpop.f32.mrf.mxu0
  %3178 = vmatprep.mubr.f32.mxu0 0.0
  %3179 = vmatmul.mubr.f32.gmra.mxu0 %v3059
  %v3180 = vpop.f32.mrf.mxu0
  %v3181 = vadd.f32 %v3045, %v3180
  %v3182 = vpop.f32.mrf.mxu0
  %3183 = vmatprep.mubr.f32.mxu0 0.0
  %3184 = vmatmul.mubr.f32.gmra.mxu0 %v3062
  %v3185 = vpop.f32.mrf.mxu0
  %v3186 = vadd.f32 %v3045, %v3185
  %v3187 = vpop.f32.mrf.mxu0
  %3188 = vmatprep.mubr.f32.mxu0 0.0
  %3189 = vmatmul.mubr.f32.gmra.mxu0 %v3065
  %v3190 = vpop.f32.mrf.mxu0
  %v3191 = vadd.f32 %v3045, %v3190
  %v3192 = vpop.f32.mrf.mxu0
  %3193 = vmatprep.mubr.f32.mxu0 0.0
  %3194 = vmatmul.mubr.f32.gmra.mxu0 %v3068
  %v3195 = vpop.f32.mrf.mxu0
  %v3196 = vadd.f32 %v3045, %v3195
  %v3197 = vpop.f32.mrf.mxu0
  %3198 = vmatprep.mubr.f32.mxu0 0.0
  %3199 = vmatmul.mubr.f32.gmra.mxu0 %v3071
  %v3200 = vpop.f32.mrf.mxu0
  %v3201 = vadd.f32 %v3045, %v3200
  %v3202 = vpop.f32.mrf.mxu0
  %3203 = vmatprep.mubr.f32.mxu0 0.0
  %3204 = vmatmul.mubr.f32.gmra.mxu0 %v3074
  %v3205 = vpop.f32.mrf.mxu0
  %v3206 = vadd.f32 %v3045, %v3205
  %v3207 = vpop.f32.mrf.mxu0
  %3208 = vmatprep.mubr.f32.mxu0 0.0
  %3209 = vmatmul.mubr.f32.gmra.mxu0 %v3077
  %v3210 = vpop.f32.mrf.mxu0
  %v3211 = vadd.f32 %v3045, %v3210
  %v3212 = vpop.f32.mrf.mxu0
  %3213 = vmatprep.mubr.f32.mxu0 0.0
  %3214 = vmatmul.mubr.f32.gmra.mxu0 %v3080
  %v3215 = vpop.f32.mrf.mxu0
  %v3216 = vadd.f32 %v3045, %v3215
  %v3217 = vpop.f32.mrf.mxu0
  %3218 = vmatprep.mubr.f32.mxu0 0.0
  %3219 = vmatmul.mubr.f32.gmra.mxu0 %v3083
  %v3220 = vpop.f32.mrf.mxu0
  %v3221 = vadd.f32 %v3045, %v3220
  %v3222 = vpop.f32.mrf.mxu0
  %3223 = vmatprep.mubr.f32.mxu0 0.0
  %3224 = vmatmul.mubr.f32.gmra.mxu0 %v3086
  %v3225 = vpop.f32.mrf.mxu0
  %v3226 = vadd.f32 %v3045, %v3225
  %v3227 = vpop.f32.mrf.mxu0
  %3228 = vmatprep.mubr.f32.mxu0 0.0
  %3229 = vmatmul.mubr.f32.gmra.mxu0 %v3089
  %v3230 = vpop.f32.mrf.mxu0
  %v3231 = vadd.f32 %v3045, %v3230
  %v3232 = vpop.f32.mrf.mxu0
  %3233 = vmatprep.mubr.f32.mxu0 0.0
  %3234 = vmatmul.mubr.f32.gmra.mxu0 %v3092
  %v3235 = vpop.f32.mrf.mxu0
  %v3236 = vadd.f32 %v3045, %v3235
  %v3237 = vpop.f32.mrf.mxu0
  %3238 = vdwg.mxu0
  %s3239 = scalar_lea.vmem %s9, 544
  %v3240 = vld [vmem:[%s3239] sm:$0xff]
  %v3241 = vld [vmem:[%s3239 + $0x8] sm:$0xff]
  %v3242 = vld [vmem:[%s3239 + $0x10] sm:$0xff]
  %v3243 = vld [vmem:[%s3239 + $0x18] sm:$0xff]
  %v3244 = vld [vmem:[%s13 + $0x24] sm:$0x1]
  %v3245 = vlaneseq
  %v3246 = vshrl.u32 %v3245, 7
  %v3247 = vsub.s32 0, %v3246
  %v3248 = vrot.slane %v3244, %v3247
  %3249 = vmatprep.subr.mxu0 0.0
  %3250 = vmatpush1.msra.mxu0 0.0
  %3251 = vmatprep.subr.mxu0 0.0
  %3252 = vmatpush1.msra.mxu0 0.0
  %3253 = vmatprep.subr.mxu0 0.0
  %3254 = vmatpush1.msra.mxu0 0.0
  %3255 = vmatprep.subr.mxu0 0.0
  %3256 = vmatpush1.msra.mxu0 0.0
  %3257 = vmatprep.subr.mxu0 0.0
  %3258 = vmatpush1.msra.mxu0 0.0
  %3259 = vmatprep.subr.mxu0 0.0
  %3260 = vmatpush1.msra.mxu0 0.0
  %3261 = vmatprep.subr.mxu0 0.0
  %3262 = vmatpush1.msra.mxu0 0.0
  %3263 = vmatprep.subr.mxu0 0.0
  %3264 = vmatpush1.msra.mxu0 0.0
  %3265 = vmatprep.subr.mxu0 0.0
  %3266 = vmatpush1.msra.mxu0 0.0
  %3267 = vmatprep.subr.mxu0 0.0
  %3268 = vmatpush1.msra.mxu0 0.0
  %3269 = vmatprep.subr.mxu0 0.0
  %3270 = vmatpush1.msra.mxu0 0.0
  %3271 = vmatprep.subr.mxu0 0.0
  %3272 = vmatpush1.msra.mxu0 0.0
  %3273 = vmatprep.subr.mxu0 0.0
  %3274 = vmatpush1.msra.mxu0 %v3243
  %3275 = vmatprep.subr.mxu0 0.0
  %3276 = vmatpush1.msra.mxu0 %v3242
  %3277 = vmatprep.subr.mxu0 0.0
  %3278 = vmatpush1.msra.mxu0 %v3241
  %3279 = vmatprep.subr.mxu0 0.0
  %3280 = vmatpush1.msra.mxu0 %v3240
  %3281 = vmatprep.subr.mxu0 0.0
  %3282 = vmatpush2.msra.mxu0 0.0
  %3283 = vmatprep.subr.mxu0 0.0
  %3284 = vmatpush2.msra.mxu0 0.0
  %3285 = vmatprep.subr.mxu0 0.0
  %3286 = vmatpush2.msra.mxu0 0.0
  %3287 = vmatprep.subr.mxu0 0.0
  %3288 = vmatpush2.msra.mxu0 0.0
  %3289 = vmatprep.subr.mxu0 0.0
  %3290 = vmatpush2.msra.mxu0 0.0
  %3291 = vmatprep.subr.mxu0 0.0
  %3292 = vmatpush2.msra.mxu0 0.0
  %3293 = vmatprep.subr.mxu0 0.0
  %3294 = vmatpush2.msra.mxu0 0.0
  %3295 = vmatprep.subr.mxu0 0.0
  %3296 = vmatpush2.msra.mxu0 0.0
  %3297 = vmatprep.subr.mxu0 0.0
  %3298 = vmatpush2.msra.mxu0 0.0
  %3299 = vmatprep.subr.mxu0 0.0
  %3300 = vmatpush2.msra.mxu0 0.0
  %3301 = vmatprep.subr.mxu0 0.0
  %3302 = vmatpush2.msra.mxu0 0.0
  %3303 = vmatprep.subr.mxu0 0.0
  %3304 = vmatpush2.msra.mxu0 0.0
  %3305 = vmatprep.subr.mxu0 0.0
  %3306 = vmatpush2.msra.mxu0 0.0
  %3307 = vmatprep.subr.mxu0 0.0
  %3308 = vmatpush2.msra.mxu0 0.0
  %3309 = vmatprep.subr.mxu0 0.0
  %3310 = vmatpush2.msra.mxu0 0.0
  %3311 = vmatprep.subr.mxu0 0.0
  %3312 = vmatpush2.msra.mxu0 0.0
  %3313 = vmatprep.mubr.f32.mxu0 0.0
  %3314 = vmatmul.mubr.f32.gmra.mxu0 %v3047
  %v3315 = vpop.f32.mrf.mxu0
  %v3316 = vadd.f32 %v3248, %v3315
  %v3317 = vpop.f32.mrf.mxu0
  %3318 = vmatprep.mubr.f32.mxu0 0.0
  %3319 = vmatmul.mubr.f32.gmra.mxu0 %v3050
  %v3320 = vpop.f32.mrf.mxu0
  %v3321 = vadd.f32 %v3248, %v3320
  %v3322 = vpop.f32.mrf.mxu0
  %3323 = vmatprep.mubr.f32.mxu0 0.0
  %3324 = vmatmul.mubr.f32.gmra.mxu0 %v3053
  %v3325 = vpop.f32.mrf.mxu0
  %v3326 = vadd.f32 %v3248, %v3325
  %v3327 = vpop.f32.mrf.mxu0
  %3328 = vmatprep.mubr.f32.mxu0 0.0
  %3329 = vmatmul.mubr.f32.gmra.mxu0 %v3056
  %v3330 = vpop.f32.mrf.mxu0
  %v3331 = vadd.f32 %v3248, %v3330
  %v3332 = vpop.f32.mrf.mxu0
  %3333 = vmatprep.mubr.f32.mxu0 0.0
  %3334 = vmatmul.mubr.f32.gmra.mxu0 %v3059
  %v3335 = vpop.f32.mrf.mxu0
  %v3336 = vadd.f32 %v3248, %v3335
  %v3337 = vpop.f32.mrf.mxu0
  %3338 = vmatprep.mubr.f32.mxu0 0.0
  %3339 = vmatmul.mubr.f32.gmra.mxu0 %v3062
  %v3340 = vpop.f32.mrf.mxu0
  %v3341 = vadd.f32 %v3248, %v3340
  %v3342 = vpop.f32.mrf.mxu0
  %3343 = vmatprep.mubr.f32.mxu0 0.0
  %3344 = vmatmul.mubr.f32.gmra.mxu0 %v3065
  %v3345 = vpop.f32.mrf.mxu0
  %v3346 = vadd.f32 %v3248, %v3345
  %v3347 = vpop.f32.mrf.mxu0
  %3348 = vmatprep.mubr.f32.mxu0 0.0
  %3349 = vmatmul.mubr.f32.gmra.mxu0 %v3068
  %v3350 = vpop.f32.mrf.mxu0
  %v3351 = vadd.f32 %v3248, %v3350
  %v3352 = vpop.f32.mrf.mxu0
  %3353 = vmatprep.mubr.f32.mxu0 0.0
  %3354 = vmatmul.mubr.f32.gmra.mxu0 %v3071
  %v3355 = vpop.f32.mrf.mxu0
  %v3356 = vadd.f32 %v3248, %v3355
  %v3357 = vpop.f32.mrf.mxu0
  %3358 = vmatprep.mubr.f32.mxu0 0.0
  %3359 = vmatmul.mubr.f32.gmra.mxu0 %v3074
  %v3360 = vpop.f32.mrf.mxu0
  %v3361 = vadd.f32 %v3248, %v3360
  %v3362 = vpop.f32.mrf.mxu0
  %3363 = vmatprep.mubr.f32.mxu0 0.0
  %3364 = vmatmul.mubr.f32.gmra.mxu0 %v3077
  %v3365 = vpop.f32.mrf.mxu0
  %v3366 = vadd.f32 %v3248, %v3365
  %v3367 = vpop.f32.mrf.mxu0
  %3368 = vmatprep.mubr.f32.mxu0 0.0
  %3369 = vmatmul.mubr.f32.gmra.mxu0 %v3080
  %v3370 = vpop.f32.mrf.mxu0
  %v3371 = vadd.f32 %v3248, %v3370
  %v3372 = vpop.f32.mrf.mxu0
  %3373 = vmatprep.mubr.f32.mxu0 0.0
  %3374 = vmatmul.mubr.f32.gmra.mxu0 %v3083
  %v3375 = vpop.f32.mrf.mxu0
  %v3376 = vadd.f32 %v3248, %v3375
  %v3377 = vpop.f32.mrf.mxu0
  %3378 = vmatprep.mubr.f32.mxu0 0.0
  %3379 = vmatmul.mubr.f32.gmra.mxu0 %v3086
  %v3380 = vpop.f32.mrf.mxu0
  %v3381 = vadd.f32 %v3248, %v3380
  %v3382 = vpop.f32.mrf.mxu0
  %3383 = vmatprep.mubr.f32.mxu0 0.0
  %3384 = vmatmul.mubr.f32.gmra.mxu0 %v3089
  %v3385 = vpop.f32.mrf.mxu0
  %v3386 = vadd.f32 %v3248, %v3385
  %v3387 = vpop.f32.mrf.mxu0
  %3388 = vmatprep.mubr.f32.mxu0 0.0
  %3389 = vmatmul.mubr.f32.gmra.mxu0 %v3092
  %v3390 = vpop.f32.mrf.mxu0
  %v3391 = vadd.f32 %v3248, %v3390
  %v3392 = vpop.f32.mrf.mxu0
  %3393 = vdwg.mxu0
  %s3394 = scalar_lea.vmem %s9, 320
  %v3395 = vld [vmem:[%s3394] sm:$0xff]
  %v3396 = vld [vmem:[%s3394 + $0x8] sm:$0xff]
  %v3397 = vld [vmem:[%s3394 + $0x10] sm:$0xff]
  %v3398 = vld [vmem:[%s3394 + $0x18] sm:$0xff]
  %v3399 = vld [vmem:[%s13 + $0x15] sm:$0x1]
  %v3400 = vlaneseq
  %v3401 = vshrl.u32 %v3400, 7
  %v3402 = vsub.s32 0, %v3401
  %v3403 = vrot.slane %v3399, %v3402
  %v3405 = vsel %vm537, %v3004, 0
  %v3408 = vsel %vm537, %v3005, 0
  %v3411 = vsel %vm537, %v3006, 0
  %v3414 = vsel %vm537, %v3007, 0
  %v3417 = vsel %vm537, %v3008, 0
  %v3420 = vsel %vm537, %v3009, 0
  %v3423 = vsel %vm537, %v3010, 0
  %v3426 = vsel %vm537, %v3011, 0
  %v3429 = vsel %vm537, %v3012, 0
  %v3432 = vsel %vm537, %v3013, 0
  %v3435 = vsel %vm537, %v3014, 0
  %v3438 = vsel %vm537, %v3015, 0
  %v3441 = vsel %vm537, %v3016, 0
  %v3444 = vsel %vm537, %v3017, 0
  %v3447 = vsel %vm537, %v3018, 0
  %v3450 = vsel %vm537, %v3019, 0
  %3452 = vmatprep.subr.mxu0 0.0
  %3453 = vmatpush1.msra.mxu0 0.0
  %3454 = vmatprep.subr.mxu0 0.0
  %3455 = vmatpush1.msra.mxu0 0.0
  %3456 = vmatprep.subr.mxu0 0.0
  %3457 = vmatpush1.msra.mxu0 0.0
  %3458 = vmatprep.subr.mxu0 0.0
  %3459 = vmatpush1.msra.mxu0 0.0
  %3460 = vmatprep.subr.mxu0 0.0
  %3461 = vmatpush1.msra.mxu0 0.0
  %3462 = vmatprep.subr.mxu0 0.0
  %3463 = vmatpush1.msra.mxu0 0.0
  %3464 = vmatprep.subr.mxu0 0.0
  %3465 = vmatpush1.msra.mxu0 0.0
  %3466 = vmatprep.subr.mxu0 0.0
  %3467 = vmatpush1.msra.mxu0 0.0
  %3468 = vmatprep.subr.mxu0 0.0
  %3469 = vmatpush1.msra.mxu0 0.0
  %3470 = vmatprep.subr.mxu0 0.0
  %3471 = vmatpush1.msra.mxu0 0.0
  %3472 = vmatprep.subr.mxu0 0.0
  %3473 = vmatpush1.msra.mxu0 0.0
  %3474 = vmatprep.subr.mxu0 0.0
  %3475 = vmatpush1.msra.mxu0 0.0
  %3476 = vmatprep.subr.mxu0 0.0
  %3477 = vmatpush1.msra.mxu0 %v3398
  %3478 = vmatprep.subr.mxu0 0.0
  %3479 = vmatpush1.msra.mxu0 %v3397
  %3480 = vmatprep.subr.mxu0 0.0
  %3481 = vmatpush1.msra.mxu0 %v3396
  %3482 = vmatprep.subr.mxu0 0.0
  %3483 = vmatpush1.msra.mxu0 %v3395
  %3484 = vmatprep.subr.mxu0 0.0
  %3485 = vmatpush2.msra.mxu0 0.0
  %3486 = vmatprep.subr.mxu0 0.0
  %3487 = vmatpush2.msra.mxu0 0.0
  %3488 = vmatprep.subr.mxu0 0.0
  %3489 = vmatpush2.msra.mxu0 0.0
  %3490 = vmatprep.subr.mxu0 0.0
  %3491 = vmatpush2.msra.mxu0 0.0
  %3492 = vmatprep.subr.mxu0 0.0
  %3493 = vmatpush2.msra.mxu0 0.0
  %3494 = vmatprep.subr.mxu0 0.0
  %3495 = vmatpush2.msra.mxu0 0.0
  %3496 = vmatprep.subr.mxu0 0.0
  %3497 = vmatpush2.msra.mxu0 0.0
  %3498 = vmatprep.subr.mxu0 0.0
  %3499 = vmatpush2.msra.mxu0 0.0
  %3500 = vmatprep.subr.mxu0 0.0
  %3501 = vmatpush2.msra.mxu0 0.0
  %3502 = vmatprep.subr.mxu0 0.0
  %3503 = vmatpush2.msra.mxu0 0.0
  %3504 = vmatprep.subr.mxu0 0.0
  %3505 = vmatpush2.msra.mxu0 0.0
  %3506 = vmatprep.subr.mxu0 0.0
  %3507 = vmatpush2.msra.mxu0 0.0
  %3508 = vmatprep.subr.mxu0 0.0
  %3509 = vmatpush2.msra.mxu0 0.0
  %3510 = vmatprep.subr.mxu0 0.0
  %3511 = vmatpush2.msra.mxu0 0.0
  %3512 = vmatprep.subr.mxu0 0.0
  %3513 = vmatpush2.msra.mxu0 0.0
  %3514 = vmatprep.subr.mxu0 0.0
  %3515 = vmatpush2.msra.mxu0 0.0
  %3516 = vmatprep.mubr.f32.mxu0 0.0
  %3517 = vmatmul.mubr.f32.gmra.mxu0 %v3405
  %v3518 = vpop.f32.mrf.mxu0
  %v3519 = vadd.f32 %v3403, %v3518
  %v3520 = vpop.f32.mrf.mxu0
  %3521 = vmatprep.mubr.f32.mxu0 0.0
  %3522 = vmatmul.mubr.f32.gmra.mxu0 %v3408
  %v3523 = vpop.f32.mrf.mxu0
  %v3524 = vadd.f32 %v3403, %v3523
  %v3525 = vpop.f32.mrf.mxu0
  %3526 = vmatprep.mubr.f32.mxu0 0.0
  %3527 = vmatmul.mubr.f32.gmra.mxu0 %v3411
  %v3528 = vpop.f32.mrf.mxu0
  %v3529 = vadd.f32 %v3403, %v3528
  %v3530 = vpop.f32.mrf.mxu0
  %3531 = vmatprep.mubr.f32.mxu0 0.0
  %3532 = vmatmul.mubr.f32.gmra.mxu0 %v3414
  %v3533 = vpop.f32.mrf.mxu0
  %v3534 = vadd.f32 %v3403, %v3533
  %v3535 = vpop.f32.mrf.mxu0
  %3536 = vmatprep.mubr.f32.mxu0 0.0
  %3537 = vmatmul.mubr.f32.gmra.mxu0 %v3417
  %v3538 = vpop.f32.mrf.mxu0
  %v3539 = vadd.f32 %v3403, %v3538
  %v3540 = vpop.f32.mrf.mxu0
  %3541 = vmatprep.mubr.f32.mxu0 0.0
  %3542 = vmatmul.mubr.f32.gmra.mxu0 %v3420
  %v3543 = vpop.f32.mrf.mxu0
  %v3544 = vadd.f32 %v3403, %v3543
  %v3545 = vpop.f32.mrf.mxu0
  %3546 = vmatprep.mubr.f32.mxu0 0.0
  %3547 = vmatmul.mubr.f32.gmra.mxu0 %v3423
  %v3548 = vpop.f32.mrf.mxu0
  %v3549 = vadd.f32 %v3403, %v3548
  %v3550 = vpop.f32.mrf.mxu0
  %3551 = vmatprep.mubr.f32.mxu0 0.0
  %3552 = vmatmul.mubr.f32.gmra.mxu0 %v3426
  %v3553 = vpop.f32.mrf.mxu0
  %v3554 = vadd.f32 %v3403, %v3553
  %v3555 = vpop.f32.mrf.mxu0
  %3556 = vmatprep.mubr.f32.mxu0 0.0
  %3557 = vmatmul.mubr.f32.gmra.mxu0 %v3429
  %v3558 = vpop.f32.mrf.mxu0
  %v3559 = vadd.f32 %v3403, %v3558
  %v3560 = vpop.f32.mrf.mxu0
  %3561 = vmatprep.mubr.f32.mxu0 0.0
  %3562 = vmatmul.mubr.f32.gmra.mxu0 %v3432
  %v3563 = vpop.f32.mrf.mxu0
  %v3564 = vadd.f32 %v3403, %v3563
  %v3565 = vpop.f32.mrf.mxu0
  %3566 = vmatprep.mubr.f32.mxu0 0.0
  %3567 = vmatmul.mubr.f32.gmra.mxu0 %v3435
  %v3568 = vpop.f32.mrf.mxu0
  %v3569 = vadd.f32 %v3403, %v3568
  %v3570 = vpop.f32.mrf.mxu0
  %3571 = vmatprep.mubr.f32.mxu0 0.0
  %3572 = vmatmul.mubr.f32.gmra.mxu0 %v3438
  %v3573 = vpop.f32.mrf.mxu0
  %v3574 = vadd.f32 %v3403, %v3573
  %v3575 = vpop.f32.mrf.mxu0
  %3576 = vmatprep.mubr.f32.mxu0 0.0
  %3577 = vmatmul.mubr.f32.gmra.mxu0 %v3441
  %v3578 = vpop.f32.mrf.mxu0
  %v3579 = vadd.f32 %v3403, %v3578
  %v3580 = vpop.f32.mrf.mxu0
  %3581 = vmatprep.mubr.f32.mxu0 0.0
  %3582 = vmatmul.mubr.f32.gmra.mxu0 %v3444
  %v3583 = vpop.f32.mrf.mxu0
  %v3584 = vadd.f32 %v3403, %v3583
  %v3585 = vpop.f32.mrf.mxu0
  %3586 = vmatprep.mubr.f32.mxu0 0.0
  %3587 = vmatmul.mubr.f32.gmra.mxu0 %v3447
  %v3588 = vpop.f32.mrf.mxu0
  %v3589 = vadd.f32 %v3403, %v3588
  %v3590 = vpop.f32.mrf.mxu0
  %3591 = vmatprep.mubr.f32.mxu0 0.0
  %3592 = vmatmul.mubr.f32.gmra.mxu0 %v3450
  %v3593 = vpop.f32.mrf.mxu0
  %v3594 = vadd.f32 %v3403, %v3593
  %v3595 = vpop.f32.mrf.mxu0
  %3596 = vdwg.mxu0
  %s3597 = scalar_lea.vmem %s9, 576
  %v3598 = vld [vmem:[%s3597] sm:$0xff]
  %v3599 = vld [vmem:[%s3597 + $0x8] sm:$0xff]
  %v3600 = vld [vmem:[%s3597 + $0x10] sm:$0xff]
  %v3601 = vld [vmem:[%s3597 + $0x18] sm:$0xff]
  %v3602 = vld [vmem:[%s13 + $0x25] sm:$0x1]
  %v3603 = vlaneseq
  %v3604 = vshrl.u32 %v3603, 7
  %v3605 = vsub.s32 0, %v3604
  %v3606 = vrot.slane %v3602, %v3605
  %3607 = vmatprep.subr.mxu0 0.0
  %3608 = vmatpush1.msra.mxu0 0.0
  %3609 = vmatprep.subr.mxu0 0.0
  %3610 = vmatpush1.msra.mxu0 0.0
  %3611 = vmatprep.subr.mxu0 0.0
  %3612 = vmatpush1.msra.mxu0 0.0
  %3613 = vmatprep.subr.mxu0 0.0
  %3614 = vmatpush1.msra.mxu0 0.0
  %3615 = vmatprep.subr.mxu0 0.0
  %3616 = vmatpush1.msra.mxu0 0.0
  %3617 = vmatprep.subr.mxu0 0.0
  %3618 = vmatpush1.msra.mxu0 0.0
  %3619 = vmatprep.subr.mxu0 0.0
  %3620 = vmatpush1.msra.mxu0 0.0
  %3621 = vmatprep.subr.mxu0 0.0
  %3622 = vmatpush1.msra.mxu0 0.0
  %3623 = vmatprep.subr.mxu0 0.0
  %3624 = vmatpush1.msra.mxu0 0.0
  %3625 = vmatprep.subr.mxu0 0.0
  %3626 = vmatpush1.msra.mxu0 0.0
  %3627 = vmatprep.subr.mxu0 0.0
  %3628 = vmatpush1.msra.mxu0 0.0
  %3629 = vmatprep.subr.mxu0 0.0
  %3630 = vmatpush1.msra.mxu0 0.0
  %3631 = vmatprep.subr.mxu0 0.0
  %3632 = vmatpush1.msra.mxu0 %v3601
  %3633 = vmatprep.subr.mxu0 0.0
  %3634 = vmatpush1.msra.mxu0 %v3600
  %3635 = vmatprep.subr.mxu0 0.0
  %3636 = vmatpush1.msra.mxu0 %v3599
  %3637 = vmatprep.subr.mxu0 0.0
  %3638 = vmatpush1.msra.mxu0 %v3598
  %3639 = vmatprep.subr.mxu0 0.0
  %3640 = vmatpush2.msra.mxu0 0.0
  %3641 = vmatprep.subr.mxu0 0.0
  %3642 = vmatpush2.msra.mxu0 0.0
  %3643 = vmatprep.subr.mxu0 0.0
  %3644 = vmatpush2.msra.mxu0 0.0
  %3645 = vmatprep.subr.mxu0 0.0
  %3646 = vmatpush2.msra.mxu0 0.0
  %3647 = vmatprep.subr.mxu0 0.0
  %3648 = vmatpush2.msra.mxu0 0.0
  %3649 = vmatprep.subr.mxu0 0.0
  %3650 = vmatpush2.msra.mxu0 0.0
  %3651 = vmatprep.subr.mxu0 0.0
  %3652 = vmatpush2.msra.mxu0 0.0
  %3653 = vmatprep.subr.mxu0 0.0
  %3654 = vmatpush2.msra.mxu0 0.0
  %3655 = vmatprep.subr.mxu0 0.0
  %3656 = vmatpush2.msra.mxu0 0.0
  %3657 = vmatprep.subr.mxu0 0.0
  %3658 = vmatpush2.msra.mxu0 0.0
  %3659 = vmatprep.subr.mxu0 0.0
  %3660 = vmatpush2.msra.mxu0 0.0
  %3661 = vmatprep.subr.mxu0 0.0
  %3662 = vmatpush2.msra.mxu0 0.0
  %3663 = vmatprep.subr.mxu0 0.0
  %3664 = vmatpush2.msra.mxu0 0.0
  %3665 = vmatprep.subr.mxu0 0.0
  %3666 = vmatpush2.msra.mxu0 0.0
  %3667 = vmatprep.subr.mxu0 0.0
  %3668 = vmatpush2.msra.mxu0 0.0
  %3669 = vmatprep.subr.mxu0 0.0
  %3670 = vmatpush2.msra.mxu0 0.0
  %3671 = vmatprep.mubr.f32.mxu0 0.0
  %3672 = vmatmul.mubr.f32.gmra.mxu0 %v3405
  %v3673 = vpop.f32.mrf.mxu0
  %v3674 = vadd.f32 %v3606, %v3673
  %v3675 = vpop.f32.mrf.mxu0
  %3676 = vmatprep.mubr.f32.mxu0 0.0
  %3677 = vmatmul.mubr.f32.gmra.mxu0 %v3408
  %v3678 = vpop.f32.mrf.mxu0
  %v3679 = vadd.f32 %v3606, %v3678
  %v3680 = vpop.f32.mrf.mxu0
  %3681 = vmatprep.mubr.f32.mxu0 0.0
  %3682 = vmatmul.mubr.f32.gmra.mxu0 %v3411
  %v3683 = vpop.f32.mrf.mxu0
  %v3684 = vadd.f32 %v3606, %v3683
  %v3685 = vpop.f32.mrf.mxu0
  %3686 = vmatprep.mubr.f32.mxu0 0.0
  %3687 = vmatmul.mubr.f32.gmra.mxu0 %v3414
  %v3688 = vpop.f32.mrf.mxu0
  %v3689 = vadd.f32 %v3606, %v3688
  %v3690 = vpop.f32.mrf.mxu0
  %3691 = vmatprep.mubr.f32.mxu0 0.0
  %3692 = vmatmul.mubr.f32.gmra.mxu0 %v3417
  %v3693 = vpop.f32.mrf.mxu0
  %v3694 = vadd.f32 %v3606, %v3693
  %v3695 = vpop.f32.mrf.mxu0
  %3696 = vmatprep.mubr.f32.mxu0 0.0
  %3697 = vmatmul.mubr.f32.gmra.mxu0 %v3420
  %v3698 = vpop.f32.mrf.mxu0
  %v3699 = vadd.f32 %v3606, %v3698
  %v3700 = vpop.f32.mrf.mxu0
  %3701 = vmatprep.mubr.f32.mxu0 0.0
  %3702 = vmatmul.mubr.f32.gmra.mxu0 %v3423
  %v3703 = vpop.f32.mrf.mxu0
  %v3704 = vadd.f32 %v3606, %v3703
  %v3705 = vpop.f32.mrf.mxu0
  %3706 = vmatprep.mubr.f32.mxu0 0.0
  %3707 = vmatmul.mubr.f32.gmra.mxu0 %v3426
  %v3708 = vpop.f32.mrf.mxu0
  %v3709 = vadd.f32 %v3606, %v3708
  %v3710 = vpop.f32.mrf.mxu0
  %3711 = vmatprep.mubr.f32.mxu0 0.0
  %3712 = vmatmul.mubr.f32.gmra.mxu0 %v3429
  %v3713 = vpop.f32.mrf.mxu0
  %v3714 = vadd.f32 %v3606, %v3713
  %v3715 = vpop.f32.mrf.mxu0
  %3716 = vmatprep.mubr.f32.mxu0 0.0
  %3717 = vmatmul.mubr.f32.gmra.mxu0 %v3432
  %v3718 = vpop.f32.mrf.mxu0
  %v3719 = vadd.f32 %v3606, %v3718
  %v3720 = vpop.f32.mrf.mxu0
  %3721 = vmatprep.mubr.f32.mxu0 0.0
  %3722 = vmatmul.mubr.f32.gmra.mxu0 %v3435
  %v3723 = vpop.f32.mrf.mxu0
  %v3724 = vadd.f32 %v3606, %v3723
  %v3725 = vpop.f32.mrf.mxu0
  %3726 = vmatprep.mubr.f32.mxu0 0.0
  %3727 = vmatmul.mubr.f32.gmra.mxu0 %v3438
  %v3728 = vpop.f32.mrf.mxu0
  %v3729 = vadd.f32 %v3606, %v3728
  %v3730 = vpop.f32.mrf.mxu0
  %3731 = vmatprep.mubr.f32.mxu0 0.0
  %3732 = vmatmul.mubr.f32.gmra.mxu0 %v3441
  %v3733 = vpop.f32.mrf.mxu0
  %v3734 = vadd.f32 %v3606, %v3733
  %v3735 = vpop.f32.mrf.mxu0
  %3736 = vmatprep.mubr.f32.mxu0 0.0
  %3737 = vmatmul.mubr.f32.gmra.mxu0 %v3444
  %v3738 = vpop.f32.mrf.mxu0
  %v3739 = vadd.f32 %v3606, %v3738
  %v3740 = vpop.f32.mrf.mxu0
  %3741 = vmatprep.mubr.f32.mxu0 0.0
  %3742 = vmatmul.mubr.f32.gmra.mxu0 %v3447
  %v3743 = vpop.f32.mrf.mxu0
  %v3744 = vadd.f32 %v3606, %v3743
  %v3745 = vpop.f32.mrf.mxu0
  %3746 = vmatprep.mubr.f32.mxu0 0.0
  %3747 = vmatmul.mubr.f32.gmra.mxu0 %v3450
  %v3748 = vpop.f32.mrf.mxu0
  %v3749 = vadd.f32 %v3606, %v3748
  %v3750 = vpop.f32.mrf.mxu0
  %3751 = vdwg.mxu0
  %v3752 = vld [vmem:[%s5] sm:$0xff]
  %v3753 = vld [vmem:[%s5 + $0x8] sm:$0xff]
  %v3754 = vld [vmem:[%s12] sm:$0xf]
  %v3755 = vld [vmem:[%s13 + $0xc] sm:$0x1]
  %v3756 = vlaneseq
  %v3757 = vshrl.u32 %v3756, 7
  %v3758 = vsub.s32 0, %v3757
  %v3759 = vrot.slane %v3755, %v3758
  %vm3760 = vcmask 31744
  %v3762 = vsel %vm3760, %v3752, 0
  %v3765 = vsel %vm3760, %v3753, 0
  %vm3767 = vcmask 1043456
  %v3769 = vsel %vm3767, %v3754, 0
  %3771 = vmatprep.subr.mxu0 0.0
  %3772 = vmatpush1.msra.mxu0 0.0
  %3773 = vmatprep.subr.mxu0 0.0
  %3774 = vmatpush1.msra.mxu0 0.0
  %3775 = vmatprep.subr.mxu0 0.0
  %3776 = vmatpush1.msra.mxu0 0.0
  %3777 = vmatprep.subr.mxu0 0.0
  %3778 = vmatpush1.msra.mxu0 0.0
  %3779 = vmatprep.subr.mxu0 0.0
  %3780 = vmatpush1.msra.mxu0 0.0
  %3781 = vmatprep.subr.mxu0 0.0
  %3782 = vmatpush1.msra.mxu0 0.0
  %3783 = vmatprep.subr.mxu0 0.0
  %3784 = vmatpush1.msra.mxu0 0.0
  %3785 = vmatprep.subr.mxu0 0.0
  %3786 = vmatpush1.msra.mxu0 0.0
  %3787 = vmatprep.subr.mxu0 0.0
  %3788 = vmatpush1.msra.mxu0 0.0
  %3789 = vmatprep.subr.mxu0 0.0
  %3790 = vmatpush1.msra.mxu0 0.0
  %3791 = vmatprep.subr.mxu0 0.0
  %3792 = vmatpush1.msra.mxu0 0.0
  %3793 = vmatprep.subr.mxu0 0.0
  %3794 = vmatpush1.msra.mxu0 0.0
  %3795 = vmatprep.subr.mxu0 0.0
  %3796 = vmatpush1.msra.mxu0 0.0
  %3797 = vmatprep.subr.mxu0 0.0
  %3798 = vmatpush1.msra.mxu0 0.0
  %3799 = vmatprep.subr.mxu0 0.0
  %3800 = vmatpush1.msra.mxu0 0.0
  %3801 = vmatprep.subr.mxu0 0.0
  %3802 = vmatpush1.msra.mxu0 %v3769
  %3803 = vmatprep.subr.mxu0 0.0
  %3804 = vmatpush2.msra.mxu0 0.0
  %3805 = vmatprep.subr.mxu0 0.0
  %3806 = vmatpush2.msra.mxu0 0.0
  %3807 = vmatprep.subr.mxu0 0.0
  %3808 = vmatpush2.msra.mxu0 0.0
  %3809 = vmatprep.subr.mxu0 0.0
  %3810 = vmatpush2.msra.mxu0 0.0
  %3811 = vmatprep.subr.mxu0 0.0
  %3812 = vmatpush2.msra.mxu0 0.0
  %3813 = vmatprep.subr.mxu0 0.0
  %3814 = vmatpush2.msra.mxu0 0.0
  %3815 = vmatprep.subr.mxu0 0.0
  %3816 = vmatpush2.msra.mxu0 0.0
  %3817 = vmatprep.subr.mxu0 0.0
  %3818 = vmatpush2.msra.mxu0 0.0
  %3819 = vmatprep.subr.mxu0 0.0
  %3820 = vmatpush2.msra.mxu0 0.0
  %3821 = vmatprep.subr.mxu0 0.0
  %3822 = vmatpush2.msra.mxu0 0.0
  %3823 = vmatprep.subr.mxu0 0.0
  %3824 = vmatpush2.msra.mxu0 0.0
  %3825 = vmatprep.subr.mxu0 0.0
  %3826 = vmatpush2.msra.mxu0 0.0
  %3827 = vmatprep.subr.mxu0 0.0
  %3828 = vmatpush2.msra.mxu0 0.0
  %3829 = vmatprep.subr.mxu0 0.0
  %3830 = vmatpush2.msra.mxu0 0.0
  %3831 = vmatprep.subr.mxu0 0.0
  %3832 = vmatpush2.msra.mxu0 0.0
  %3833 = vmatprep.subr.mxu0 0.0
  %3834 = vmatpush2.msra.mxu0 0.0
  %3835 = vmatprep.mubr.f32.mxu0 0.0
  %3836 = vmatmul.mubr.f32.gmra.mxu0 %v3762
  %v3837 = vpop.f32.mrf.mxu0
  %v3838 = vadd.f32 %v3759, %v3837
  %v3839 = vpop.f32.mrf.mxu0
  %3840 = vmatprep.mubr.f32.mxu0 0.0
  %3841 = vmatmul.mubr.f32.gmra.mxu0 %v3765
  %v3842 = vpop.f32.mrf.mxu0
  %v3843 = vadd.f32 %v3759, %v3842
  %v3844 = vpop.f32.mrf.mxu0
  %3845 = vdwg.mxu0
  %v3846 = vadd.f32 %v3838, 0.0
  %v3847 = vadd.f32 %v3843, 0.0
  %s3848 = scalar_lea.vmem %s9, 128
  %v3849 = vld [vmem:[%s3848] sm:$0xff]
  %v3850 = vld [vmem:[%s3848 + $0x8] sm:$0xff]
  %v3851 = vld [vmem:[%s3848 + $0x10] sm:$0xff]
  %v3852 = vld [vmem:[%s3848 + $0x18] sm:$0xff]
  %v3853 = vld [vmem:[%s13 + $0xd] sm:$0x1]
  %v3854 = vlaneseq
  %v3855 = vshrl.u32 %v3854, 7
  %v3856 = vsub.s32 0, %v3855
  %v3857 = vrot.slane %v3853, %v3856
  %v3859 = vsel %vm537, %v3846, 0
  %v3862 = vsel %vm537, %v3847, 0
  %3864 = vmatprep.subr.mxu0 0.0
  %3865 = vmatpush1.msra.mxu0 0.0
  %3866 = vmatprep.subr.mxu0 0.0
  %3867 = vmatpush1.msra.mxu0 0.0
  %3868 = vmatprep.subr.mxu0 0.0
  %3869 = vmatpush1.msra.mxu0 0.0
  %3870 = vmatprep.subr.mxu0 0.0
  %3871 = vmatpush1.msra.mxu0 0.0
  %3872 = vmatprep.subr.mxu0 0.0
  %3873 = vmatpush1.msra.mxu0 0.0
  %3874 = vmatprep.subr.mxu0 0.0
  %3875 = vmatpush1.msra.mxu0 0.0
  %3876 = vmatprep.subr.mxu0 0.0
  %3877 = vmatpush1.msra.mxu0 0.0
  %3878 = vmatprep.subr.mxu0 0.0
  %3879 = vmatpush1.msra.mxu0 0.0
  %3880 = vmatprep.subr.mxu0 0.0
  %3881 = vmatpush1.msra.mxu0 0.0
  %3882 = vmatprep.subr.mxu0 0.0
  %3883 = vmatpush1.msra.mxu0 0.0
  %3884 = vmatprep.subr.mxu0 0.0
  %3885 = vmatpush1.msra.mxu0 0.0
  %3886 = vmatprep.subr.mxu0 0.0
  %3887 = vmatpush1.msra.mxu0 0.0
  %3888 = vmatprep.subr.mxu0 0.0
  %3889 = vmatpush1.msra.mxu0 %v3852
  %3890 = vmatprep.subr.mxu0 0.0
  %3891 = vmatpush1.msra.mxu0 %v3851
  %3892 = vmatprep.subr.mxu0 0.0
  %3893 = vmatpush1.msra.mxu0 %v3850
  %3894 = vmatprep.subr.mxu0 0.0
  %3895 = vmatpush1.msra.mxu0 %v3849
  %3896 = vmatprep.subr.mxu0 0.0
  %3897 = vmatpush2.msra.mxu0 0.0
  %3898 = vmatprep.subr.mxu0 0.0
  %3899 = vmatpush2.msra.mxu0 0.0
  %3900 = vmatprep.subr.mxu0 0.0
  %3901 = vmatpush2.msra.mxu0 0.0
  %3902 = vmatprep.subr.mxu0 0.0
  %3903 = vmatpush2.msra.mxu0 0.0
  %3904 = vmatprep.subr.mxu0 0.0
  %3905 = vmatpush2.msra.mxu0 0.0
  %3906 = vmatprep.subr.mxu0 0.0
  %3907 = vmatpush2.msra.mxu0 0.0
  %3908 = vmatprep.subr.mxu0 0.0
  %3909 = vmatpush2.msra.mxu0 0.0
  %3910 = vmatprep.subr.mxu0 0.0
  %3911 = vmatpush2.msra.mxu0 0.0
  %3912 = vmatprep.subr.mxu0 0.0
  %3913 = vmatpush2.msra.mxu0 0.0
  %3914 = vmatprep.subr.mxu0 0.0
  %3915 = vmatpush2.msra.mxu0 0.0
  %3916 = vmatprep.subr.mxu0 0.0
  %3917 = vmatpush2.msra.mxu0 0.0
  %3918 = vmatprep.subr.mxu0 0.0
  %3919 = vmatpush2.msra.mxu0 0.0
  %3920 = vmatprep.subr.mxu0 0.0
  %3921 = vmatpush2.msra.mxu0 0.0
  %3922 = vmatprep.subr.mxu0 0.0
  %3923 = vmatpush2.msra.mxu0 0.0
  %3924 = vmatprep.subr.mxu0 0.0
  %3925 = vmatpush2.msra.mxu0 0.0
  %3926 = vmatprep.subr.mxu0 0.0
  %3927 = vmatpush2.msra.mxu0 0.0
  %3928 = vmatprep.mubr.f32.mxu0 0.0
  %3929 = vmatmul.mubr.f32.gmra.mxu0 %v3859
  %v3930 = vpop.f32.mrf.mxu0
  %v3931 = vadd.f32 %v3857, %v3930
  %v3932 = vpop.f32.mrf.mxu0
  %3933 = vmatprep.mubr.f32.mxu0 0.0
  %3934 = vmatmul.mubr.f32.gmra.mxu0 %v3862
  %v3935 = vpop.f32.mrf.mxu0
  %v3936 = vadd.f32 %v3857, %v3935
  %v3937 = vpop.f32.mrf.mxu0
  %3938 = vdwg.mxu0
  %s3939 = scalar_lea.vmem %s9, 160
  %v3940 = vld [vmem:[%s3939] sm:$0xff]
  %v3941 = vld [vmem:[%s3939 + $0x8] sm:$0xff]
  %v3942 = vld [vmem:[%s3939 + $0x10] sm:$0xff]
  %v3943 = vld [vmem:[%s3939 + $0x18] sm:$0xff]
  %v3944 = vld [vmem:[%s13 + $0xe] sm:$0x1]
  %v3945 = vlaneseq
  %v3946 = vshrl.u32 %v3945, 7
  %v3947 = vsub.s32 0, %v3946
  %v3948 = vrot.slane %v3944, %v3947
  %3949 = vmatprep.subr.mxu0 0.0
  %3950 = vmatpush1.msra.mxu0 0.0
  %3951 = vmatprep.subr.mxu0 0.0
  %3952 = vmatpush1.msra.mxu0 0.0
  %3953 = vmatprep.subr.mxu0 0.0
  %3954 = vmatpush1.msra.mxu0 0.0
  %3955 = vmatprep.subr.mxu0 0.0
  %3956 = vmatpush1.msra.mxu0 0.0
  %3957 = vmatprep.subr.mxu0 0.0
  %3958 = vmatpush1.msra.mxu0 0.0
  %3959 = vmatprep.subr.mxu0 0.0
  %3960 = vmatpush1.msra.mxu0 0.0
  %3961 = vmatprep.subr.mxu0 0.0
  %3962 = vmatpush1.msra.mxu0 0.0
  %3963 = vmatprep.subr.mxu0 0.0
  %3964 = vmatpush1.msra.mxu0 0.0
  %3965 = vmatprep.subr.mxu0 0.0
  %3966 = vmatpush1.msra.mxu0 0.0
  %3967 = vmatprep.subr.mxu0 0.0
  %3968 = vmatpush1.msra.mxu0 0.0
  %3969 = vmatprep.subr.mxu0 0.0
  %3970 = vmatpush1.msra.mxu0 0.0
  %3971 = vmatprep.subr.mxu0 0.0
  %3972 = vmatpush1.msra.mxu0 0.0
  %3973 = vmatprep.subr.mxu0 0.0
  %3974 = vmatpush1.msra.mxu0 %v3943
  %3975 = vmatprep.subr.mxu0 0.0
  %3976 = vmatpush1.msra.mxu0 %v3942
  %3977 = vmatprep.subr.mxu0 0.0
  %3978 = vmatpush1.msra.mxu0 %v3941
  %3979 = vmatprep.subr.mxu0 0.0
  %3980 = vmatpush1.msra.mxu0 %v3940
  %3981 = vmatprep.subr.mxu0 0.0
  %3982 = vmatpush2.msra.mxu0 0.0
  %3983 = vmatprep.subr.mxu0 0.0
  %3984 = vmatpush2.msra.mxu0 0.0
  %3985 = vmatprep.subr.mxu0 0.0
  %3986 = vmatpush2.msra.mxu0 0.0
  %3987 = vmatprep.subr.mxu0 0.0
  %3988 = vmatpush2.msra.mxu0 0.0
  %3989 = vmatprep.subr.mxu0 0.0
  %3990 = vmatpush2.msra.mxu0 0.0
  %3991 = vmatprep.subr.mxu0 0.0
  %3992 = vmatpush2.msra.mxu0 0.0
  %3993 = vmatprep.subr.mxu0 0.0
  %3994 = vmatpush2.msra.mxu0 0.0
  %3995 = vmatprep.subr.mxu0 0.0
  %3996 = vmatpush2.msra.mxu0 0.0
  %3997 = vmatprep.subr.mxu0 0.0
  %3998 = vmatpush2.msra.mxu0 0.0
  %3999 = vmatprep.subr.mxu0 0.0
  %4000 = vmatpush2.msra.mxu0 0.0
  %4001 = vmatprep.subr.mxu0 0.0
  %4002 = vmatpush2.msra.mxu0 0.0
  %4003 = vmatprep.subr.mxu0 0.0
  %4004 = vmatpush2.msra.mxu0 0.0
  %4005 = vmatprep.subr.mxu0 0.0
  %4006 = vmatpush2.msra.mxu0 0.0
  %4007 = vmatprep.subr.mxu0 0.0
  %4008 = vmatpush2.msra.mxu0 0.0
  %4009 = vmatprep.subr.mxu0 0.0
  %4010 = vmatpush2.msra.mxu0 0.0
  %4011 = vmatprep.subr.mxu0 0.0
  %4012 = vmatpush2.msra.mxu0 0.0
  %4013 = vmatprep.mubr.f32.mxu0 0.0
  %4014 = vmatmul.mubr.f32.gmra.mxu0 %v3859
  %v4015 = vpop.f32.mrf.mxu0
  %v4016 = vadd.f32 %v3948, %v4015
  %v4017 = vpop.f32.mrf.mxu0
  %4018 = vmatprep.mubr.f32.mxu0 0.0
  %4019 = vmatmul.mubr.f32.gmra.mxu0 %v3862
  %v4020 = vpop.f32.mrf.mxu0
  %v4021 = vadd.f32 %v3948, %v4020
  %v4022 = vpop.f32.mrf.mxu0
  %4023 = vdwg.mxu0
  %s4024 = scalar_lea.vmem %s9, 192
  %v4025 = vld [vmem:[%s4024] sm:$0xff]
  %v4026 = vld [vmem:[%s4024 + $0x8] sm:$0xff]
  %v4027 = vld [vmem:[%s4024 + $0x10] sm:$0xff]
  %v4028 = vld [vmem:[%s4024 + $0x18] sm:$0xff]
  %v4029 = vld [vmem:[%s13 + $0xf] sm:$0x1]
  %v4030 = vlaneseq
  %v4031 = vshrl.u32 %v4030, 7
  %v4032 = vsub.s32 0, %v4031
  %v4033 = vrot.slane %v4029, %v4032
  %v4035 = vsel %vm537, 0.0, 0
  %4037 = vmatprep.subr.mxu0 0.0
  %4038 = vmatpush1.msra.mxu0 0.0
  %4039 = vmatprep.subr.mxu0 0.0
  %4040 = vmatpush1.msra.mxu0 0.0
  %4041 = vmatprep.subr.mxu0 0.0
  %4042 = vmatpush1.msra.mxu0 0.0
  %4043 = vmatprep.subr.mxu0 0.0
  %4044 = vmatpush1.msra.mxu0 0.0
  %4045 = vmatprep.subr.mxu0 0.0
  %4046 = vmatpush1.msra.mxu0 0.0
  %4047 = vmatprep.subr.mxu0 0.0
  %4048 = vmatpush1.msra.mxu0 0.0
  %4049 = vmatprep.subr.mxu0 0.0
  %4050 = vmatpush1.msra.mxu0 0.0
  %4051 = vmatprep.subr.mxu0 0.0
  %4052 = vmatpush1.msra.mxu0 0.0
  %4053 = vmatprep.subr.mxu0 0.0
  %4054 = vmatpush1.msra.mxu0 0.0
  %4055 = vmatprep.subr.mxu0 0.0
  %4056 = vmatpush1.msra.mxu0 0.0
  %4057 = vmatprep.subr.mxu0 0.0
  %4058 = vmatpush1.msra.mxu0 0.0
  %4059 = vmatprep.subr.mxu0 0.0
  %4060 = vmatpush1.msra.mxu0 0.0
  %4061 = vmatprep.subr.mxu0 0.0
  %4062 = vmatpush1.msra.mxu0 %v4028
  %4063 = vmatprep.subr.mxu0 0.0
  %4064 = vmatpush1.msra.mxu0 %v4027
  %4065 = vmatprep.subr.mxu0 0.0
  %4066 = vmatpush1.msra.mxu0 %v4026
  %4067 = vmatprep.subr.mxu0 0.0
  %4068 = vmatpush1.msra.mxu0 %v4025
  %4069 = vmatprep.subr.mxu0 0.0
  %4070 = vmatpush2.msra.mxu0 0.0
  %4071 = vmatprep.subr.mxu0 0.0
  %4072 = vmatpush2.msra.mxu0 0.0
  %4073 = vmatprep.subr.mxu0 0.0
  %4074 = vmatpush2.msra.mxu0 0.0
  %4075 = vmatprep.subr.mxu0 0.0
  %4076 = vmatpush2.msra.mxu0 0.0
  %4077 = vmatprep.subr.mxu0 0.0
  %4078 = vmatpush2.msra.mxu0 0.0
  %4079 = vmatprep.subr.mxu0 0.0
  %4080 = vmatpush2.msra.mxu0 0.0
  %4081 = vmatprep.subr.mxu0 0.0
  %4082 = vmatpush2.msra.mxu0 0.0
  %4083 = vmatprep.subr.mxu0 0.0
  %4084 = vmatpush2.msra.mxu0 0.0
  %4085 = vmatprep.subr.mxu0 0.0
  %4086 = vmatpush2.msra.mxu0 0.0
  %4087 = vmatprep.subr.mxu0 0.0
  %4088 = vmatpush2.msra.mxu0 0.0
  %4089 = vmatprep.subr.mxu0 0.0
  %4090 = vmatpush2.msra.mxu0 0.0
  %4091 = vmatprep.subr.mxu0 0.0
  %4092 = vmatpush2.msra.mxu0 0.0
  %4093 = vmatprep.subr.mxu0 0.0
  %4094 = vmatpush2.msra.mxu0 0.0
  %4095 = vmatprep.subr.mxu0 0.0
  %4096 = vmatpush2.msra.mxu0 0.0
  %4097 = vmatprep.subr.mxu0 0.0
  %4098 = vmatpush2.msra.mxu0 0.0
  %4099 = vmatprep.subr.mxu0 0.0
  %4100 = vmatpush2.msra.mxu0 0.0
  %4101 = vmatprep.mubr.f32.mxu0 0.0
  %4102 = vmatmul.mubr.f32.gmra.mxu0 %v4035
  %v4103 = vpop.f32.mrf.mxu0
  %v4104 = vadd.f32 %v4033, %v4103
  %v4105 = vpop.f32.mrf.mxu0
  %4106 = vmatprep.mubr.f32.mxu0 0.0
  %4107 = vmatmul.mubr.f32.gmra.mxu0 %v4035
  %v4108 = vpop.f32.mrf.mxu0
  %v4109 = vadd.f32 %v4033, %v4108
  %v4110 = vpop.f32.mrf.mxu0
  %4111 = vdwg.mxu0
  %v4113 = vsel %vm537, %v3931, 0
  %v4116 = vsel %vm537, %v3936, 0
  %v4119 = vsel %vm537, %v4016, 0
  %v4122 = vsel %vm537, %v4021, 0
  %4124 = vmatprep.subr.mxu0 0.0
  %4125 = vmatpush1.xpose.msra.mxu0 0.0
  %4126 = vmatprep.subr.mxu0 0.0
  %4127 = vmatpush1.xpose.msra.mxu0 0.0
  %4128 = vmatprep.subr.mxu0 0.0
  %4129 = vmatpush1.xpose.msra.mxu0 0.0
  %4130 = vmatprep.subr.mxu0 0.0
  %4131 = vmatpush1.xpose.msra.mxu0 0.0
  %4132 = vmatprep.subr.mxu0 0.0
  %4133 = vmatpush1.xpose.msra.mxu0 0.0
  %4134 = vmatprep.subr.mxu0 0.0
  %4135 = vmatpush1.xpose.msra.mxu0 0.0
  %4136 = vmatprep.subr.mxu0 0.0
  %4137 = vmatpush1.xpose.msra.mxu0 0.0
  %4138 = vmatprep.subr.mxu0 0.0
  %4139 = vmatpush1.xpose.msra.mxu0 0.0
  %4140 = vmatprep.subr.mxu0 0.0
  %4141 = vmatpush1.xpose.msra.mxu0 0.0
  %4142 = vmatprep.subr.mxu0 0.0
  %4143 = vmatpush1.xpose.msra.mxu0 0.0
  %4144 = vmatprep.subr.mxu0 0.0
  %4145 = vmatpush1.xpose.msra.mxu0 0.0
  %4146 = vmatprep.subr.mxu0 0.0
  %4147 = vmatpush1.xpose.msra.mxu0 0.0
  %4148 = vmatprep.subr.mxu0 0.0
  %4149 = vmatpush1.xpose.msra.mxu0 0.0
  %4150 = vmatprep.subr.mxu0 0.0
  %4151 = vmatpush1.xpose.msra.mxu0 0.0
  %4152 = vmatprep.subr.mxu0 0.0
  %4153 = vmatpush1.xpose.msra.mxu0 %v4122
  %4154 = vmatprep.subr.mxu0 0.0
  %4155 = vmatpush1.xpose.msra.mxu0 %v4119
  %4156 = vmatprep.subr.mxu0 0.0
  %4157 = vmatpush2.xpose.msra.mxu0 0.0
  %4158 = vmatprep.subr.mxu0 0.0
  %4159 = vmatpush2.xpose.msra.mxu0 0.0
  %4160 = vmatprep.subr.mxu0 0.0
  %4161 = vmatpush2.xpose.msra.mxu0 0.0
  %4162 = vmatprep.subr.mxu0 0.0
  %4163 = vmatpush2.xpose.msra.mxu0 0.0
  %4164 = vmatprep.subr.mxu0 0.0
  %4165 = vmatpush2.xpose.msra.mxu0 0.0
  %4166 = vmatprep.subr.mxu0 0.0
  %4167 = vmatpush2.xpose.msra.mxu0 0.0
  %4168 = vmatprep.subr.mxu0 0.0
  %4169 = vmatpush2.xpose.msra.mxu0 0.0
  %4170 = vmatprep.subr.mxu0 0.0
  %4171 = vmatpush2.xpose.msra.mxu0 0.0
  %4172 = vmatprep.subr.mxu0 0.0
  %4173 = vmatpush2.xpose.msra.mxu0 0.0
  %4174 = vmatprep.subr.mxu0 0.0
  %4175 = vmatpush2.xpose.msra.mxu0 0.0
  %4176 = vmatprep.subr.mxu0 0.0
  %4177 = vmatpush2.xpose.msra.mxu0 0.0
  %4178 = vmatprep.subr.mxu0 0.0
  %4179 = vmatpush2.xpose.msra.mxu0 0.0
  %4180 = vmatprep.subr.mxu0 0.0
  %4181 = vmatpush2.xpose.msra.mxu0 0.0
  %4182 = vmatprep.subr.mxu0 0.0
  %4183 = vmatpush2.xpose.msra.mxu0 0.0
  %4184 = vmatprep.subr.mxu0 0.0
  %4185 = vmatpush2.xpose.msra.mxu0 0.0
  %4186 = vmatprep.subr.mxu0 0.0
  %4187 = vmatpush2.xpose.msra.mxu0 0.0
  %4188 = vmatprep.mubr.f32.mxu0 0.0
  %4189 = vmatmul.mubr.f32.gmra.mxu0 %v4113
  %v4190 = vpop.f32.mrf.mxu0
  %v4191 = vadd.f32 0.0, %v4190
  %v4192 = vpop.f32.mrf.mxu0
  %4193 = vmatprep.mubr.f32.mxu0 0.0
  %4194 = vmatmul.mubr.f32.gmra.mxu0 %v4116
  %v4195 = vpop.f32.mrf.mxu0
  %v4196 = vadd.f32 0.0, %v4195
  %v4197 = vpop.f32.mrf.mxu0
  %4198 = vdwg.mxu0
  %v4199 = vmul.f32 %v4191, 0.17677669
  %v4200 = vmul.f32 %v4196, 0.17677669
  %v4201 = vadd.f32 %v4199, %v112
  %v4202 = vadd.f32 %v4200, %v113
  %v4203 = vsel %vm343, %v4201, -inf
  %4204 = vmax.xlane.f32.xlu0 %v4203
  %v4205 = vpop.xlane.xlu0 %4204
  %v4206 = vsel %vm343, %v4202, -inf
  %4207 = vmax.xlane.f32.xlu0 %v4206
  %v4208 = vpop.xlane.xlu0 %4207
  %v4209 = vsub.f32 %v4201, %v4205
  %v4210 = vsub.f32 %v4202, %v4208
  %v4211 = vmul.f32 %v4209, 1.442695
  %v4212 = vpow.pop %v4211
  %v4213 = vmul.f32 %v4210, 1.442695
  %v4214 = vpow.pop %v4213
  %v4215 = vsel %vm343, %v4212, 0.0
  %4216 = vadd.xlane.f32.xlu0 %v4215
  %v4217 = vpop.xlane.xlu0 %4216
  %v4218 = vsel %vm343, %v4214, 0.0
  %4219 = vadd.xlane.f32.xlu0 %v4218
  %v4220 = vpop.xlane.xlu0 %4219
  %v4221 = vrcp.pop %v4217
  %v4222 = vrcp.pop %v4220
  %v4223 = vmul.f32 %v4212, %v4221
  %v4224 = vmul.f32 %v4214, %v4222
  %v4226 = vsel %vm343, %v4223, 0
  %v4229 = vsel %vm343, %v4224, 0
  %4231 = vmatprep.subr.mxu0 0.0
  %4232 = vmatpush1.msra.mxu0 0.0
  %4233 = vmatprep.subr.mxu0 0.0
  %4234 = vmatpush1.msra.mxu0 0.0
  %4235 = vmatprep.subr.mxu0 0.0
  %4236 = vmatpush1.msra.mxu0 0.0
  %4237 = vmatprep.subr.mxu0 0.0
  %4238 = vmatpush1.msra.mxu0 0.0
  %4239 = vmatprep.subr.mxu0 0.0
  %4240 = vmatpush1.msra.mxu0 0.0
  %4241 = vmatprep.subr.mxu0 0.0
  %4242 = vmatpush1.msra.mxu0 0.0
  %4243 = vmatprep.subr.mxu0 0.0
  %4244 = vmatpush1.msra.mxu0 0.0
  %4245 = vmatprep.subr.mxu0 0.0
  %4246 = vmatpush1.msra.mxu0 0.0
  %4247 = vmatprep.subr.mxu0 0.0
  %4248 = vmatpush1.msra.mxu0 0.0
  %4249 = vmatprep.subr.mxu0 0.0
  %4250 = vmatpush1.msra.mxu0 0.0
  %4251 = vmatprep.subr.mxu0 0.0
  %4252 = vmatpush1.msra.mxu0 0.0
  %4253 = vmatprep.subr.mxu0 0.0
  %4254 = vmatpush1.msra.mxu0 0.0
  %4255 = vmatprep.subr.mxu0 0.0
  %4256 = vmatpush1.msra.mxu0 0.0
  %4257 = vmatprep.subr.mxu0 0.0
  %4258 = vmatpush1.msra.mxu0 0.0
  %4259 = vmatprep.subr.mxu0 0.0
  %4260 = vmatpush1.msra.mxu0 %v4109
  %4261 = vmatprep.subr.mxu0 0.0
  %4262 = vmatpush1.msra.mxu0 %v4104
  %4263 = vmatprep.subr.mxu0 0.0
  %4264 = vmatpush2.msra.mxu0 0.0
  %4265 = vmatprep.subr.mxu0 0.0
  %4266 = vmatpush2.msra.mxu0 0.0
  %4267 = vmatprep.subr.mxu0 0.0
  %4268 = vmatpush2.msra.mxu0 0.0
  %4269 = vmatprep.subr.mxu0 0.0
  %4270 = vmatpush2.msra.mxu0 0.0
  %4271 = vmatprep.subr.mxu0 0.0
  %4272 = vmatpush2.msra.mxu0 0.0
  %4273 = vmatprep.subr.mxu0 0.0
  %4274 = vmatpush2.msra.mxu0 0.0
  %4275 = vmatprep.subr.mxu0 0.0
  %4276 = vmatpush2.msra.mxu0 0.0
  %4277 = vmatprep.subr.mxu0 0.0
  %4278 = vmatpush2.msra.mxu0 0.0
  %4279 = vmatprep.subr.mxu0 0.0
  %4280 = vmatpush2.msra.mxu0 0.0
  %4281 = vmatprep.subr.mxu0 0.0
  %4282 = vmatpush2.msra.mxu0 0.0
  %4283 = vmatprep.subr.mxu0 0.0
  %4284 = vmatpush2.msra.mxu0 0.0
  %4285 = vmatprep.subr.mxu0 0.0
  %4286 = vmatpush2.msra.mxu0 0.0
  %4287 = vmatprep.subr.mxu0 0.0
  %4288 = vmatpush2.msra.mxu0 0.0
  %4289 = vmatprep.subr.mxu0 0.0
  %4290 = vmatpush2.msra.mxu0 0.0
  %4291 = vmatprep.subr.mxu0 0.0
  %4292 = vmatpush2.msra.mxu0 0.0
  %4293 = vmatprep.subr.mxu0 0.0
  %4294 = vmatpush2.msra.mxu0 0.0
  %4295 = vmatprep.mubr.f32.mxu0 0.0
  %4296 = vmatmul.mubr.f32.gmra.mxu0 %v4226
  %v4297 = vpop.f32.mrf.mxu0
  %v4298 = vadd.f32 0.0, %v4297
  %v4299 = vpop.f32.mrf.mxu0
  %4300 = vmatprep.mubr.f32.mxu0 0.0
  %4301 = vmatmul.mubr.f32.gmra.mxu0 %v4229
  %v4302 = vpop.f32.mrf.mxu0
  %v4303 = vadd.f32 0.0, %v4302
  %v4304 = vpop.f32.mrf.mxu0
  %4305 = vdwg.mxu0
  %s4306 = scalar_lea.vmem %s9, 224
  %v4307 = vld [vmem:[%s4306] sm:$0xff]
  %v4308 = vld [vmem:[%s4306 + $0x8] sm:$0xff]
  %v4309 = vld [vmem:[%s4306 + $0x10] sm:$0xff]
  %v4310 = vld [vmem:[%s4306 + $0x18] sm:$0xff]
  %v4311 = vld [vmem:[%s13 + $0x10] sm:$0x1]
  %v4312 = vlaneseq
  %v4313 = vshrl.u32 %v4312, 7
  %v4314 = vsub.s32 0, %v4313
  %v4315 = vrot.slane %v4311, %v4314
  %v4317 = vsel %vm537, %v4298, 0
  %v4320 = vsel %vm537, %v4303, 0
  %4322 = vmatprep.subr.mxu0 0.0
  %4323 = vmatpush1.msra.mxu0 0.0
  %4324 = vmatprep.subr.mxu0 0.0
  %4325 = vmatpush1.msra.mxu0 0.0
  %4326 = vmatprep.subr.mxu0 0.0
  %4327 = vmatpush1.msra.mxu0 0.0
  %4328 = vmatprep.subr.mxu0 0.0
  %4329 = vmatpush1.msra.mxu0 0.0
  %4330 = vmatprep.subr.mxu0 0.0
  %4331 = vmatpush1.msra.mxu0 0.0
  %4332 = vmatprep.subr.mxu0 0.0
  %4333 = vmatpush1.msra.mxu0 0.0
  %4334 = vmatprep.subr.mxu0 0.0
  %4335 = vmatpush1.msra.mxu0 0.0
  %4336 = vmatprep.subr.mxu0 0.0
  %4337 = vmatpush1.msra.mxu0 0.0
  %4338 = vmatprep.subr.mxu0 0.0
  %4339 = vmatpush1.msra.mxu0 0.0
  %4340 = vmatprep.subr.mxu0 0.0
  %4341 = vmatpush1.msra.mxu0 0.0
  %4342 = vmatprep.subr.mxu0 0.0
  %4343 = vmatpush1.msra.mxu0 0.0
  %4344 = vmatprep.subr.mxu0 0.0
  %4345 = vmatpush1.msra.mxu0 0.0
  %4346 = vmatprep.subr.mxu0 0.0
  %4347 = vmatpush1.msra.mxu0 %v4310
  %4348 = vmatprep.subr.mxu0 0.0
  %4349 = vmatpush1.msra.mxu0 %v4309
  %4350 = vmatprep.subr.mxu0 0.0
  %4351 = vmatpush1.msra.mxu0 %v4308
  %4352 = vmatprep.subr.mxu0 0.0
  %4353 = vmatpush1.msra.mxu0 %v4307
  %4354 = vmatprep.subr.mxu0 0.0
  %4355 = vmatpush2.msra.mxu0 0.0
  %4356 = vmatprep.subr.mxu0 0.0
  %4357 = vmatpush2.msra.mxu0 0.0
  %4358 = vmatprep.subr.mxu0 0.0
  %4359 = vmatpush2.msra.mxu0 0.0
  %4360 = vmatprep.subr.mxu0 0.0
  %4361 = vmatpush2.msra.mxu0 0.0
  %4362 = vmatprep.subr.mxu0 0.0
  %4363 = vmatpush2.msra.mxu0 0.0
  %4364 = vmatprep.subr.mxu0 0.0
  %4365 = vmatpush2.msra.mxu0 0.0
  %4366 = vmatprep.subr.mxu0 0.0
  %4367 = vmatpush2.msra.mxu0 0.0
  %4368 = vmatprep.subr.mxu0 0.0
  %4369 = vmatpush2.msra.mxu0 0.0
  %4370 = vmatprep.subr.mxu0 0.0
  %4371 = vmatpush2.msra.mxu0 0.0
  %4372 = vmatprep.subr.mxu0 0.0
  %4373 = vmatpush2.msra.mxu0 0.0
  %4374 = vmatprep.subr.mxu0 0.0
  %4375 = vmatpush2.msra.mxu0 0.0
  %4376 = vmatprep.subr.mxu0 0.0
  %4377 = vmatpush2.msra.mxu0 0.0
  %4378 = vmatprep.subr.mxu0 0.0
  %4379 = vmatpush2.msra.mxu0 0.0
  %4380 = vmatprep.subr.mxu0 0.0
  %4381 = vmatpush2.msra.mxu0 0.0
  %4382 = vmatprep.subr.mxu0 0.0
  %4383 = vmatpush2.msra.mxu0 0.0
  %4384 = vmatprep.subr.mxu0 0.0
  %4385 = vmatpush2.msra.mxu0 0.0
  %4386 = vmatprep.mubr.f32.mxu0 0.0
  %4387 = vmatmul.mubr.f32.gmra.mxu0 %v4317
  %v4388 = vpop.f32.mrf.mxu0
  %v4389 = vadd.f32 %v4315, %v4388
  %v4390 = vpop.f32.mrf.mxu0
  %4391 = vmatprep.mubr.f32.mxu0 0.0
  %4392 = vmatmul.mubr.f32.gmra.mxu0 %v4320
  %v4393 = vpop.f32.mrf.mxu0
  %v4394 = vadd.f32 %v4315, %v4393
  %v4395 = vpop.f32.mrf.mxu0
  %4396 = vdwg.mxu0
  %v4397 = vadd.f32 %v4389, 0.0
  %v4398 = vadd.f32 %v4394, 0.0
  %v4399 = vsel %vm537, %v4397, 0.0
  %4400 = vadd.xlane.f32.xlu0 %v4399
  %v4401 = vpop.xlane.xlu0 %4400
  %v4402 = vsel %vm537, %v4398, 0.0
  %4403 = vadd.xlane.f32.xlu0 %v4402
  %v4404 = vpop.xlane.xlu0 %4403
  %v4405 = vmul.f32 %v4401, %v2126
  %v4406 = vmul.f32 %v4404, %v2126
  %v4407 = vsub.f32 %v4397, %v4405
  %v4408 = vsub.f32 %v4398, %v4406
  %v4409 = vmul.f32 %v4407, %v4407
  %v4410 = vmul.f32 %v4408, %v4408
  %v4411 = vsel %vm537, %v4409, 0.0
  %4412 = vadd.xlane.f32.xlu0 %v4411
  %v4413 = vpop.xlane.xlu0 %4412
  %v4414 = vsel %vm537, %v4410, 0.0
  %4415 = vadd.xlane.f32.xlu0 %v4414
  %v4416 = vpop.xlane.xlu0 %4415
  %v4417 = vmul.f32 %v4413, %v2126
  %v4418 = vmul.f32 %v4416, %v2126
  %v4419 = vadd.f32 %v4417, 1e-05
  %v4420 = vadd.f32 %v4418, 1e-05
  %v4421 = vrsqrt.pop %v4419
  %v4422 = vrsqrt.pop %v4420
  %v4423 = vmul.f32 %v4407, %v4421
  %v4424 = vmul.f32 %v4408, %v4422
  %v4425 = vld [vmem:[%s13 + $0x11] sm:$0x1]
  %v4426 = vlaneseq
  %v4427 = vshrl.u32 %v4426, 7
  %v4428 = vsub.s32 0, %v4427
  %v4429 = vrot.slane %v4425, %v4428
  %v4430 = vmul.f32 %v4423, %v4429
  %v4431 = vmul.f32 %v4424, %v4429
  %v4432 = vld [vmem:[%s13 + $0x12] sm:$0x1]
  %v4433 = vlaneseq
  %v4434 = vshrl.u32 %v4433, 7
  %v4435 = vsub.s32 0, %v4434
  %v4436 = vrot.slane %v4432, %v4435
  %v4437 = vadd.f32 %v4430, %v4436
  %v4438 = vadd.f32 %v4431, %v4436
  %v4439 = vadd.f32 %v4437, %v3838
  %v4440 = vadd.f32 %v4438, %v3843
  %s4441 = scalar_lea.vmem %s9, 256
  %v4442 = vld [vmem:[%s4441] sm:$0xff]
  %v4443 = vld [vmem:[%s4441 + $0x8] sm:$0xff]
  %v4444 = vld [vmem:[%s4441 + $0x10] sm:$0xff]
  %v4445 = vld [vmem:[%s4441 + $0x18] sm:$0xff]
  %v4446 = vld [vmem:[%s13 + $0x13] sm:$0x1]
  %v4447 = vlaneseq
  %v4448 = vshrl.u32 %v4447, 7
  %v4449 = vsub.s32 0, %v4448
  %v4450 = vrot.slane %v4446, %v4449
  %v4452 = vsel %vm537, %v4439, 0
  %v4455 = vsel %vm537, %v4440, 0
  %4457 = vmatprep.subr.mxu0 0.0
  %4458 = vmatpush1.msra.mxu0 0.0
  %4459 = vmatprep.subr.mxu0 0.0
  %4460 = vmatpush1.msra.mxu0 0.0
  %4461 = vmatprep.subr.mxu0 0.0
  %4462 = vmatpush1.msra.mxu0 0.0
  %4463 = vmatprep.subr.mxu0 0.0
  %4464 = vmatpush1.msra.mxu0 0.0
  %4465 = vmatprep.subr.mxu0 0.0
  %4466 = vmatpush1.msra.mxu0 0.0
  %4467 = vmatprep.subr.mxu0 0.0
  %4468 = vmatpush1.msra.mxu0 0.0
  %4469 = vmatprep.subr.mxu0 0.0
  %4470 = vmatpush1.msra.mxu0 0.0
  %4471 = vmatprep.subr.mxu0 0.0
  %4472 = vmatpush1.msra.mxu0 0.0
  %4473 = vmatprep.subr.mxu0 0.0
  %4474 = vmatpush1.msra.mxu0 0.0
  %4475 = vmatprep.subr.mxu0 0.0
  %4476 = vmatpush1.msra.mxu0 0.0
  %4477 = vmatprep.subr.mxu0 0.0
  %4478 = vmatpush1.msra.mxu0 0.0
  %4479 = vmatprep.subr.mxu0 0.0
  %4480 = vmatpush1.msra.mxu0 0.0
  %4481 = vmatprep.subr.mxu0 0.0
  %4482 = vmatpush1.msra.mxu0 %v4445
  %4483 = vmatprep.subr.mxu0 0.0
  %4484 = vmatpush1.msra.mxu0 %v4444
  %4485 = vmatprep.subr.mxu0 0.0
  %4486 = vmatpush1.msra.mxu0 %v4443
  %4487 = vmatprep.subr.mxu0 0.0
  %4488 = vmatpush1.msra.mxu0 %v4442
  %4489 = vmatprep.subr.mxu0 0.0
  %4490 = vmatpush2.msra.mxu0 0.0
  %4491 = vmatprep.subr.mxu0 0.0
  %4492 = vmatpush2.msra.mxu0 0.0
  %4493 = vmatprep.subr.mxu0 0.0
  %4494 = vmatpush2.msra.mxu0 0.0
  %4495 = vmatprep.subr.mxu0 0.0
  %4496 = vmatpush2.msra.mxu0 0.0
  %4497 = vmatprep.subr.mxu0 0.0
  %4498 = vmatpush2.msra.mxu0 0.0
  %4499 = vmatprep.subr.mxu0 0.0
  %4500 = vmatpush2.msra.mxu0 0.0
  %4501 = vmatprep.subr.mxu0 0.0
  %4502 = vmatpush2.msra.mxu0 0.0
  %4503 = vmatprep.subr.mxu0 0.0
  %4504 = vmatpush2.msra.mxu0 0.0
  %4505 = vmatprep.subr.mxu0 0.0
  %4506 = vmatpush2.msra.mxu0 0.0
  %4507 = vmatprep.subr.mxu0 0.0
  %4508 = vmatpush2.msra.mxu0 0.0
  %4509 = vmatprep.subr.mxu0 0.0
  %4510 = vmatpush2.msra.mxu0 0.0
  %4511 = vmatprep.subr.mxu0 0.0
  %4512 = vmatpush2.msra.mxu0 0.0
  %4513 = vmatprep.subr.mxu0 0.0
  %4514 = vmatpush2.msra.mxu0 0.0
  %4515 = vmatprep.subr.mxu0 0.0
  %4516 = vmatpush2.msra.mxu0 0.0
  %4517 = vmatprep.subr.mxu0 0.0
  %4518 = vmatpush2.msra.mxu0 0.0
  %4519 = vmatprep.subr.mxu0 0.0
  %4520 = vmatpush2.msra.mxu0 0.0
  %4521 = vmatprep.mubr.f32.mxu0 0.0
  %4522 = vmatmul.mubr.f32.gmra.mxu0 %v4452
  %v4523 = vpop.f32.mrf.mxu0
  %v4524 = vadd.f32 %v4450, %v4523
  %v4525 = vpop.f32.mrf.mxu0
  %4526 = vmatprep.mubr.f32.mxu0 0.0
  %4527 = vmatmul.mubr.f32.gmra.mxu0 %v4455
  %v4528 = vpop.f32.mrf.mxu0
  %v4529 = vadd.f32 %v4450, %v4528
  %v4530 = vpop.f32.mrf.mxu0
  %4531 = vdwg.mxu0
  %v4533 = vsel %vm537, %v4524, 0
  %v4536 = vsel %vm537, %v4529, 0
  %v4539 = vsel %vm537, %v3161, 0
  %v4542 = vsel %vm537, %v3166, 0
  %v4545 = vsel %vm537, %v3171, 0
  %v4548 = vsel %vm537, %v3176, 0
  %v4551 = vsel %vm537, %v3181, 0
  %v4554 = vsel %vm537, %v3186, 0
  %v4557 = vsel %vm537, %v3191, 0
  %v4560 = vsel %vm537, %v3196, 0
  %v4563 = vsel %vm537, %v3201, 0
  %v4566 = vsel %vm537, %v3206, 0
  %v4569 = vsel %vm537, %v3211, 0
  %v4572 = vsel %vm537, %v3216, 0
  %v4575 = vsel %vm537, %v3221, 0
  %v4578 = vsel %vm537, %v3226, 0
  %v4581 = vsel %vm537, %v3231, 0
  %v4584 = vsel %vm537, %v3236, 0
  %4586 = vmatprep.subr.mxu0 0.0
  %4587 = vmatpush1.xpose.msra.mxu0 %v4584
  %4588 = vmatprep.subr.mxu0 0.0
  %4589 = vmatpush1.xpose.msra.mxu0 %v4581
  %4590 = vmatprep.subr.mxu0 0.0
  %4591 = vmatpush1.xpose.msra.mxu0 %v4578
  %4592 = vmatprep.subr.mxu0 0.0
  %4593 = vmatpush1.xpose.msra.mxu0 %v4575
  %4594 = vmatprep.subr.mxu0 0.0
  %4595 = vmatpush1.xpose.msra.mxu0 %v4572
  %4596 = vmatprep.subr.mxu0 0.0
  %4597 = vmatpush1.xpose.msra.mxu0 %v4569
  %4598 = vmatprep.subr.mxu0 0.0
  %4599 = vmatpush1.xpose.msra.mxu0 %v4566
  %4600 = vmatprep.subr.mxu0 0.0
  %4601 = vmatpush1.xpose.msra.mxu0 %v4563
  %4602 = vmatprep.subr.mxu0 0.0
  %4603 = vmatpush1.xpose.msra.mxu0 %v4560
  %4604 = vmatprep.subr.mxu0 0.0
  %4605 = vmatpush1.xpose.msra.mxu0 %v4557
  %4606 = vmatprep.subr.mxu0 0.0
  %4607 = vmatpush1.xpose.msra.mxu0 %v4554
  %4608 = vmatprep.subr.mxu0 0.0
  %4609 = vmatpush1.xpose.msra.mxu0 %v4551
  %4610 = vmatprep.subr.mxu0 0.0
  %4611 = vmatpush1.xpose.msra.mxu0 %v4548
  %4612 = vmatprep.subr.mxu0 0.0
  %4613 = vmatpush1.xpose.msra.mxu0 %v4545
  %4614 = vmatprep.subr.mxu0 0.0
  %4615 = vmatpush1.xpose.msra.mxu0 %v4542
  %4616 = vmatprep.subr.mxu0 0.0
  %4617 = vmatpush1.xpose.msra.mxu0 %v4539
  %4618 = vmatprep.subr.mxu0 0.0
  %4619 = vmatpush2.xpose.msra.mxu0 0.0
  %4620 = vmatprep.subr.mxu0 0.0
  %4621 = vmatpush2.xpose.msra.mxu0 0.0
  %4622 = vmatprep.subr.mxu0 0.0
  %4623 = vmatpush2.xpose.msra.mxu0 0.0
  %4624 = vmatprep.subr.mxu0 0.0
  %4625 = vmatpush2.xpose.msra.mxu0 0.0
  %4626 = vmatprep.subr.mxu0 0.0
  %4627 = vmatpush2.xpose.msra.mxu0 0.0
  %4628 = vmatprep.subr.mxu0 0.0
  %4629 = vmatpush2.xpose.msra.mxu0 0.0
  %4630 = vmatprep.subr.mxu0 0.0
  %4631 = vmatpush2.xpose.msra.mxu0 0.0
  %4632 = vmatprep.subr.mxu0 0.0
  %4633 = vmatpush2.xpose.msra.mxu0 0.0
  %4634 = vmatprep.subr.mxu0 0.0
  %4635 = vmatpush2.xpose.msra.mxu0 0.0
  %4636 = vmatprep.subr.mxu0 0.0
  %4637 = vmatpush2.xpose.msra.mxu0 0.0
  %4638 = vmatprep.subr.mxu0 0.0
  %4639 = vmatpush2.xpose.msra.mxu0 0.0
  %4640 = vmatprep.subr.mxu0 0.0
  %4641 = vmatpush2.xpose.msra.mxu0 0.0
  %4642 = vmatprep.subr.mxu0 0.0
  %4643 = vmatpush2.xpose.msra.mxu0 0.0
  %4644 = vmatprep.subr.mxu0 0.0
  %4645 = vmatpush2.xpose.msra.mxu0 0.0
  %4646 = vmatprep.subr.mxu0 0.0
  %4647 = vmatpush2.xpose.msra.mxu0 0.0
  %4648 = vmatprep.subr.mxu0 0.0
  %4649 = vmatpush2.xpose.msra.mxu0 0.0
  %4650 = vmatprep.mubr.f32.mxu0 0.0
  %4651 = vmatmul.mubr.f32.gmra.mxu0 %v4533
  %v4652 = vpop.f32.mrf.mxu0
  %v4653 = vadd.f32 0.0, %v4652
  %v4654 = vpop.f32.mrf.mxu0
  %4655 = vmatprep.mubr.f32.mxu0 0.0
  %4656 = vmatmul.mubr.f32.gmra.mxu0 %v4536
  %v4657 = vpop.f32.mrf.mxu0
  %v4658 = vadd.f32 0.0, %v4657
  %v4659 = vpop.f32.mrf.mxu0
  %4660 = vdwg.mxu0
  %v4661 = vmul.f32 %v4653, 0.17677669
  %v4662 = vmul.f32 %v4658, 0.17677669
  %v4663 = vadd.f32 %v4661, %v110
  %v4664 = vadd.f32 %v4662, %v111
  %4665 = vmax.xlane.f32.xlu0 %v4663
  %v4666 = vpop.xlane.xlu0 %4665
  %4667 = vmax.xlane.f32.xlu0 %v4664
  %v4668 = vpop.xlane.xlu0 %4667
  %v4669 = vsub.f32 %v4663, %v4666
  %v4670 = vsub.f32 %v4664, %v4668
  %v4671 = vmul.f32 %v4669, 1.442695
  %v4672 = vpow.pop %v4671
  %v4673 = vmul.f32 %v4670, 1.442695
  %v4674 = vpow.pop %v4673
  %4675 = vadd.xlane.f32.xlu0 %v4672
  %v4676 = vpop.xlane.xlu0 %4675
  %4677 = vadd.xlane.f32.xlu0 %v4674
  %v4678 = vpop.xlane.xlu0 %4677
  %v4679 = vrcp.pop %v4676
  %v4680 = vrcp.pop %v4678
  %v4681 = vmul.f32 %v4672, %v4679
  %v4682 = vmul.f32 %v4674, %v4680
  %4683 = vmatprep.subr.mxu0 0.0
  %4684 = vmatpush1.msra.mxu0 %v3594
  %4685 = vmatprep.subr.mxu0 0.0
  %4686 = vmatpush1.msra.mxu0 %v3589
  %4687 = vmatprep.subr.mxu0 0.0
  %4688 = vmatpush1.msra.mxu0 %v3584
  %4689 = vmatprep.subr.mxu0 0.0
  %4690 = vmatpush1.msra.mxu0 %v3579
  %4691 = vmatprep.subr.mxu0 0.0
  %4692 = vmatpush1.msra.mxu0 %v3574
  %4693 = vmatprep.subr.mxu0 0.0
  %4694 = vmatpush1.msra.mxu0 %v3569
  %4695 = vmatprep.subr.mxu0 0.0
  %4696 = vmatpush1.msra.mxu0 %v3564
  %4697 = vmatprep.subr.mxu0 0.0
  %4698 = vmatpush1.msra.mxu0 %v3559
  %4699 = vmatprep.subr.mxu0 0.0
  %4700 = vmatpush1.msra.mxu0 %v3554
  %4701 = vmatprep.subr.mxu0 0.0
  %4702 = vmatpush1.msra.mxu0 %v3549
  %4703 = vmatprep.subr.mxu0 0.0
  %4704 = vmatpush1.msra.mxu0 %v3544
  %4705 = vmatprep.subr.mxu0 0.0
  %4706 = vmatpush1.msra.mxu0 %v3539
  %4707 = vmatprep.subr.mxu0 0.0
  %4708 = vmatpush1.msra.mxu0 %v3534
  %4709 = vmatprep.subr.mxu0 0.0
  %4710 = vmatpush1.msra.mxu0 %v3529
  %4711 = vmatprep.subr.mxu0 0.0
  %4712 = vmatpush1.msra.mxu0 %v3524
  %4713 = vmatprep.subr.mxu0 0.0
  %4714 = vmatpush1.msra.mxu0 %v3519
  %4715 = vmatprep.subr.mxu0 0.0
  %4716 = vmatpush2.msra.mxu0 0.0
  %4717 = vmatprep.subr.mxu0 0.0
  %4718 = vmatpush2.msra.mxu0 0.0
  %4719 = vmatprep.subr.mxu0 0.0
  %4720 = vmatpush2.msra.mxu0 0.0
  %4721 = vmatprep.subr.mxu0 0.0
  %4722 = vmatpush2.msra.mxu0 0.0
  %4723 = vmatprep.subr.mxu0 0.0
  %4724 = vmatpush2.msra.mxu0 0.0
  %4725 = vmatprep.subr.mxu0 0.0
  %4726 = vmatpush2.msra.mxu0 0.0
  %4727 = vmatprep.subr.mxu0 0.0
  %4728 = vmatpush2.msra.mxu0 0.0
  %4729 = vmatprep.subr.mxu0 0.0
  %4730 = vmatpush2.msra.mxu0 0.0
  %4731 = vmatprep.subr.mxu0 0.0
  %4732 = vmatpush2.msra.mxu0 0.0
  %4733 = vmatprep.subr.mxu0 0.0
  %4734 = vmatpush2.msra.mxu0 0.0
  %4735 = vmatprep.subr.mxu0 0.0
  %4736 = vmatpush2.msra.mxu0 0.0
  %4737 = vmatprep.subr.mxu0 0.0
  %4738 = vmatpush2.msra.mxu0 0.0
  %4739 = vmatprep.subr.mxu0 0.0
  %4740 = vmatpush2.msra.mxu0 0.0
  %4741 = vmatprep.subr.mxu0 0.0
  %4742 = vmatpush2.msra.mxu0 0.0
  %4743 = vmatprep.subr.mxu0 0.0
  %4744 = vmatpush2.msra.mxu0 0.0
  %4745 = vmatprep.subr.mxu0 0.0
  %4746 = vmatpush2.msra.mxu0 0.0
  %4747 = vmatprep.mubr.f32.mxu0 0.0
  %4748 = vmatmul.mubr.f32.gmra.mxu0 %v4681
  %v4749 = vpop.f32.mrf.mxu0
  %v4750 = vadd.f32 0.0, %v4749
  %v4751 = vpop.f32.mrf.mxu0
  %4752 = vmatprep.mubr.f32.mxu0 0.0
  %4753 = vmatmul.mubr.f32.gmra.mxu0 %v4682
  %v4754 = vpop.f32.mrf.mxu0
  %v4755 = vadd.f32 0.0, %v4754
  %v4756 = vpop.f32.mrf.mxu0
  %4757 = vdwg.mxu0
  %s4758 = scalar_lea.vmem %s9, 352
  %v4759 = vld [vmem:[%s4758] sm:$0xff]
  %v4760 = vld [vmem:[%s4758 + $0x8] sm:$0xff]
  %v4761 = vld [vmem:[%s4758 + $0x10] sm:$0xff]
  %v4762 = vld [vmem:[%s4758 + $0x18] sm:$0xff]
  %v4763 = vld [vmem:[%s13 + $0x16] sm:$0x1]
  %v4764 = vlaneseq
  %v4765 = vshrl.u32 %v4764, 7
  %v4766 = vsub.s32 0, %v4765
  %v4767 = vrot.slane %v4763, %v4766
  %v4769 = vsel %vm537, %v4750, 0
  %v4772 = vsel %vm537, %v4755, 0
  %4774 = vmatprep.subr.mxu0 0.0
  %4775 = vmatpush1.msra.mxu0 0.0
  %4776 = vmatprep.subr.mxu0 0.0
  %4777 = vmatpush1.msra.mxu0 0.0
  %4778 = vmatprep.subr.mxu0 0.0
  %4779 = vmatpush1.msra.mxu0 0.0
  %4780 = vmatprep.subr.mxu0 0.0
  %4781 = vmatpush1.msra.mxu0 0.0
  %4782 = vmatprep.subr.mxu0 0.0
  %4783 = vmatpush1.msra.mxu0 0.0
  %4784 = vmatprep.subr.mxu0 0.0
  %4785 = vmatpush1.msra.mxu0 0.0
  %4786 = vmatprep.subr.mxu0 0.0
  %4787 = vmatpush1.msra.mxu0 0.0
  %4788 = vmatprep.subr.mxu0 0.0
  %4789 = vmatpush1.msra.mxu0 0.0
  %4790 = vmatprep.subr.mxu0 0.0
  %4791 = vmatpush1.msra.mxu0 0.0
  %4792 = vmatprep.subr.mxu0 0.0
  %4793 = vmatpush1.msra.mxu0 0.0
  %4794 = vmatprep.subr.mxu0 0.0
  %4795 = vmatpush1.msra.mxu0 0.0
  %4796 = vmatprep.subr.mxu0 0.0
  %4797 = vmatpush1.msra.mxu0 0.0
  %4798 = vmatprep.subr.mxu0 0.0
  %4799 = vmatpush1.msra.mxu0 %v4762
  %4800 = vmatprep.subr.mxu0 0.0
  %4801 = vmatpush1.msra.mxu0 %v4761
  %4802 = vmatprep.subr.mxu0 0.0
  %4803 = vmatpush1.msra.mxu0 %v4760
  %4804 = vmatprep.subr.mxu0 0.0
  %4805 = vmatpush1.msra.mxu0 %v4759
  %4806 = vmatprep.subr.mxu0 0.0
  %4807 = vmatpush2.msra.mxu0 0.0
  %4808 = vmatprep.subr.mxu0 0.0
  %4809 = vmatpush2.msra.mxu0 0.0
  %4810 = vmatprep.subr.mxu0 0.0
  %4811 = vmatpush2.msra.mxu0 0.0
  %4812 = vmatprep.subr.mxu0 0.0
  %4813 = vmatpush2.msra.mxu0 0.0
  %4814 = vmatprep.subr.mxu0 0.0
  %4815 = vmatpush2.msra.mxu0 0.0
  %4816 = vmatprep.subr.mxu0 0.0
  %4817 = vmatpush2.msra.mxu0 0.0
  %4818 = vmatprep.subr.mxu0 0.0
  %4819 = vmatpush2.msra.mxu0 0.0
  %4820 = vmatprep.subr.mxu0 0.0
  %4821 = vmatpush2.msra.mxu0 0.0
  %4822 = vmatprep.subr.mxu0 0.0
  %4823 = vmatpush2.msra.mxu0 0.0
  %4824 = vmatprep.subr.mxu0 0.0
  %4825 = vmatpush2.msra.mxu0 0.0
  %4826 = vmatprep.subr.mxu0 0.0
  %4827 = vmatpush2.msra.mxu0 0.0
  %4828 = vmatprep.subr.mxu0 0.0
  %4829 = vmatpush2.msra.mxu0 0.0
  %4830 = vmatprep.subr.mxu0 0.0
  %4831 = vmatpush2.msra.mxu0 0.0
  %4832 = vmatprep.subr.mxu0 0.0
  %4833 = vmatpush2.msra.mxu0 0.0
  %4834 = vmatprep.subr.mxu0 0.0
  %4835 = vmatpush2.msra.mxu0 0.0
  %4836 = vmatprep.subr.mxu0 0.0
  %4837 = vmatpush2.msra.mxu0 0.0
  %4838 = vmatprep.mubr.f32.mxu0 0.0
  %4839 = vmatmul.mubr.f32.gmra.mxu0 %v4769
  %v4840 = vpop.f32.mrf.mxu0
  %v4841 = vadd.f32 %v4767, %v4840
  %v4842 = vpop.f32.mrf.mxu0
  %4843 = vmatprep.mubr.f32.mxu0 0.0
  %4844 = vmatmul.mubr.f32.gmra.mxu0 %v4772
  %v4845 = vpop.f32.mrf.mxu0
  %v4846 = vadd.f32 %v4767, %v4845
  %v4847 = vpop.f32.mrf.mxu0
  %4848 = vdwg.mxu0
  %v4849 = vadd.f32 %v4437, %v4841
  %v4850 = vadd.f32 %v4438, %v4846
  %v4851 = vsel %vm537, %v4849, 0.0
  %4852 = vadd.xlane.f32.xlu0 %v4851
  %v4853 = vpop.xlane.xlu0 %4852
  %v4854 = vsel %vm537, %v4850, 0.0
  %4855 = vadd.xlane.f32.xlu0 %v4854
  %v4856 = vpop.xlane.xlu0 %4855
  %v4857 = vmul.f32 %v4853, %v2126
  %v4858 = vmul.f32 %v4856, %v2126
  %v4859 = vsub.f32 %v4849, %v4857
  %v4860 = vsub.f32 %v4850, %v4858
  %v4861 = vmul.f32 %v4859, %v4859
  %v4862 = vmul.f32 %v4860, %v4860
  %v4863 = vsel %vm537, %v4861, 0.0
  %4864 = vadd.xlane.f32.xlu0 %v4863
  %v4865 = vpop.xlane.xlu0 %4864
  %v4866 = vsel %vm537, %v4862, 0.0
  %4867 = vadd.xlane.f32.xlu0 %v4866
  %v4868 = vpop.xlane.xlu0 %4867
  %v4869 = vmul.f32 %v4865, %v2126
  %v4870 = vmul.f32 %v4868, %v2126
  %v4871 = vadd.f32 %v4869, 1e-05
  %v4872 = vadd.f32 %v4870, 1e-05
  %v4873 = vrsqrt.pop %v4871
  %v4874 = vrsqrt.pop %v4872
  %v4875 = vmul.f32 %v4859, %v4873
  %v4876 = vmul.f32 %v4860, %v4874
  %v4877 = vld [vmem:[%s13 + $0x17] sm:$0x1]
  %v4878 = vlaneseq
  %v4879 = vshrl.u32 %v4878, 7
  %v4880 = vsub.s32 0, %v4879
  %v4881 = vrot.slane %v4877, %v4880
  %v4882 = vmul.f32 %v4875, %v4881
  %v4883 = vmul.f32 %v4876, %v4881
  %v4884 = vld [vmem:[%s13 + $0x18] sm:$0x1]
  %v4885 = vlaneseq
  %v4886 = vshrl.u32 %v4885, 7
  %v4887 = vsub.s32 0, %v4886
  %v4888 = vrot.slane %v4884, %v4887
  %v4889 = vadd.f32 %v4882, %v4888
  %v4890 = vadd.f32 %v4883, %v4888
  %s4891 = scalar_lea.vmem %s10, 32
  %v4892 = vld [vmem:[%s4891] sm:$0xff]
  %v4893 = vld [vmem:[%s4891 + $0x8] sm:$0xff]
  %v4894 = vld [vmem:[%s4891 + $0x10] sm:$0xff]
  %v4895 = vld [vmem:[%s4891 + $0x18] sm:$0xff]
  %v4896 = vld [vmem:[%s14 + $0x1] sm:$0x1]
  %v4897 = vlaneseq
  %v4898 = vshrl.u32 %v4897, 7
  %v4899 = vsub.s32 0, %v4898
  %v4900 = vrot.slane %v4896, %v4899
  %v4902 = vsel %vm537, %v4889, 0
  %v4905 = vsel %vm537, %v4890, 0
  %4907 = vmatprep.subr.mxu0 0.0
  %4908 = vmatpush1.msra.mxu0 0.0
  %4909 = vmatprep.subr.mxu0 0.0
  %4910 = vmatpush1.msra.mxu0 0.0
  %4911 = vmatprep.subr.mxu0 0.0
  %4912 = vmatpush1.msra.mxu0 0.0
  %4913 = vmatprep.subr.mxu0 0.0
  %4914 = vmatpush1.msra.mxu0 0.0
  %4915 = vmatprep.subr.mxu0 0.0
  %4916 = vmatpush1.msra.mxu0 0.0
  %4917 = vmatprep.subr.mxu0 0.0
  %4918 = vmatpush1.msra.mxu0 0.0
  %4919 = vmatprep.subr.mxu0 0.0
  %4920 = vmatpush1.msra.mxu0 0.0
  %4921 = vmatprep.subr.mxu0 0.0
  %4922 = vmatpush1.msra.mxu0 0.0
  %4923 = vmatprep.subr.mxu0 0.0
  %4924 = vmatpush1.msra.mxu0 0.0
  %4925 = vmatprep.subr.mxu0 0.0
  %4926 = vmatpush1.msra.mxu0 0.0
  %4927 = vmatprep.subr.mxu0 0.0
  %4928 = vmatpush1.msra.mxu0 0.0
  %4929 = vmatprep.subr.mxu0 0.0
  %4930 = vmatpush1.msra.mxu0 0.0
  %4931 = vmatprep.subr.mxu0 0.0
  %4932 = vmatpush1.msra.mxu0 %v4895
  %4933 = vmatprep.subr.mxu0 0.0
  %4934 = vmatpush1.msra.mxu0 %v4894
  %4935 = vmatprep.subr.mxu0 0.0
  %4936 = vmatpush1.msra.mxu0 %v4893
  %4937 = vmatprep.subr.mxu0 0.0
  %4938 = vmatpush1.msra.mxu0 %v4892
  %4939 = vmatprep.subr.mxu0 0.0
  %4940 = vmatpush2.msra.mxu0 0.0
  %4941 = vmatprep.subr.mxu0 0.0
  %4942 = vmatpush2.msra.mxu0 0.0
  %4943 = vmatprep.subr.mxu0 0.0
  %4944 = vmatpush2.msra.mxu0 0.0
  %4945 = vmatprep.subr.mxu0 0.0
  %4946 = vmatpush2.msra.mxu0 0.0
  %4947 = vmatprep.subr.mxu0 0.0
  %4948 = vmatpush2.msra.mxu0 0.0
  %4949 = vmatprep.subr.mxu0 0.0
  %4950 = vmatpush2.msra.mxu0 0.0
  %4951 = vmatprep.subr.mxu0 0.0
  %4952 = vmatpush2.msra.mxu0 0.0
  %4953 = vmatprep.subr.mxu0 0.0
  %4954 = vmatpush2.msra.mxu0 0.0
  %4955 = vmatprep.subr.mxu0 0.0
  %4956 = vmatpush2.msra.mxu0 0.0
  %4957 = vmatprep.subr.mxu0 0.0
  %4958 = vmatpush2.msra.mxu0 0.0
  %4959 = vmatprep.subr.mxu0 0.0
  %4960 = vmatpush2.msra.mxu0 0.0
  %4961 = vmatprep.subr.mxu0 0.0
  %4962 = vmatpush2.msra.mxu0 0.0
  %4963 = vmatprep.subr.mxu0 0.0
  %4964 = vmatpush2.msra.mxu0 0.0
  %4965 = vmatprep.subr.mxu0 0.0
  %4966 = vmatpush2.msra.mxu0 0.0
  %4967 = vmatprep.subr.mxu0 0.0
  %4968 = vmatpush2.msra.mxu0 0.0
  %4969 = vmatprep.subr.mxu0 0.0
  %4970 = vmatpush2.msra.mxu0 0.0
  %4971 = vmatprep.mubr.f32.mxu0 0.0
  %4972 = vmatmul.mubr.f32.gmra.mxu0 %v4902
  %v4973 = vpop.f32.mrf.mxu0
  %v4974 = vadd.f32 %v4900, %v4973
  %v4975 = vpop.f32.mrf.mxu0
  %4976 = vmatprep.mubr.f32.mxu0 0.0
  %4977 = vmatmul.mubr.f32.gmra.mxu0 %v4905
  %v4978 = vpop.f32.mrf.mxu0
  %v4979 = vadd.f32 %v4900, %v4978
  %v4980 = vpop.f32.mrf.mxu0
  %4981 = vdwg.mxu0
  %v4982 = vmax.f32 %v4974, 0.0
  %v4983 = vmax.f32 %v4979, 0.0
  %s4984 = scalar_lea.vmem %s11, 64
  %v4985 = vld [vmem:[%s4984] sm:$0xff]
  %v4986 = vld [vmem:[%s4984 + $0x8] sm:$0xff]
  %v4987 = vld [vmem:[%s4984 + $0x10] sm:$0xff]
  %v4988 = vld [vmem:[%s4984 + $0x18] sm:$0xff]
  %v4989 = vld [vmem:[%s4984 + $0x20] sm:$0xff]
  %v4990 = vld [vmem:[%s4984 + $0x28] sm:$0xff]
  %v4991 = vld [vmem:[%s4984 + $0x30] sm:$0xff]
  %v4992 = vld [vmem:[%s4984 + $0x38] sm:$0xff]
  %v4993 = vld [vmem:[%s13 + $0x19] sm:$0x1]
  %v4994 = vlaneseq
  %v4995 = vshrl.u32 %v4994, 7
  %v4996 = vsub.s32 0, %v4995
  %v4997 = vrot.slane %v4993, %v4996
  %v4999 = vsel %vm2560, %v4982, 0
  %v5002 = vsel %vm2560, %v4983, 0
  %5004 = vmatprep.subr.mxu0 0.0
  %5005 = vmatpush1.msra.mxu0 0.0
  %5006 = vmatprep.subr.mxu0 0.0
  %5007 = vmatpush1.msra.mxu0 0.0
  %5008 = vmatprep.subr.mxu0 0.0
  %5009 = vmatpush1.msra.mxu0 0.0
  %5010 = vmatprep.subr.mxu0 0.0
  %5011 = vmatpush1.msra.mxu0 0.0
  %5012 = vmatprep.subr.mxu0 0.0
  %5013 = vmatpush1.msra.mxu0 0.0
  %5014 = vmatprep.subr.mxu0 0.0
  %5015 = vmatpush1.msra.mxu0 0.0
  %5016 = vmatprep.subr.mxu0 0.0
  %5017 = vmatpush1.msra.mxu0 0.0
  %5018 = vmatprep.subr.mxu0 0.0
  %5019 = vmatpush1.msra.mxu0 0.0
  %5020 = vmatprep.subr.mxu0 0.0
  %5021 = vmatpush1.msra.mxu0 %v4992
  %5022 = vmatprep.subr.mxu0 0.0
  %5023 = vmatpush1.msra.mxu0 %v4991
  %5024 = vmatprep.subr.mxu0 0.0
  %5025 = vmatpush1.msra.mxu0 %v4990
  %5026 = vmatprep.subr.mxu0 0.0
  %5027 = vmatpush1.msra.mxu0 %v4989
  %5028 = vmatprep.subr.mxu0 0.0
  %5029 = vmatpush1.msra.mxu0 %v4988
  %5030 = vmatprep.subr.mxu0 0.0
  %5031 = vmatpush1.msra.mxu0 %v4987
  %5032 = vmatprep.subr.mxu0 0.0
  %5033 = vmatpush1.msra.mxu0 %v4986
  %5034 = vmatprep.subr.mxu0 0.0
  %5035 = vmatpush1.msra.mxu0 %v4985
  %5036 = vmatprep.subr.mxu0 0.0
  %5037 = vmatpush2.msra.mxu0 0.0
  %5038 = vmatprep.subr.mxu0 0.0
  %5039 = vmatpush2.msra.mxu0 0.0
  %5040 = vmatprep.subr.mxu0 0.0
  %5041 = vmatpush2.msra.mxu0 0.0
  %5042 = vmatprep.subr.mxu0 0.0
  %5043 = vmatpush2.msra.mxu0 0.0
  %5044 = vmatprep.subr.mxu0 0.0
  %5045 = vmatpush2.msra.mxu0 0.0
  %5046 = vmatprep.subr.mxu0 0.0
  %5047 = vmatpush2.msra.mxu0 0.0
  %5048 = vmatprep.subr.mxu0 0.0
  %5049 = vmatpush2.msra.mxu0 0.0
  %5050 = vmatprep.subr.mxu0 0.0
  %5051 = vmatpush2.msra.mxu0 0.0
  %5052 = vmatprep.subr.mxu0 0.0
  %5053 = vmatpush2.msra.mxu0 0.0
  %5054 = vmatprep.subr.mxu0 0.0
  %5055 = vmatpush2.msra.mxu0 0.0
  %5056 = vmatprep.subr.mxu0 0.0
  %5057 = vmatpush2.msra.mxu0 0.0
  %5058 = vmatprep.subr.mxu0 0.0
  %5059 = vmatpush2.msra.mxu0 0.0
  %5060 = vmatprep.subr.mxu0 0.0
  %5061 = vmatpush2.msra.mxu0 0.0
  %5062 = vmatprep.subr.mxu0 0.0
  %5063 = vmatpush2.msra.mxu0 0.0
  %5064 = vmatprep.subr.mxu0 0.0
  %5065 = vmatpush2.msra.mxu0 0.0
  %5066 = vmatprep.subr.mxu0 0.0
  %5067 = vmatpush2.msra.mxu0 0.0
  %5068 = vmatprep.mubr.f32.mxu0 0.0
  %5069 = vmatmul.mubr.f32.gmra.mxu0 %v4999
  %v5070 = vpop.f32.mrf.mxu0
  %v5071 = vadd.f32 %v4997, %v5070
  %v5072 = vpop.f32.mrf.mxu0
  %5073 = vmatprep.mubr.f32.mxu0 0.0
  %5074 = vmatmul.mubr.f32.gmra.mxu0 %v5002
  %v5075 = vpop.f32.mrf.mxu0
  %v5076 = vadd.f32 %v4997, %v5075
  %v5077 = vpop.f32.mrf.mxu0
  %5078 = vdwg.mxu0
  %v5079 = vadd.f32 %v4889, %v5071
  %v5080 = vadd.f32 %v4890, %v5076
  %v5081 = vsel %vm537, %v5079, 0.0
  %5082 = vadd.xlane.f32.xlu0 %v5081
  %v5083 = vpop.xlane.xlu0 %5082
  %v5084 = vsel %vm537, %v5080, 0.0
  %5085 = vadd.xlane.f32.xlu0 %v5084
  %v5086 = vpop.xlane.xlu0 %5085
  %v5087 = vmul.f32 %v5083, %v2126
  %v5088 = vmul.f32 %v5086, %v2126
  %v5089 = vsub.f32 %v5079, %v5087
  %v5090 = vsub.f32 %v5080, %v5088
  %v5091 = vmul.f32 %v5089, %v5089
  %v5092 = vmul.f32 %v5090, %v5090
  %v5093 = vsel %vm537, %v5091, 0.0
  %5094 = vadd.xlane.f32.xlu0 %v5093
  %v5095 = vpop.xlane.xlu0 %5094
  %v5096 = vsel %vm537, %v5092, 0.0
  %5097 = vadd.xlane.f32.xlu0 %v5096
  %v5098 = vpop.xlane.xlu0 %5097
  %v5099 = vmul.f32 %v5095, %v2126
  %v5100 = vmul.f32 %v5098, %v2126
  %v5101 = vadd.f32 %v5099, 1e-05
  %v5102 = vadd.f32 %v5100, 1e-05
  %v5103 = vrsqrt.pop %v5101
  %v5104 = vrsqrt.pop %v5102
  %v5105 = vmul.f32 %v5089, %v5103
  %v5106 = vmul.f32 %v5090, %v5104
  %v5107 = vld [vmem:[%s13 + $0x1a] sm:$0x1]
  %v5108 = vlaneseq
  %v5109 = vshrl.u32 %v5108, 7
  %v5110 = vsub.s32 0, %v5109
  %v5111 = vrot.slane %v5107, %v5110
  %v5112 = vmul.f32 %v5105, %v5111
  %v5113 = vmul.f32 %v5106, %v5111
  %v5114 = vld [vmem:[%s13 + $0x1b] sm:$0x1]
  %v5115 = vlaneseq
  %v5116 = vshrl.u32 %v5115, 7
  %v5117 = vsub.s32 0, %v5116
  %v5118 = vrot.slane %v5114, %v5117
  %v5119 = vadd.f32 %v5112, %v5118
  %v5120 = vadd.f32 %v5113, %v5118
  %s5121 = scalar_lea.vmem %s9, 640
  %v5122 = vld [vmem:[%s5121] sm:$0xff]
  %v5123 = vld [vmem:[%s5121 + $0x8] sm:$0xff]
  %v5124 = vld [vmem:[%s5121 + $0x10] sm:$0xff]
  %v5125 = vld [vmem:[%s5121 + $0x18] sm:$0xff]
  %v5126 = vld [vmem:[%s13 + $0x2c] sm:$0x1]
  %v5127 = vlaneseq
  %v5128 = vshrl.u32 %v5127, 7
  %v5129 = vsub.s32 0, %v5128
  %v5130 = vrot.slane %v5126, %v5129
  %v5132 = vsel %vm537, %v5119, 0
  %v5135 = vsel %vm537, %v5120, 0
  %5137 = vmatprep.subr.mxu0 0.0
  %5138 = vmatpush1.msra.mxu0 0.0
  %5139 = vmatprep.subr.mxu0 0.0
  %5140 = vmatpush1.msra.mxu0 0.0
  %5141 = vmatprep.subr.mxu0 0.0
  %5142 = vmatpush1.msra.mxu0 0.0
  %5143 = vmatprep.subr.mxu0 0.0
  %5144 = vmatpush1.msra.mxu0 0.0
  %5145 = vmatprep.subr.mxu0 0.0
  %5146 = vmatpush1.msra.mxu0 0.0
  %5147 = vmatprep.subr.mxu0 0.0
  %5148 = vmatpush1.msra.mxu0 0.0
  %5149 = vmatprep.subr.mxu0 0.0
  %5150 = vmatpush1.msra.mxu0 0.0
  %5151 = vmatprep.subr.mxu0 0.0
  %5152 = vmatpush1.msra.mxu0 0.0
  %5153 = vmatprep.subr.mxu0 0.0
  %5154 = vmatpush1.msra.mxu0 0.0
  %5155 = vmatprep.subr.mxu0 0.0
  %5156 = vmatpush1.msra.mxu0 0.0
  %5157 = vmatprep.subr.mxu0 0.0
  %5158 = vmatpush1.msra.mxu0 0.0
  %5159 = vmatprep.subr.mxu0 0.0
  %5160 = vmatpush1.msra.mxu0 0.0
  %5161 = vmatprep.subr.mxu0 0.0
  %5162 = vmatpush1.msra.mxu0 %v5125
  %5163 = vmatprep.subr.mxu0 0.0
  %5164 = vmatpush1.msra.mxu0 %v5124
  %5165 = vmatprep.subr.mxu0 0.0
  %5166 = vmatpush1.msra.mxu0 %v5123
  %5167 = vmatprep.subr.mxu0 0.0
  %5168 = vmatpush1.msra.mxu0 %v5122
  %5169 = vmatprep.subr.mxu0 0.0
  %5170 = vmatpush2.msra.mxu0 0.0
  %5171 = vmatprep.subr.mxu0 0.0
  %5172 = vmatpush2.msra.mxu0 0.0
  %5173 = vmatprep.subr.mxu0 0.0
  %5174 = vmatpush2.msra.mxu0 0.0
  %5175 = vmatprep.subr.mxu0 0.0
  %5176 = vmatpush2.msra.mxu0 0.0
  %5177 = vmatprep.subr.mxu0 0.0
  %5178 = vmatpush2.msra.mxu0 0.0
  %5179 = vmatprep.subr.mxu0 0.0
  %5180 = vmatpush2.msra.mxu0 0.0
  %5181 = vmatprep.subr.mxu0 0.0
  %5182 = vmatpush2.msra.mxu0 0.0
  %5183 = vmatprep.subr.mxu0 0.0
  %5184 = vmatpush2.msra.mxu0 0.0
  %5185 = vmatprep.subr.mxu0 0.0
  %5186 = vmatpush2.msra.mxu0 0.0
  %5187 = vmatprep.subr.mxu0 0.0
  %5188 = vmatpush2.msra.mxu0 0.0
  %5189 = vmatprep.subr.mxu0 0.0
  %5190 = vmatpush2.msra.mxu0 0.0
  %5191 = vmatprep.subr.mxu0 0.0
  %5192 = vmatpush2.msra.mxu0 0.0
  %5193 = vmatprep.subr.mxu0 0.0
  %5194 = vmatpush2.msra.mxu0 0.0
  %5195 = vmatprep.subr.mxu0 0.0
  %5196 = vmatpush2.msra.mxu0 0.0
  %5197 = vmatprep.subr.mxu0 0.0
  %5198 = vmatpush2.msra.mxu0 0.0
  %5199 = vmatprep.subr.mxu0 0.0
  %5200 = vmatpush2.msra.mxu0 0.0
  %5201 = vmatprep.mubr.f32.mxu0 0.0
  %5202 = vmatmul.mubr.f32.gmra.mxu0 %v5132
  %v5203 = vpop.f32.mrf.mxu0
  %v5204 = vadd.f32 %v5130, %v5203
  %v5205 = vpop.f32.mrf.mxu0
  %5206 = vmatprep.mubr.f32.mxu0 0.0
  %5207 = vmatmul.mubr.f32.gmra.mxu0 %v5135
  %v5208 = vpop.f32.mrf.mxu0
  %v5209 = vadd.f32 %v5130, %v5208
  %v5210 = vpop.f32.mrf.mxu0
  %5211 = vdwg.mxu0
  %v5212 = vmax.f32 %v5204, 0.0
  %v5213 = vmax.f32 %v5209, 0.0
  %s5214 = scalar_lea.vmem %s9, 672
  %v5215 = vld [vmem:[%s5214] sm:$0xff]
  %v5216 = vld [vmem:[%s5214 + $0x8] sm:$0xff]
  %v5217 = vld [vmem:[%s5214 + $0x10] sm:$0xff]
  %v5218 = vld [vmem:[%s5214 + $0x18] sm:$0xff]
  %v5219 = vld [vmem:[%s13 + $0x2d] sm:$0x1]
  %v5220 = vlaneseq
  %v5221 = vshrl.u32 %v5220, 7
  %v5222 = vsub.s32 0, %v5221
  %v5223 = vrot.slane %v5219, %v5222
  %v5225 = vsel %vm537, %v5212, 0
  %v5228 = vsel %vm537, %v5213, 0
  %5230 = vmatprep.subr.mxu0 0.0
  %5231 = vmatpush1.msra.mxu0 0.0
  %5232 = vmatprep.subr.mxu0 0.0
  %5233 = vmatpush1.msra.mxu0 0.0
  %5234 = vmatprep.subr.mxu0 0.0
  %5235 = vmatpush1.msra.mxu0 0.0
  %5236 = vmatprep.subr.mxu0 0.0
  %5237 = vmatpush1.msra.mxu0 0.0
  %5238 = vmatprep.subr.mxu0 0.0
  %5239 = vmatpush1.msra.mxu0 0.0
  %5240 = vmatprep.subr.mxu0 0.0
  %5241 = vmatpush1.msra.mxu0 0.0
  %5242 = vmatprep.subr.mxu0 0.0
  %5243 = vmatpush1.msra.mxu0 0.0
  %5244 = vmatprep.subr.mxu0 0.0
  %5245 = vmatpush1.msra.mxu0 0.0
  %5246 = vmatprep.subr.mxu0 0.0
  %5247 = vmatpush1.msra.mxu0 0.0
  %5248 = vmatprep.subr.mxu0 0.0
  %5249 = vmatpush1.msra.mxu0 0.0
  %5250 = vmatprep.subr.mxu0 0.0
  %5251 = vmatpush1.msra.mxu0 0.0
  %5252 = vmatprep.subr.mxu0 0.0
  %5253 = vmatpush1.msra.mxu0 0.0
  %5254 = vmatprep.subr.mxu0 0.0
  %5255 = vmatpush1.msra.mxu0 %v5218
  %5256 = vmatprep.subr.mxu0 0.0
  %5257 = vmatpush1.msra.mxu0 %v5217
  %5258 = vmatprep.subr.mxu0 0.0
  %5259 = vmatpush1.msra.mxu0 %v5216
  %5260 = vmatprep.subr.mxu0 0.0
  %5261 = vmatpush1.msra.mxu0 %v5215
  %5262 = vmatprep.subr.mxu0 0.0
  %5263 = vmatpush2.msra.mxu0 0.0
  %5264 = vmatprep.subr.mxu0 0.0
  %5265 = vmatpush2.msra.mxu0 0.0
  %5266 = vmatprep.subr.mxu0 0.0
  %5267 = vmatpush2.msra.mxu0 0.0
  %5268 = vmatprep.subr.mxu0 0.0
  %5269 = vmatpush2.msra.mxu0 0.0
  %5270 = vmatprep.subr.mxu0 0.0
  %5271 = vmatpush2.msra.mxu0 0.0
  %5272 = vmatprep.subr.mxu0 0.0
  %5273 = vmatpush2.msra.mxu0 0.0
  %5274 = vmatprep.subr.mxu0 0.0
  %5275 = vmatpush2.msra.mxu0 0.0
  %5276 = vmatprep.subr.mxu0 0.0
  %5277 = vmatpush2.msra.mxu0 0.0
  %5278 = vmatprep.subr.mxu0 0.0
  %5279 = vmatpush2.msra.mxu0 0.0
  %5280 = vmatprep.subr.mxu0 0.0
  %5281 = vmatpush2.msra.mxu0 0.0
  %5282 = vmatprep.subr.mxu0 0.0
  %5283 = vmatpush2.msra.mxu0 0.0
  %5284 = vmatprep.subr.mxu0 0.0
  %5285 = vmatpush2.msra.mxu0 0.0
  %5286 = vmatprep.subr.mxu0 0.0
  %5287 = vmatpush2.msra.mxu0 0.0
  %5288 = vmatprep.subr.mxu0 0.0
  %5289 = vmatpush2.msra.mxu0 0.0
  %5290 = vmatprep.subr.mxu0 0.0
  %5291 = vmatpush2.msra.mxu0 0.0
  %5292 = vmatprep.subr.mxu0 0.0
  %5293 = vmatpush2.msra.mxu0 0.0
  %5294 = vmatprep.mubr.f32.mxu0 0.0
  %5295 = vmatmul.mubr.f32.gmra.mxu0 %v5225
  %v5296 = vpop.f32.mrf.mxu0
  %v5297 = vadd.f32 %v5223, %v5296
  %v5298 = vpop.f32.mrf.mxu0
  %5299 = vmatprep.mubr.f32.mxu0 0.0
  %5300 = vmatmul.mubr.f32.gmra.mxu0 %v5228
  %v5301 = vpop.f32.mrf.mxu0
  %v5302 = vadd.f32 %v5223, %v5301
  %v5303 = vpop.f32.mrf.mxu0
  %5304 = vdwg.mxu0
  %v5305 = vmax.f32 %v5297, 0.0
  %v5306 = vmax.f32 %v5302, 0.0
  %v5307 = vld [vmem:[%s17] sm:$0xff]
  %v5308 = vld [vmem:[%s17 + $0x8] sm:$0xff]
  %v5309 = vld [vmem:[%s17 + $0x10] sm:$0xff]
  %v5310 = vld [vmem:[%s17 + $0x18] sm:$0xff]
  %v5311 = vld [vmem:[%s18] sm:$0x1]
  %v5313 = vlaneseq
  %v5314 = vshrl.u32 %v5313, 7
  %v5315 = vsub.s32 0, %v5314
  %v5316 = vrot.slane %v5311, %v5315
  %v5319 = vsel %vm537, %v5305, 0
  %v5322 = vsel %vm537, %v5306, 0
  %5324 = vmatprep.subr.mxu0 0.0
  %5325 = vmatpush1.msra.mxu0 0.0
  %5326 = vmatprep.subr.mxu0 0.0
  %5327 = vmatpush1.msra.mxu0 0.0
  %5328 = vmatprep.subr.mxu0 0.0
  %5329 = vmatpush1.msra.mxu0 0.0
  %5330 = vmatprep.subr.mxu0 0.0
  %5331 = vmatpush1.msra.mxu0 0.0
  %5332 = vmatprep.subr.mxu0 0.0
  %5333 = vmatpush1.msra.mxu0 0.0
  %5334 = vmatprep.subr.mxu0 0.0
  %5335 = vmatpush1.msra.mxu0 0.0
  %5336 = vmatprep.subr.mxu0 0.0
  %5337 = vmatpush1.msra.mxu0 0.0
  %5338 = vmatprep.subr.mxu0 0.0
  %5339 = vmatpush1.msra.mxu0 0.0
  %5340 = vmatprep.subr.mxu0 0.0
  %5341 = vmatpush1.msra.mxu0 0.0
  %5342 = vmatprep.subr.mxu0 0.0
  %5343 = vmatpush1.msra.mxu0 0.0
  %5344 = vmatprep.subr.mxu0 0.0
  %5345 = vmatpush1.msra.mxu0 0.0
  %5346 = vmatprep.subr.mxu0 0.0
  %5347 = vmatpush1.msra.mxu0 0.0
  %5348 = vmatprep.subr.mxu0 0.0
  %5349 = vmatpush1.msra.mxu0 %v5310
  %5350 = vmatprep.subr.mxu0 0.0
  %5351 = vmatpush1.msra.mxu0 %v5309
  %5352 = vmatprep.subr.mxu0 0.0
  %5353 = vmatpush1.msra.mxu0 %v5308
  %5354 = vmatprep.subr.mxu0 0.0
  %5355 = vmatpush1.msra.mxu0 %v5307
  %5356 = vmatprep.subr.mxu0 0.0
  %5357 = vmatpush2.msra.mxu0 0.0
  %5358 = vmatprep.subr.mxu0 0.0
  %5359 = vmatpush2.msra.mxu0 0.0
  %5360 = vmatprep.subr.mxu0 0.0
  %5361 = vmatpush2.msra.mxu0 0.0
  %5362 = vmatprep.subr.mxu0 0.0
  %5363 = vmatpush2.msra.mxu0 0.0
  %5364 = vmatprep.subr.mxu0 0.0
  %5365 = vmatpush2.msra.mxu0 0.0
  %5366 = vmatprep.subr.mxu0 0.0
  %5367 = vmatpush2.msra.mxu0 0.0
  %5368 = vmatprep.subr.mxu0 0.0
  %5369 = vmatpush2.msra.mxu0 0.0
  %5370 = vmatprep.subr.mxu0 0.0
  %5371 = vmatpush2.msra.mxu0 0.0
  %5372 = vmatprep.subr.mxu0 0.0
  %5373 = vmatpush2.msra.mxu0 0.0
  %5374 = vmatprep.subr.mxu0 0.0
  %5375 = vmatpush2.msra.mxu0 0.0
  %5376 = vmatprep.subr.mxu0 0.0
  %5377 = vmatpush2.msra.mxu0 0.0
  %5378 = vmatprep.subr.mxu0 0.0
  %5379 = vmatpush2.msra.mxu0 0.0
  %5380 = vmatprep.subr.mxu0 0.0
  %5381 = vmatpush2.msra.mxu0 0.0
  %5382 = vmatprep.subr.mxu0 0.0
  %5383 = vmatpush2.msra.mxu0 0.0
  %5384 = vmatprep.subr.mxu0 0.0
  %5385 = vmatpush2.msra.mxu0 0.0
  %5386 = vmatprep.subr.mxu0 0.0
  %5387 = vmatpush2.msra.mxu0 0.0
  %5388 = vmatprep.mubr.f32.mxu0 0.0
  %5389 = vmatmul.mubr.f32.gmra.mxu0 %v5319
  %v5390 = vpop.f32.mrf.mxu0
  %v5391 = vadd.f32 %v5316, %v5390
  %v5392 = vpop.f32.mrf.mxu0
  %5393 = vmatprep.mubr.f32.mxu0 0.0
  %5394 = vmatmul.mubr.f32.gmra.mxu0 %v5322
  %v5395 = vpop.f32.mrf.mxu0
  %v5396 = vadd.f32 %v5316, %v5395
  %v5397 = vpop.f32.mrf.mxu0
  %5398 = vdwg.mxu0
  %v5399 = vadd.f32 %v3752, %v5391
  %v5400 = vadd.f32 %v3753, %v5396
  %s5401 = scalar_lea.vmem %s12, 4
  %v5402 = vld [vmem:[%s5401] sm:$0xf]
  %v5403 = vld [vmem:[%s13 + $0x1c] sm:$0x1]
  %v5404 = vlaneseq
  %v5405 = vshrl.u32 %v5404, 7
  %v5406 = vsub.s32 0, %v5405
  %v5407 = vrot.slane %v5403, %v5406
  %v5409 = vsel %vm3760, %v5399, 0
  %v5412 = vsel %vm3760, %v5400, 0
  %v5415 = vsel %vm3767, %v5402, 0
  %5417 = vmatprep.subr.mxu0 0.0
  %5418 = vmatpush1.msra.mxu0 0.0
  %5419 = vmatprep.subr.mxu0 0.0
  %5420 = vmatpush1.msra.mxu0 0.0
  %5421 = vmatprep.subr.mxu0 0.0
  %5422 = vmatpush1.msra.mxu0 0.0
  %5423 = vmatprep.subr.mxu0 0.0
  %5424 = vmatpush1.msra.mxu0 0.0
  %5425 = vmatprep.subr.mxu0 0.0
  %5426 = vmatpush1.msra.mxu0 0.0
  %5427 = vmatprep.subr.mxu0 0.0
  %5428 = vmatpush1.msra.mxu0 0.0
  %5429 = vmatprep.subr.mxu0 0.0
  %5430 = vmatpush1.msra.mxu0 0.0
  %5431 = vmatprep.subr.mxu0 0.0
  %5432 = vmatpush1.msra.mxu0 0.0
  %5433 = vmatprep.subr.mxu0 0.0
  %5434 = vmatpush1.msra.mxu0 0.0
  %5435 = vmatprep.subr.mxu0 0.0
  %5436 = vmatpush1.msra.mxu0 0.0
  %5437 = vmatprep.subr.mxu0 0.0
  %5438 = vmatpush1.msra.mxu0 0.0
  %5439 = vmatprep.subr.mxu0 0.0
  %5440 = vmatpush1.msra.mxu0 0.0
  %5441 = vmatprep.subr.mxu0 0.0
  %5442 = vmatpush1.msra.mxu0 0.0
  %5443 = vmatprep.subr.mxu0 0.0
  %5444 = vmatpush1.msra.mxu0 0.0
  %5445 = vmatprep.subr.mxu0 0.0
  %5446 = vmatpush1.msra.mxu0 0.0
  %5447 = vmatprep.subr.mxu0 0.0
  %5448 = vmatpush1.msra.mxu0 %v5415
  %5449 = vmatprep.subr.mxu0 0.0
  %5450 = vmatpush2.msra.mxu0 0.0
  %5451 = vmatprep.subr.mxu0 0.0
  %5452 = vmatpush2.msra.mxu0 0.0
  %5453 = vmatprep.subr.mxu0 0.0
  %5454 = vmatpush2.msra.mxu0 0.0
  %5455 = vmatprep.subr.mxu0 0.0
  %5456 = vmatpush2.msra.mxu0 0.0
  %5457 = vmatprep.subr.mxu0 0.0
  %5458 = vmatpush2.msra.mxu0 0.0
  %5459 = vmatprep.subr.mxu0 0.0
  %5460 = vmatpush2.msra.mxu0 0.0
  %5461 = vmatprep.subr.mxu0 0.0
  %5462 = vmatpush2.msra.mxu0 0.0
  %5463 = vmatprep.subr.mxu0 0.0
  %5464 = vmatpush2.msra.mxu0 0.0
  %5465 = vmatprep.subr.mxu0 0.0
  %5466 = vmatpush2.msra.mxu0 0.0
  %5467 = vmatprep.subr.mxu0 0.0
  %5468 = vmatpush2.msra.mxu0 0.0
  %5469 = vmatprep.subr.mxu0 0.0
  %5470 = vmatpush2.msra.mxu0 0.0
  %5471 = vmatprep.subr.mxu0 0.0
  %5472 = vmatpush2.msra.mxu0 0.0
  %5473 = vmatprep.subr.mxu0 0.0
  %5474 = vmatpush2.msra.mxu0 0.0
  %5475 = vmatprep.subr.mxu0 0.0
  %5476 = vmatpush2.msra.mxu0 0.0
  %5477 = vmatprep.subr.mxu0 0.0
  %5478 = vmatpush2.msra.mxu0 0.0
  %5479 = vmatprep.subr.mxu0 0.0
  %5480 = vmatpush2.msra.mxu0 0.0
  %5481 = vmatprep.mubr.f32.mxu0 0.0
  %5482 = vmatmul.mubr.f32.gmra.mxu0 %v5409
  %v5483 = vpop.f32.mrf.mxu0
  %v5484 = vadd.f32 %v5407, %v5483
  %v5485 = vpop.f32.mrf.mxu0
  %5486 = vmatprep.mubr.f32.mxu0 0.0
  %5487 = vmatmul.mubr.f32.gmra.mxu0 %v5412
  %v5488 = vpop.f32.mrf.mxu0
  %v5489 = vadd.f32 %v5407, %v5488
  %v5490 = vpop.f32.mrf.mxu0
  %5491 = vdwg.mxu0
  %v5492 = vadd.f32 %v5119, %v5484
  %v5493 = vadd.f32 %v5120, %v5489
  %s5494 = scalar_lea.vmem %s9, 384
  %v5495 = vld [vmem:[%s5494] sm:$0xff]
  %v5496 = vld [vmem:[%s5494 + $0x8] sm:$0xff]
  %v5497 = vld [vmem:[%s5494 + $0x10] sm:$0xff]
  %v5498 = vld [vmem:[%s5494 + $0x18] sm:$0xff]
  %v5499 = vld [vmem:[%s13 + $0x1d] sm:$0x1]
  %v5500 = vlaneseq
  %v5501 = vshrl.u32 %v5500, 7
  %v5502 = vsub.s32 0, %v5501
  %v5503 = vrot.slane %v5499, %v5502
  %v5505 = vsel %vm537, %v5492, 0
  %v5508 = vsel %vm537, %v5493, 0
  %5510 = vmatprep.subr.mxu0 0.0
  %5511 = vmatpush1.msra.mxu0 0.0
  %5512 = vmatprep.subr.mxu0 0.0
  %5513 = vmatpush1.msra.mxu0 0.0
  %5514 = vmatprep.subr.mxu0 0.0
  %5515 = vmatpush1.msra.mxu0 0.0
  %5516 = vmatprep.subr.mxu0 0.0
  %5517 = vmatpush1.msra.mxu0 0.0
  %5518 = vmatprep.subr.mxu0 0.0
  %5519 = vmatpush1.msra.mxu0 0.0
  %5520 = vmatprep.subr.mxu0 0.0
  %5521 = vmatpush1.msra.mxu0 0.0
  %5522 = vmatprep.subr.mxu0 0.0
  %5523 = vmatpush1.msra.mxu0 0.0
  %5524 = vmatprep.subr.mxu0 0.0
  %5525 = vmatpush1.msra.mxu0 0.0
  %5526 = vmatprep.subr.mxu0 0.0
  %5527 = vmatpush1.msra.mxu0 0.0
  %5528 = vmatprep.subr.mxu0 0.0
  %5529 = vmatpush1.msra.mxu0 0.0
  %5530 = vmatprep.subr.mxu0 0.0
  %5531 = vmatpush1.msra.mxu0 0.0
  %5532 = vmatprep.subr.mxu0 0.0
  %5533 = vmatpush1.msra.mxu0 0.0
  %5534 = vmatprep.subr.mxu0 0.0
  %5535 = vmatpush1.msra.mxu0 %v5498
  %5536 = vmatprep.subr.mxu0 0.0
  %5537 = vmatpush1.msra.mxu0 %v5497
  %5538 = vmatprep.subr.mxu0 0.0
  %5539 = vmatpush1.msra.mxu0 %v5496
  %5540 = vmatprep.subr.mxu0 0.0
  %5541 = vmatpush1.msra.mxu0 %v5495
  %5542 = vmatprep.subr.mxu0 0.0
  %5543 = vmatpush2.msra.mxu0 0.0
  %5544 = vmatprep.subr.mxu0 0.0
  %5545 = vmatpush2.msra.mxu0 0.0
  %5546 = vmatprep.subr.mxu0 0.0
  %5547 = vmatpush2.msra.mxu0 0.0
  %5548 = vmatprep.subr.mxu0 0.0
  %5549 = vmatpush2.msra.mxu0 0.0
  %5550 = vmatprep.subr.mxu0 0.0
  %5551 = vmatpush2.msra.mxu0 0.0
  %5552 = vmatprep.subr.mxu0 0.0
  %5553 = vmatpush2.msra.mxu0 0.0
  %5554 = vmatprep.subr.mxu0 0.0
  %5555 = vmatpush2.msra.mxu0 0.0
  %5556 = vmatprep.subr.mxu0 0.0
  %5557 = vmatpush2.msra.mxu0 0.0
  %5558 = vmatprep.subr.mxu0 0.0
  %5559 = vmatpush2.msra.mxu0 0.0
  %5560 = vmatprep.subr.mxu0 0.0
  %5561 = vmatpush2.msra.mxu0 0.0
  %5562 = vmatprep.subr.mxu0 0.0
  %5563 = vmatpush2.msra.mxu0 0.0
  %5564 = vmatprep.subr.mxu0 0.0
  %5565 = vmatpush2.msra.mxu0 0.0
  %5566 = vmatprep.subr.mxu0 0.0
  %5567 = vmatpush2.msra.mxu0 0.0
  %5568 = vmatprep.subr.mxu0 0.0
  %5569 = vmatpush2.msra.mxu0 0.0
  %5570 = vmatprep.subr.mxu0 0.0
  %5571 = vmatpush2.msra.mxu0 0.0
  %5572 = vmatprep.subr.mxu0 0.0
  %5573 = vmatpush2.msra.mxu0 0.0
  %5574 = vmatprep.mubr.f32.mxu0 0.0
  %5575 = vmatmul.mubr.f32.gmra.mxu0 %v5505
  %v5576 = vpop.f32.mrf.mxu0
  %v5577 = vadd.f32 %v5503, %v5576
  %v5578 = vpop.f32.mrf.mxu0
  %5579 = vmatprep.mubr.f32.mxu0 0.0
  %5580 = vmatmul.mubr.f32.gmra.mxu0 %v5508
  %v5581 = vpop.f32.mrf.mxu0
  %v5582 = vadd.f32 %v5503, %v5581
  %v5583 = vpop.f32.mrf.mxu0
  %5584 = vdwg.mxu0
  %s5585 = scalar_lea.vmem %s9, 416
  %v5586 = vld [vmem:[%s5585] sm:$0xff]
  %v5587 = vld [vmem:[%s5585 + $0x8] sm:$0xff]
  %v5588 = vld [vmem:[%s5585 + $0x10] sm:$0xff]
  %v5589 = vld [vmem:[%s5585 + $0x18] sm:$0xff]
  %v5590 = vld [vmem:[%s13 + $0x1e] sm:$0x1]
  %v5591 = vlaneseq
  %v5592 = vshrl.u32 %v5591, 7
  %v5593 = vsub.s32 0, %v5592
  %v5594 = vrot.slane %v5590, %v5593
  %5595 = vmatprep.subr.mxu0 0.0
  %5596 = vmatpush1.msra.mxu0 0.0
  %5597 = vmatprep.subr.mxu0 0.0
  %5598 = vmatpush1.msra.mxu0 0.0
  %5599 = vmatprep.subr.mxu0 0.0
  %5600 = vmatpush1.msra.mxu0 0.0
  %5601 = vmatprep.subr.mxu0 0.0
  %5602 = vmatpush1.msra.mxu0 0.0
  %5603 = vmatprep.subr.mxu0 0.0
  %5604 = vmatpush1.msra.mxu0 0.0
  %5605 = vmatprep.subr.mxu0 0.0
  %5606 = vmatpush1.msra.mxu0 0.0
  %5607 = vmatprep.subr.mxu0 0.0
  %5608 = vmatpush1.msra.mxu0 0.0
  %5609 = vmatprep.subr.mxu0 0.0
  %5610 = vmatpush1.msra.mxu0 0.0
  %5611 = vmatprep.subr.mxu0 0.0
  %5612 = vmatpush1.msra.mxu0 0.0
  %5613 = vmatprep.subr.mxu0 0.0
  %5614 = vmatpush1.msra.mxu0 0.0
  %5615 = vmatprep.subr.mxu0 0.0
  %5616 = vmatpush1.msra.mxu0 0.0
  %5617 = vmatprep.subr.mxu0 0.0
  %5618 = vmatpush1.msra.mxu0 0.0
  %5619 = vmatprep.subr.mxu0 0.0
  %5620 = vmatpush1.msra.mxu0 %v5589
  %5621 = vmatprep.subr.mxu0 0.0
  %5622 = vmatpush1.msra.mxu0 %v5588
  %5623 = vmatprep.subr.mxu0 0.0
  %5624 = vmatpush1.msra.mxu0 %v5587
  %5625 = vmatprep.subr.mxu0 0.0
  %5626 = vmatpush1.msra.mxu0 %v5586
  %5627 = vmatprep.subr.mxu0 0.0
  %5628 = vmatpush2.msra.mxu0 0.0
  %5629 = vmatprep.subr.mxu0 0.0
  %5630 = vmatpush2.msra.mxu0 0.0
  %5631 = vmatprep.subr.mxu0 0.0
  %5632 = vmatpush2.msra.mxu0 0.0
  %5633 = vmatprep.subr.mxu0 0.0
  %5634 = vmatpush2.msra.mxu0 0.0
  %5635 = vmatprep.subr.mxu0 0.0
  %5636 = vmatpush2.msra.mxu0 0.0
  %5637 = vmatprep.subr.mxu0 0.0
  %5638 = vmatpush2.msra.mxu0 0.0
  %5639 = vmatprep.subr.mxu0 0.0
  %5640 = vmatpush2.msra.mxu0 0.0
  %5641 = vmatprep.subr.mxu0 0.0
  %5642 = vmatpush2.msra.mxu0 0.0
  %5643 = vmatprep.subr.mxu0 0.0
  %5644 = vmatpush2.msra.mxu0 0.0
  %5645 = vmatprep.subr.mxu0 0.0
  %5646 = vmatpush2.msra.mxu0 0.0
  %5647 = vmatprep.subr.mxu0 0.0
  %5648 = vmatpush2.msra.mxu0 0.0
  %5649 = vmatprep.subr.mxu0 0.0
  %5650 = vmatpush2.msra.mxu0 0.0
  %5651 = vmatprep.subr.mxu0 0.0
  %5652 = vmatpush2.msra.mxu0 0.0
  %5653 = vmatprep.subr.mxu0 0.0
  %5654 = vmatpush2.msra.mxu0 0.0
  %5655 = vmatprep.subr.mxu0 0.0
  %5656 = vmatpush2.msra.mxu0 0.0
  %5657 = vmatprep.subr.mxu0 0.0
  %5658 = vmatpush2.msra.mxu0 0.0
  %5659 = vmatprep.mubr.f32.mxu0 0.0
  %5660 = vmatmul.mubr.f32.gmra.mxu0 %v5505
  %v5661 = vpop.f32.mrf.mxu0
  %v5662 = vadd.f32 %v5594, %v5661
  %v5663 = vpop.f32.mrf.mxu0
  %5664 = vmatprep.mubr.f32.mxu0 0.0
  %5665 = vmatmul.mubr.f32.gmra.mxu0 %v5508
  %v5666 = vpop.f32.mrf.mxu0
  %v5667 = vadd.f32 %v5594, %v5666
  %v5668 = vpop.f32.mrf.mxu0
  %5669 = vdwg.mxu0
  %s5670 = scalar_lea.vmem %s9, 448
  %v5671 = vld [vmem:[%s5670] sm:$0xff]
  %v5672 = vld [vmem:[%s5670 + $0x8] sm:$0xff]
  %v5673 = vld [vmem:[%s5670 + $0x10] sm:$0xff]
  %v5674 = vld [vmem:[%s5670 + $0x18] sm:$0xff]
  %v5675 = vld [vmem:[%s13 + $0x1f] sm:$0x1]
  %v5676 = vlaneseq
  %v5677 = vshrl.u32 %v5676, 7
  %v5678 = vsub.s32 0, %v5677
  %v5679 = vrot.slane %v5675, %v5678
  %5680 = vmatprep.subr.mxu0 0.0
  %5681 = vmatpush1.msra.mxu0 0.0
  %5682 = vmatprep.subr.mxu0 0.0
  %5683 = vmatpush1.msra.mxu0 0.0
  %5684 = vmatprep.subr.mxu0 0.0
  %5685 = vmatpush1.msra.mxu0 0.0
  %5686 = vmatprep.subr.mxu0 0.0
  %5687 = vmatpush1.msra.mxu0 0.0
  %5688 = vmatprep.subr.mxu0 0.0
  %5689 = vmatpush1.msra.mxu0 0.0
  %5690 = vmatprep.subr.mxu0 0.0
  %5691 = vmatpush1.msra.mxu0 0.0
  %5692 = vmatprep.subr.mxu0 0.0
  %5693 = vmatpush1.msra.mxu0 0.0
  %5694 = vmatprep.subr.mxu0 0.0
  %5695 = vmatpush1.msra.mxu0 0.0
  %5696 = vmatprep.subr.mxu0 0.0
  %5697 = vmatpush1.msra.mxu0 0.0
  %5698 = vmatprep.subr.mxu0 0.0
  %5699 = vmatpush1.msra.mxu0 0.0
  %5700 = vmatprep.subr.mxu0 0.0
  %5701 = vmatpush1.msra.mxu0 0.0
  %5702 = vmatprep.subr.mxu0 0.0
  %5703 = vmatpush1.msra.mxu0 0.0
  %5704 = vmatprep.subr.mxu0 0.0
  %5705 = vmatpush1.msra.mxu0 %v5674
  %5706 = vmatprep.subr.mxu0 0.0
  %5707 = vmatpush1.msra.mxu0 %v5673
  %5708 = vmatprep.subr.mxu0 0.0
  %5709 = vmatpush1.msra.mxu0 %v5672
  %5710 = vmatprep.subr.mxu0 0.0
  %5711 = vmatpush1.msra.mxu0 %v5671
  %5712 = vmatprep.subr.mxu0 0.0
  %5713 = vmatpush2.msra.mxu0 0.0
  %5714 = vmatprep.subr.mxu0 0.0
  %5715 = vmatpush2.msra.mxu0 0.0
  %5716 = vmatprep.subr.mxu0 0.0
  %5717 = vmatpush2.msra.mxu0 0.0
  %5718 = vmatprep.subr.mxu0 0.0
  %5719 = vmatpush2.msra.mxu0 0.0
  %5720 = vmatprep.subr.mxu0 0.0
  %5721 = vmatpush2.msra.mxu0 0.0
  %5722 = vmatprep.subr.mxu0 0.0
  %5723 = vmatpush2.msra.mxu0 0.0
  %5724 = vmatprep.subr.mxu0 0.0
  %5725 = vmatpush2.msra.mxu0 0.0
  %5726 = vmatprep.subr.mxu0 0.0
  %5727 = vmatpush2.msra.mxu0 0.0
  %5728 = vmatprep.subr.mxu0 0.0
  %5729 = vmatpush2.msra.mxu0 0.0
  %5730 = vmatprep.subr.mxu0 0.0
  %5731 = vmatpush2.msra.mxu0 0.0
  %5732 = vmatprep.subr.mxu0 0.0
  %5733 = vmatpush2.msra.mxu0 0.0
  %5734 = vmatprep.subr.mxu0 0.0
  %5735 = vmatpush2.msra.mxu0 0.0
  %5736 = vmatprep.subr.mxu0 0.0
  %5737 = vmatpush2.msra.mxu0 0.0
  %5738 = vmatprep.subr.mxu0 0.0
  %5739 = vmatpush2.msra.mxu0 0.0
  %5740 = vmatprep.subr.mxu0 0.0
  %5741 = vmatpush2.msra.mxu0 0.0
  %5742 = vmatprep.subr.mxu0 0.0
  %5743 = vmatpush2.msra.mxu0 0.0
  %5744 = vmatprep.mubr.f32.mxu0 0.0
  %5745 = vmatmul.mubr.f32.gmra.mxu0 %v5132
  %v5746 = vpop.f32.mrf.mxu0
  %v5747 = vadd.f32 %v5679, %v5746
  %v5748 = vpop.f32.mrf.mxu0
  %5749 = vmatprep.mubr.f32.mxu0 0.0
  %5750 = vmatmul.mubr.f32.gmra.mxu0 %v5135
  %v5751 = vpop.f32.mrf.mxu0
  %v5752 = vadd.f32 %v5679, %v5751
  %v5753 = vpop.f32.mrf.mxu0
  %5754 = vdwg.mxu0
  %v5756 = vsel %vm537, %v5577, 0
  %v5759 = vsel %vm537, %v5582, 0
  %v5762 = vsel %vm537, %v5662, 0
  %v5765 = vsel %vm537, %v5667, 0
  %5767 = vmatprep.subr.mxu0 0.0
  %5768 = vmatpush1.xpose.msra.mxu0 0.0
  %5769 = vmatprep.subr.mxu0 0.0
  %5770 = vmatpush1.xpose.msra.mxu0 0.0
  %5771 = vmatprep.subr.mxu0 0.0
  %5772 = vmatpush1.xpose.msra.mxu0 0.0
  %5773 = vmatprep.subr.mxu0 0.0
  %5774 = vmatpush1.xpose.msra.mxu0 0.0
  %5775 = vmatprep.subr.mxu0 0.0
  %5776 = vmatpush1.xpose.msra.mxu0 0.0
  %5777 = vmatprep.subr.mxu0 0.0
  %5778 = vmatpush1.xpose.msra.mxu0 0.0
  %5779 = vmatprep.subr.mxu0 0.0
  %5780 = vmatpush1.xpose.msra.mxu0 0.0
  %5781 = vmatprep.subr.mxu0 0.0
  %5782 = vmatpush1.xpose.msra.mxu0 0.0
  %5783 = vmatprep.subr.mxu0 0.0
  %5784 = vmatpush1.xpose.msra.mxu0 0.0
  %5785 = vmatprep.subr.mxu0 0.0
  %5786 = vmatpush1.xpose.msra.mxu0 0.0
  %5787 = vmatprep.subr.mxu0 0.0
  %5788 = vmatpush1.xpose.msra.mxu0 0.0
  %5789 = vmatprep.subr.mxu0 0.0
  %5790 = vmatpush1.xpose.msra.mxu0 0.0
  %5791 = vmatprep.subr.mxu0 0.0
  %5792 = vmatpush1.xpose.msra.mxu0 0.0
  %5793 = vmatprep.subr.mxu0 0.0
  %5794 = vmatpush1.xpose.msra.mxu0 0.0
  %5795 = vmatprep.subr.mxu0 0.0
  %5796 = vmatpush1.xpose.msra.mxu0 %v5765
  %5797 = vmatprep.subr.mxu0 0.0
  %5798 = vmatpush1.xpose.msra.mxu0 %v5762
  %5799 = vmatprep.subr.mxu0 0.0
  %5800 = vmatpush2.xpose.msra.mxu0 0.0
  %5801 = vmatprep.subr.mxu0 0.0
  %5802 = vmatpush2.xpose.msra.mxu0 0.0
  %5803 = vmatprep.subr.mxu0 0.0
  %5804 = vmatpush2.xpose.msra.mxu0 0.0
  %5805 = vmatprep.subr.mxu0 0.0
  %5806 = vmatpush2.xpose.msra.mxu0 0.0
  %5807 = vmatprep.subr.mxu0 0.0
  %5808 = vmatpush2.xpose.msra.mxu0 0.0
  %5809 = vmatprep.subr.mxu0 0.0
  %5810 = vmatpush2.xpose.msra.mxu0 0.0
  %5811 = vmatprep.subr.mxu0 0.0
  %5812 = vmatpush2.xpose.msra.mxu0 0.0
  %5813 = vmatprep.subr.mxu0 0.0
  %5814 = vmatpush2.xpose.msra.mxu0 0.0
  %5815 = vmatprep.subr.mxu0 0.0
  %5816 = vmatpush2.xpose.msra.mxu0 0.0
  %5817 = vmatprep.subr.mxu0 0.0
  %5818 = vmatpush2.xpose.msra.mxu0 0.0
  %5819 = vmatprep.subr.mxu0 0.0
  %5820 = vmatpush2.xpose.msra.mxu0 0.0
  %5821 = vmatprep.subr.mxu0 0.0
  %5822 = vmatpush2.xpose.msra.mxu0 0.0
  %5823 = vmatprep.subr.mxu0 0.0
  %5824 = vmatpush2.xpose.msra.mxu0 0.0
  %5825 = vmatprep.subr.mxu0 0.0
  %5826 = vmatpush2.xpose.msra.mxu0 0.0
  %5827 = vmatprep.subr.mxu0 0.0
  %5828 = vmatpush2.xpose.msra.mxu0 0.0
  %5829 = vmatprep.subr.mxu0 0.0
  %5830 = vmatpush2.xpose.msra.mxu0 0.0
  %5831 = vmatprep.mubr.f32.mxu0 0.0
  %5832 = vmatmul.mubr.f32.gmra.mxu0 %v5756
  %v5833 = vpop.f32.mrf.mxu0
  %v5834 = vadd.f32 0.0, %v5833
  %v5835 = vpop.f32.mrf.mxu0
  %5836 = vmatprep.mubr.f32.mxu0 0.0
  %5837 = vmatmul.mubr.f32.gmra.mxu0 %v5759
  %v5838 = vpop.f32.mrf.mxu0
  %v5839 = vadd.f32 0.0, %v5838
  %v5840 = vpop.f32.mrf.mxu0
  %5841 = vdwg.mxu0
  %v5842 = vmul.f32 %v5834, 0.17677669
  %v5843 = vmul.f32 %v5839, 0.17677669
  %v5844 = vadd.f32 %v5842, %v112
  %v5845 = vadd.f32 %v5843, %v113
  %v5846 = vsel %vm343, %v5844, -inf
  %5847 = vmax.xlane.f32.xlu0 %v5846
  %v5848 = vpop.xlane.xlu0 %5847
  %v5849 = vsel %vm343, %v5845, -inf
  %5850 = vmax.xlane.f32.xlu0 %v5849
  %v5851 = vpop.xlane.xlu0 %5850
  %v5852 = vsub.f32 %v5844, %v5848
  %v5853 = vsub.f32 %v5845, %v5851
  %v5854 = vmul.f32 %v5852, 1.442695
  %v5855 = vpow.pop %v5854
  %v5856 = vmul.f32 %v5853, 1.442695
  %v5857 = vpow.pop %v5856
  %v5858 = vsel %vm343, %v5855, 0.0
  %5859 = vadd.xlane.f32.xlu0 %v5858
  %v5860 = vpop.xlane.xlu0 %5859
  %v5861 = vsel %vm343, %v5857, 0.0
  %5862 = vadd.xlane.f32.xlu0 %v5861
  %v5863 = vpop.xlane.xlu0 %5862
  %v5864 = vrcp.pop %v5860
  %v5865 = vrcp.pop %v5863
  %v5866 = vmul.f32 %v5855, %v5864
  %v5867 = vmul.f32 %v5857, %v5865
  %v5869 = vsel %vm343, %v5866, 0
  %v5872 = vsel %vm343, %v5867, 0
  %5874 = vmatprep.subr.mxu0 0.0
  %5875 = vmatpush1.msra.mxu0 0.0
  %5876 = vmatprep.subr.mxu0 0.0
  %5877 = vmatpush1.msra.mxu0 0.0
  %5878 = vmatprep.subr.mxu0 0.0
  %5879 = vmatpush1.msra.mxu0 0.0
  %5880 = vmatprep.subr.mxu0 0.0
  %5881 = vmatpush1.msra.mxu0 0.0
  %5882 = vmatprep.subr.mxu0 0.0
  %5883 = vmatpush1.msra.mxu0 0.0
  %5884 = vmatprep.subr.mxu0 0.0
  %5885 = vmatpush1.msra.mxu0 0.0
  %5886 = vmatprep.subr.mxu0 0.0
  %5887 = vmatpush1.msra.mxu0 0.0
  %5888 = vmatprep.subr.mxu0 0.0
  %5889 = vmatpush1.msra.mxu0 0.0
  %5890 = vmatprep.subr.mxu0 0.0
  %5891 = vmatpush1.msra.mxu0 0.0
  %5892 = vmatprep.subr.mxu0 0.0
  %5893 = vmatpush1.msra.mxu0 0.0
  %5894 = vmatprep.subr.mxu0 0.0
  %5895 = vmatpush1.msra.mxu0 0.0
  %5896 = vmatprep.subr.mxu0 0.0
  %5897 = vmatpush1.msra.mxu0 0.0
  %5898 = vmatprep.subr.mxu0 0.0
  %5899 = vmatpush1.msra.mxu0 0.0
  %5900 = vmatprep.subr.mxu0 0.0
  %5901 = vmatpush1.msra.mxu0 0.0
  %5902 = vmatprep.subr.mxu0 0.0
  %5903 = vmatpush1.msra.mxu0 %v5752
  %5904 = vmatprep.subr.mxu0 0.0
  %5905 = vmatpush1.msra.mxu0 %v5747
  %5906 = vmatprep.subr.mxu0 0.0
  %5907 = vmatpush2.msra.mxu0 0.0
  %5908 = vmatprep.subr.mxu0 0.0
  %5909 = vmatpush2.msra.mxu0 0.0
  %5910 = vmatprep.subr.mxu0 0.0
  %5911 = vmatpush2.msra.mxu0 0.0
  %5912 = vmatprep.subr.mxu0 0.0
  %5913 = vmatpush2.msra.mxu0 0.0
  %5914 = vmatprep.subr.mxu0 0.0
  %5915 = vmatpush2.msra.mxu0 0.0
  %5916 = vmatprep.subr.mxu0 0.0
  %5917 = vmatpush2.msra.mxu0 0.0
  %5918 = vmatprep.subr.mxu0 0.0
  %5919 = vmatpush2.msra.mxu0 0.0
  %5920 = vmatprep.subr.mxu0 0.0
  %5921 = vmatpush2.msra.mxu0 0.0
  %5922 = vmatprep.subr.mxu0 0.0
  %5923 = vmatpush2.msra.mxu0 0.0
  %5924 = vmatprep.subr.mxu0 0.0
  %5925 = vmatpush2.msra.mxu0 0.0
  %5926 = vmatprep.subr.mxu0 0.0
  %5927 = vmatpush2.msra.mxu0 0.0
  %5928 = vmatprep.subr.mxu0 0.0
  %5929 = vmatpush2.msra.mxu0 0.0
  %5930 = vmatprep.subr.mxu0 0.0
  %5931 = vmatpush2.msra.mxu0 0.0
  %5932 = vmatprep.subr.mxu0 0.0
  %5933 = vmatpush2.msra.mxu0 0.0
  %5934 = vmatprep.subr.mxu0 0.0
  %5935 = vmatpush2.msra.mxu0 0.0
  %5936 = vmatprep.subr.mxu0 0.0
  %5937 = vmatpush2.msra.mxu0 0.0
  %5938 = vmatprep.mubr.f32.mxu0 0.0
  %5939 = vmatmul.mubr.f32.gmra.mxu0 %v5869
  %v5940 = vpop.f32.mrf.mxu0
  %v5941 = vadd.f32 0.0, %v5940
  %v5942 = vpop.f32.mrf.mxu0
  %5943 = vmatprep.mubr.f32.mxu0 0.0
  %5944 = vmatmul.mubr.f32.gmra.mxu0 %v5872
  %v5945 = vpop.f32.mrf.mxu0
  %v5946 = vadd.f32 0.0, %v5945
  %v5947 = vpop.f32.mrf.mxu0
  %5948 = vdwg.mxu0
  %s5949 = scalar_lea.vmem %s9, 480
  %v5950 = vld [vmem:[%s5949] sm:$0xff]
  %v5951 = vld [vmem:[%s5949 + $0x8] sm:$0xff]
  %v5952 = vld [vmem:[%s5949 + $0x10] sm:$0xff]
  %v5953 = vld [vmem:[%s5949 + $0x18] sm:$0xff]
  %v5954 = vld [vmem:[%s13 + $0x20] sm:$0x1]
  %v5955 = vlaneseq
  %v5956 = vshrl.u32 %v5955, 7
  %v5957 = vsub.s32 0, %v5956
  %v5958 = vrot.slane %v5954, %v5957
  %v5960 = vsel %vm537, %v5941, 0
  %v5963 = vsel %vm537, %v5946, 0
  %5965 = vmatprep.subr.mxu0 0.0
  %5966 = vmatpush1.msra.mxu0 0.0
  %5967 = vmatprep.subr.mxu0 0.0
  %5968 = vmatpush1.msra.mxu0 0.0
  %5969 = vmatprep.subr.mxu0 0.0
  %5970 = vmatpush1.msra.mxu0 0.0
  %5971 = vmatprep.subr.mxu0 0.0
  %5972 = vmatpush1.msra.mxu0 0.0
  %5973 = vmatprep.subr.mxu0 0.0
  %5974 = vmatpush1.msra.mxu0 0.0
  %5975 = vmatprep.subr.mxu0 0.0
  %5976 = vmatpush1.msra.mxu0 0.0
  %5977 = vmatprep.subr.mxu0 0.0
  %5978 = vmatpush1.msra.mxu0 0.0
  %5979 = vmatprep.subr.mxu0 0.0
  %5980 = vmatpush1.msra.mxu0 0.0
  %5981 = vmatprep.subr.mxu0 0.0
  %5982 = vmatpush1.msra.mxu0 0.0
  %5983 = vmatprep.subr.mxu0 0.0
  %5984 = vmatpush1.msra.mxu0 0.0
  %5985 = vmatprep.subr.mxu0 0.0
  %5986 = vmatpush1.msra.mxu0 0.0
  %5987 = vmatprep.subr.mxu0 0.0
  %5988 = vmatpush1.msra.mxu0 0.0
  %5989 = vmatprep.subr.mxu0 0.0
  %5990 = vmatpush1.msra.mxu0 %v5953
  %5991 = vmatprep.subr.mxu0 0.0
  %5992 = vmatpush1.msra.mxu0 %v5952
  %5993 = vmatprep.subr.mxu0 0.0
  %5994 = vmatpush1.msra.mxu0 %v5951
  %5995 = vmatprep.subr.mxu0 0.0
  %5996 = vmatpush1.msra.mxu0 %v5950
  %5997 = vmatprep.subr.mxu0 0.0
  %5998 = vmatpush2.msra.mxu0 0.0
  %5999 = vmatprep.subr.mxu0 0.0
  %6000 = vmatpush2.msra.mxu0 0.0
  %6001 = vmatprep.subr.mxu0 0.0
  %6002 = vmatpush2.msra.mxu0 0.0
  %6003 = vmatprep.subr.mxu0 0.0
  %6004 = vmatpush2.msra.mxu0 0.0
  %6005 = vmatprep.subr.mxu0 0.0
  %6006 = vmatpush2.msra.mxu0 0.0
  %6007 = vmatprep.subr.mxu0 0.0
  %6008 = vmatpush2.msra.mxu0 0.0
  %6009 = vmatprep.subr.mxu0 0.0
  %6010 = vmatpush2.msra.mxu0 0.0
  %6011 = vmatprep.subr.mxu0 0.0
  %6012 = vmatpush2.msra.mxu0 0.0
  %6013 = vmatprep.subr.mxu0 0.0
  %6014 = vmatpush2.msra.mxu0 0.0
  %6015 = vmatprep.subr.mxu0 0.0
  %6016 = vmatpush2.msra.mxu0 0.0
  %6017 = vmatprep.subr.mxu0 0.0
  %6018 = vmatpush2.msra.mxu0 0.0
  %6019 = vmatprep.subr.mxu0 0.0
  %6020 = vmatpush2.msra.mxu0 0.0
  %6021 = vmatprep.subr.mxu0 0.0
  %6022 = vmatpush2.msra.mxu0 0.0
  %6023 = vmatprep.subr.mxu0 0.0
  %6024 = vmatpush2.msra.mxu0 0.0
  %6025 = vmatprep.subr.mxu0 0.0
  %6026 = vmatpush2.msra.mxu0 0.0
  %6027 = vmatprep.subr.mxu0 0.0
  %6028 = vmatpush2.msra.mxu0 0.0
  %6029 = vmatprep.mubr.f32.mxu0 0.0
  %6030 = vmatmul.mubr.f32.gmra.mxu0 %v5960
  %v6031 = vpop.f32.mrf.mxu0
  %v6032 = vadd.f32 %v5958, %v6031
  %v6033 = vpop.f32.mrf.mxu0
  %6034 = vmatprep.mubr.f32.mxu0 0.0
  %6035 = vmatmul.mubr.f32.gmra.mxu0 %v5963
  %v6036 = vpop.f32.mrf.mxu0
  %v6037 = vadd.f32 %v5958, %v6036
  %v6038 = vpop.f32.mrf.mxu0
  %6039 = vdwg.mxu0
  %v6040 = vadd.f32 %v5119, %v6032
  %v6041 = vadd.f32 %v5120, %v6037
  %v6042 = vsel %vm537, %v6040, 0.0
  %6043 = vadd.xlane.f32.xlu0 %v6042
  %v6044 = vpop.xlane.xlu0 %6043
  %v6045 = vsel %vm537, %v6041, 0.0
  %6046 = vadd.xlane.f32.xlu0 %v6045
  %v6047 = vpop.xlane.xlu0 %6046
  %v6048 = vmul.f32 %v6044, %v2126
  %v6049 = vmul.f32 %v6047, %v2126
  %v6050 = vsub.f32 %v6040, %v6048
  %v6051 = vsub.f32 %v6041, %v6049
  %v6052 = vmul.f32 %v6050, %v6050
  %v6053 = vmul.f32 %v6051, %v6051
  %v6054 = vsel %vm537, %v6052, 0.0
  %6055 = vadd.xlane.f32.xlu0 %v6054
  %v6056 = vpop.xlane.xlu0 %6055
  %v6057 = vsel %vm537, %v6053, 0.0
  %6058 = vadd.xlane.f32.xlu0 %v6057
  %v6059 = vpop.xlane.xlu0 %6058
  %v6060 = vmul.f32 %v6056, %v2126
  %v6061 = vmul.f32 %v6059, %v2126
  %v6062 = vadd.f32 %v6060, 1e-05
  %v6063 = vadd.f32 %v6061, 1e-05
  %v6064 = vrsqrt.pop %v6062
  %v6065 = vrsqrt.pop %v6063
  %v6066 = vmul.f32 %v6050, %v6064
  %v6067 = vmul.f32 %v6051, %v6065
  %v6068 = vld [vmem:[%s13 + $0x21] sm:$0x1]
  %v6069 = vlaneseq
  %v6070 = vshrl.u32 %v6069, 7
  %v6071 = vsub.s32 0, %v6070
  %v6072 = vrot.slane %v6068, %v6071
  %v6073 = vmul.f32 %v6066, %v6072
  %v6074 = vmul.f32 %v6067, %v6072
  %v6075 = vld [vmem:[%s13 + $0x22] sm:$0x1]
  %v6076 = vlaneseq
  %v6077 = vshrl.u32 %v6076, 7
  %v6078 = vsub.s32 0, %v6077
  %v6079 = vrot.slane %v6075, %v6078
  %v6080 = vadd.f32 %v6073, %v6079
  %v6081 = vadd.f32 %v6074, %v6079
  %v6082 = vadd.f32 %v6080, %v5484
  %v6083 = vadd.f32 %v6081, %v5489
  %s6084 = scalar_lea.vmem %s9, 512
  %v6085 = vld [vmem:[%s6084] sm:$0xff]
  %v6086 = vld [vmem:[%s6084 + $0x8] sm:$0xff]
  %v6087 = vld [vmem:[%s6084 + $0x10] sm:$0xff]
  %v6088 = vld [vmem:[%s6084 + $0x18] sm:$0xff]
  %v6089 = vld [vmem:[%s13 + $0x23] sm:$0x1]
  %v6090 = vlaneseq
  %v6091 = vshrl.u32 %v6090, 7
  %v6092 = vsub.s32 0, %v6091
  %v6093 = vrot.slane %v6089, %v6092
  %v6095 = vsel %vm537, %v6082, 0
  %v6098 = vsel %vm537, %v6083, 0
  %6100 = vmatprep.subr.mxu0 0.0
  %6101 = vmatpush1.msra.mxu0 0.0
  %6102 = vmatprep.subr.mxu0 0.0
  %6103 = vmatpush1.msra.mxu0 0.0
  %6104 = vmatprep.subr.mxu0 0.0
  %6105 = vmatpush1.msra.mxu0 0.0
  %6106 = vmatprep.subr.mxu0 0.0
  %6107 = vmatpush1.msra.mxu0 0.0
  %6108 = vmatprep.subr.mxu0 0.0
  %6109 = vmatpush1.msra.mxu0 0.0
  %6110 = vmatprep.subr.mxu0 0.0
  %6111 = vmatpush1.msra.mxu0 0.0
  %6112 = vmatprep.subr.mxu0 0.0
  %6113 = vmatpush1.msra.mxu0 0.0
  %6114 = vmatprep.subr.mxu0 0.0
  %6115 = vmatpush1.msra.mxu0 0.0
  %6116 = vmatprep.subr.mxu0 0.0
  %6117 = vmatpush1.msra.mxu0 0.0
  %6118 = vmatprep.subr.mxu0 0.0
  %6119 = vmatpush1.msra.mxu0 0.0
  %6120 = vmatprep.subr.mxu0 0.0
  %6121 = vmatpush1.msra.mxu0 0.0
  %6122 = vmatprep.subr.mxu0 0.0
  %6123 = vmatpush1.msra.mxu0 0.0
  %6124 = vmatprep.subr.mxu0 0.0
  %6125 = vmatpush1.msra.mxu0 %v6088
  %6126 = vmatprep.subr.mxu0 0.0
  %6127 = vmatpush1.msra.mxu0 %v6087
  %6128 = vmatprep.subr.mxu0 0.0
  %6129 = vmatpush1.msra.mxu0 %v6086
  %6130 = vmatprep.subr.mxu0 0.0
  %6131 = vmatpush1.msra.mxu0 %v6085
  %6132 = vmatprep.subr.mxu0 0.0
  %6133 = vmatpush2.msra.mxu0 0.0
  %6134 = vmatprep.subr.mxu0 0.0
  %6135 = vmatpush2.msra.mxu0 0.0
  %6136 = vmatprep.subr.mxu0 0.0
  %6137 = vmatpush2.msra.mxu0 0.0
  %6138 = vmatprep.subr.mxu0 0.0
  %6139 = vmatpush2.msra.mxu0 0.0
  %6140 = vmatprep.subr.mxu0 0.0
  %6141 = vmatpush2.msra.mxu0 0.0
  %6142 = vmatprep.subr.mxu0 0.0
  %6143 = vmatpush2.msra.mxu0 0.0
  %6144 = vmatprep.subr.mxu0 0.0
  %6145 = vmatpush2.msra.mxu0 0.0
  %6146 = vmatprep.subr.mxu0 0.0
  %6147 = vmatpush2.msra.mxu0 0.0
  %6148 = vmatprep.subr.mxu0 0.0
  %6149 = vmatpush2.msra.mxu0 0.0
  %6150 = vmatprep.subr.mxu0 0.0
  %6151 = vmatpush2.msra.mxu0 0.0
  %6152 = vmatprep.subr.mxu0 0.0
  %6153 = vmatpush2.msra.mxu0 0.0
  %6154 = vmatprep.subr.mxu0 0.0
  %6155 = vmatpush2.msra.mxu0 0.0
  %6156 = vmatprep.subr.mxu0 0.0
  %6157 = vmatpush2.msra.mxu0 0.0
  %6158 = vmatprep.subr.mxu0 0.0
  %6159 = vmatpush2.msra.mxu0 0.0
  %6160 = vmatprep.subr.mxu0 0.0
  %6161 = vmatpush2.msra.mxu0 0.0
  %6162 = vmatprep.subr.mxu0 0.0
  %6163 = vmatpush2.msra.mxu0 0.0
  %6164 = vmatprep.mubr.f32.mxu0 0.0
  %6165 = vmatmul.mubr.f32.gmra.mxu0 %v6095
  %v6166 = vpop.f32.mrf.mxu0
  %v6167 = vadd.f32 %v6093, %v6166
  %v6168 = vpop.f32.mrf.mxu0
  %6169 = vmatprep.mubr.f32.mxu0 0.0
  %6170 = vmatmul.mubr.f32.gmra.mxu0 %v6098
  %v6171 = vpop.f32.mrf.mxu0
  %v6172 = vadd.f32 %v6093, %v6171
  %v6173 = vpop.f32.mrf.mxu0
  %6174 = vdwg.mxu0
  %v6176 = vsel %vm537, %v6167, 0
  %v6179 = vsel %vm537, %v6172, 0
  %v6182 = vsel %vm537, %v3316, 0
  %v6185 = vsel %vm537, %v3321, 0
  %v6188 = vsel %vm537, %v3326, 0
  %v6191 = vsel %vm537, %v3331, 0
  %v6194 = vsel %vm537, %v3336, 0
  %v6197 = vsel %vm537, %v3341, 0
  %v6200 = vsel %vm537, %v3346, 0
  %v6203 = vsel %vm537, %v3351, 0
  %v6206 = vsel %vm537, %v3356, 0
  %v6209 = vsel %vm537, %v3361, 0
  %v6212 = vsel %vm537, %v3366, 0
  %v6215 = vsel %vm537, %v3371, 0
  %v6218 = vsel %vm537, %v3376, 0
  %v6221 = vsel %vm537, %v3381, 0
  %v6224 = vsel %vm537, %v3386, 0
  %v6227 = vsel %vm537, %v3391, 0
  %6229 = vmatprep.subr.mxu0 0.0
  %6230 = vmatpush1.xpose.msra.mxu0 %v6227
  %6231 = vmatprep.subr.mxu0 0.0
  %6232 = vmatpush1.xpose.msra.mxu0 %v6224
  %6233 = vmatprep.subr.mxu0 0.0
  %6234 = vmatpush1.xpose.msra.mxu0 %v6221
  %6235 = vmatprep.subr.mxu0 0.0
  %6236 = vmatpush1.xpose.msra.mxu0 %v6218
  %6237 = vmatprep.subr.mxu0 0.0
  %6238 = vmatpush1.xpose.msra.mxu0 %v6215
  %6239 = vmatprep.subr.mxu0 0.0
  %6240 = vmatpush1.xpose.msra.mxu0 %v6212
  %6241 = vmatprep.subr.mxu0 0.0
  %6242 = vmatpush1.xpose.msra.mxu0 %v6209
  %6243 = vmatprep.subr.mxu0 0.0
  %6244 = vmatpush1.xpose.msra.mxu0 %v6206
  %6245 = vmatprep.subr.mxu0 0.0
  %6246 = vmatpush1.xpose.msra.mxu0 %v6203
  %6247 = vmatprep.subr.mxu0 0.0
  %6248 = vmatpush1.xpose.msra.mxu0 %v6200
  %6249 = vmatprep.subr.mxu0 0.0
  %6250 = vmatpush1.xpose.msra.mxu0 %v6197
  %6251 = vmatprep.subr.mxu0 0.0
  %6252 = vmatpush1.xpose.msra.mxu0 %v6194
  %6253 = vmatprep.subr.mxu0 0.0
  %6254 = vmatpush1.xpose.msra.mxu0 %v6191
  %6255 = vmatprep.subr.mxu0 0.0
  %6256 = vmatpush1.xpose.msra.mxu0 %v6188
  %6257 = vmatprep.subr.mxu0 0.0
  %6258 = vmatpush1.xpose.msra.mxu0 %v6185
  %6259 = vmatprep.subr.mxu0 0.0
  %6260 = vmatpush1.xpose.msra.mxu0 %v6182
  %6261 = vmatprep.subr.mxu0 0.0
  %6262 = vmatpush2.xpose.msra.mxu0 0.0
  %6263 = vmatprep.subr.mxu0 0.0
  %6264 = vmatpush2.xpose.msra.mxu0 0.0
  %6265 = vmatprep.subr.mxu0 0.0
  %6266 = vmatpush2.xpose.msra.mxu0 0.0
  %6267 = vmatprep.subr.mxu0 0.0
  %6268 = vmatpush2.xpose.msra.mxu0 0.0
  %6269 = vmatprep.subr.mxu0 0.0
  %6270 = vmatpush2.xpose.msra.mxu0 0.0
  %6271 = vmatprep.subr.mxu0 0.0
  %6272 = vmatpush2.xpose.msra.mxu0 0.0
  %6273 = vmatprep.subr.mxu0 0.0
  %6274 = vmatpush2.xpose.msra.mxu0 0.0
  %6275 = vmatprep.subr.mxu0 0.0
  %6276 = vmatpush2.xpose.msra.mxu0 0.0
  %6277 = vmatprep.subr.mxu0 0.0
  %6278 = vmatpush2.xpose.msra.mxu0 0.0
  %6279 = vmatprep.subr.mxu0 0.0
  %6280 = vmatpush2.xpose.msra.mxu0 0.0
  %6281 = vmatprep.subr.mxu0 0.0
  %6282 = vmatpush2.xpose.msra.mxu0 0.0
  %6283 = vmatprep.subr.mxu0 0.0
  %6284 = vmatpush2.xpose.msra.mxu0 0.0
  %6285 = vmatprep.subr.mxu0 0.0
  %6286 = vmatpush2.xpose.msra.mxu0 0.0
  %6287 = vmatprep.subr.mxu0 0.0
  %6288 = vmatpush2.xpose.msra.mxu0 0.0
  %6289 = vmatprep.subr.mxu0 0.0
  %6290 = vmatpush2.xpose.msra.mxu0 0.0
  %6291 = vmatprep.subr.mxu0 0.0
  %6292 = vmatpush2.xpose.msra.mxu0 0.0
  %6293 = vmatprep.mubr.f32.mxu0 0.0
  %6294 = vmatmul.mubr.f32.gmra.mxu0 %v6176
  %v6295 = vpop.f32.mrf.mxu0
  %v6296 = vadd.f32 0.0, %v6295
  %v6297 = vpop.f32.mrf.mxu0
  %6298 = vmatprep.mubr.f32.mxu0 0.0
  %6299 = vmatmul.mubr.f32.gmra.mxu0 %v6179
  %v6300 = vpop.f32.mrf.mxu0
  %v6301 = vadd.f32 0.0, %v6300
  %v6302 = vpop.f32.mrf.mxu0
  %6303 = vdwg.mxu0
  %v6304 = vmul.f32 %v6296, 0.17677669
  %v6305 = vmul.f32 %v6301, 0.17677669
  %v6306 = vadd.f32 %v6304, %v110
  %v6307 = vadd.f32 %v6305, %v111
  %6308 = vmax.xlane.f32.xlu0 %v6306
  %v6309 = vpop.xlane.xlu0 %6308
  %6310 = vmax.xlane.f32.xlu0 %v6307
  %v6311 = vpop.xlane.xlu0 %6310
  %v6312 = vsub.f32 %v6306, %v6309
  %v6313 = vsub.f32 %v6307, %v6311
  %v6314 = vmul.f32 %v6312, 1.442695
  %v6315 = vpow.pop %v6314
  %v6316 = vmul.f32 %v6313, 1.442695
  %v6317 = vpow.pop %v6316
  %6318 = vadd.xlane.f32.xlu0 %v6315
  %v6319 = vpop.xlane.xlu0 %6318
  %6320 = vadd.xlane.f32.xlu0 %v6317
  %v6321 = vpop.xlane.xlu0 %6320
  %v6322 = vrcp.pop %v6319
  %v6323 = vrcp.pop %v6321
  %v6324 = vmul.f32 %v6315, %v6322
  %v6325 = vmul.f32 %v6317, %v6323
  %6326 = vmatprep.subr.mxu0 0.0
  %6327 = vmatpush1.msra.mxu0 %v3749
  %6328 = vmatprep.subr.mxu0 0.0
  %6329 = vmatpush1.msra.mxu0 %v3744
  %6330 = vmatprep.subr.mxu0 0.0
  %6331 = vmatpush1.msra.mxu0 %v3739
  %6332 = vmatprep.subr.mxu0 0.0
  %6333 = vmatpush1.msra.mxu0 %v3734
  %6334 = vmatprep.subr.mxu0 0.0
  %6335 = vmatpush1.msra.mxu0 %v3729
  %6336 = vmatprep.subr.mxu0 0.0
  %6337 = vmatpush1.msra.mxu0 %v3724
  %6338 = vmatprep.subr.mxu0 0.0
  %6339 = vmatpush1.msra.mxu0 %v3719
  %6340 = vmatprep.subr.mxu0 0.0
  %6341 = vmatpush1.msra.mxu0 %v3714
  %6342 = vmatprep.subr.mxu0 0.0
  %6343 = vmatpush1.msra.mxu0 %v3709
  %6344 = vmatprep.subr.mxu0 0.0
  %6345 = vmatpush1.msra.mxu0 %v3704
  %6346 = vmatprep.subr.mxu0 0.0
  %6347 = vmatpush1.msra.mxu0 %v3699
  %6348 = vmatprep.subr.mxu0 0.0
  %6349 = vmatpush1.msra.mxu0 %v3694
  %6350 = vmatprep.subr.mxu0 0.0
  %6351 = vmatpush1.msra.mxu0 %v3689
  %6352 = vmatprep.subr.mxu0 0.0
  %6353 = vmatpush1.msra.mxu0 %v3684
  %6354 = vmatprep.subr.mxu0 0.0
  %6355 = vmatpush1.msra.mxu0 %v3679
  %6356 = vmatprep.subr.mxu0 0.0
  %6357 = vmatpush1.msra.mxu0 %v3674
  %6358 = vmatprep.subr.mxu0 0.0
  %6359 = vmatpush2.msra.mxu0 0.0
  %6360 = vmatprep.subr.mxu0 0.0
  %6361 = vmatpush2.msra.mxu0 0.0
  %6362 = vmatprep.subr.mxu0 0.0
  %6363 = vmatpush2.msra.mxu0 0.0
  %6364 = vmatprep.subr.mxu0 0.0
  %6365 = vmatpush2.msra.mxu0 0.0
  %6366 = vmatprep.subr.mxu0 0.0
  %6367 = vmatpush2.msra.mxu0 0.0
  %6368 = vmatprep.subr.mxu0 0.0
  %6369 = vmatpush2.msra.mxu0 0.0
  %6370 = vmatprep.subr.mxu0 0.0
  %6371 = vmatpush2.msra.mxu0 0.0
  %6372 = vmatprep.subr.mxu0 0.0
  %6373 = vmatpush2.msra.mxu0 0.0
  %6374 = vmatprep.subr.mxu0 0.0
  %6375 = vmatpush2.msra.mxu0 0.0
  %6376 = vmatprep.subr.mxu0 0.0
  %6377 = vmatpush2.msra.mxu0 0.0
  %6378 = vmatprep.subr.mxu0 0.0
  %6379 = vmatpush2.msra.mxu0 0.0
  %6380 = vmatprep.subr.mxu0 0.0
  %6381 = vmatpush2.msra.mxu0 0.0
  %6382 = vmatprep.subr.mxu0 0.0
  %6383 = vmatpush2.msra.mxu0 0.0
  %6384 = vmatprep.subr.mxu0 0.0
  %6385 = vmatpush2.msra.mxu0 0.0
  %6386 = vmatprep.subr.mxu0 0.0
  %6387 = vmatpush2.msra.mxu0 0.0
  %6388 = vmatprep.subr.mxu0 0.0
  %6389 = vmatpush2.msra.mxu0 0.0
  %6390 = vmatprep.mubr.f32.mxu0 0.0
  %6391 = vmatmul.mubr.f32.gmra.mxu0 %v6324
  %v6392 = vpop.f32.mrf.mxu0
  %v6393 = vadd.f32 0.0, %v6392
  %v6394 = vpop.f32.mrf.mxu0
  %6395 = vmatprep.mubr.f32.mxu0 0.0
  %6396 = vmatmul.mubr.f32.gmra.mxu0 %v6325
  %v6397 = vpop.f32.mrf.mxu0
  %v6398 = vadd.f32 0.0, %v6397
  %v6399 = vpop.f32.mrf.mxu0
  %6400 = vdwg.mxu0
  %s6401 = scalar_lea.vmem %s9, 608
  %v6402 = vld [vmem:[%s6401] sm:$0xff]
  %v6403 = vld [vmem:[%s6401 + $0x8] sm:$0xff]
  %v6404 = vld [vmem:[%s6401 + $0x10] sm:$0xff]
  %v6405 = vld [vmem:[%s6401 + $0x18] sm:$0xff]
  %v6406 = vld [vmem:[%s13 + $0x26] sm:$0x1]
  %v6407 = vlaneseq
  %v6408 = vshrl.u32 %v6407, 7
  %v6409 = vsub.s32 0, %v6408
  %v6410 = vrot.slane %v6406, %v6409
  %v6412 = vsel %vm537, %v6393, 0
  %v6415 = vsel %vm537, %v6398, 0
  %6417 = vmatprep.subr.mxu0 0.0
  %6418 = vmatpush1.msra.mxu0 0.0
  %6419 = vmatprep.subr.mxu0 0.0
  %6420 = vmatpush1.msra.mxu0 0.0
  %6421 = vmatprep.subr.mxu0 0.0
  %6422 = vmatpush1.msra.mxu0 0.0
  %6423 = vmatprep.subr.mxu0 0.0
  %6424 = vmatpush1.msra.mxu0 0.0
  %6425 = vmatprep.subr.mxu0 0.0
  %6426 = vmatpush1.msra.mxu0 0.0
  %6427 = vmatprep.subr.mxu0 0.0
  %6428 = vmatpush1.msra.mxu0 0.0
  %6429 = vmatprep.subr.mxu0 0.0
  %6430 = vmatpush1.msra.mxu0 0.0
  %6431 = vmatprep.subr.mxu0 0.0
  %6432 = vmatpush1.msra.mxu0 0.0
  %6433 = vmatprep.subr.mxu0 0.0
  %6434 = vmatpush1.msra.mxu0 0.0
  %6435 = vmatprep.subr.mxu0 0.0
  %6436 = vmatpush1.msra.mxu0 0.0
  %6437 = vmatprep.subr.mxu0 0.0
  %6438 = vmatpush1.msra.mxu0 0.0
  %6439 = vmatprep.subr.mxu0 0.0
  %6440 = vmatpush1.msra.mxu0 0.0
  %6441 = vmatprep.subr.mxu0 0.0
  %6442 = vmatpush1.msra.mxu0 %v6405
  %6443 = vmatprep.subr.mxu0 0.0
  %6444 = vmatpush1.msra.mxu0 %v6404
  %6445 = vmatprep.subr.mxu0 0.0
  %6446 = vmatpush1.msra.mxu0 %v6403
  %6447 = vmatprep.subr.mxu0 0.0
  %6448 = vmatpush1.msra.mxu0 %v6402
  %6449 = vmatprep.subr.mxu0 0.0
  %6450 = vmatpush2.msra.mxu0 0.0
  %6451 = vmatprep.subr.mxu0 0.0
  %6452 = vmatpush2.msra.mxu0 0.0
  %6453 = vmatprep.subr.mxu0 0.0
  %6454 = vmatpush2.msra.mxu0 0.0
  %6455 = vmatprep.subr.mxu0 0.0
  %6456 = vmatpush2.msra.mxu0 0.0
  %6457 = vmatprep.subr.mxu0 0.0
  %6458 = vmatpush2.msra.mxu0 0.0
  %6459 = vmatprep.subr.mxu0 0.0
  %6460 = vmatpush2.msra.mxu0 0.0
  %6461 = vmatprep.subr.mxu0 0.0
  %6462 = vmatpush2.msra.mxu0 0.0
  %6463 = vmatprep.subr.mxu0 0.0
  %6464 = vmatpush2.msra.mxu0 0.0
  %6465 = vmatprep.subr.mxu0 0.0
  %6466 = vmatpush2.msra.mxu0 0.0
  %6467 = vmatprep.subr.mxu0 0.0
  %6468 = vmatpush2.msra.mxu0 0.0
  %6469 = vmatprep.subr.mxu0 0.0
  %6470 = vmatpush2.msra.mxu0 0.0
  %6471 = vmatprep.subr.mxu0 0.0
  %6472 = vmatpush2.msra.mxu0 0.0
  %6473 = vmatprep.subr.mxu0 0.0
  %6474 = vmatpush2.msra.mxu0 0.0
  %6475 = vmatprep.subr.mxu0 0.0
  %6476 = vmatpush2.msra.mxu0 0.0
  %6477 = vmatprep.subr.mxu0 0.0
  %6478 = vmatpush2.msra.mxu0 0.0
  %6479 = vmatprep.subr.mxu0 0.0
  %6480 = vmatpush2.msra.mxu0 0.0
  %6481 = vmatprep.mubr.f32.mxu0 0.0
  %6482 = vmatmul.mubr.f32.gmra.mxu0 %v6412
  %v6483 = vpop.f32.mrf.mxu0
  %v6484 = vadd.f32 %v6410, %v6483
  %v6485 = vpop.f32.mrf.mxu0
  %6486 = vmatprep.mubr.f32.mxu0 0.0
  %6487 = vmatmul.mubr.f32.gmra.mxu0 %v6415
  %v6488 = vpop.f32.mrf.mxu0
  %v6489 = vadd.f32 %v6410, %v6488
  %v6490 = vpop.f32.mrf.mxu0
  %6491 = vdwg.mxu0
  %v6492 = vadd.f32 %v6080, %v6484
  %v6493 = vadd.f32 %v6081, %v6489
  %v6494 = vsel %vm537, %v6492, 0.0
  %6495 = vadd.xlane.f32.xlu0 %v6494
  %v6496 = vpop.xlane.xlu0 %6495
  %v6497 = vsel %vm537, %v6493, 0.0
  %6498 = vadd.xlane.f32.xlu0 %v6497
  %v6499 = vpop.xlane.xlu0 %6498
  %v6500 = vmul.f32 %v6496, %v2126
  %v6501 = vmul.f32 %v6499, %v2126
  %v6502 = vsub.f32 %v6492, %v6500
  %v6503 = vsub.f32 %v6493, %v6501
  %v6504 = vmul.f32 %v6502, %v6502
  %v6505 = vmul.f32 %v6503, %v6503
  %v6506 = vsel %vm537, %v6504, 0.0
  %6507 = vadd.xlane.f32.xlu0 %v6506
  %v6508 = vpop.xlane.xlu0 %6507
  %v6509 = vsel %vm537, %v6505, 0.0
  %6510 = vadd.xlane.f32.xlu0 %v6509
  %v6511 = vpop.xlane.xlu0 %6510
  %v6512 = vmul.f32 %v6508, %v2126
  %v6513 = vmul.f32 %v6511, %v2126
  %v6514 = vadd.f32 %v6512, 1e-05
  %v6515 = vadd.f32 %v6513, 1e-05
  %v6516 = vrsqrt.pop %v6514
  %v6517 = vrsqrt.pop %v6515
  %v6518 = vmul.f32 %v6502, %v6516
  %v6519 = vmul.f32 %v6503, %v6517
  %v6520 = vld [vmem:[%s13 + $0x27] sm:$0x1]
  %v6521 = vlaneseq
  %v6522 = vshrl.u32 %v6521, 7
  %v6523 = vsub.s32 0, %v6522
  %v6524 = vrot.slane %v6520, %v6523
  %v6525 = vmul.f32 %v6518, %v6524
  %v6526 = vmul.f32 %v6519, %v6524
  %v6527 = vld [vmem:[%s13 + $0x28] sm:$0x1]
  %v6528 = vlaneseq
  %v6529 = vshrl.u32 %v6528, 7
  %v6530 = vsub.s32 0, %v6529
  %v6531 = vrot.slane %v6527, %v6530
  %v6532 = vadd.f32 %v6525, %v6531
  %v6533 = vadd.f32 %v6526, %v6531
  %s6534 = scalar_lea.vmem %s10, 64
  %v6535 = vld [vmem:[%s6534] sm:$0xff]
  %v6536 = vld [vmem:[%s6534 + $0x8] sm:$0xff]
  %v6537 = vld [vmem:[%s6534 + $0x10] sm:$0xff]
  %v6538 = vld [vmem:[%s6534 + $0x18] sm:$0xff]
  %v6539 = vld [vmem:[%s14 + $0x2] sm:$0x1]
  %v6540 = vlaneseq
  %v6541 = vshrl.u32 %v6540, 7
  %v6542 = vsub.s32 0, %v6541
  %v6543 = vrot.slane %v6539, %v6542
  %v6545 = vsel %vm537, %v6532, 0
  %v6548 = vsel %vm537, %v6533, 0
  %6550 = vmatprep.subr.mxu0 0.0
  %6551 = vmatpush1.msra.mxu0 0.0
  %6552 = vmatprep.subr.mxu0 0.0
  %6553 = vmatpush1.msra.mxu0 0.0
  %6554 = vmatprep.subr.mxu0 0.0
  %6555 = vmatpush1.msra.mxu0 0.0
  %6556 = vmatprep.subr.mxu0 0.0
  %6557 = vmatpush1.msra.mxu0 0.0
  %6558 = vmatprep.subr.mxu0 0.0
  %6559 = vmatpush1.msra.mxu0 0.0
  %6560 = vmatprep.subr.mxu0 0.0
  %6561 = vmatpush1.msra.mxu0 0.0
  %6562 = vmatprep.subr.mxu0 0.0
  %6563 = vmatpush1.msra.mxu0 0.0
  %6564 = vmatprep.subr.mxu0 0.0
  %6565 = vmatpush1.msra.mxu0 0.0
  %6566 = vmatprep.subr.mxu0 0.0
  %6567 = vmatpush1.msra.mxu0 0.0
  %6568 = vmatprep.subr.mxu0 0.0
  %6569 = vmatpush1.msra.mxu0 0.0
  %6570 = vmatprep.subr.mxu0 0.0
  %6571 = vmatpush1.msra.mxu0 0.0
  %6572 = vmatprep.subr.mxu0 0.0
  %6573 = vmatpush1.msra.mxu0 0.0
  %6574 = vmatprep.subr.mxu0 0.0
  %6575 = vmatpush1.msra.mxu0 %v6538
  %6576 = vmatprep.subr.mxu0 0.0
  %6577 = vmatpush1.msra.mxu0 %v6537
  %6578 = vmatprep.subr.mxu0 0.0
  %6579 = vmatpush1.msra.mxu0 %v6536
  %6580 = vmatprep.subr.mxu0 0.0
  %6581 = vmatpush1.msra.mxu0 %v6535
  %6582 = vmatprep.subr.mxu0 0.0
  %6583 = vmatpush2.msra.mxu0 0.0
  %6584 = vmatprep.subr.mxu0 0.0
  %6585 = vmatpush2.msra.mxu0 0.0
  %6586 = vmatprep.subr.mxu0 0.0
  %6587 = vmatpush2.msra.mxu0 0.0
  %6588 = vmatprep.subr.mxu0 0.0
  %6589 = vmatpush2.msra.mxu0 0.0
  %6590 = vmatprep.subr.mxu0 0.0
  %6591 = vmatpush2.msra.mxu0 0.0
  %6592 = vmatprep.subr.mxu0 0.0
  %6593 = vmatpush2.msra.mxu0 0.0
  %6594 = vmatprep.subr.mxu0 0.0
  %6595 = vmatpush2.msra.mxu0 0.0
  %6596 = vmatprep.subr.mxu0 0.0
  %6597 = vmatpush2.msra.mxu0 0.0
  %6598 = vmatprep.subr.mxu0 0.0
  %6599 = vmatpush2.msra.mxu0 0.0
  %6600 = vmatprep.subr.mxu0 0.0
  %6601 = vmatpush2.msra.mxu0 0.0
  %6602 = vmatprep.subr.mxu0 0.0
  %6603 = vmatpush2.msra.mxu0 0.0
  %6604 = vmatprep.subr.mxu0 0.0
  %6605 = vmatpush2.msra.mxu0 0.0
  %6606 = vmatprep.subr.mxu0 0.0
  %6607 = vmatpush2.msra.mxu0 0.0
  %6608 = vmatprep.subr.mxu0 0.0
  %6609 = vmatpush2.msra.mxu0 0.0
  %6610 = vmatprep.subr.mxu0 0.0
  %6611 = vmatpush2.msra.mxu0 0.0
  %6612 = vmatprep.subr.mxu0 0.0
  %6613 = vmatpush2.msra.mxu0 0.0
  %6614 = vmatprep.mubr.f32.mxu0 0.0
  %6615 = vmatmul.mubr.f32.gmra.mxu0 %v6545
  %v6616 = vpop.f32.mrf.mxu0
  %v6617 = vadd.f32 %v6543, %v6616
  %v6618 = vpop.f32.mrf.mxu0
  %6619 = vmatprep.mubr.f32.mxu0 0.0
  %6620 = vmatmul.mubr.f32.gmra.mxu0 %v6548
  %v6621 = vpop.f32.mrf.mxu0
  %v6622 = vadd.f32 %v6543, %v6621
  %v6623 = vpop.f32.mrf.mxu0
  %6624 = vdwg.mxu0
  %v6625 = vmax.f32 %v6617, 0.0
  %v6626 = vmax.f32 %v6622, 0.0
  %s6627 = scalar_lea.vmem %s11, 128
  %v6628 = vld [vmem:[%s6627] sm:$0xff]
  %v6629 = vld [vmem:[%s6627 + $0x8] sm:$0xff]
  %v6630 = vld [vmem:[%s6627 + $0x10] sm:$0xff]
  %v6631 = vld [vmem:[%s6627 + $0x18] sm:$0xff]
  %v6632 = vld [vmem:[%s6627 + $0x20] sm:$0xff]
  %v6633 = vld [vmem:[%s6627 + $0x28] sm:$0xff]
  %v6634 = vld [vmem:[%s6627 + $0x30] sm:$0xff]
  %v6635 = vld [vmem:[%s6627 + $0x38] sm:$0xff]
  %v6636 = vld [vmem:[%s13 + $0x29] sm:$0x1]
  %v6637 = vlaneseq
  %v6638 = vshrl.u32 %v6637, 7
  %v6639 = vsub.s32 0, %v6638
  %v6640 = vrot.slane %v6636, %v6639
  %v6642 = vsel %vm2560, %v6625, 0
  %v6645 = vsel %vm2560, %v6626, 0
  %6647 = vmatprep.subr.mxu0 0.0
  %6648 = vmatpush1.msra.mxu0 0.0
  %6649 = vmatprep.subr.mxu0 0.0
  %6650 = vmatpush1.msra.mxu0 0.0
  %6651 = vmatprep.subr.mxu0 0.0
  %6652 = vmatpush1.msra.mxu0 0.0
  %6653 = vmatprep.subr.mxu0 0.0
  %6654 = vmatpush1.msra.mxu0 0.0
  %6655 = vmatprep.subr.mxu0 0.0
  %6656 = vmatpush1.msra.mxu0 0.0
  %6657 = vmatprep.subr.mxu0 0.0
  %6658 = vmatpush1.msra.mxu0 0.0
  %6659 = vmatprep.subr.mxu0 0.0
  %6660 = vmatpush1.msra.mxu0 0.0
  %6661 = vmatprep.subr.mxu0 0.0
  %6662 = vmatpush1.msra.mxu0 0.0
  %6663 = vmatprep.subr.mxu0 0.0
  %6664 = vmatpush1.msra.mxu0 %v6635
  %6665 = vmatprep.subr.mxu0 0.0
  %6666 = vmatpush1.msra.mxu0 %v6634
  %6667 = vmatprep.subr.mxu0 0.0
  %6668 = vmatpush1.msra.mxu0 %v6633
  %6669 = vmatprep.subr.mxu0 0.0
  %6670 = vmatpush1.msra.mxu0 %v6632
  %6671 = vmatprep.subr.mxu0 0.0
  %6672 = vmatpush1.msra.mxu0 %v6631
  %6673 = vmatprep.subr.mxu0 0.0
  %6674 = vmatpush1.msra.mxu0 %v6630
  %6675 = vmatprep.subr.mxu0 0.0
  %6676 = vmatpush1.msra.mxu0 %v6629
  %6677 = vmatprep.subr.mxu0 0.0
  %6678 = vmatpush1.msra.mxu0 %v6628
  %6679 = vmatprep.subr.mxu0 0.0
  %6680 = vmatpush2.msra.mxu0 0.0
  %6681 = vmatprep.subr.mxu0 0.0
  %6682 = vmatpush2.msra.mxu0 0.0
  %6683 = vmatprep.subr.mxu0 0.0
  %6684 = vmatpush2.msra.mxu0 0.0
  %6685 = vmatprep.subr.mxu0 0.0
  %6686 = vmatpush2.msra.mxu0 0.0
  %6687 = vmatprep.subr.mxu0 0.0
  %6688 = vmatpush2.msra.mxu0 0.0
  %6689 = vmatprep.subr.mxu0 0.0
  %6690 = vmatpush2.msra.mxu0 0.0
  %6691 = vmatprep.subr.mxu0 0.0
  %6692 = vmatpush2.msra.mxu0 0.0
  %6693 = vmatprep.subr.mxu0 0.0
  %6694 = vmatpush2.msra.mxu0 0.0
  %6695 = vmatprep.subr.mxu0 0.0
  %6696 = vmatpush2.msra.mxu0 0.0
  %6697 = vmatprep.subr.mxu0 0.0
  %6698 = vmatpush2.msra.mxu0 0.0
  %6699 = vmatprep.subr.mxu0 0.0
  %6700 = vmatpush2.msra.mxu0 0.0
  %6701 = vmatprep.subr.mxu0 0.0
  %6702 = vmatpush2.msra.mxu0 0.0
  %6703 = vmatprep.subr.mxu0 0.0
  %6704 = vmatpush2.msra.mxu0 0.0
  %6705 = vmatprep.subr.mxu0 0.0
  %6706 = vmatpush2.msra.mxu0 0.0
  %6707 = vmatprep.subr.mxu0 0.0
  %6708 = vmatpush2.msra.mxu0 0.0
  %6709 = vmatprep.subr.mxu0 0.0
  %6710 = vmatpush2.msra.mxu0 0.0
  %6711 = vmatprep.mubr.f32.mxu0 0.0
  %6712 = vmatmul.mubr.f32.gmra.mxu0 %v6642
  %v6713 = vpop.f32.mrf.mxu0
  %v6714 = vadd.f32 %v6640, %v6713
  %v6715 = vpop.f32.mrf.mxu0
  %6716 = vmatprep.mubr.f32.mxu0 0.0
  %6717 = vmatmul.mubr.f32.gmra.mxu0 %v6645
  %v6718 = vpop.f32.mrf.mxu0
  %v6719 = vadd.f32 %v6640, %v6718
  %v6720 = vpop.f32.mrf.mxu0
  %6721 = vdwg.mxu0
  %v6722 = vadd.f32 %v6532, %v6714
  %v6723 = vadd.f32 %v6533, %v6719
  %v6724 = vsel %vm537, %v6722, 0.0
  %6725 = vadd.xlane.f32.xlu0 %v6724
  %v6726 = vpop.xlane.xlu0 %6725
  %v6727 = vsel %vm537, %v6723, 0.0
  %6728 = vadd.xlane.f32.xlu0 %v6727
  %v6729 = vpop.xlane.xlu0 %6728
  %v6730 = vmul.f32 %v6726, %v2126
  %v6731 = vmul.f32 %v6729, %v2126
  %v6732 = vsub.f32 %v6722, %v6730
  %v6733 = vsub.f32 %v6723, %v6731
  %v6734 = vmul.f32 %v6732, %v6732
  %v6735 = vmul.f32 %v6733, %v6733
  %v6736 = vsel %vm537, %v6734, 0.0
  %6737 = vadd.xlane.f32.xlu0 %v6736
  %v6738 = vpop.xlane.xlu0 %6737
  %v6739 = vsel %vm537, %v6735, 0.0
  %6740 = vadd.xlane.f32.xlu0 %v6739
  %v6741 = vpop.xlane.xlu0 %6740
  %v6742 = vmul.f32 %v6738, %v2126
  %v6743 = vmul.f32 %v6741, %v2126
  %v6744 = vadd.f32 %v6742, 1e-05
  %v6745 = vadd.f32 %v6743, 1e-05
  %v6746 = vrsqrt.pop %v6744
  %v6747 = vrsqrt.pop %v6745
  %v6748 = vmul.f32 %v6732, %v6746
  %v6749 = vmul.f32 %v6733, %v6747
  %v6750 = vld [vmem:[%s13 + $0x2a] sm:$0x1]
  %v6751 = vlaneseq
  %v6752 = vshrl.u32 %v6751, 7
  %v6753 = vsub.s32 0, %v6752
  %v6754 = vrot.slane %v6750, %v6753
  %v6755 = vmul.f32 %v6748, %v6754
  %v6756 = vmul.f32 %v6749, %v6754
  %v6757 = vld [vmem:[%s13 + $0x2b] sm:$0x1]
  %v6758 = vlaneseq
  %v6759 = vshrl.u32 %v6758, 7
  %v6760 = vsub.s32 0, %v6759
  %v6761 = vrot.slane %v6757, %v6760
  %v6762 = vadd.f32 %v6755, %v6761
  %v6763 = vadd.f32 %v6756, %v6761
  %v6764 = vxor.u32 %v5399, 2147483648
  %v6765 = vxor.u32 %v5400, 2147483648
  %v6766 = vmul.f32 %v6764, 1.442695
  %v6767 = vpow.pop %v6766
  %v6768 = vmul.f32 %v6765, 1.442695
  %v6769 = vpow.pop %v6768
  %v6770 = vadd.f32 %v6767, 1.0
  %v6771 = vadd.f32 %v6769, 1.0
  %v6772 = vrcp.pop %v6770
  %v6773 = vmul.f32 1.0, %v6772
  %v6774 = vrcp.pop %v6771
  %v6775 = vmul.f32 1.0, %v6774
  %v6777 = vsel %vm537, %v6762, 0
  %v6780 = vsel %vm537, %v6763, 0
  %6782 = vmatprep.subr.mxu0 0.0
  %6783 = vmatpush1.msra.mxu0 0.0
  %6784 = vmatprep.subr.mxu0 0.0
  %6785 = vmatpush1.msra.mxu0 0.0
  %6786 = vmatprep.subr.mxu0 0.0
  %6787 = vmatpush1.msra.mxu0 0.0
  %6788 = vmatprep.subr.mxu0 0.0
  %6789 = vmatpush1.msra.mxu0 0.0
  %6790 = vmatprep.subr.mxu0 0.0
  %6791 = vmatpush1.msra.mxu0 0.0
  %6792 = vmatprep.subr.mxu0 0.0
  %6793 = vmatpush1.msra.mxu0 0.0
  %6794 = vmatprep.subr.mxu0 0.0
  %6795 = vmatpush1.msra.mxu0 0.0
  %6796 = vmatprep.subr.mxu0 0.0
  %6797 = vmatpush1.msra.mxu0 0.0
  %6798 = vmatprep.subr.mxu0 0.0
  %6799 = vmatpush1.msra.mxu0 0.0
  %6800 = vmatprep.subr.mxu0 0.0
  %6801 = vmatpush1.msra.mxu0 0.0
  %6802 = vmatprep.subr.mxu0 0.0
  %6803 = vmatpush1.msra.mxu0 0.0
  %6804 = vmatprep.subr.mxu0 0.0
  %6805 = vmatpush1.msra.mxu0 0.0
  %6806 = vmatprep.subr.mxu0 0.0
  %6807 = vmatpush1.msra.mxu0 %v5125
  %6808 = vmatprep.subr.mxu0 0.0
  %6809 = vmatpush1.msra.mxu0 %v5124
  %6810 = vmatprep.subr.mxu0 0.0
  %6811 = vmatpush1.msra.mxu0 %v5123
  %6812 = vmatprep.subr.mxu0 0.0
  %6813 = vmatpush1.msra.mxu0 %v5122
  %6814 = vmatprep.subr.mxu0 0.0
  %6815 = vmatpush2.msra.mxu0 0.0
  %6816 = vmatprep.subr.mxu0 0.0
  %6817 = vmatpush2.msra.mxu0 0.0
  %6818 = vmatprep.subr.mxu0 0.0
  %6819 = vmatpush2.msra.mxu0 0.0
  %6820 = vmatprep.subr.mxu0 0.0
  %6821 = vmatpush2.msra.mxu0 0.0
  %6822 = vmatprep.subr.mxu0 0.0
  %6823 = vmatpush2.msra.mxu0 0.0
  %6824 = vmatprep.subr.mxu0 0.0
  %6825 = vmatpush2.msra.mxu0 0.0
  %6826 = vmatprep.subr.mxu0 0.0
  %6827 = vmatpush2.msra.mxu0 0.0
  %6828 = vmatprep.subr.mxu0 0.0
  %6829 = vmatpush2.msra.mxu0 0.0
  %6830 = vmatprep.subr.mxu0 0.0
  %6831 = vmatpush2.msra.mxu0 0.0
  %6832 = vmatprep.subr.mxu0 0.0
  %6833 = vmatpush2.msra.mxu0 0.0
  %6834 = vmatprep.subr.mxu0 0.0
  %6835 = vmatpush2.msra.mxu0 0.0
  %6836 = vmatprep.subr.mxu0 0.0
  %6837 = vmatpush2.msra.mxu0 0.0
  %6838 = vmatprep.subr.mxu0 0.0
  %6839 = vmatpush2.msra.mxu0 0.0
  %6840 = vmatprep.subr.mxu0 0.0
  %6841 = vmatpush2.msra.mxu0 0.0
  %6842 = vmatprep.subr.mxu0 0.0
  %6843 = vmatpush2.msra.mxu0 0.0
  %6844 = vmatprep.subr.mxu0 0.0
  %6845 = vmatpush2.msra.mxu0 0.0
  %6846 = vmatprep.mubr.f32.mxu0 0.0
  %6847 = vmatmul.mubr.f32.gmra.mxu0 %v6777
  %v6848 = vpop.f32.mrf.mxu0
  %v6849 = vadd.f32 %v5130, %v6848
  %v6850 = vpop.f32.mrf.mxu0
  %6851 = vmatprep.mubr.f32.mxu0 0.0
  %6852 = vmatmul.mubr.f32.gmra.mxu0 %v6780
  %v6853 = vpop.f32.mrf.mxu0
  %v6854 = vadd.f32 %v5130, %v6853
  %v6855 = vpop.f32.mrf.mxu0
  %6856 = vdwg.mxu0
  %v6857 = vmax.f32 %v6849, 0.0
  %v6858 = vmax.f32 %v6854, 0.0
  %v6860 = vsel %vm537, %v6857, 0
  %v6863 = vsel %vm537, %v6858, 0
  %6865 = vmatprep.subr.mxu0 0.0
  %6866 = vmatpush1.msra.mxu0 0.0
  %6867 = vmatprep.subr.mxu0 0.0
  %6868 = vmatpush1.msra.mxu0 0.0
  %6869 = vmatprep.subr.mxu0 0.0
  %6870 = vmatpush1.msra.mxu0 0.0
  %6871 = vmatprep.subr.mxu0 0.0
  %6872 = vmatpush1.msra.mxu0 0.0
  %6873 = vmatprep.subr.mxu0 0.0
  %6874 = vmatpush1.msra.mxu0 0.0
  %6875 = vmatprep.subr.mxu0 0.0
  %6876 = vmatpush1.msra.mxu0 0.0
  %6877 = vmatprep.subr.mxu0 0.0
  %6878 = vmatpush1.msra.mxu0 0.0
  %6879 = vmatprep.subr.mxu0 0.0
  %6880 = vmatpush1.msra.mxu0 0.0
  %6881 = vmatprep.subr.mxu0 0.0
  %6882 = vmatpush1.msra.mxu0 0.0
  %6883 = vmatprep.subr.mxu0 0.0
  %6884 = vmatpush1.msra.mxu0 0.0
  %6885 = vmatprep.subr.mxu0 0.0
  %6886 = vmatpush1.msra.mxu0 0.0
  %6887 = vmatprep.subr.mxu0 0.0
  %6888 = vmatpush1.msra.mxu0 0.0
  %6889 = vmatprep.subr.mxu0 0.0
  %6890 = vmatpush1.msra.mxu0 %v5218
  %6891 = vmatprep.subr.mxu0 0.0
  %6892 = vmatpush1.msra.mxu0 %v5217
  %6893 = vmatprep.subr.mxu0 0.0
  %6894 = vmatpush1.msra.mxu0 %v5216
  %6895 = vmatprep.subr.mxu0 0.0
  %6896 = vmatpush1.msra.mxu0 %v5215
  %6897 = vmatprep.subr.mxu0 0.0
  %6898 = vmatpush2.msra.mxu0 0.0
  %6899 = vmatprep.subr.mxu0 0.0
  %6900 = vmatpush2.msra.mxu0 0.0
  %6901 = vmatprep.subr.mxu0 0.0
  %6902 = vmatpush2.msra.mxu0 0.0
  %6903 = vmatprep.subr.mxu0 0.0
  %6904 = vmatpush2.msra.mxu0 0.0
  %6905 = vmatprep.subr.mxu0 0.0
  %6906 = vmatpush2.msra.mxu0 0.0
  %6907 = vmatprep.subr.mxu0 0.0
  %6908 = vmatpush2.msra.mxu0 0.0
  %6909 = vmatprep.subr.mxu0 0.0
  %6910 = vmatpush2.msra.mxu0 0.0
  %6911 = vmatprep.subr.mxu0 0.0
  %6912 = vmatpush2.msra.mxu0 0.0
  %6913 = vmatprep.subr.mxu0 0.0
  %6914 = vmatpush2.msra.mxu0 0.0
  %6915 = vmatprep.subr.mxu0 0.0
  %6916 = vmatpush2.msra.mxu0 0.0
  %6917 = vmatprep.subr.mxu0 0.0
  %6918 = vmatpush2.msra.mxu0 0.0
  %6919 = vmatprep.subr.mxu0 0.0
  %6920 = vmatpush2.msra.mxu0 0.0
  %6921 = vmatprep.subr.mxu0 0.0
  %6922 = vmatpush2.msra.mxu0 0.0
  %6923 = vmatprep.subr.mxu0 0.0
  %6924 = vmatpush2.msra.mxu0 0.0
  %6925 = vmatprep.subr.mxu0 0.0
  %6926 = vmatpush2.msra.mxu0 0.0
  %6927 = vmatprep.subr.mxu0 0.0
  %6928 = vmatpush2.msra.mxu0 0.0
  %6929 = vmatprep.mubr.f32.mxu0 0.0
  %6930 = vmatmul.mubr.f32.gmra.mxu0 %v6860
  %v6931 = vpop.f32.mrf.mxu0
  %v6932 = vadd.f32 %v5223, %v6931
  %v6933 = vpop.f32.mrf.mxu0
  %6934 = vmatprep.mubr.f32.mxu0 0.0
  %6935 = vmatmul.mubr.f32.gmra.mxu0 %v6863
  %v6936 = vpop.f32.mrf.mxu0
  %v6937 = vadd.f32 %v5223, %v6936
  %v6938 = vpop.f32.mrf.mxu0
  %6939 = vdwg.mxu0
  %v6940 = vmax.f32 %v6932, 0.0
  %v6941 = vmax.f32 %v6937, 0.0
  %v6943 = vsel %vm537, %v6940, 0
  %v6946 = vsel %vm537, %v6941, 0
  %6948 = vmatprep.subr.mxu0 0.0
  %6949 = vmatpush1.msra.mxu0 0.0
  %6950 = vmatprep.subr.mxu0 0.0
  %6951 = vmatpush1.msra.mxu0 0.0
  %6952 = vmatprep.subr.mxu0 0.0
  %6953 = vmatpush1.msra.mxu0 0.0
  %6954 = vmatprep.subr.mxu0 0.0
  %6955 = vmatpush1.msra.mxu0 0.0
  %6956 = vmatprep.subr.mxu0 0.0
  %6957 = vmatpush1.msra.mxu0 0.0
  %6958 = vmatprep.subr.mxu0 0.0
  %6959 = vmatpush1.msra.mxu0 0.0
  %6960 = vmatprep.subr.mxu0 0.0
  %6961 = vmatpush1.msra.mxu0 0.0
  %6962 = vmatprep.subr.mxu0 0.0
  %6963 = vmatpush1.msra.mxu0 0.0
  %6964 = vmatprep.subr.mxu0 0.0
  %6965 = vmatpush1.msra.mxu0 0.0
  %6966 = vmatprep.subr.mxu0 0.0
  %6967 = vmatpush1.msra.mxu0 0.0
  %6968 = vmatprep.subr.mxu0 0.0
  %6969 = vmatpush1.msra.mxu0 0.0
  %6970 = vmatprep.subr.mxu0 0.0
  %6971 = vmatpush1.msra.mxu0 0.0
  %6972 = vmatprep.subr.mxu0 0.0
  %6973 = vmatpush1.msra.mxu0 %v5310
  %6974 = vmatprep.subr.mxu0 0.0
  %6975 = vmatpush1.msra.mxu0 %v5309
  %6976 = vmatprep.subr.mxu0 0.0
  %6977 = vmatpush1.msra.mxu0 %v5308
  %6978 = vmatprep.subr.mxu0 0.0
  %6979 = vmatpush1.msra.mxu0 %v5307
  %6980 = vmatprep.subr.mxu0 0.0
  %6981 = vmatpush2.msra.mxu0 0.0
  %6982 = vmatprep.subr.mxu0 0.0
  %6983 = vmatpush2.msra.mxu0 0.0
  %6984 = vmatprep.subr.mxu0 0.0
  %6985 = vmatpush2.msra.mxu0 0.0
  %6986 = vmatprep.subr.mxu0 0.0
  %6987 = vmatpush2.msra.mxu0 0.0
  %6988 = vmatprep.subr.mxu0 0.0
  %6989 = vmatpush2.msra.mxu0 0.0
  %6990 = vmatprep.subr.mxu0 0.0
  %6991 = vmatpush2.msra.mxu0 0.0
  %6992 = vmatprep.subr.mxu0 0.0
  %6993 = vmatpush2.msra.mxu0 0.0
  %6994 = vmatprep.subr.mxu0 0.0
  %6995 = vmatpush2.msra.mxu0 0.0
  %6996 = vmatprep.subr.mxu0 0.0
  %6997 = vmatpush2.msra.mxu0 0.0
  %6998 = vmatprep.subr.mxu0 0.0
  %6999 = vmatpush2.msra.mxu0 0.0
  %7000 = vmatprep.subr.mxu0 0.0
  %7001 = vmatpush2.msra.mxu0 0.0
  %7002 = vmatprep.subr.mxu0 0.0
  %7003 = vmatpush2.msra.mxu0 0.0
  %7004 = vmatprep.subr.mxu0 0.0
  %7005 = vmatpush2.msra.mxu0 0.0
  %7006 = vmatprep.subr.mxu0 0.0
  %7007 = vmatpush2.msra.mxu0 0.0
  %7008 = vmatprep.subr.mxu0 0.0
  %7009 = vmatpush2.msra.mxu0 0.0
  %7010 = vmatprep.subr.mxu0 0.0
  %7011 = vmatpush2.msra.mxu0 0.0
  %7012 = vmatprep.mubr.f32.mxu0 0.0
  %7013 = vmatmul.mubr.f32.gmra.mxu0 %v6943
  %v7014 = vpop.f32.mrf.mxu0
  %v7015 = vadd.f32 %v5316, %v7014
  %v7016 = vpop.f32.mrf.mxu0
  %7017 = vmatprep.mubr.f32.mxu0 0.0
  %7018 = vmatmul.mubr.f32.gmra.mxu0 %v6946
  %v7019 = vpop.f32.mrf.mxu0
  %v7020 = vadd.f32 %v5316, %v7019
  %v7021 = vpop.f32.mrf.mxu0
  %7022 = vdwg.mxu0
  %v7023 = vmax.f32 %v6773, 0.0
  %v7024 = vmax.f32 %v6775, 0.0
  %v7025 = vmin.f32 %v7023, 1.0
  %v7026 = vmin.f32 %v7024, 1.0
  %v7027 = vmax.f32 %v7025, 0.001
  %v7028 = vmax.f32 %v7026, 0.001
  %v7029 = vsub.f32 1.0, %v7025
  %v7030 = vsub.f32 1.0, %v7026
  %v7031 = vmax.f32 %v7029, 0.001
  %v7032 = vmax.f32 %v7030, 0.001
  %v7033 = vrcp.pop %v7031
  %v7034 = vmul.f32 %v7027, %v7033
  %v7035 = vrcp.pop %v7032
  %v7036 = vmul.f32 %v7028, %v7035
  %v7037 = vlog2.pop %v7034
  %v7038 = vmul.f32 %v7037, 0.6931472
  %v7039 = vlog2.pop %v7036
  %v7040 = vmul.f32 %v7039, 0.6931472
  %v7041 = vadd.f32 %v7038, %v7015
  %v7042 = vadd.f32 %v7040, %v7020
  %v7043 = vxor.u32 %v7041, 2147483648
  %v7044 = vxor.u32 %v7042, 2147483648
  %v7045 = vmul.f32 %v7043, 1.442695
  %v7046 = vpow.pop %v7045
  %v7047 = vmul.f32 %v7044, 1.442695
  %v7048 = vpow.pop %v7047
  %v7049 = vadd.f32 %v7046, 1.0
  %v7050 = vadd.f32 %v7048, 1.0
  %v7051 = vrcp.pop %v7049
  %v7052 = vmul.f32 1.0, %v7051
  %v7053 = vrcp.pop %v7050
  %v7054 = vmul.f32 1.0, %v7053
  %v7055 = vld [vmem:[%s15] sm:$0xff]
  %v7056 = vld [vmem:[%s15 + $0x8] sm:$0xff]
  %v7057 = vld [vmem:[%s15 + $0x10] sm:$0xff]
  %v7058 = vld [vmem:[%s15 + $0x18] sm:$0xff]
  %v7059 = vld [vmem:[%s16] sm:$0x1]
  %v7061 = vlaneseq
  %v7062 = vshrl.u32 %v7061, 7
  %v7063 = vsub.s32 0, %v7062
  %v7064 = vrot.slane %v7059, %v7063
  %7066 = vmatprep.subr.mxu0 0.0
  %7067 = vmatpush1.msra.mxu0 0.0
  %7068 = vmatprep.subr.mxu0 0.0
  %7069 = vmatpush1.msra.mxu0 0.0
  %7070 = vmatprep.subr.mxu0 0.0
  %7071 = vmatpush1.msra.mxu0 0.0
  %7072 = vmatprep.subr.mxu0 0.0
  %7073 = vmatpush1.msra.mxu0 0.0
  %7074 = vmatprep.subr.mxu0 0.0
  %7075 = vmatpush1.msra.mxu0 0.0
  %7076 = vmatprep.subr.mxu0 0.0
  %7077 = vmatpush1.msra.mxu0 0.0
  %7078 = vmatprep.subr.mxu0 0.0
  %7079 = vmatpush1.msra.mxu0 0.0
  %7080 = vmatprep.subr.mxu0 0.0
  %7081 = vmatpush1.msra.mxu0 0.0
  %7082 = vmatprep.subr.mxu0 0.0
  %7083 = vmatpush1.msra.mxu0 0.0
  %7084 = vmatprep.subr.mxu0 0.0
  %7085 = vmatpush1.msra.mxu0 0.0
  %7086 = vmatprep.subr.mxu0 0.0
  %7087 = vmatpush1.msra.mxu0 0.0
  %7088 = vmatprep.subr.mxu0 0.0
  %7089 = vmatpush1.msra.mxu0 0.0
  %7090 = vmatprep.subr.mxu0 0.0
  %7091 = vmatpush1.msra.mxu0 %v7058
  %7092 = vmatprep.subr.mxu0 0.0
  %7093 = vmatpush1.msra.mxu0 %v7057
  %7094 = vmatprep.subr.mxu0 0.0
  %7095 = vmatpush1.msra.mxu0 %v7056
  %7096 = vmatprep.subr.mxu0 0.0
  %7097 = vmatpush1.msra.mxu0 %v7055
  %7098 = vmatprep.subr.mxu0 0.0
  %7099 = vmatpush2.msra.mxu0 0.0
  %7100 = vmatprep.subr.mxu0 0.0
  %7101 = vmatpush2.msra.mxu0 0.0
  %7102 = vmatprep.subr.mxu0 0.0
  %7103 = vmatpush2.msra.mxu0 0.0
  %7104 = vmatprep.subr.mxu0 0.0
  %7105 = vmatpush2.msra.mxu0 0.0
  %7106 = vmatprep.subr.mxu0 0.0
  %7107 = vmatpush2.msra.mxu0 0.0
  %7108 = vmatprep.subr.mxu0 0.0
  %7109 = vmatpush2.msra.mxu0 0.0
  %7110 = vmatprep.subr.mxu0 0.0
  %7111 = vmatpush2.msra.mxu0 0.0
  %7112 = vmatprep.subr.mxu0 0.0
  %7113 = vmatpush2.msra.mxu0 0.0
  %7114 = vmatprep.subr.mxu0 0.0
  %7115 = vmatpush2.msra.mxu0 0.0
  %7116 = vmatprep.subr.mxu0 0.0
  %7117 = vmatpush2.msra.mxu0 0.0
  %7118 = vmatprep.subr.mxu0 0.0
  %7119 = vmatpush2.msra.mxu0 0.0
  %7120 = vmatprep.subr.mxu0 0.0
  %7121 = vmatpush2.msra.mxu0 0.0
  %7122 = vmatprep.subr.mxu0 0.0
  %7123 = vmatpush2.msra.mxu0 0.0
  %7124 = vmatprep.subr.mxu0 0.0
  %7125 = vmatpush2.msra.mxu0 0.0
  %7126 = vmatprep.subr.mxu0 0.0
  %7127 = vmatpush2.msra.mxu0 0.0
  %7128 = vmatprep.subr.mxu0 0.0
  %7129 = vmatpush2.msra.mxu0 0.0
  %7130 = vmatprep.mubr.f32.mxu0 0.0
  %7131 = vmatmul.mubr.f32.gmra.mxu0 %v6777
  %v7132 = vpop.f32.mrf.mxu0
  %v7133 = vadd.f32 %v7064, %v7132
  %v7134 = vpop.f32.mrf.mxu0
  %7135 = vmatprep.mubr.f32.mxu0 0.0
  %7136 = vmatmul.mubr.f32.gmra.mxu0 %v6780
  %v7137 = vpop.f32.mrf.mxu0
  %v7138 = vadd.f32 %v7064, %v7137
  %v7139 = vpop.f32.mrf.mxu0
  %7140 = vdwg.mxu0
  %7143 = vrot.lane.b32.xlu0 %v7052, 2
  %v7144 = vpop.permute.xlu0 %7143
  %7145 = vrot.lane.b32.xlu0 %v7054, 2
  %v7146 = vpop.permute.xlu0 %7145
  %vm7149 = vcmask 15360
  %v7150 = vsel %vm7149, %v7133, %v7144
  %v7151 = vsel %vm7149, %v7138, %v7146
  %vm7152 = vcmask 48128
  %v7153 = vsel %vm7152, %v7150, 0.0
  %v7154 = vsel %vm7152, %v7151, 0.0
  %vm7155 = vcmask 64512
  %7156 = vst.msk [vmem:[%s19] sm:$0xff] %vm7155, %v7153
  %7157 = vst.msk [vmem:[%s19 + $0x8] sm:$0xff] %vm7155, %v7154
  // Predicated region
  $region78: #{co_detr_forward.1} parent=0 // pred_check
    _
  $region79: #{co_detr_forward.1} parent=0 // pred_check_branch
    %7159 = sbr.rel (0) target = $region81
  $region80: #{co_detr_forward.1} parent=0 // pred_region
    _
  $region81: #{co_detr_forward.1} parent=0 // pred_fallthru
    _
  // Predicated region
  $region82: #{co_detr_forward.1} parent=0 // pred_check
    _
  $region83: #{co_detr_forward.1} parent=0 // pred_check_branch
    %7161 = sbr.rel (0) target = $region85
  $region84: #{co_detr_forward.1} parent=0 // pred_region
    _
  $region85: #{co_detr_forward.1} parent=0 // pred_fallthru
    _

</llo_original>
